<compile_context>
chip_gen: v6e
topology: v6e:2x2x1
jax: 0.10.0
libtpu: 0.0.40
codegen_flags: <defaults>
</compile_context>

<pallas_src>
import functools
import math

import jax
import jax.numpy as jnp
from jax import lax
from jax.experimental import pallas as pl
from jax.experimental.pallas import tpu as pltpu

EPS = 1e-6
# 48 MiB scoped VMEM: leaves headroom on v7x (64 MiB physical per TC), safe on v5e/v6e (128 MiB).
VMEM_LIMIT = 48 * 1024 * 1024


def _pick_tile(dim, pref, align):
    """Largest multiple of `align` that divides `dim` and is <= `pref`; else the full dim."""
    if dim <= pref or dim % align != 0:
        return dim
    t = (pref // align) * align
    while t >= align:
        if dim % t == 0:
            return t
        t -= align
    return dim


def _layernorm(x, gamma, beta):
    """Annotated-Transformer LayerNorm: unbiased (N-1) std, divide by (std + eps). f32 math."""
    d = x.shape[-1]
    mean = jnp.mean(x, axis=-1, keepdims=True)
    xc = x - mean
    var = jnp.sum(xc * xc, axis=-1, keepdims=True) * (1.0 / (d - 1))
    std = jnp.sqrt(var)
    return gamma * xc * pl.reciprocal(std + EPS, approx=True) + beta


# ----------------------- fused [LN ->] matmul [-> +resid] kernel -----------------------
def _linear_kernel(*refs, has_ln, has_resid, relu):
    it = iter(refs)
    x_ref = next(it)
    w_ref = next(it)
    b_ref = next(it)
    g_ref = next(it) if has_ln else None
    bt_ref = next(it) if has_ln else None
    r_ref = next(it) if has_resid else None
    o_ref = next(it)

    x = x_ref[...]
    if has_ln:
        x = _layernorm(x, g_ref[...], bt_ref[...])
    acc = jnp.dot(x.astype(jnp.bfloat16), w_ref[...].astype(jnp.bfloat16),
                  preferred_element_type=jnp.float32)
    acc = acc + b_ref[...]
    if relu:
        acc = jnp.maximum(acc, 0.0)
    if has_resid:
        acc = acc + r_ref[...]
    o_ref[...] = acc.astype(o_ref.dtype)


def fused_linear(x2d, w, b, *, ln=None, resid=None, relu=False, tm_pref=256, tn_pref=512):
    """y = [resid +] [ReLU](LN?(x2d) @ w + b), tiled over (rows, out-features)."""
    M, K = x2d.shape
    N = w.shape[1]
    tm = _pick_tile(M, tm_pref, 8)
    tn = _pick_tile(N, tn_pref, 128)

    in_specs = [
        pl.BlockSpec((tm, K), lambda i, j: (i, 0)),
        pl.BlockSpec((K, tn), lambda i, j: (0, j)),
        pl.BlockSpec((1, tn), lambda i, j: (0, j)),
    ]
    args = [x2d, w, b.reshape(1, N)]
    if ln is not None:
        gamma, beta = ln
        in_specs += [pl.BlockSpec((1, K), lambda i, j: (0, 0)),
                     pl.BlockSpec((1, K), lambda i, j: (0, 0))]
        args += [gamma.reshape(1, K), beta.reshape(1, K)]
    if resid is not None:
        in_specs.append(pl.BlockSpec((tm, tn), lambda i, j: (i, j)))
        args.append(resid)

    kernel = functools.partial(_linear_kernel, has_ln=ln is not None,
                               has_resid=resid is not None, relu=relu)
    return pl.pallas_call(
        kernel,
        out_shape=jax.ShapeDtypeStruct((M, N), jnp.float32),
        grid=(M // tm, N // tn),
        in_specs=in_specs,
        out_specs=pl.BlockSpec((tm, tn), lambda i, j: (i, j)),
        compiler_params=pltpu.CompilerParams(
            dimension_semantics=("parallel", "parallel"),
            vmem_limit_bytes=VMEM_LIMIT),
    )(*args)


# -------------------- fully fused FFN sublayer: x + W2(relu(W1(LN(x)))) --------------------
def _ffn_kernel(x_ref, g_ref, bt_ref, w1_ref, b1_ref, w2_ref, b2_ref, o_ref):
    x = x_ref[...]
    xn = _layernorm(x, g_ref[...], bt_ref[...])
    hid = jnp.dot(xn.astype(jnp.bfloat16), w1_ref[...].astype(jnp.bfloat16),
                  preferred_element_type=jnp.float32) + b1_ref[...]
    hid = jnp.maximum(hid, 0.0)
    y = jnp.dot(hid.astype(jnp.bfloat16), w2_ref[...].astype(jnp.bfloat16),
                preferred_element_type=jnp.float32) + b2_ref[...]
    o_ref[...] = (x + y).astype(o_ref.dtype)   # residual fused (residual == LN input here)


def ffn_sublayer(x2d, gamma, beta, ffn, *, tm_pref=256):
    M, D = x2d.shape
    Dff = ffn["w1"].shape[1]
    tm = _pick_tile(M, tm_pref, 8)
    return pl.pallas_call(
        _ffn_kernel,
        out_shape=jax.ShapeDtypeStruct((M, D), jnp.float32),
        grid=(M // tm,),
        in_specs=[
            pl.BlockSpec((tm, D), lambda i: (i, 0)),
            pl.BlockSpec((1, D), lambda i: (0, 0)),
            pl.BlockSpec((1, D), lambda i: (0, 0)),
            pl.BlockSpec((D, Dff), lambda i: (0, 0)),
            pl.BlockSpec((1, Dff), lambda i: (0, 0)),
            pl.BlockSpec((Dff, D), lambda i: (0, 0)),
            pl.BlockSpec((1, D), lambda i: (0, 0)),
        ],
        out_specs=pl.BlockSpec((tm, D), lambda i: (i, 0)),
        compiler_params=pltpu.CompilerParams(
            dimension_semantics=("parallel",),
            vmem_limit_bytes=VMEM_LIMIT),
    )(x2d, gamma.reshape(1, D), beta.reshape(1, D),
      ffn["w1"], ffn["b1"].reshape(1, Dff), ffn["w2"], ffn["b2"].reshape(1, D))


# ------------------------------- multi-head attention kernels -------------------------------
def _attn_core(q, k, v, h, causal):
    """Scaled dot-product attention for one batch element, all heads in one grid step."""
    Lq, D = q.shape
    Lk = k.shape[0]
    dk = D // h
    scale = 1.0 / math.sqrt(dk)
    qb = q.astype(jnp.bfloat16)
    kb = k.astype(jnp.bfloat16)
    vb = v.astype(jnp.bfloat16)
    if causal:
        row = lax.broadcasted_iota(jnp.int32, (Lq, Lk), 0)
        col = lax.broadcasted_iota(jnp.int32, (Lq, Lk), 1)
        keep = row >= col
    heads = []
    for hd in range(h):                       # static unroll over heads
        sl = slice(hd * dk, (hd + 1) * dk)
        s = lax.dot_general(qb[:, sl], kb[:, sl], (((1,), (1,)), ((), ())),
                            preferred_element_type=jnp.float32) * scale
        if causal:
            s = jnp.where(keep, s, -1e9)      # scores stay in f32, so -1e9 is safe
        s = s - jnp.max(s, axis=-1, keepdims=True)
        p = jnp.exp(s)
        p = p * pl.reciprocal(jnp.sum(p, axis=-1, keepdims=True), approx=True)
        heads.append(jnp.dot(p.astype(jnp.bfloat16), vb[:, sl],
                             preferred_element_type=jnp.float32))
    return jnp.concatenate(heads, axis=-1)    # (Lq, D): one lane-dense store


def _self_attn_kernel(qkv_ref, o_ref, *, h, d, causal):
    q = qkv_ref[0, :, 0:d]
    k = qkv_ref[0, :, d:2 * d]
    v = qkv_ref[0, :, 2 * d:3 * d]
    o_ref[0] = _attn_core(q, k, v, h, causal)


def _cross_attn_kernel(q_ref, kv_ref, o_ref, *, h, d):
    q = q_ref[0]
    k = kv_ref[0, :, 0:d]
    v = kv_ref[0, :, d:2 * d]
    o_ref[0] = _attn_core(q, k, v, h, False)


# TODO(synk): for long Lk, switch to a flash-style KV-tiled online softmax (VMEM here is O(Lq*Lk)).
def self_attention(qkv, h, *, causal):
    B, Lq, threeD = qkv.shape
    D = threeD // 3
    return pl.pallas_call(
        functools.partial(_self_attn_kernel, h=h, d=D, causal=causal),
        out_shape=jax.ShapeDtypeStruct((B, Lq, D), jnp.float32),
        grid=(B,),
        in_specs=[pl.BlockSpec((1, Lq, threeD), lambda b: (b, 0, 0))],
        out_specs=pl.BlockSpec((1, Lq, D), lambda b: (b, 0, 0)),
        compiler_params=pltpu.CompilerParams(
            dimension_semantics=("parallel",), vmem_limit_bytes=VMEM_LIMIT),
    )(qkv)


def cross_attention(q, kv, h):
    B, Lq, D = q.shape
    Lk = kv.shape[1]
    return pl.pallas_call(
        functools.partial(_cross_attn_kernel, h=h, d=D),
        out_shape=jax.ShapeDtypeStruct((B, Lq, D), jnp.float32),
        grid=(B,),
        in_specs=[pl.BlockSpec((1, Lq, D), lambda b: (b, 0, 0)),
                  pl.BlockSpec((1, Lk, 2 * D), lambda b: (b, 0, 0))],
        out_specs=pl.BlockSpec((1, Lq, D), lambda b: (b, 0, 0)),
        compiler_params=pltpu.CompilerParams(
            dimension_semantics=("parallel",), vmem_limit_bytes=VMEM_LIMIT),
    )(q, kv)


# --------------------------------------- DecoderLayer ---------------------------------------
def decoder_layer(x, memory, params, h):
    """x + SelfAttn(LN0(x), causal); x + SrcAttn(LN1(x), memory); x + FFN(LN2(x)).

    tgt_mask: causal subsequent-mask, generated in-kernel via iota (no mask DMA).
    src_mask: all-ones in this config -> no masking applied.
    # TODO(synk): arbitrary runtime (B,1,Lq,Lk) boolean masks would need an extra mask operand.
    """
    B, L, D = x.shape
    Ls = memory.shape[1]
    p = params
    x2 = x.reshape(B * L, D)
    m2 = memory.reshape(B * Ls, D)

    # sublayer 0: self-attention (pre-LN fused into the fused QKV projection)
    qkv = fused_linear(x2, p["self_attn"]["w_qkv"], p["self_attn"]["b_qkv"],
                       ln=(p["ln0_g"], p["ln0_b"]))
    a = self_attention(qkv.reshape(B, L, 3 * D), h, causal=True)
    x2 = fused_linear(a.reshape(B * L, D), p["self_attn"]["wo"], p["self_attn"]["bo"],
                      resid=x2)                                    # residual fused

    # sublayer 1: source attention over memory (K/V projected from raw memory, no LN)
    q = fused_linear(x2, p["src_attn"]["wq"], p["src_attn"]["bq"],
                     ln=(p["ln1_g"], p["ln1_b"]))
    kv = fused_linear(m2, p["src_attn"]["w_kv"], p["src_attn"]["b_kv"])
    a = cross_attention(q.reshape(B, L, D), kv.reshape(B, Ls, 2 * D), h)
    x2 = fused_linear(a.reshape(B * L, D), p["src_attn"]["wo"], p["src_attn"]["bo"],
                      resid=x2)                                    # residual fused

    # sublayer 2: feed-forward (LN + W1 + ReLU + W2 + residual, fully fused)
    x2 = ffn_sublayer(x2, p["ln2_g"], p["ln2_b"], p["ffn"])
    return x2.reshape(B, L, D)


# ----------------------------------------- params -------------------------------------------
def _attn_params(key, D):
    kq, kk, kv, ko, kb = jax.random.split(key, 5)
    wq = jax.random.normal(kq, (D, D), jnp.float32) * 0.05
    wk = jax.random.normal(kk, (D, D), jnp.float32) * 0.05
    wv = jax.random.normal(kv, (D, D), jnp.float32) * 0.05
    wo = jax.random.normal(ko, (D, D), jnp.float32) * 0.05
    bq, bk, bv, bo = [jax.random.normal(k, (D,), jnp.float32) * 0.01
                      for k in jax.random.split(kb, 4)]
    return {
        # fused layouts so each projection is a single MXU-friendly matmul (bf16 weights)
        "w_qkv": jnp.concatenate([wq, wk, wv], axis=1).astype(jnp.bfloat16),
        "b_qkv": jnp.concatenate([bq, bk, bv], axis=0),
        "wq": wq.astype(jnp.bfloat16), "bq": bq,
        "w_kv": jnp.concatenate([wk, wv], axis=1).astype(jnp.bfloat16),
        "b_kv": jnp.concatenate([bk, bv], axis=0),
        "wo": wo.astype(jnp.bfloat16), "bo": bo,
    }


def make_params(key, D, Dff):
    k_self, k_src, k1, k2, kb1, kb2 = jax.random.split(key, 6)
    return {
        "ln0_g": jnp.ones((D,), jnp.float32), "ln0_b": jnp.zeros((D,), jnp.float32),
        "ln1_g": jnp.ones((D,), jnp.float32), "ln1_b": jnp.zeros((D,), jnp.float32),
        "ln2_g": jnp.ones((D,), jnp.float32), "ln2_b": jnp.zeros((D,), jnp.float32),
        "self_attn": _attn_params(k_self, D),
        "src_attn": _attn_params(k_src, D),
        "ffn": {
            "w1": (jax.random.normal(k1, (D, Dff), jnp.float32) * 0.05).astype(jnp.bfloat16),
            "b1": jax.random.normal(kb1, (Dff,), jnp.float32) * 0.01,
            "w2": (jax.random.normal(k2, (Dff, D), jnp.float32) * 0.05).astype(jnp.bfloat16),
            "b2": jax.random.normal(kb2, (D,), jnp.float32) * 0.01,
        },
    }


if __name__ == "__main__":
    B, L, Lsrc, D, H, Dff = 2, 32, 32, 256, 8, 1024

    key = jax.random.PRNGKey(0)
    kx, km, kp = jax.random.split(key, 3)
    x = jax.random.normal(kx, (B, L, D), jnp.float32)
    memory = jax.random.normal(km, (B, Lsrc, D), jnp.float32)
    params = make_params(kp, D, Dff)

    fwd = jax.jit(functools.partial(decoder_layer, h=H))
    out = jax.block_until_ready(fwd(x, memory, params))
    assert out.shape == (B, L, D)
    assert bool(jnp.all(jnp.isfinite(out)))
    print("KERNEL_OK")
</pallas_src>

<mosaic_0001>
module attributes {stable_mosaic.version = 11 : i64} {
  func.func @_linear_kernel(%arg0: i32, %arg1: i32, %arg2: memref<64x256xf32, #tpu.memory_space<vmem>>, %arg3: memref<256x384xbf16, #tpu.memory_space<vmem>>, %arg4: memref<1x384xf32, #tpu.memory_space<vmem>>, %arg5: memref<1x256xf32, #tpu.memory_space<vmem>>, %arg6: memref<1x256xf32, #tpu.memory_space<vmem>>, %arg7: memref<64x384xf32, #tpu.memory_space<vmem>>) attributes {dimension_semantics = [#tpu.dimension_semantics<parallel>, #tpu.dimension_semantics<parallel>], iteration_bounds = array<i64: 1, 2>, scalar_prefetch = 0 : i64, scratch_operands = 0 : i64, tpu.core_type = #tpu.core_type<tc>, window_params = [{transform_indices = @transform_0, window_bounds = array<i64: 64, 256>}, {transform_indices = @transform_1, window_bounds = array<i64: 256, 384>}, {transform_indices = @transform_2, window_bounds = array<i64: 1, 384>}, {pipeline_mode = #tpu.pipeline_mode<synchronous>, transform_indices = @transform_3, window_bounds = array<i64: 1, 256>}, {pipeline_mode = #tpu.pipeline_mode<synchronous>, transform_indices = @transform_4, window_bounds = array<i64: 1, 256>}, {transform_indices = @transform_5, window_bounds = array<i64: 64, 384>}]} {
    %c0 = arith.constant 0 : index
    %c0_0 = arith.constant 0 : index
    %0 = vector.load %arg2[%c0, %c0_0] : memref<64x256xf32, #tpu.memory_space<vmem>>, vector<64x256xf32>
    %c0_1 = arith.constant 0 : index
    %c0_2 = arith.constant 0 : index
    %1 = vector.load %arg5[%c0_1, %c0_2] : memref<1x256xf32, #tpu.memory_space<vmem>>, vector<1x256xf32>
    %c0_3 = arith.constant 0 : index
    %c0_4 = arith.constant 0 : index
    %2 = vector.load %arg6[%c0_3, %c0_4] : memref<1x256xf32, #tpu.memory_space<vmem>>, vector<1x256xf32>
    %cst = arith.constant dense<0.000000e+00> : vector<64xf32>
    %3 = vector.multi_reduction <add>, %0, %cst [1] : vector<64x256xf32> to vector<64xf32>
    %4 = vector.shape_cast %3 : vector<64xf32> to vector<64x1xf32>
    %cst_5 = arith.constant 2.560000e+02 : f32
    %5 = vector.broadcast %cst_5 : f32 to vector<64x1xf32>
    %6 = arith.divf %4, %5 : vector<64x1xf32>
    %7 = vector.broadcast %6 : vector<64x1xf32> to vector<64x256xf32>
    %8 = arith.subf %0, %7 : vector<64x256xf32>
    %9 = arith.mulf %8, %8 : vector<64x256xf32>
    %cst_6 = arith.constant dense<0.000000e+00> : vector<64xf32>
    %10 = vector.multi_reduction <add>, %9, %cst_6 [1] : vector<64x256xf32> to vector<64xf32>
    %11 = vector.shape_cast %10 : vector<64xf32> to vector<64x1xf32>
    %cst_7 = arith.constant 0.00392156886 : f32
    %12 = vector.broadcast %cst_7 : f32 to vector<64x1xf32>
    %13 = arith.mulf %11, %12 : vector<64x1xf32>
    %14 = math.sqrt %13 : vector<64x1xf32>
    %15 = vector.broadcast %1 : vector<1x256xf32> to vector<64x256xf32>
    %16 = arith.mulf %15, %8 : vector<64x256xf32>
    %cst_8 = arith.constant 9.99999997E-7 : f32
    %17 = vector.broadcast %cst_8 : f32 to vector<64x1xf32>
    %18 = arith.addf %14, %17 : vector<64x1xf32>
    %19 = tpu.reciprocal %18 {approx = true} : vector<64x1xf32> -> vector<64x1xf32>
    %20 = vector.broadcast %19 : vector<64x1xf32> to vector<64x256xf32>
    %21 = arith.mulf %16, %20 : vector<64x256xf32>
    %22 = vector.broadcast %2 : vector<1x256xf32> to vector<64x256xf32>
    %23 = arith.addf %21, %22 : vector<64x256xf32>
    %24 = arith.truncf %23 : vector<64x256xf32> to vector<64x256xbf16>
    %c0_9 = arith.constant 0 : index
    %c0_10 = arith.constant 0 : index
    %25 = vector.load %arg3[%c0_9, %c0_10] : memref<256x384xbf16, #tpu.memory_space<vmem>>, vector<256x384xbf16>
    %cst_11 = arith.constant dense<0.000000e+00> : vector<64x384xf32>
    %26 = tpu.matmul %24, %25, %cst_11 {dimension_numbers = #tpu.dot_dimension_numbers<[1], [0], [0], [1], [0, 0, 1, 1], [], []>} : vector<64x256xbf16>, vector<256x384xbf16>, vector<64x384xf32> -> vector<64x384xf32>
    %c0_12 = arith.constant 0 : index
    %c0_13 = arith.constant 0 : index
    %27 = vector.load %arg4[%c0_12, %c0_13] : memref<1x384xf32, #tpu.memory_space<vmem>>, vector<1x384xf32>
    %28 = vector.broadcast %27 : vector<1x384xf32> to vector<64x384xf32>
    %29 = arith.addf %26, %28 : vector<64x384xf32>
    %c0_14 = arith.constant 0 : index
    %c0_15 = arith.constant 0 : index
    %30 = vector.load %arg7[%c0_14, %c0_15] : memref<64x384xf32, #tpu.memory_space<vmem>>, vector<64x384xf32>
    tpu.vector_store %arg7[%c0_14, %c0_15], %29 {strides = array<i32>} : memref<64x384xf32, #tpu.memory_space<vmem>>, vector<64x384xf32>,
    return
  }
  func.func @transform_0(%arg0: i32, %arg1: i32) -> (i32, i32) {
    %c0_i32 = arith.constant 0 : i32
    %c0_i32_0 = arith.constant 0 : i32
    return %arg0, %c0_i32 : i32, i32
  }
  func.func @transform_1(%arg0: i32, %arg1: i32) -> (i32, i32) {
    %c0_i32 = arith.constant 0 : i32
    %c0_i32_0 = arith.constant 0 : i32
    return %c0_i32, %arg1 : i32, i32
  }
  func.func @transform_2(%arg0: i32, %arg1: i32) -> (i32, i32) {
    %c0_i32 = arith.constant 0 : i32
    %c0_i32_0 = arith.constant 0 : i32
    return %c0_i32, %arg1 : i32, i32
  }
  func.func @transform_3(%arg0: i32, %arg1: i32) -> (i32, i32) {
    %c0_i32 = arith.constant 0 : i32
    %c0_i32_0 = arith.constant 0 : i32
    %c0_i32_1 = arith.constant 0 : i32
    return %c0_i32, %c0_i32_0 : i32, i32
  }
  func.func @transform_4(%arg0: i32, %arg1: i32) -> (i32, i32) {
    %c0_i32 = arith.constant 0 : i32
    %c0_i32_0 = arith.constant 0 : i32
    %c0_i32_1 = arith.constant 0 : i32
    return %c0_i32, %c0_i32_0 : i32, i32
  }
  func.func @transform_5(%arg0: i32, %arg1: i32) -> (i32, i32) {
    %c0_i32 = arith.constant 0 : i32
    return %arg0, %arg1 : i32, i32
  }
}

module attributes {stable_mosaic.version = 11 : i64} {
  func.func @_linear_kernel(%arg0: i32, %arg1: i32, %arg2: memref<64x256xf32, #tpu.memory_space<vmem>>, %arg3: memref<256x256xbf16, #tpu.memory_space<vmem>>, %arg4: memref<1x256xf32, #tpu.memory_space<vmem>>, %arg5: memref<64x256xf32, #tpu.memory_space<vmem>>, %arg6: memref<64x256xf32, #tpu.memory_space<vmem>>) attributes {dimension_semantics = [#tpu.dimension_semantics<parallel>, #tpu.dimension_semantics<parallel>], iteration_bounds = array<i64: 1, 1>, scalar_prefetch = 0 : i64, scratch_operands = 0 : i64, tpu.core_type = #tpu.core_type<tc>, window_params = [{transform_indices = @transform_0, window_bounds = array<i64: 64, 256>}, {transform_indices = @transform_1, window_bounds = array<i64: 256, 256>}, {transform_indices = @transform_2, window_bounds = array<i64: 1, 256>}, {transform_indices = @transform_3, window_bounds = array<i64: 64, 256>}, {transform_indices = @transform_4, window_bounds = array<i64: 64, 256>}]} {
    %c0 = arith.constant 0 : index
    %c0_0 = arith.constant 0 : index
    %0 = vector.load %arg2[%c0, %c0_0] : memref<64x256xf32, #tpu.memory_space<vmem>>, vector<64x256xf32>
    %1 = arith.truncf %0 : vector<64x256xf32> to vector<64x256xbf16>
    %c0_1 = arith.constant 0 : index
    %c0_2 = arith.constant 0 : index
    %2 = vector.load %arg3[%c0_1, %c0_2] : memref<256x256xbf16, #tpu.memory_space<vmem>>, vector<256x256xbf16>
    %cst = arith.constant dense<0.000000e+00> : vector<64x256xf32>
    %3 = tpu.matmul %1, %2, %cst {dimension_numbers = #tpu.dot_dimension_numbers<[1], [0], [0], [1], [0, 0, 1, 1], [], []>} : vector<64x256xbf16>, vector<256x256xbf16>, vector<64x256xf32> -> vector<64x256xf32>
    %c0_3 = arith.constant 0 : index
    %c0_4 = arith.constant 0 : index
    %4 = vector.load %arg4[%c0_3, %c0_4] : memref<1x256xf32, #tpu.memory_space<vmem>>, vector<1x256xf32>
    %5 = vector.broadcast %4 : vector<1x256xf32> to vector<64x256xf32>
    %6 = arith.addf %3, %5 : vector<64x256xf32>
    %c0_5 = arith.constant 0 : index
    %c0_6 = arith.constant 0 : index
    %7 = vector.load %arg5[%c0_5, %c0_6] : memref<64x256xf32, #tpu.memory_space<vmem>>, vector<64x256xf32>
    %8 = arith.addf %6, %7 : vector<64x256xf32>
    %c0_7 = arith.constant 0 : index
    %c0_8 = arith.constant 0 : index
    %9 = vector.load %arg6[%c0_7, %c0_8] : memref<64x256xf32, #tpu.memory_space<vmem>>, vector<64x256xf32>
    tpu.vector_store %arg6[%c0_7, %c0_8], %8 {strides = array<i32>} : memref<64x256xf32, #tpu.memory_space<vmem>>, vector<64x256xf32>,
    return
  }
  func.func @transform_0(%arg0: i32, %arg1: i32) -> (i32, i32) {
    %c0_i32 = arith.constant 0 : i32
    %c0_i32_0 = arith.constant 0 : i32
    return %arg0, %c0_i32 : i32, i32
  }
  func.func @transform_1(%arg0: i32, %arg1: i32) -> (i32, i32) {
    %c0_i32 = arith.constant 0 : i32
    %c0_i32_0 = arith.constant 0 : i32
    return %c0_i32, %arg1 : i32, i32
  }
  func.func @transform_2(%arg0: i32, %arg1: i32) -> (i32, i32) {
    %c0_i32 = arith.constant 0 : i32
    %c0_i32_0 = arith.constant 0 : i32
    return %c0_i32, %arg1 : i32, i32
  }
  func.func @transform_3(%arg0: i32, %arg1: i32) -> (i32, i32) {
    %c0_i32 = arith.constant 0 : i32
    return %arg0, %arg1 : i32, i32
  }
  func.func @transform_4(%arg0: i32, %arg1: i32) -> (i32, i32) {
    %c0_i32 = arith.constant 0 : i32
    return %arg0, %arg1 : i32, i32
  }
}

module attributes {stable_mosaic.version = 11 : i64} {
  func.func @_self_attn_kernel(%arg0: i32, %arg1: memref<1x32x768xf32, #tpu.memory_space<vmem>>, %arg2: memref<1x32x256xf32, #tpu.memory_space<vmem>>) attributes {dimension_semantics = [#tpu.dimension_semantics<parallel>], iteration_bounds = array<i64: 2>, scalar_prefetch = 0 : i64, scratch_operands = 0 : i64, tpu.core_type = #tpu.core_type<tc>, window_params = [{transform_indices = @transform_0, window_bounds = array<i64: 1, 32, 768>}, {transform_indices = @transform_1, window_bounds = array<i64: 1, 32, 256>}]} {
    %c0 = arith.constant 0 : index
    %c0_0 = arith.constant 0 : index
    %c0_1 = arith.constant 0 : index
    %0 = vector.load %arg1[%c0, %c0_0, %c0_1] : memref<1x32x768xf32, #tpu.memory_space<vmem>>, vector<1x32x256xf32>
    %1 = vector.shape_cast %0 : vector<1x32x256xf32> to vector<32x256xf32>
    %c0_2 = arith.constant 0 : index
    %c0_3 = arith.constant 0 : index
    %c256 = arith.constant 256 : index
    %2 = vector.load %arg1[%c0_2, %c0_3, %c256] : memref<1x32x768xf32, #tpu.memory_space<vmem>>, vector<1x32x256xf32>
    %3 = vector.shape_cast %2 : vector<1x32x256xf32> to vector<32x256xf32>
    %c0_4 = arith.constant 0 : index
    %c0_5 = arith.constant 0 : index
    %c512 = arith.constant 512 : index
    %4 = vector.load %arg1[%c0_4, %c0_5, %c512] : memref<1x32x768xf32, #tpu.memory_space<vmem>>, vector<1x32x256xf32>
    %5 = vector.shape_cast %4 : vector<1x32x256xf32> to vector<32x256xf32>
    %6 = arith.truncf %1 : vector<32x256xf32> to vector<32x256xbf16>
    %7 = arith.truncf %3 : vector<32x256xf32> to vector<32x256xbf16>
    %8 = arith.truncf %5 : vector<32x256xf32> to vector<32x256xbf16>
    %9 = tpu.iota {dimensions = array<i32: 0>} : vector<32x32xi32>
    %10 = tpu.iota {dimensions = array<i32: 1>} : vector<32x32xi32>
    %11 = arith.cmpi sge, %9, %10 : vector<32x32xi32>
    %12 = vector.extract_strided_slice %6 {offsets = [0, 0], sizes = [32, 32], strides = [1, 1]} : vector<32x256xbf16> to vector<32x32xbf16>
    %13 = vector.extract_strided_slice %7 {offsets = [0, 0], sizes = [32, 32], strides = [1, 1]} : vector<32x256xbf16> to vector<32x32xbf16>
    %cst = arith.constant dense<0.000000e+00> : vector<32x32xf32>
    %14 = tpu.matmul %12, %13, %cst {dimension_numbers = #tpu.dot_dimension_numbers<[1], [1], [0], [0], [0, 0, 1, 0], [], []>} : vector<32x32xbf16>, vector<32x32xbf16>, vector<32x32xf32> -> vector<32x32xf32>
    %cst_6 = arith.constant 0.176776692 : f32
    %15 = vector.broadcast %cst_6 : f32 to vector<32x32xf32>
    %16 = arith.mulf %14, %15 : vector<32x32xf32>
    %cst_7 = arith.constant -1.000000e+09 : f32
    %17 = vector.broadcast %cst_7 : f32 to vector<32x32xf32>
    %18 = arith.select %11, %16, %17 : vector<32x32xi1>, vector<32x32xf32>
    %cst_8 = arith.constant dense<0xFF800000> : vector<32xf32>
    %19 = vector.multi_reduction <maximumf>, %18, %cst_8 [1] : vector<32x32xf32> to vector<32xf32>
    %20 = vector.shape_cast %19 : vector<32xf32> to vector<32x1xf32>
    %21 = vector.broadcast %20 : vector<32x1xf32> to vector<32x32xf32>
    %22 = arith.subf %18, %21 : vector<32x32xf32>
    %23 = math.exp %22 : vector<32x32xf32>
    %cst_9 = arith.constant dense<0.000000e+00> : vector<32xf32>
    %24 = vector.multi_reduction <add>, %23, %cst_9 [1] : vector<32x32xf32> to vector<32xf32>
    %25 = vector.shape_cast %24 : vector<32xf32> to vector<32x1xf32>
    %26 = tpu.reciprocal %25 {approx = true} : vector<32x1xf32> -> vector<32x1xf32>
    %27 = vector.broadcast %26 : vector<32x1xf32> to vector<32x32xf32>
    %28 = arith.mulf %23, %27 : vector<32x32xf32>
    %29 = arith.truncf %28 : vector<32x32xf32> to vector<32x32xbf16>
    %30 = vector.extract_strided_slice %8 {offsets = [0, 0], sizes = [32, 32], strides = [1, 1]} : vector<32x256xbf16> to vector<32x32xbf16>
    %cst_10 = arith.constant dense<0.000000e+00> : vector<32x32xf32>
    %31 = tpu.matmul %29, %30, %cst_10 {dimension_numbers = #tpu.dot_dimension_numbers<[1], [0], [0], [1], [0, 0, 1, 1], [], []>} : vector<32x32xbf16>, vector<32x32xbf16>, vector<32x32xf32> -> vector<32x32xf32>
    %32 = vector.extract_strided_slice %6 {offsets = [0, 32], sizes = [32, 32], strides = [1, 1]} : vector<32x256xbf16> to vector<32x32xbf16>
    %33 = vector.extract_strided_slice %7 {offsets = [0, 32], sizes = [32, 32], strides = [1, 1]} : vector<32x256xbf16> to vector<32x32xbf16>
    %cst_11 = arith.constant dense<0.000000e+00> : vector<32x32xf32>
    %34 = tpu.matmul %32, %33, %cst_11 {dimension_numbers = #tpu.dot_dimension_numbers<[1], [1], [0], [0], [0, 0, 1, 0], [], []>} : vector<32x32xbf16>, vector<32x32xbf16>, vector<32x32xf32> -> vector<32x32xf32>
    %cst_12 = arith.constant 0.176776692 : f32
    %35 = vector.broadcast %cst_12 : f32 to vector<32x32xf32>
    %36 = arith.mulf %34, %35 : vector<32x32xf32>
    %cst_13 = arith.constant -1.000000e+09 : f32
    %37 = vector.broadcast %cst_13 : f32 to vector<32x32xf32>
    %38 = arith.select %11, %36, %37 : vector<32x32xi1>, vector<32x32xf32>
    %cst_14 = arith.constant dense<0xFF800000> : vector<32xf32>
    %39 = vector.multi_reduction <maximumf>, %38, %cst_14 [1] : vector<32x32xf32> to vector<32xf32>
    %40 = vector.shape_cast %39 : vector<32xf32> to vector<32x1xf32>
    %41 = vector.broadcast %40 : vector<32x1xf32> to vector<32x32xf32>
    %42 = arith.subf %38, %41 : vector<32x32xf32>
    %43 = math.exp %42 : vector<32x32xf32>
    %cst_15 = arith.constant dense<0.000000e+00> : vector<32xf32>
    %44 = vector.multi_reduction <add>, %43, %cst_15 [1] : vector<32x32xf32> to vector<32xf32>
    %45 = vector.shape_cast %44 : vector<32xf32> to vector<32x1xf32>
    %46 = tpu.reciprocal %45 {approx = true} : vector<32x1xf32> -> vector<32x1xf32>
    %47 = vector.broadcast %46 : vector<32x1xf32> to vector<32x32xf32>
    %48 = arith.mulf %43, %47 : vector<32x32xf32>
    %49 = arith.truncf %48 : vector<32x32xf32> to vector<32x32xbf16>
    %50 = vector.extract_strided_slice %8 {offsets = [0, 32], sizes = [32, 32], strides = [1, 1]} : vector<32x256xbf16> to vector<32x32xbf16>
    %cst_16 = arith.constant dense<0.000000e+00> : vector<32x32xf32>
    %51 = tpu.matmul %49, %50, %cst_16 {dimension_numbers = #tpu.dot_dimension_numbers<[1], [0], [0], [1], [0, 0, 1, 1], [], []>} : vector<32x32xbf16>, vector<32x32xbf16>, vector<32x32xf32> -> vector<32x32xf32>
    %52 = vector.extract_strided_slice %6 {offsets = [0, 64], sizes = [32, 32], strides = [1, 1]} : vector<32x256xbf16> to vector<32x32xbf16>
    %53 = vector.extract_strided_slice %7 {offsets = [0, 64], sizes = [32, 32], strides = [1, 1]} : vector<32x256xbf16> to vector<32x32xbf16>
    %cst_17 = arith.constant dense<0.000000e+00> : vector<32x32xf32>
    %54 = tpu.matmul %52, %53, %cst_17 {dimension_numbers = #tpu.dot_dimension_numbers<[1], [1], [0], [0], [0, 0, 1, 0], [], []>} : vector<32x32xbf16>, vector<32x32xbf16>, vector<32x32xf32> -> vector<32x32xf32>
    %cst_18 = arith.constant 0.176776692 : f32
    %55 = vector.broadcast %cst_18 : f32 to vector<32x32xf32>
    %56 = arith.mulf %54, %55 : vector<32x32xf32>
    %cst_19 = arith.constant -1.000000e+09 : f32
    %57 = vector.broadcast %cst_19 : f32 to vector<32x32xf32>
    %58 = arith.select %11, %56, %57 : vector<32x32xi1>, vector<32x32xf32>
    %cst_20 = arith.constant dense<0xFF800000> : vector<32xf32>
    %59 = vector.multi_reduction <maximumf>, %58, %cst_20 [1] : vector<32x32xf32> to vector<32xf32>
    %60 = vector.shape_cast %59 : vector<32xf32> to vector<32x1xf32>
    %61 = vector.broadcast %60 : vector<32x1xf32> to vector<32x32xf32>
    %62 = arith.subf %58, %61 : vector<32x32xf32>
    %63 = math.exp %62 : vector<32x32xf32>
    %cst_21 = arith.constant dense<0.000000e+00> : vector<32xf32>
    %64 = vector.multi_reduction <add>, %63, %cst_21 [1] : vector<32x32xf32> to vector<32xf32>
    %65 = vector.shape_cast %64 : vector<32xf32> to vector<32x1xf32>
    %66 = tpu.reciprocal %65 {approx = true} : vector<32x1xf32> -> vector<32x1xf32>
    %67 = vector.broadcast %66 : vector<32x1xf32> to vector<32x32xf32>
    %68 = arith.mulf %63, %67 : vector<32x32xf32>
    %69 = arith.truncf %68 : vector<32x32xf32> to vector<32x32xbf16>
    %70 = vector.extract_strided_slice %8 {offsets = [0, 64], sizes = [32, 32], strides = [1, 1]} : vector<32x256xbf16> to vector<32x32xbf16>
    %cst_22 = arith.constant dense<0.000000e+00> : vector<32x32xf32>
    %71 = tpu.matmul %69, %70, %cst_22 {dimension_numbers = #tpu.dot_dimension_numbers<[1], [0], [0], [1], [0, 0, 1, 1], [], []>} : vector<32x32xbf16>, vector<32x32xbf16>, vector<32x32xf32> -> vector<32x32xf32>
    %72 = vector.extract_strided_slice %6 {offsets = [0, 96], sizes = [32, 32], strides = [1, 1]} : vector<32x256xbf16> to vector<32x32xbf16>
    %73 = vector.extract_strided_slice %7 {offsets = [0, 96], sizes = [32, 32], strides = [1, 1]} : vector<32x256xbf16> to vector<32x32xbf16>
    %cst_23 = arith.constant dense<0.000000e+00> : vector<32x32xf32>
    %74 = tpu.matmul %72, %73, %cst_23 {dimension_numbers = #tpu.dot_dimension_numbers<[1], [1], [0], [0], [0, 0, 1, 0], [], []>} : vector<32x32xbf16>, vector<32x32xbf16>, vector<32x32xf32> -> vector<32x32xf32>
    %cst_24 = arith.constant 0.176776692 : f32
    %75 = vector.broadcast %cst_24 : f32 to vector<32x32xf32>
    %76 = arith.mulf %74, %75 : vector<32x32xf32>
    %cst_25 = arith.constant -1.000000e+09 : f32
    %77 = vector.broadcast %cst_25 : f32 to vector<32x32xf32>
    %78 = arith.select %11, %76, %77 : vector<32x32xi1>, vector<32x32xf32>
    %cst_26 = arith.constant dense<0xFF800000> : vector<32xf32>
    %79 = vector.multi_reduction <maximumf>, %78, %cst_26 [1] : vector<32x32xf32> to vector<32xf32>
    %80 = vector.shape_cast %79 : vector<32xf32> to vector<32x1xf32>
    %81 = vector.broadcast %80 : vector<32x1xf32> to vector<32x32xf32>
    %82 = arith.subf %78, %81 : vector<32x32xf32>
    %83 = math.exp %82 : vector<32x32xf32>
    %cst_27 = arith.constant dense<0.000000e+00> : vector<32xf32>
    %84 = vector.multi_reduction <add>, %83, %cst_27 [1] : vector<32x32xf32> to vector<32xf32>
    %85 = vector.shape_cast %84 : vector<32xf32> to vector<32x1xf32>
    %86 = tpu.reciprocal %85 {approx = true} : vector<32x1xf32> -> vector<32x1xf32>
    %87 = vector.broadcast %86 : vector<32x1xf32> to vector<32x32xf32>
    %88 = arith.mulf %83, %87 : vector<32x32xf32>
    %89 = arith.truncf %88 : vector<32x32xf32> to vector<32x32xbf16>
    %90 = vector.extract_strided_slice %8 {offsets = [0, 96], sizes = [32, 32], strides = [1, 1]} : vector<32x256xbf16> to vector<32x32xbf16>
    %cst_28 = arith.constant dense<0.000000e+00> : vector<32x32xf32>
    %91 = tpu.matmul %89, %90, %cst_28 {dimension_numbers = #tpu.dot_dimension_numbers<[1], [0], [0], [1], [0, 0, 1, 1], [], []>} : vector<32x32xbf16>, vector<32x32xbf16>, vector<32x32xf32> -> vector<32x32xf32>
    %92 = vector.extract_strided_slice %6 {offsets = [0, 128], sizes = [32, 32], strides = [1, 1]} : vector<32x256xbf16> to vector<32x32xbf16>
    %93 = vector.extract_strided_slice %7 {offsets = [0, 128], sizes = [32, 32], strides = [1, 1]} : vector<32x256xbf16> to vector<32x32xbf16>
    %cst_29 = arith.constant dense<0.000000e+00> : vector<32x32xf32>
    %94 = tpu.matmul %92, %93, %cst_29 {dimension_numbers = #tpu.dot_dimension_numbers<[1], [1], [0], [0], [0, 0, 1, 0], [], []>} : vector<32x32xbf16>, vector<32x32xbf16>, vector<32x32xf32> -> vector<32x32xf32>
    %cst_30 = arith.constant 0.176776692 : f32
    %95 = vector.broadcast %cst_30 : f32 to vector<32x32xf32>
    %96 = arith.mulf %94, %95 : vector<32x32xf32>
    %cst_31 = arith.constant -1.000000e+09 : f32
    %97 = vector.broadcast %cst_31 : f32 to vector<32x32xf32>
    %98 = arith.select %11, %96, %97 : vector<32x32xi1>, vector<32x32xf32>
    %cst_32 = arith.constant dense<0xFF800000> : vector<32xf32>
    %99 = vector.multi_reduction <maximumf>, %98, %cst_32 [1] : vector<32x32xf32> to vector<32xf32>
    %100 = vector.shape_cast %99 : vector<32xf32> to vector<32x1xf32>
    %101 = vector.broadcast %100 : vector<32x1xf32> to vector<32x32xf32>
    %102 = arith.subf %98, %101 : vector<32x32xf32>
    %103 = math.exp %102 : vector<32x32xf32>
    %cst_33 = arith.constant dense<0.000000e+00> : vector<32xf32>
    %104 = vector.multi_reduction <add>, %103, %cst_33 [1] : vector<32x32xf32> to vector<32xf32>
    %105 = vector.shape_cast %104 : vector<32xf32> to vector<32x1xf32>
    %106 = tpu.reciprocal %105 {approx = true} : vector<32x1xf32> -> vector<32x1xf32>
    %107 = vector.broadcast %106 : vector<32x1xf32> to vector<32x32xf32>
    %108 = arith.mulf %103, %107 : vector<32x32xf32>
    %109 = arith.truncf %108 : vector<32x32xf32> to vector<32x32xbf16>
    %110 = vector.extract_strided_slice %8 {offsets = [0, 128], sizes = [32, 32], strides = [1, 1]} : vector<32x256xbf16> to vector<32x32xbf16>
    %cst_34 = arith.constant dense<0.000000e+00> : vector<32x32xf32>
    %111 = tpu.matmul %109, %110, %cst_34 {dimension_numbers = #tpu.dot_dimension_numbers<[1], [0], [0], [1], [0, 0, 1, 1], [], []>} : vector<32x32xbf16>, vector<32x32xbf16>, vector<32x32xf32> -> vector<32x32xf32>
    %112 = vector.extract_strided_slice %6 {offsets = [0, 160], sizes = [32, 32], strides = [1, 1]} : vector<32x256xbf16> to vector<32x32xbf16>
    %113 = vector.extract_strided_slice %7 {offsets = [0, 160], sizes = [32, 32], strides = [1, 1]} : vector<32x256xbf16> to vector<32x32xbf16>
    %cst_35 = arith.constant dense<0.000000e+00> : vector<32x32xf32>
    %114 = tpu.matmul %112, %113, %cst_35 {dimension_numbers = #tpu.dot_dimension_numbers<[1], [1], [0], [0], [0, 0, 1, 0], [], []>} : vector<32x32xbf16>, vector<32x32xbf16>, vector<32x32xf32> -> vector<32x32xf32>
    %cst_36 = arith.constant 0.176776692 : f32
    %115 = vector.broadcast %cst_36 : f32 to vector<32x32xf32>
    %116 = arith.mulf %114, %115 : vector<32x32xf32>
    %cst_37 = arith.constant -1.000000e+09 : f32
    %117 = vector.broadcast %cst_37 : f32 to vector<32x32xf32>
    %118 = arith.select %11, %116, %117 : vector<32x32xi1>, vector<32x32xf32>
    %cst_38 = arith.constant dense<0xFF800000> : vector<32xf32>
    %119 = vector.multi_reduction <maximumf>, %118, %cst_38 [1] : vector<32x32xf32> to vector<32xf32>
    %120 = vector.shape_cast %119 : vector<32xf32> to vector<32x1xf32>
    %121 = vector.broadcast %120 : vector<32x1xf32> to vector<32x32xf32>
    %122 = arith.subf %118, %121 : vector<32x32xf32>
    %123 = math.exp %122 : vector<32x32xf32>
    %cst_39 = arith.constant dense<0.000000e+00> : vector<32xf32>
    %124 = vector.multi_reduction <add>, %123, %cst_39 [1] : vector<32x32xf32> to vector<32xf32>
    %125 = vector.shape_cast %124 : vector<32xf32> to vector<32x1xf32>
    %126 = tpu.reciprocal %125 {approx = true} : vector<32x1xf32> -> vector<32x1xf32>
    %127 = vector.broadcast %126 : vector<32x1xf32> to vector<32x32xf32>
    %128 = arith.mulf %123, %127 : vector<32x32xf32>
    %129 = arith.truncf %128 : vector<32x32xf32> to vector<32x32xbf16>
    %130 = vector.extract_strided_slice %8 {offsets = [0, 160], sizes = [32, 32], strides = [1, 1]} : vector<32x256xbf16> to vector<32x32xbf16>
    %cst_40 = arith.constant dense<0.000000e+00> : vector<32x32xf32>
    %131 = tpu.matmul %129, %130, %cst_40 {dimension_numbers = #tpu.dot_dimension_numbers<[1], [0], [0], [1], [0, 0, 1, 1], [], []>} : vector<32x32xbf16>, vector<32x32xbf16>, vector<32x32xf32> -> vector<32x32xf32>
    %132 = vector.extract_strided_slice %6 {offsets = [0, 192], sizes = [32, 32], strides = [1, 1]} : vector<32x256xbf16> to vector<32x32xbf16>
    %133 = vector.extract_strided_slice %7 {offsets = [0, 192], sizes = [32, 32], strides = [1, 1]} : vector<32x256xbf16> to vector<32x32xbf16>
    %cst_41 = arith.constant dense<0.000000e+00> : vector<32x32xf32>
    %134 = tpu.matmul %132, %133, %cst_41 {dimension_numbers = #tpu.dot_dimension_numbers<[1], [1], [0], [0], [0, 0, 1, 0], [], []>} : vector<32x32xbf16>, vector<32x32xbf16>, vector<32x32xf32> -> vector<32x32xf32>
    %cst_42 = arith.constant 0.176776692 : f32
    %135 = vector.broadcast %cst_42 : f32 to vector<32x32xf32>
    %136 = arith.mulf %134, %135 : vector<32x32xf32>
    %cst_43 = arith.constant -1.000000e+09 : f32
    %137 = vector.broadcast %cst_43 : f32 to vector<32x32xf32>
    %138 = arith.select %11, %136, %137 : vector<32x32xi1>, vector<32x32xf32>
    %cst_44 = arith.constant dense<0xFF800000> : vector<32xf32>
    %139 = vector.multi_reduction <maximumf>, %138, %cst_44 [1] : vector<32x32xf32> to vector<32xf32>
    %140 = vector.shape_cast %139 : vector<32xf32> to vector<32x1xf32>
    %141 = vector.broadcast %140 : vector<32x1xf32> to vector<32x32xf32>
    %142 = arith.subf %138, %141 : vector<32x32xf32>
    %143 = math.exp %142 : vector<32x32xf32>
    %cst_45 = arith.constant dense<0.000000e+00> : vector<32xf32>
    %144 = vector.multi_reduction <add>, %143, %cst_45 [1] : vector<32x32xf32> to vector<32xf32>
    %145 = vector.shape_cast %144 : vector<32xf32> to vector<32x1xf32>
    %146 = tpu.reciprocal %145 {approx = true} : vector<32x1xf32> -> vector<32x1xf32>
    %147 = vector.broadcast %146 : vector<32x1xf32> to vector<32x32xf32>
    %148 = arith.mulf %143, %147 : vector<32x32xf32>
    %149 = arith.truncf %148 : vector<32x32xf32> to vector<32x32xbf16>
    %150 = vector.extract_strided_slice %8 {offsets = [0, 192], sizes = [32, 32], strides = [1, 1]} : vector<32x256xbf16> to vector<32x32xbf16>
    %cst_46 = arith.constant dense<0.000000e+00> : vector<32x32xf32>
    %151 = tpu.matmul %149, %150, %cst_46 {dimension_numbers = #tpu.dot_dimension_numbers<[1], [0], [0], [1], [0, 0, 1, 1], [], []>} : vector<32x32xbf16>, vector<32x32xbf16>, vector<32x32xf32> -> vector<32x32xf32>
    %152 = vector.extract_strided_slice %6 {offsets = [0, 224], sizes = [32, 32], strides = [1, 1]} : vector<32x256xbf16> to vector<32x32xbf16>
    %153 = vector.extract_strided_slice %7 {offsets = [0, 224], sizes = [32, 32], strides = [1, 1]} : vector<32x256xbf16> to vector<32x32xbf16>
    %cst_47 = arith.constant dense<0.000000e+00> : vector<32x32xf32>
    %154 = tpu.matmul %152, %153, %cst_47 {dimension_numbers = #tpu.dot_dimension_numbers<[1], [1], [0], [0], [0, 0, 1, 0], [], []>} : vector<32x32xbf16>, vector<32x32xbf16>, vector<32x32xf32> -> vector<32x32xf32>
    %cst_48 = arith.constant 0.176776692 : f32
    %155 = vector.broadcast %cst_48 : f32 to vector<32x32xf32>
    %156 = arith.mulf %154, %155 : vector<32x32xf32>
    %cst_49 = arith.constant -1.000000e+09 : f32
    %157 = vector.broadcast %cst_49 : f32 to vector<32x32xf32>
    %158 = arith.select %11, %156, %157 : vector<32x32xi1>, vector<32x32xf32>
    %cst_50 = arith.constant dense<0xFF800000> : vector<32xf32>
    %159 = vector.multi_reduction <maximumf>, %158, %cst_50 [1] : vector<32x32xf32> to vector<32xf32>
    %160 = vector.shape_cast %159 : vector<32xf32> to vector<32x1xf32>
    %161 = vector.broadcast %160 : vector<32x1xf32> to vector<32x32xf32>
    %162 = arith.subf %158, %161 : vector<32x32xf32>
    %163 = math.exp %162 : vector<32x32xf32>
    %cst_51 = arith.constant dense<0.000000e+00> : vector<32xf32>
    %164 = vector.multi_reduction <add>, %163, %cst_51 [1] : vector<32x32xf32> to vector<32xf32>
    %165 = vector.shape_cast %164 : vector<32xf32> to vector<32x1xf32>
    %166 = tpu.reciprocal %165 {approx = true} : vector<32x1xf32> -> vector<32x1xf32>
    %167 = vector.broadcast %166 : vector<32x1xf32> to vector<32x32xf32>
    %168 = arith.mulf %163, %167 : vector<32x32xf32>
    %169 = arith.truncf %168 : vector<32x32xf32> to vector<32x32xbf16>
    %170 = vector.extract_strided_slice %8 {offsets = [0, 224], sizes = [32, 32], strides = [1, 1]} : vector<32x256xbf16> to vector<32x32xbf16>
    %cst_52 = arith.constant dense<0.000000e+00> : vector<32x32xf32>
    %171 = tpu.matmul %169, %170, %cst_52 {dimension_numbers = #tpu.dot_dimension_numbers<[1], [0], [0], [1], [0, 0, 1, 1], [], []>} : vector<32x32xbf16>, vector<32x32xbf16>, vector<32x32xf32> -> vector<32x32xf32>
    %172 = tpu.concatenate %31, %51, %71, %91, %111, %131, %151, %171 in 1 : vector<32x32xf32>, vector<32x32xf32>, vector<32x32xf32>, vector<32x32xf32>, vector<32x32xf32>, vector<32x32xf32>, vector<32x32xf32>, vector<32x32xf32> -> vector<32x256xf32>
    %c0_53 = arith.constant 0 : index
    %c0_54 = arith.constant 0 : index
    %c0_55 = arith.constant 0 : index
    %173 = vector.load %arg2[%c0_53, %c0_54, %c0_55] : memref<1x32x256xf32, #tpu.memory_space<vmem>>, vector<1x32x256xf32>
    %174 = vector.shape_cast %173 : vector<1x32x256xf32> to vector<32x256xf32>
    %175 = vector.shape_cast %172 : vector<32x256xf32> to vector<1x32x256xf32>
    tpu.vector_store %arg2[%c0_53, %c0_54, %c0_55], %175 {strides = array<i32>} : memref<1x32x256xf32, #tpu.memory_space<vmem>>, vector<1x32x256xf32>,
    return
  }
  func.func @transform_0(%arg0: i32) -> (i32, i32, i32) {
    %c0_i32 = arith.constant 0 : i32
    %c0_i32_0 = arith.constant 0 : i32
    %c0_i32_1 = arith.constant 0 : i32
    return %arg0, %c0_i32, %c0_i32_0 : i32, i32, i32
  }
  func.func @transform_1(%arg0: i32) -> (i32, i32, i32) {
    %c0_i32 = arith.constant 0 : i32
    %c0_i32_0 = arith.constant 0 : i32
    %c0_i32_1 = arith.constant 0 : i32
    return %arg0, %c0_i32, %c0_i32_0 : i32, i32, i32
  }
}

module attributes {stable_mosaic.version = 11 : i64} {
  func.func @_linear_kernel(%arg0: i32, %arg1: i32, %arg2: memref<64x256xf32, #tpu.memory_space<vmem>>, %arg3: memref<256x256xbf16, #tpu.memory_space<vmem>>, %arg4: memref<1x256xf32, #tpu.memory_space<vmem>>, %arg5: memref<1x256xf32, #tpu.memory_space<vmem>>, %arg6: memref<1x256xf32, #tpu.memory_space<vmem>>, %arg7: memref<64x256xf32, #tpu.memory_space<vmem>>) attributes {dimension_semantics = [#tpu.dimension_semantics<parallel>, #tpu.dimension_semantics<parallel>], iteration_bounds = array<i64: 1, 1>, scalar_prefetch = 0 : i64, scratch_operands = 0 : i64, tpu.core_type = #tpu.core_type<tc>, window_params = [{transform_indices = @transform_0, window_bounds = array<i64: 64, 256>}, {transform_indices = @transform_1, window_bounds = array<i64: 256, 256>}, {transform_indices = @transform_2, window_bounds = array<i64: 1, 256>}, {pipeline_mode = #tpu.pipeline_mode<synchronous>, transform_indices = @transform_3, window_bounds = array<i64: 1, 256>}, {pipeline_mode = #tpu.pipeline_mode<synchronous>, transform_indices = @transform_4, window_bounds = array<i64: 1, 256>}, {transform_indices = @transform_5, window_bounds = array<i64: 64, 256>}]} {
    %c0 = arith.constant 0 : index
    %c0_0 = arith.constant 0 : index
    %0 = vector.load %arg2[%c0, %c0_0] : memref<64x256xf32, #tpu.memory_space<vmem>>, vector<64x256xf32>
    %c0_1 = arith.constant 0 : index
    %c0_2 = arith.constant 0 : index
    %1 = vector.load %arg5[%c0_1, %c0_2] : memref<1x256xf32, #tpu.memory_space<vmem>>, vector<1x256xf32>
    %c0_3 = arith.constant 0 : index
    %c0_4 = arith.constant 0 : index
    %2 = vector.load %arg6[%c0_3, %c0_4] : memref<1x256xf32, #tpu.memory_space<vmem>>, vector<1x256xf32>
    %cst = arith.constant dense<0.000000e+00> : vector<64xf32>
    %3 = vector.multi_reduction <add>, %0, %cst [1] : vector<64x256xf32> to vector<64xf32>
    %4 = vector.shape_cast %3 : vector<64xf32> to vector<64x1xf32>
    %cst_5 = arith.constant 2.560000e+02 : f32
    %5 = vector.broadcast %cst_5 : f32 to vector<64x1xf32>
    %6 = arith.divf %4, %5 : vector<64x1xf32>
    %7 = vector.broadcast %6 : vector<64x1xf32> to vector<64x256xf32>
    %8 = arith.subf %0, %7 : vector<64x256xf32>
    %9 = arith.mulf %8, %8 : vector<64x256xf32>
    %cst_6 = arith.constant dense<0.000000e+00> : vector<64xf32>
    %10 = vector.multi_reduction <add>, %9, %cst_6 [1] : vector<64x256xf32> to vector<64xf32>
    %11 = vector.shape_cast %10 : vector<64xf32> to vector<64x1xf32>
    %cst_7 = arith.constant 0.00392156886 : f32
    %12 = vector.broadcast %cst_7 : f32 to vector<64x1xf32>
    %13 = arith.mulf %11, %12 : vector<64x1xf32>
    %14 = math.sqrt %13 : vector<64x1xf32>
    %15 = vector.broadcast %1 : vector<1x256xf32> to vector<64x256xf32>
    %16 = arith.mulf %15, %8 : vector<64x256xf32>
    %cst_8 = arith.constant 9.99999997E-7 : f32
    %17 = vector.broadcast %cst_8 : f32 to vector<64x1xf32>
    %18 = arith.addf %14, %17 : vector<64x1xf32>
    %19 = tpu.reciprocal %18 {approx = true} : vector<64x1xf32> -> vector<64x1xf32>
    %20 = vector.broadcast %19 : vector<64x1xf32> to vector<64x256xf32>
    %21 = arith.mulf %16, %20 : vector<64x256xf32>
    %22 = vector.broadcast %2 : vector<1x256xf32> to vector<64x256xf32>
    %23 = arith.addf %21, %22 : vector<64x256xf32>
    %24 = arith.truncf %23 : vector<64x256xf32> to vector<64x256xbf16>
    %c0_9 = arith.constant 0 : index
    %c0_10 = arith.constant 0 : index
    %25 = vector.load %arg3[%c0_9, %c0_10] : memref<256x256xbf16, #tpu.memory_space<vmem>>, vector<256x256xbf16>
    %cst_11 = arith.constant dense<0.000000e+00> : vector<64x256xf32>
    %26 = tpu.matmul %24, %25, %cst_11 {dimension_numbers = #tpu.dot_dimension_numbers<[1], [0], [0], [1], [0, 0, 1, 1], [], []>} : vector<64x256xbf16>, vector<256x256xbf16>, vector<64x256xf32> -> vector<64x256xf32>
    %c0_12 = arith.constant 0 : index
    %c0_13 = arith.constant 0 : index
    %27 = vector.load %arg4[%c0_12, %c0_13] : memref<1x256xf32, #tpu.memory_space<vmem>>, vector<1x256xf32>
    %28 = vector.broadcast %27 : vector<1x256xf32> to vector<64x256xf32>
    %29 = arith.addf %26, %28 : vector<64x256xf32>
    %c0_14 = arith.constant 0 : index
    %c0_15 = arith.constant 0 : index
    %30 = vector.load %arg7[%c0_14, %c0_15] : memref<64x256xf32, #tpu.memory_space<vmem>>, vector<64x256xf32>
    tpu.vector_store %arg7[%c0_14, %c0_15], %29 {strides = array<i32>} : memref<64x256xf32, #tpu.memory_space<vmem>>, vector<64x256xf32>,
    return
  }
  func.func @transform_0(%arg0: i32, %arg1: i32) -> (i32, i32) {
    %c0_i32 = arith.constant 0 : i32
    %c0_i32_0 = arith.constant 0 : i32
    return %arg0, %c0_i32 : i32, i32
  }
  func.func @transform_1(%arg0: i32, %arg1: i32) -> (i32, i32) {
    %c0_i32 = arith.constant 0 : i32
    %c0_i32_0 = arith.constant 0 : i32
    return %c0_i32, %arg1 : i32, i32
  }
  func.func @transform_2(%arg0: i32, %arg1: i32) -> (i32, i32) {
    %c0_i32 = arith.constant 0 : i32
    %c0_i32_0 = arith.constant 0 : i32
    return %c0_i32, %arg1 : i32, i32
  }
  func.func @transform_3(%arg0: i32, %arg1: i32) -> (i32, i32) {
    %c0_i32 = arith.constant 0 : i32
    %c0_i32_0 = arith.constant 0 : i32
    %c0_i32_1 = arith.constant 0 : i32
    return %c0_i32, %c0_i32_0 : i32, i32
  }
  func.func @transform_4(%arg0: i32, %arg1: i32) -> (i32, i32) {
    %c0_i32 = arith.constant 0 : i32
    %c0_i32_0 = arith.constant 0 : i32
    %c0_i32_1 = arith.constant 0 : i32
    return %c0_i32, %c0_i32_0 : i32, i32
  }
  func.func @transform_5(%arg0: i32, %arg1: i32) -> (i32, i32) {
    %c0_i32 = arith.constant 0 : i32
    return %arg0, %arg1 : i32, i32
  }
}

module attributes {stable_mosaic.version = 11 : i64} {
  func.func @_linear_kernel(%arg0: i32, %arg1: i32, %arg2: memref<64x256xf32, #tpu.memory_space<vmem>>, %arg3: memref<256x512xbf16, #tpu.memory_space<vmem>>, %arg4: memref<1x512xf32, #tpu.memory_space<vmem>>, %arg5: memref<64x512xf32, #tpu.memory_space<vmem>>) attributes {dimension_semantics = [#tpu.dimension_semantics<parallel>, #tpu.dimension_semantics<parallel>], iteration_bounds = array<i64: 1, 1>, scalar_prefetch = 0 : i64, scratch_operands = 0 : i64, tpu.core_type = #tpu.core_type<tc>, window_params = [{transform_indices = @transform_0, window_bounds = array<i64: 64, 256>}, {transform_indices = @transform_1, window_bounds = array<i64: 256, 512>}, {transform_indices = @transform_2, window_bounds = array<i64: 1, 512>}, {transform_indices = @transform_3, window_bounds = array<i64: 64, 512>}]} {
    %c0 = arith.constant 0 : index
    %c0_0 = arith.constant 0 : index
    %0 = vector.load %arg2[%c0, %c0_0] : memref<64x256xf32, #tpu.memory_space<vmem>>, vector<64x256xf32>
    %1 = arith.truncf %0 : vector<64x256xf32> to vector<64x256xbf16>
    %c0_1 = arith.constant 0 : index
    %c0_2 = arith.constant 0 : index
    %2 = vector.load %arg3[%c0_1, %c0_2] : memref<256x512xbf16, #tpu.memory_space<vmem>>, vector<256x512xbf16>
    %cst = arith.constant dense<0.000000e+00> : vector<64x512xf32>
    %3 = tpu.matmul %1, %2, %cst {dimension_numbers = #tpu.dot_dimension_numbers<[1], [0], [0], [1], [0, 0, 1, 1], [], []>} : vector<64x256xbf16>, vector<256x512xbf16>, vector<64x512xf32> -> vector<64x512xf32>
    %c0_3 = arith.constant 0 : index
    %c0_4 = arith.constant 0 : index
    %4 = vector.load %arg4[%c0_3, %c0_4] : memref<1x512xf32, #tpu.memory_space<vmem>>, vector<1x512xf32>
    %5 = vector.broadcast %4 : vector<1x512xf32> to vector<64x512xf32>
    %6 = arith.addf %3, %5 : vector<64x512xf32>
    %c0_5 = arith.constant 0 : index
    %c0_6 = arith.constant 0 : index
    %7 = vector.load %arg5[%c0_5, %c0_6] : memref<64x512xf32, #tpu.memory_space<vmem>>, vector<64x512xf32>
    tpu.vector_store %arg5[%c0_5, %c0_6], %6 {strides = array<i32>} : memref<64x512xf32, #tpu.memory_space<vmem>>, vector<64x512xf32>,
    return
  }
  func.func @transform_0(%arg0: i32, %arg1: i32) -> (i32, i32) {
    %c0_i32 = arith.constant 0 : i32
    %c0_i32_0 = arith.constant 0 : i32
    return %arg0, %c0_i32 : i32, i32
  }
  func.func @transform_1(%arg0: i32, %arg1: i32) -> (i32, i32) {
    %c0_i32 = arith.constant 0 : i32
    %c0_i32_0 = arith.constant 0 : i32
    return %c0_i32, %arg1 : i32, i32
  }
  func.func @transform_2(%arg0: i32, %arg1: i32) -> (i32, i32) {
    %c0_i32 = arith.constant 0 : i32
    %c0_i32_0 = arith.constant 0 : i32
    return %c0_i32, %arg1 : i32, i32
  }
  func.func @transform_3(%arg0: i32, %arg1: i32) -> (i32, i32) {
    %c0_i32 = arith.constant 0 : i32
    return %arg0, %arg1 : i32, i32
  }
}

module attributes {stable_mosaic.version = 11 : i64} {
  func.func @_cross_attn_kernel(%arg0: i32, %arg1: memref<1x32x256xf32, #tpu.memory_space<vmem>>, %arg2: memref<1x32x512xf32, #tpu.memory_space<vmem>>, %arg3: memref<1x32x256xf32, #tpu.memory_space<vmem>>) attributes {dimension_semantics = [#tpu.dimension_semantics<parallel>], iteration_bounds = array<i64: 2>, scalar_prefetch = 0 : i64, scratch_operands = 0 : i64, tpu.core_type = #tpu.core_type<tc>, window_params = [{transform_indices = @transform_0, window_bounds = array<i64: 1, 32, 256>}, {transform_indices = @transform_1, window_bounds = array<i64: 1, 32, 512>}, {transform_indices = @transform_2, window_bounds = array<i64: 1, 32, 256>}]} {
    %c0 = arith.constant 0 : index
    %c0_0 = arith.constant 0 : index
    %c0_1 = arith.constant 0 : index
    %0 = vector.load %arg1[%c0, %c0_0, %c0_1] : memref<1x32x256xf32, #tpu.memory_space<vmem>>, vector<1x32x256xf32>
    %1 = vector.shape_cast %0 : vector<1x32x256xf32> to vector<32x256xf32>
    %c0_2 = arith.constant 0 : index
    %c0_3 = arith.constant 0 : index
    %c0_4 = arith.constant 0 : index
    %2 = vector.load %arg2[%c0_2, %c0_3, %c0_4] : memref<1x32x512xf32, #tpu.memory_space<vmem>>, vector<1x32x256xf32>
    %3 = vector.shape_cast %2 : vector<1x32x256xf32> to vector<32x256xf32>
    %c0_5 = arith.constant 0 : index
    %c0_6 = arith.constant 0 : index
    %c256 = arith.constant 256 : index
    %4 = vector.load %arg2[%c0_5, %c0_6, %c256] : memref<1x32x512xf32, #tpu.memory_space<vmem>>, vector<1x32x256xf32>
    %5 = vector.shape_cast %4 : vector<1x32x256xf32> to vector<32x256xf32>
    %6 = arith.truncf %1 : vector<32x256xf32> to vector<32x256xbf16>
    %7 = arith.truncf %3 : vector<32x256xf32> to vector<32x256xbf16>
    %8 = arith.truncf %5 : vector<32x256xf32> to vector<32x256xbf16>
    %9 = vector.extract_strided_slice %6 {offsets = [0, 0], sizes = [32, 32], strides = [1, 1]} : vector<32x256xbf16> to vector<32x32xbf16>
    %10 = vector.extract_strided_slice %7 {offsets = [0, 0], sizes = [32, 32], strides = [1, 1]} : vector<32x256xbf16> to vector<32x32xbf16>
    %cst = arith.constant dense<0.000000e+00> : vector<32x32xf32>
    %11 = tpu.matmul %9, %10, %cst {dimension_numbers = #tpu.dot_dimension_numbers<[1], [1], [0], [0], [0, 0, 1, 0], [], []>} : vector<32x32xbf16>, vector<32x32xbf16>, vector<32x32xf32> -> vector<32x32xf32>
    %cst_7 = arith.constant 0.176776692 : f32
    %12 = vector.broadcast %cst_7 : f32 to vector<32x32xf32>
    %13 = arith.mulf %11, %12 : vector<32x32xf32>
    %cst_8 = arith.constant dense<0xFF800000> : vector<32xf32>
    %14 = vector.multi_reduction <maximumf>, %13, %cst_8 [1] : vector<32x32xf32> to vector<32xf32>
    %15 = vector.shape_cast %14 : vector<32xf32> to vector<32x1xf32>
    %16 = vector.broadcast %15 : vector<32x1xf32> to vector<32x32xf32>
    %17 = arith.subf %13, %16 : vector<32x32xf32>
    %18 = math.exp %17 : vector<32x32xf32>
    %cst_9 = arith.constant dense<0.000000e+00> : vector<32xf32>
    %19 = vector.multi_reduction <add>, %18, %cst_9 [1] : vector<32x32xf32> to vector<32xf32>
    %20 = vector.shape_cast %19 : vector<32xf32> to vector<32x1xf32>
    %21 = tpu.reciprocal %20 {approx = true} : vector<32x1xf32> -> vector<32x1xf32>
    %22 = vector.broadcast %21 : vector<32x1xf32> to vector<32x32xf32>
    %23 = arith.mulf %18, %22 : vector<32x32xf32>
    %24 = arith.truncf %23 : vector<32x32xf32> to vector<32x32xbf16>
    %25 = vector.extract_strided_slice %8 {offsets = [0, 0], sizes = [32, 32], strides = [1, 1]} : vector<32x256xbf16> to vector<32x32xbf16>
    %cst_10 = arith.constant dense<0.000000e+00> : vector<32x32xf32>
    %26 = tpu.matmul %24, %25, %cst_10 {dimension_numbers = #tpu.dot_dimension_numbers<[1], [0], [0], [1], [0, 0, 1, 1], [], []>} : vector<32x32xbf16>, vector<32x32xbf16>, vector<32x32xf32> -> vector<32x32xf32>
    %27 = vector.extract_strided_slice %6 {offsets = [0, 32], sizes = [32, 32], strides = [1, 1]} : vector<32x256xbf16> to vector<32x32xbf16>
    %28 = vector.extract_strided_slice %7 {offsets = [0, 32], sizes = [32, 32], strides = [1, 1]} : vector<32x256xbf16> to vector<32x32xbf16>
    %cst_11 = arith.constant dense<0.000000e+00> : vector<32x32xf32>
    %29 = tpu.matmul %27, %28, %cst_11 {dimension_numbers = #tpu.dot_dimension_numbers<[1], [1], [0], [0], [0, 0, 1, 0], [], []>} : vector<32x32xbf16>, vector<32x32xbf16>, vector<32x32xf32> -> vector<32x32xf32>
    %cst_12 = arith.constant 0.176776692 : f32
    %30 = vector.broadcast %cst_12 : f32 to vector<32x32xf32>
    %31 = arith.mulf %29, %30 : vector<32x32xf32>
    %cst_13 = arith.constant dense<0xFF800000> : vector<32xf32>
    %32 = vector.multi_reduction <maximumf>, %31, %cst_13 [1] : vector<32x32xf32> to vector<32xf32>
    %33 = vector.shape_cast %32 : vector<32xf32> to vector<32x1xf32>
    %34 = vector.broadcast %33 : vector<32x1xf32> to vector<32x32xf32>
    %35 = arith.subf %31, %34 : vector<32x32xf32>
    %36 = math.exp %35 : vector<32x32xf32>
    %cst_14 = arith.constant dense<0.000000e+00> : vector<32xf32>
    %37 = vector.multi_reduction <add>, %36, %cst_14 [1] : vector<32x32xf32> to vector<32xf32>
    %38 = vector.shape_cast %37 : vector<32xf32> to vector<32x1xf32>
    %39 = tpu.reciprocal %38 {approx = true} : vector<32x1xf32> -> vector<32x1xf32>
    %40 = vector.broadcast %39 : vector<32x1xf32> to vector<32x32xf32>
    %41 = arith.mulf %36, %40 : vector<32x32xf32>
    %42 = arith.truncf %41 : vector<32x32xf32> to vector<32x32xbf16>
    %43 = vector.extract_strided_slice %8 {offsets = [0, 32], sizes = [32, 32], strides = [1, 1]} : vector<32x256xbf16> to vector<32x32xbf16>
    %cst_15 = arith.constant dense<0.000000e+00> : vector<32x32xf32>
    %44 = tpu.matmul %42, %43, %cst_15 {dimension_numbers = #tpu.dot_dimension_numbers<[1], [0], [0], [1], [0, 0, 1, 1], [], []>} : vector<32x32xbf16>, vector<32x32xbf16>, vector<32x32xf32> -> vector<32x32xf32>
    %45 = vector.extract_strided_slice %6 {offsets = [0, 64], sizes = [32, 32], strides = [1, 1]} : vector<32x256xbf16> to vector<32x32xbf16>
    %46 = vector.extract_strided_slice %7 {offsets = [0, 64], sizes = [32, 32], strides = [1, 1]} : vector<32x256xbf16> to vector<32x32xbf16>
    %cst_16 = arith.constant dense<0.000000e+00> : vector<32x32xf32>
    %47 = tpu.matmul %45, %46, %cst_16 {dimension_numbers = #tpu.dot_dimension_numbers<[1], [1], [0], [0], [0, 0, 1, 0], [], []>} : vector<32x32xbf16>, vector<32x32xbf16>, vector<32x32xf32> -> vector<32x32xf32>
    %cst_17 = arith.constant 0.176776692 : f32
    %48 = vector.broadcast %cst_17 : f32 to vector<32x32xf32>
    %49 = arith.mulf %47, %48 : vector<32x32xf32>
    %cst_18 = arith.constant dense<0xFF800000> : vector<32xf32>
    %50 = vector.multi_reduction <maximumf>, %49, %cst_18 [1] : vector<32x32xf32> to vector<32xf32>
    %51 = vector.shape_cast %50 : vector<32xf32> to vector<32x1xf32>
    %52 = vector.broadcast %51 : vector<32x1xf32> to vector<32x32xf32>
    %53 = arith.subf %49, %52 : vector<32x32xf32>
    %54 = math.exp %53 : vector<32x32xf32>
    %cst_19 = arith.constant dense<0.000000e+00> : vector<32xf32>
    %55 = vector.multi_reduction <add>, %54, %cst_19 [1] : vector<32x32xf32> to vector<32xf32>
    %56 = vector.shape_cast %55 : vector<32xf32> to vector<32x1xf32>
    %57 = tpu.reciprocal %56 {approx = true} : vector<32x1xf32> -> vector<32x1xf32>
    %58 = vector.broadcast %57 : vector<32x1xf32> to vector<32x32xf32>
    %59 = arith.mulf %54, %58 : vector<32x32xf32>
    %60 = arith.truncf %59 : vector<32x32xf32> to vector<32x32xbf16>
    %61 = vector.extract_strided_slice %8 {offsets = [0, 64], sizes = [32, 32], strides = [1, 1]} : vector<32x256xbf16> to vector<32x32xbf16>
    %cst_20 = arith.constant dense<0.000000e+00> : vector<32x32xf32>
    %62 = tpu.matmul %60, %61, %cst_20 {dimension_numbers = #tpu.dot_dimension_numbers<[1], [0], [0], [1], [0, 0, 1, 1], [], []>} : vector<32x32xbf16>, vector<32x32xbf16>, vector<32x32xf32> -> vector<32x32xf32>
    %63 = vector.extract_strided_slice %6 {offsets = [0, 96], sizes = [32, 32], strides = [1, 1]} : vector<32x256xbf16> to vector<32x32xbf16>
    %64 = vector.extract_strided_slice %7 {offsets = [0, 96], sizes = [32, 32], strides = [1, 1]} : vector<32x256xbf16> to vector<32x32xbf16>
    %cst_21 = arith.constant dense<0.000000e+00> : vector<32x32xf32>
    %65 = tpu.matmul %63, %64, %cst_21 {dimension_numbers = #tpu.dot_dimension_numbers<[1], [1], [0], [0], [0, 0, 1, 0], [], []>} : vector<32x32xbf16>, vector<32x32xbf16>, vector<32x32xf32> -> vector<32x32xf32>
    %cst_22 = arith.constant 0.176776692 : f32
    %66 = vector.broadcast %cst_22 : f32 to vector<32x32xf32>
    %67 = arith.mulf %65, %66 : vector<32x32xf32>
    %cst_23 = arith.constant dense<0xFF800000> : vector<32xf32>
    %68 = vector.multi_reduction <maximumf>, %67, %cst_23 [1] : vector<32x32xf32> to vector<32xf32>
    %69 = vector.shape_cast %68 : vector<32xf32> to vector<32x1xf32>
    %70 = vector.broadcast %69 : vector<32x1xf32> to vector<32x32xf32>
    %71 = arith.subf %67, %70 : vector<32x32xf32>
    %72 = math.exp %71 : vector<32x32xf32>
    %cst_24 = arith.constant dense<0.000000e+00> : vector<32xf32>
    %73 = vector.multi_reduction <add>, %72, %cst_24 [1] : vector<32x32xf32> to vector<32xf32>
    %74 = vector.shape_cast %73 : vector<32xf32> to vector<32x1xf32>
    %75 = tpu.reciprocal %74 {approx = true} : vector<32x1xf32> -> vector<32x1xf32>
    %76 = vector.broadcast %75 : vector<32x1xf32> to vector<32x32xf32>
    %77 = arith.mulf %72, %76 : vector<32x32xf32>
    %78 = arith.truncf %77 : vector<32x32xf32> to vector<32x32xbf16>
    %79 = vector.extract_strided_slice %8 {offsets = [0, 96], sizes = [32, 32], strides = [1, 1]} : vector<32x256xbf16> to vector<32x32xbf16>
    %cst_25 = arith.constant dense<0.000000e+00> : vector<32x32xf32>
    %80 = tpu.matmul %78, %79, %cst_25 {dimension_numbers = #tpu.dot_dimension_numbers<[1], [0], [0], [1], [0, 0, 1, 1], [], []>} : vector<32x32xbf16>, vector<32x32xbf16>, vector<32x32xf32> -> vector<32x32xf32>
    %81 = vector.extract_strided_slice %6 {offsets = [0, 128], sizes = [32, 32], strides = [1, 1]} : vector<32x256xbf16> to vector<32x32xbf16>
    %82 = vector.extract_strided_slice %7 {offsets = [0, 128], sizes = [32, 32], strides = [1, 1]} : vector<32x256xbf16> to vector<32x32xbf16>
    %cst_26 = arith.constant dense<0.000000e+00> : vector<32x32xf32>
    %83 = tpu.matmul %81, %82, %cst_26 {dimension_numbers = #tpu.dot_dimension_numbers<[1], [1], [0], [0], [0, 0, 1, 0], [], []>} : vector<32x32xbf16>, vector<32x32xbf16>, vector<32x32xf32> -> vector<32x32xf32>
    %cst_27 = arith.constant 0.176776692 : f32
    %84 = vector.broadcast %cst_27 : f32 to vector<32x32xf32>
    %85 = arith.mulf %83, %84 : vector<32x32xf32>
    %cst_28 = arith.constant dense<0xFF800000> : vector<32xf32>
    %86 = vector.multi_reduction <maximumf>, %85, %cst_28 [1] : vector<32x32xf32> to vector<32xf32>
    %87 = vector.shape_cast %86 : vector<32xf32> to vector<32x1xf32>
    %88 = vector.broadcast %87 : vector<32x1xf32> to vector<32x32xf32>
    %89 = arith.subf %85, %88 : vector<32x32xf32>
    %90 = math.exp %89 : vector<32x32xf32>
    %cst_29 = arith.constant dense<0.000000e+00> : vector<32xf32>
    %91 = vector.multi_reduction <add>, %90, %cst_29 [1] : vector<32x32xf32> to vector<32xf32>
    %92 = vector.shape_cast %91 : vector<32xf32> to vector<32x1xf32>
    %93 = tpu.reciprocal %92 {approx = true} : vector<32x1xf32> -> vector<32x1xf32>
    %94 = vector.broadcast %93 : vector<32x1xf32> to vector<32x32xf32>
    %95 = arith.mulf %90, %94 : vector<32x32xf32>
    %96 = arith.truncf %95 : vector<32x32xf32> to vector<32x32xbf16>
    %97 = vector.extract_strided_slice %8 {offsets = [0, 128], sizes = [32, 32], strides = [1, 1]} : vector<32x256xbf16> to vector<32x32xbf16>
    %cst_30 = arith.constant dense<0.000000e+00> : vector<32x32xf32>
    %98 = tpu.matmul %96, %97, %cst_30 {dimension_numbers = #tpu.dot_dimension_numbers<[1], [0], [0], [1], [0, 0, 1, 1], [], []>} : vector<32x32xbf16>, vector<32x32xbf16>, vector<32x32xf32> -> vector<32x32xf32>
    %99 = vector.extract_strided_slice %6 {offsets = [0, 160], sizes = [32, 32], strides = [1, 1]} : vector<32x256xbf16> to vector<32x32xbf16>
    %100 = vector.extract_strided_slice %7 {offsets = [0, 160], sizes = [32, 32], strides = [1, 1]} : vector<32x256xbf16> to vector<32x32xbf16>
    %cst_31 = arith.constant dense<0.000000e+00> : vector<32x32xf32>
    %101 = tpu.matmul %99, %100, %cst_31 {dimension_numbers = #tpu.dot_dimension_numbers<[1], [1], [0], [0], [0, 0, 1, 0], [], []>} : vector<32x32xbf16>, vector<32x32xbf16>, vector<32x32xf32> -> vector<32x32xf32>
    %cst_32 = arith.constant 0.176776692 : f32
    %102 = vector.broadcast %cst_32 : f32 to vector<32x32xf32>
    %103 = arith.mulf %101, %102 : vector<32x32xf32>
    %cst_33 = arith.constant dense<0xFF800000> : vector<32xf32>
    %104 = vector.multi_reduction <maximumf>, %103, %cst_33 [1] : vector<32x32xf32> to vector<32xf32>
    %105 = vector.shape_cast %104 : vector<32xf32> to vector<32x1xf32>
    %106 = vector.broadcast %105 : vector<32x1xf32> to vector<32x32xf32>
    %107 = arith.subf %103, %106 : vector<32x32xf32>
    %108 = math.exp %107 : vector<32x32xf32>
    %cst_34 = arith.constant dense<0.000000e+00> : vector<32xf32>
    %109 = vector.multi_reduction <add>, %108, %cst_34 [1] : vector<32x32xf32> to vector<32xf32>
    %110 = vector.shape_cast %109 : vector<32xf32> to vector<32x1xf32>
    %111 = tpu.reciprocal %110 {approx = true} : vector<32x1xf32> -> vector<32x1xf32>
    %112 = vector.broadcast %111 : vector<32x1xf32> to vector<32x32xf32>
    %113 = arith.mulf %108, %112 : vector<32x32xf32>
    %114 = arith.truncf %113 : vector<32x32xf32> to vector<32x32xbf16>
    %115 = vector.extract_strided_slice %8 {offsets = [0, 160], sizes = [32, 32], strides = [1, 1]} : vector<32x256xbf16> to vector<32x32xbf16>
    %cst_35 = arith.constant dense<0.000000e+00> : vector<32x32xf32>
    %116 = tpu.matmul %114, %115, %cst_35 {dimension_numbers = #tpu.dot_dimension_numbers<[1], [0], [0], [1], [0, 0, 1, 1], [], []>} : vector<32x32xbf16>, vector<32x32xbf16>, vector<32x32xf32> -> vector<32x32xf32>
    %117 = vector.extract_strided_slice %6 {offsets = [0, 192], sizes = [32, 32], strides = [1, 1]} : vector<32x256xbf16> to vector<32x32xbf16>
    %118 = vector.extract_strided_slice %7 {offsets = [0, 192], sizes = [32, 32], strides = [1, 1]} : vector<32x256xbf16> to vector<32x32xbf16>
    %cst_36 = arith.constant dense<0.000000e+00> : vector<32x32xf32>
    %119 = tpu.matmul %117, %118, %cst_36 {dimension_numbers = #tpu.dot_dimension_numbers<[1], [1], [0], [0], [0, 0, 1, 0], [], []>} : vector<32x32xbf16>, vector<32x32xbf16>, vector<32x32xf32> -> vector<32x32xf32>
    %cst_37 = arith.constant 0.176776692 : f32
    %120 = vector.broadcast %cst_37 : f32 to vector<32x32xf32>
    %121 = arith.mulf %119, %120 : vector<32x32xf32>
    %cst_38 = arith.constant dense<0xFF800000> : vector<32xf32>
    %122 = vector.multi_reduction <maximumf>, %121, %cst_38 [1] : vector<32x32xf32> to vector<32xf32>
    %123 = vector.shape_cast %122 : vector<32xf32> to vector<32x1xf32>
    %124 = vector.broadcast %123 : vector<32x1xf32> to vector<32x32xf32>
    %125 = arith.subf %121, %124 : vector<32x32xf32>
    %126 = math.exp %125 : vector<32x32xf32>
    %cst_39 = arith.constant dense<0.000000e+00> : vector<32xf32>
    %127 = vector.multi_reduction <add>, %126, %cst_39 [1] : vector<32x32xf32> to vector<32xf32>
    %128 = vector.shape_cast %127 : vector<32xf32> to vector<32x1xf32>
    %129 = tpu.reciprocal %128 {approx = true} : vector<32x1xf32> -> vector<32x1xf32>
    %130 = vector.broadcast %129 : vector<32x1xf32> to vector<32x32xf32>
    %131 = arith.mulf %126, %130 : vector<32x32xf32>
    %132 = arith.truncf %131 : vector<32x32xf32> to vector<32x32xbf16>
    %133 = vector.extract_strided_slice %8 {offsets = [0, 192], sizes = [32, 32], strides = [1, 1]} : vector<32x256xbf16> to vector<32x32xbf16>
    %cst_40 = arith.constant dense<0.000000e+00> : vector<32x32xf32>
    %134 = tpu.matmul %132, %133, %cst_40 {dimension_numbers = #tpu.dot_dimension_numbers<[1], [0], [0], [1], [0, 0, 1, 1], [], []>} : vector<32x32xbf16>, vector<32x32xbf16>, vector<32x32xf32> -> vector<32x32xf32>
    %135 = vector.extract_strided_slice %6 {offsets = [0, 224], sizes = [32, 32], strides = [1, 1]} : vector<32x256xbf16> to vector<32x32xbf16>
    %136 = vector.extract_strided_slice %7 {offsets = [0, 224], sizes = [32, 32], strides = [1, 1]} : vector<32x256xbf16> to vector<32x32xbf16>
    %cst_41 = arith.constant dense<0.000000e+00> : vector<32x32xf32>
    %137 = tpu.matmul %135, %136, %cst_41 {dimension_numbers = #tpu.dot_dimension_numbers<[1], [1], [0], [0], [0, 0, 1, 0], [], []>} : vector<32x32xbf16>, vector<32x32xbf16>, vector<32x32xf32> -> vector<32x32xf32>
    %cst_42 = arith.constant 0.176776692 : f32
    %138 = vector.broadcast %cst_42 : f32 to vector<32x32xf32>
    %139 = arith.mulf %137, %138 : vector<32x32xf32>
    %cst_43 = arith.constant dense<0xFF800000> : vector<32xf32>
    %140 = vector.multi_reduction <maximumf>, %139, %cst_43 [1] : vector<32x32xf32> to vector<32xf32>
    %141 = vector.shape_cast %140 : vector<32xf32> to vector<32x1xf32>
    %142 = vector.broadcast %141 : vector<32x1xf32> to vector<32x32xf32>
    %143 = arith.subf %139, %142 : vector<32x32xf32>
    %144 = math.exp %143 : vector<32x32xf32>
    %cst_44 = arith.constant dense<0.000000e+00> : vector<32xf32>
    %145 = vector.multi_reduction <add>, %144, %cst_44 [1] : vector<32x32xf32> to vector<32xf32>
    %146 = vector.shape_cast %145 : vector<32xf32> to vector<32x1xf32>
    %147 = tpu.reciprocal %146 {approx = true} : vector<32x1xf32> -> vector<32x1xf32>
    %148 = vector.broadcast %147 : vector<32x1xf32> to vector<32x32xf32>
    %149 = arith.mulf %144, %148 : vector<32x32xf32>
    %150 = arith.truncf %149 : vector<32x32xf32> to vector<32x32xbf16>
    %151 = vector.extract_strided_slice %8 {offsets = [0, 224], sizes = [32, 32], strides = [1, 1]} : vector<32x256xbf16> to vector<32x32xbf16>
    %cst_45 = arith.constant dense<0.000000e+00> : vector<32x32xf32>
    %152 = tpu.matmul %150, %151, %cst_45 {dimension_numbers = #tpu.dot_dimension_numbers<[1], [0], [0], [1], [0, 0, 1, 1], [], []>} : vector<32x32xbf16>, vector<32x32xbf16>, vector<32x32xf32> -> vector<32x32xf32>
    %153 = tpu.concatenate %26, %44, %62, %80, %98, %116, %134, %152 in 1 : vector<32x32xf32>, vector<32x32xf32>, vector<32x32xf32>, vector<32x32xf32>, vector<32x32xf32>, vector<32x32xf32>, vector<32x32xf32>, vector<32x32xf32> -> vector<32x256xf32>
    %c0_46 = arith.constant 0 : index
    %c0_47 = arith.constant 0 : index
    %c0_48 = arith.constant 0 : index
    %154 = vector.load %arg3[%c0_46, %c0_47, %c0_48] : memref<1x32x256xf32, #tpu.memory_space<vmem>>, vector<1x32x256xf32>
    %155 = vector.shape_cast %154 : vector<1x32x256xf32> to vector<32x256xf32>
    %156 = vector.shape_cast %153 : vector<32x256xf32> to vector<1x32x256xf32>
    tpu.vector_store %arg3[%c0_46, %c0_47, %c0_48], %156 {strides = array<i32>} : memref<1x32x256xf32, #tpu.memory_space<vmem>>, vector<1x32x256xf32>,
    return
  }
  func.func @transform_0(%arg0: i32) -> (i32, i32, i32) {
    %c0_i32 = arith.constant 0 : i32
    %c0_i32_0 = arith.constant 0 : i32
    %c0_i32_1 = arith.constant 0 : i32
    return %arg0, %c0_i32, %c0_i32_0 : i32, i32, i32
  }
  func.func @transform_1(%arg0: i32) -> (i32, i32, i32) {
    %c0_i32 = arith.constant 0 : i32
    %c0_i32_0 = arith.constant 0 : i32
    %c0_i32_1 = arith.constant 0 : i32
    return %arg0, %c0_i32, %c0_i32_0 : i32, i32, i32
  }
  func.func @transform_2(%arg0: i32) -> (i32, i32, i32) {
    %c0_i32 = arith.constant 0 : i32
    %c0_i32_0 = arith.constant 0 : i32
    %c0_i32_1 = arith.constant 0 : i32
    return %arg0, %c0_i32, %c0_i32_0 : i32, i32, i32
  }
}

module attributes {stable_mosaic.version = 11 : i64} {
  func.func @_ffn_kernel(%arg0: i32, %arg1: memref<64x256xf32, #tpu.memory_space<vmem>>, %arg2: memref<1x256xf32, #tpu.memory_space<vmem>>, %arg3: memref<1x256xf32, #tpu.memory_space<vmem>>, %arg4: memref<256x1024xbf16, #tpu.memory_space<vmem>>, %arg5: memref<1x1024xf32, #tpu.memory_space<vmem>>, %arg6: memref<1024x256xbf16, #tpu.memory_space<vmem>>, %arg7: memref<1x256xf32, #tpu.memory_space<vmem>>, %arg8: memref<64x256xf32, #tpu.memory_space<vmem>>) attributes {dimension_semantics = [#tpu.dimension_semantics<parallel>], iteration_bounds = array<i64: 1>, scalar_prefetch = 0 : i64, scratch_operands = 0 : i64, tpu.core_type = #tpu.core_type<tc>, window_params = [{transform_indices = @transform_0, window_bounds = array<i64: 64, 256>}, {pipeline_mode = #tpu.pipeline_mode<synchronous>, transform_indices = @transform_1, window_bounds = array<i64: 1, 256>}, {pipeline_mode = #tpu.pipeline_mode<synchronous>, transform_indices = @transform_2, window_bounds = array<i64: 1, 256>}, {pipeline_mode = #tpu.pipeline_mode<synchronous>, transform_indices = @transform_3, window_bounds = array<i64: 256, 1024>}, {pipeline_mode = #tpu.pipeline_mode<synchronous>, transform_indices = @transform_4, window_bounds = array<i64: 1, 1024>}, {pipeline_mode = #tpu.pipeline_mode<synchronous>, transform_indices = @transform_5, window_bounds = array<i64: 1024, 256>}, {pipeline_mode = #tpu.pipeline_mode<synchronous>, transform_indices = @transform_6, window_bounds = array<i64: 1, 256>}, {transform_indices = @transform_7, window_bounds = array<i64: 64, 256>}]} {
    %c0 = arith.constant 0 : index
    %c0_0 = arith.constant 0 : index
    %0 = vector.load %arg1[%c0, %c0_0] : memref<64x256xf32, #tpu.memory_space<vmem>>, vector<64x256xf32>
    %c0_1 = arith.constant 0 : index
    %c0_2 = arith.constant 0 : index
    %1 = vector.load %arg2[%c0_1, %c0_2] : memref<1x256xf32, #tpu.memory_space<vmem>>, vector<1x256xf32>
    %c0_3 = arith.constant 0 : index
    %c0_4 = arith.constant 0 : index
    %2 = vector.load %arg3[%c0_3, %c0_4] : memref<1x256xf32, #tpu.memory_space<vmem>>, vector<1x256xf32>
    %cst = arith.constant dense<0.000000e+00> : vector<64xf32>
    %3 = vector.multi_reduction <add>, %0, %cst [1] : vector<64x256xf32> to vector<64xf32>
    %4 = vector.shape_cast %3 : vector<64xf32> to vector<64x1xf32>
    %cst_5 = arith.constant 2.560000e+02 : f32
    %5 = vector.broadcast %cst_5 : f32 to vector<64x1xf32>
    %6 = arith.divf %4, %5 : vector<64x1xf32>
    %7 = vector.broadcast %6 : vector<64x1xf32> to vector<64x256xf32>
    %8 = arith.subf %0, %7 : vector<64x256xf32>
    %9 = arith.mulf %8, %8 : vector<64x256xf32>
    %cst_6 = arith.constant dense<0.000000e+00> : vector<64xf32>
    %10 = vector.multi_reduction <add>, %9, %cst_6 [1] : vector<64x256xf32> to vector<64xf32>
    %11 = vector.shape_cast %10 : vector<64xf32> to vector<64x1xf32>
    %cst_7 = arith.constant 0.00392156886 : f32
    %12 = vector.broadcast %cst_7 : f32 to vector<64x1xf32>
    %13 = arith.mulf %11, %12 : vector<64x1xf32>
    %14 = math.sqrt %13 : vector<64x1xf32>
    %15 = vector.broadcast %1 : vector<1x256xf32> to vector<64x256xf32>
    %16 = arith.mulf %15, %8 : vector<64x256xf32>
    %cst_8 = arith.constant 9.99999997E-7 : f32
    %17 = vector.broadcast %cst_8 : f32 to vector<64x1xf32>
    %18 = arith.addf %14, %17 : vector<64x1xf32>
    %19 = tpu.reciprocal %18 {approx = true} : vector<64x1xf32> -> vector<64x1xf32>
    %20 = vector.broadcast %19 : vector<64x1xf32> to vector<64x256xf32>
    %21 = arith.mulf %16, %20 : vector<64x256xf32>
    %22 = vector.broadcast %2 : vector<1x256xf32> to vector<64x256xf32>
    %23 = arith.addf %21, %22 : vector<64x256xf32>
    %24 = arith.truncf %23 : vector<64x256xf32> to vector<64x256xbf16>
    %c0_9 = arith.constant 0 : index
    %c0_10 = arith.constant 0 : index
    %25 = vector.load %arg4[%c0_9, %c0_10] : memref<256x1024xbf16, #tpu.memory_space<vmem>>, vector<256x1024xbf16>
    %cst_11 = arith.constant dense<0.000000e+00> : vector<64x1024xf32>
    %26 = tpu.matmul %24, %25, %cst_11 {dimension_numbers = #tpu.dot_dimension_numbers<[1], [0], [0], [1], [0, 0, 1, 1], [], []>} : vector<64x256xbf16>, vector<256x1024xbf16>, vector<64x1024xf32> -> vector<64x1024xf32>
    %c0_12 = arith.constant 0 : index
    %c0_13 = arith.constant 0 : index
    %27 = vector.load %arg5[%c0_12, %c0_13] : memref<1x1024xf32, #tpu.memory_space<vmem>>, vector<1x1024xf32>
    %28 = vector.broadcast %27 : vector<1x1024xf32> to vector<64x1024xf32>
    %29 = arith.addf %26, %28 : vector<64x1024xf32>
    %cst_14 = arith.constant 0.000000e+00 : f32
    %30 = vector.broadcast %cst_14 : f32 to vector<64x1024xf32>
    %31 = arith.maximumf %29, %30 : vector<64x1024xf32>
    %32 = arith.truncf %31 : vector<64x1024xf32> to vector<64x1024xbf16>
    %c0_15 = arith.constant 0 : index
    %c0_16 = arith.constant 0 : index
    %33 = vector.load %arg6[%c0_15, %c0_16] : memref<1024x256xbf16, #tpu.memory_space<vmem>>, vector<1024x256xbf16>
    %cst_17 = arith.constant dense<0.000000e+00> : vector<64x256xf32>
    %34 = tpu.matmul %32, %33, %cst_17 {dimension_numbers = #tpu.dot_dimension_numbers<[1], [0], [0], [1], [0, 0, 1, 1], [], []>} : vector<64x1024xbf16>, vector<1024x256xbf16>, vector<64x256xf32> -> vector<64x256xf32>
    %c0_18 = arith.constant 0 : index
    %c0_19 = arith.constant 0 : index
    %35 = vector.load %arg7[%c0_18, %c0_19] : memref<1x256xf32, #tpu.memory_space<vmem>>, vector<1x256xf32>
    %36 = vector.broadcast %35 : vector<1x256xf32> to vector<64x256xf32>
    %37 = arith.addf %34, %36 : vector<64x256xf32>
    %38 = arith.addf %0, %37 : vector<64x256xf32>
    %c0_20 = arith.constant 0 : index
    %c0_21 = arith.constant 0 : index
    %39 = vector.load %arg8[%c0_20, %c0_21] : memref<64x256xf32, #tpu.memory_space<vmem>>, vector<64x256xf32>
    tpu.vector_store %arg8[%c0_20, %c0_21], %38 {strides = array<i32>} : memref<64x256xf32, #tpu.memory_space<vmem>>, vector<64x256xf32>,
    return
  }
  func.func @transform_0(%arg0: i32) -> (i32, i32) {
    %c0_i32 = arith.constant 0 : i32
    %c0_i32_0 = arith.constant 0 : i32
    return %arg0, %c0_i32 : i32, i32
  }
  func.func @transform_1(%arg0: i32) -> (i32, i32) {
    %c0_i32 = arith.constant 0 : i32
    %c0_i32_0 = arith.constant 0 : i32
    %c0_i32_1 = arith.constant 0 : i32
    return %c0_i32, %c0_i32_0 : i32, i32
  }
  func.func @transform_2(%arg0: i32) -> (i32, i32) {
    %c0_i32 = arith.constant 0 : i32
    %c0_i32_0 = arith.constant 0 : i32
    %c0_i32_1 = arith.constant 0 : i32
    return %c0_i32, %c0_i32_0 : i32, i32
  }
  func.func @transform_3(%arg0: i32) -> (i32, i32) {
    %c0_i32 = arith.constant 0 : i32
    %c0_i32_0 = arith.constant 0 : i32
    %c0_i32_1 = arith.constant 0 : i32
    return %c0_i32, %c0_i32_0 : i32, i32
  }
  func.func @transform_4(%arg0: i32) -> (i32, i32) {
    %c0_i32 = arith.constant 0 : i32
    %c0_i32_0 = arith.constant 0 : i32
    %c0_i32_1 = arith.constant 0 : i32
    return %c0_i32, %c0_i32_0 : i32, i32
  }
  func.func @transform_5(%arg0: i32) -> (i32, i32) {
    %c0_i32 = arith.constant 0 : i32
    %c0_i32_0 = arith.constant 0 : i32
    %c0_i32_1 = arith.constant 0 : i32
    return %c0_i32, %c0_i32_0 : i32, i32
  }
  func.func @transform_6(%arg0: i32) -> (i32, i32) {
    %c0_i32 = arith.constant 0 : i32
    %c0_i32_0 = arith.constant 0 : i32
    %c0_i32_1 = arith.constant 0 : i32
    return %c0_i32, %c0_i32_0 : i32, i32
  }
  func.func @transform_7(%arg0: i32) -> (i32, i32) {
    %c0_i32 = arith.constant 0 : i32
    %c0_i32_0 = arith.constant 0 : i32
    return %arg0, %c0_i32 : i32, i32
  }
}

</mosaic_0001>

<llo_original>
// kernel: decoder_layer.10
$region0: #{decoder_layer.10}
  #allocation0 [shape = 'u32[]', space=smem, size = 0x4, offset = 0x4, fixed_abs, tag = 'smem constant byte address 0x4 - core index']
  #allocation1 [shape = 'u32[144,128]{1,0:T(1,128)}', space=vmem, size = 0x12000, scoped, tag = 'internal scratch']
  %s0 = inlined_call_operand.vmem [shape: f32[64,256], index: 0, kind: input, shape index: {}]
  %s1 = inlined_call_operand.vmem [shape: bf16[256,256], index: 1, kind: input, shape index: {}]
  %s2 = inlined_call_operand.vmem [shape: f32[1,256], index: 2, kind: input, shape index: {}]
  %s3 = inlined_call_operand.vmem [shape: f32[64,256], index: 3, kind: input, shape index: {}]
  %s4 = inlined_call_operand.vmem [shape: f32[64,256], index: 4, kind: output, shape index: {}]
  %s5 = sld [smem:[#allocation0]]
  $region26: #{decoder_layer.10} parent=0
    _
  %s7 = ssub.s32 1, %s5
  %s8 = scalar_select 0, %s7, %s5
  // Predicated region
  $region2: #{decoder_layer.10} parent=0 // pred_check
    _
  $region3: #{decoder_layer.10} parent=0 // pred_check_branch
    %10 = sbr.rel (0) target = $region5
  $region4: #{decoder_layer.10} parent=0 // pred_region
    _
  $region5: #{decoder_layer.10} parent=0 // pred_fallthru
    _
  // Predicated region
  $region6: #{decoder_layer.10} parent=0 // pred_check
    _
  $region7: #{decoder_layer.10} parent=0 // pred_check_branch
    %12 = sbr.rel (0) target = $region9
  $region8: #{decoder_layer.10} parent=0 // pred_region
    _
  $region9: #{decoder_layer.10} parent=0 // pred_fallthru
    _
  // Predicated region
  $region10: #{decoder_layer.10} parent=0 // pred_check
    _
  $region11: #{decoder_layer.10} parent=0 // pred_check_branch
    %14 = sbr.rel (0) target = $region13
  $region12: #{decoder_layer.10} parent=0 // pred_region
    _
  $region13: #{decoder_layer.10} parent=0 // pred_fallthru
    _
  // Predicated region
  $region14: #{decoder_layer.10} parent=0 // pred_check
    _
  $region15: #{decoder_layer.10} parent=0 // pred_check_branch
    %16 = sbr.rel (0) target = $region17
  $region16: #{decoder_layer.10} parent=0 // pred_region
    _
  $region17: #{decoder_layer.10} parent=0 // pred_fallthru
    _
  %v17 = vld [vmem:[%s0] sm:$0xff]
  %v18 = vld [vmem:[%s0 + $0x8] sm:$0xff]
  %v19 = vld [vmem:[%s0 + $0x10] sm:$0xff]
  %v20 = vld [vmem:[%s0 + $0x18] sm:$0xff]
  %v21 = vld [vmem:[%s0 + $0x20] sm:$0xff]
  %v22 = vld [vmem:[%s0 + $0x28] sm:$0xff]
  %v23 = vld [vmem:[%s0 + $0x30] sm:$0xff]
  %v24 = vld [vmem:[%s0 + $0x38] sm:$0xff]
  %v25 = vld [vmem:[%s0 + $0x40] sm:$0xff]
  %v26 = vld [vmem:[%s0 + $0x48] sm:$0xff]
  %v27 = vld [vmem:[%s0 + $0x50] sm:$0xff]
  %v28 = vld [vmem:[%s0 + $0x58] sm:$0xff]
  %v29 = vld [vmem:[%s0 + $0x60] sm:$0xff]
  %v30 = vld [vmem:[%s0 + $0x68] sm:$0xff]
  %v31 = vld [vmem:[%s0 + $0x70] sm:$0xff]
  %v32 = vld [vmem:[%s0 + $0x78] sm:$0xff]
  %v33 = vpack.c.bf16 %v19, %v17
  %v34 = vpack.c.bf16 %v20, %v18
  %v35 = vpack.c.bf16 %v23, %v21
  %v36 = vpack.c.bf16 %v24, %v22
  %v37 = vpack.c.bf16 %v27, %v25
  %v38 = vpack.c.bf16 %v28, %v26
  %v39 = vpack.c.bf16 %v31, %v29
  %v40 = vpack.c.bf16 %v32, %v30
  %v41 = vld [vmem:[%s1] sm:$0xff]
  %v42 = vld [vmem:[%s1 + $0x8] sm:$0xff]
  %v43 = vld [vmem:[%s1 + $0x10] sm:$0xff]
  %v44 = vld [vmem:[%s1 + $0x18] sm:$0xff]
  %v45 = vld [vmem:[%s1 + $0x20] sm:$0xff]
  %v46 = vld [vmem:[%s1 + $0x28] sm:$0xff]
  %v47 = vld [vmem:[%s1 + $0x30] sm:$0xff]
  %v48 = vld [vmem:[%s1 + $0x38] sm:$0xff]
  %v49 = vld [vmem:[%s1 + $0x40] sm:$0xff]
  %v50 = vld [vmem:[%s1 + $0x48] sm:$0xff]
  %v51 = vld [vmem:[%s1 + $0x50] sm:$0xff]
  %v52 = vld [vmem:[%s1 + $0x58] sm:$0xff]
  %v53 = vld [vmem:[%s1 + $0x60] sm:$0xff]
  %v54 = vld [vmem:[%s1 + $0x68] sm:$0xff]
  %v55 = vld [vmem:[%s1 + $0x70] sm:$0xff]
  %v56 = vld [vmem:[%s1 + $0x78] sm:$0xff]
  %v57 = vld [vmem:[%s1 + $0x80] sm:$0xff]
  %v58 = vld [vmem:[%s1 + $0x88] sm:$0xff]
  %v59 = vld [vmem:[%s1 + $0x90] sm:$0xff]
  %v60 = vld [vmem:[%s1 + $0x98] sm:$0xff]
  %v61 = vld [vmem:[%s1 + $0xa0] sm:$0xff]
  %v62 = vld [vmem:[%s1 + $0xa8] sm:$0xff]
  %v63 = vld [vmem:[%s1 + $0xb0] sm:$0xff]
  %v64 = vld [vmem:[%s1 + $0xb8] sm:$0xff]
  %v65 = vld [vmem:[%s1 + $0xc0] sm:$0xff]
  %v66 = vld [vmem:[%s1 + $0xc8] sm:$0xff]
  %v67 = vld [vmem:[%s1 + $0xd0] sm:$0xff]
  %v68 = vld [vmem:[%s1 + $0xd8] sm:$0xff]
  %v69 = vld [vmem:[%s1 + $0xe0] sm:$0xff]
  %v70 = vld [vmem:[%s1 + $0xe8] sm:$0xff]
  %v71 = vld [vmem:[%s1 + $0xf0] sm:$0xff]
  %v72 = vld [vmem:[%s1 + $0xf8] sm:$0xff]
  %v73 = vld [vmem:[%s2] sm:$0x3]
  %v75 = vlaneseq
  %v76 = vshrl.u32 %v75, 7
  %v77 = vsub.s32 0, %v76
  %v78 = vrot.slane %v73, %v77
  %v79 = vlaneseq
  %v80 = vshrl.u32 %v79, 7
  %v81 = vsub.s32 1, %v80
  %v82 = vrot.slane %v73, %v81
  %v117 = vunpack.c.l.b16 %v41
  %v118 = vunpack.c.h.b16 %v41
  %v119 = vunpack.c.l.b16 %v42
  %v120 = vunpack.c.h.b16 %v42
  %v121 = vunpack.c.l.b16 %v43
  %v122 = vunpack.c.h.b16 %v43
  %v123 = vunpack.c.l.b16 %v44
  %v124 = vunpack.c.h.b16 %v44
  %v125 = vunpack.c.l.b16 %v45
  %v126 = vunpack.c.h.b16 %v45
  %v127 = vunpack.c.l.b16 %v46
  %v128 = vunpack.c.h.b16 %v46
  %v129 = vunpack.c.l.b16 %v47
  %v130 = vunpack.c.h.b16 %v47
  %v131 = vunpack.c.l.b16 %v48
  %v132 = vunpack.c.h.b16 %v48
  %v133 = vunpack.c.l.b16 %v49
  %v134 = vunpack.c.h.b16 %v49
  %v135 = vunpack.c.l.b16 %v50
  %v136 = vunpack.c.h.b16 %v50
  %v137 = vunpack.c.l.b16 %v51
  %v138 = vunpack.c.h.b16 %v51
  %v139 = vunpack.c.l.b16 %v52
  %v140 = vunpack.c.h.b16 %v52
  %v141 = vunpack.c.l.b16 %v53
  %v142 = vunpack.c.h.b16 %v53
  %v143 = vunpack.c.l.b16 %v54
  %v144 = vunpack.c.h.b16 %v54
  %v145 = vunpack.c.l.b16 %v55
  %v146 = vunpack.c.h.b16 %v55
  %v147 = vunpack.c.l.b16 %v56
  %v148 = vunpack.c.h.b16 %v56
  %v149 = vunpack.c.l.b16 %v57
  %v150 = vunpack.c.h.b16 %v57
  %v151 = vunpack.c.l.b16 %v58
  %v152 = vunpack.c.h.b16 %v58
  %v153 = vunpack.c.l.b16 %v59
  %v154 = vunpack.c.h.b16 %v59
  %v155 = vunpack.c.l.b16 %v60
  %v156 = vunpack.c.h.b16 %v60
  %v157 = vunpack.c.l.b16 %v61
  %v158 = vunpack.c.h.b16 %v61
  %v159 = vunpack.c.l.b16 %v62
  %v160 = vunpack.c.h.b16 %v62
  %v161 = vunpack.c.l.b16 %v63
  %v162 = vunpack.c.h.b16 %v63
  %v163 = vunpack.c.l.b16 %v64
  %v164 = vunpack.c.h.b16 %v64
  %v165 = vunpack.c.l.b16 %v65
  %v166 = vunpack.c.h.b16 %v65
  %v167 = vunpack.c.l.b16 %v66
  %v168 = vunpack.c.h.b16 %v66
  %v169 = vunpack.c.l.b16 %v67
  %v170 = vunpack.c.h.b16 %v67
  %v171 = vunpack.c.l.b16 %v68
  %v172 = vunpack.c.h.b16 %v68
  %v173 = vunpack.c.l.b16 %v69
  %v174 = vunpack.c.h.b16 %v69
  %v175 = vunpack.c.l.b16 %v70
  %v176 = vunpack.c.h.b16 %v70
  %v177 = vunpack.c.l.b16 %v71
  %v178 = vunpack.c.h.b16 %v71
  %v179 = vunpack.c.l.b16 %v72
  %v180 = vunpack.c.h.b16 %v72
  %v181 = vpack.c.b16 %v119, %v117
  %v182 = vpack.c.b16 %v120, %v118
  %v183 = vpack.c.b16 %v123, %v121
  %v184 = vpack.c.b16 %v124, %v122
  %v185 = vpack.c.b16 %v127, %v125
  %v186 = vpack.c.b16 %v128, %v126
  %v187 = vpack.c.b16 %v131, %v129
  %v188 = vpack.c.b16 %v132, %v130
  %v189 = vpack.c.b16 %v135, %v133
  %v190 = vpack.c.b16 %v136, %v134
  %v191 = vpack.c.b16 %v139, %v137
  %v192 = vpack.c.b16 %v140, %v138
  %v193 = vpack.c.b16 %v143, %v141
  %v194 = vpack.c.b16 %v144, %v142
  %v195 = vpack.c.b16 %v147, %v145
  %v196 = vpack.c.b16 %v148, %v146
  %v197 = vpack.c.b16 %v151, %v149
  %v198 = vpack.c.b16 %v152, %v150
  %v199 = vpack.c.b16 %v155, %v153
  %v200 = vpack.c.b16 %v156, %v154
  %v201 = vpack.c.b16 %v159, %v157
  %v202 = vpack.c.b16 %v160, %v158
  %v203 = vpack.c.b16 %v163, %v161
  %v204 = vpack.c.b16 %v164, %v162
  %v205 = vpack.c.b16 %v167, %v165
  %v206 = vpack.c.b16 %v168, %v166
  %v207 = vpack.c.b16 %v171, %v169
  %v208 = vpack.c.b16 %v172, %v170
  %v209 = vpack.c.b16 %v175, %v173
  %v210 = vpack.c.b16 %v176, %v174
  %v211 = vpack.c.b16 %v179, %v177
  %v212 = vpack.c.b16 %v180, %v178
  %245 = vmatprep.subr.bf16.mxu0 %v196
  %246 = vmatpush1.bf16.msra.mxu0 %v195
  %247 = vmatprep.subr.bf16.mxu0 %v194
  %248 = vmatpush1.bf16.msra.mxu0 %v193
  %249 = vmatprep.subr.bf16.mxu0 %v192
  %250 = vmatpush1.bf16.msra.mxu0 %v191
  %251 = vmatprep.subr.bf16.mxu0 %v190
  %252 = vmatpush1.bf16.msra.mxu0 %v189
  %253 = vmatprep.subr.bf16.mxu0 %v188
  %254 = vmatpush1.bf16.msra.mxu0 %v187
  %255 = vmatprep.subr.bf16.mxu0 %v186
  %256 = vmatpush1.bf16.msra.mxu0 %v185
  %257 = vmatprep.subr.bf16.mxu0 %v184
  %258 = vmatpush1.bf16.msra.mxu0 %v183
  %259 = vmatprep.subr.bf16.mxu0 %v182
  %260 = vmatpush1.bf16.msra.mxu0 %v181
  %261 = vmatprep.subr.bf16.mxu0 %v212
  %262 = vmatpush2.bf16.msra.mxu0 %v211
  %263 = vmatprep.subr.bf16.mxu0 %v210
  %264 = vmatpush2.bf16.msra.mxu0 %v209
  %265 = vmatprep.subr.bf16.mxu0 %v208
  %266 = vmatpush2.bf16.msra.mxu0 %v207
  %267 = vmatprep.subr.bf16.mxu0 %v206
  %268 = vmatpush2.bf16.msra.mxu0 %v205
  %269 = vmatprep.subr.bf16.mxu0 %v204
  %270 = vmatpush2.bf16.msra.mxu0 %v203
  %271 = vmatprep.subr.bf16.mxu0 %v202
  %272 = vmatpush2.bf16.msra.mxu0 %v201
  %273 = vmatprep.subr.bf16.mxu0 %v200
  %274 = vmatpush2.bf16.msra.mxu0 %v199
  %275 = vmatprep.subr.bf16.mxu0 %v198
  %276 = vmatpush2.bf16.msra.mxu0 %v197
  %277 = vmatprep.mubr.bf16.mxu0 %v34
  %278 = vmatmul.mubr.bf16.gmra.mxu0 %v33
  %v279 = vpop.f32.mrf.mxu0
  %v280 = vadd.f32 %v78, %v279
  %v281 = vpop.f32.mrf.mxu0
  %v282 = vadd.f32 %v82, %v281
  %v283 = vpop.f32.mrf.mxu0
  %v284 = vadd.f32 %v78, %v283
  %v285 = vpop.f32.mrf.mxu0
  %v286 = vadd.f32 %v82, %v285
  %287 = vmatprep.mubr.bf16.mxu0 %v36
  %288 = vmatmul.mubr.bf16.gmra.mxu0 %v35
  %v289 = vpop.f32.mrf.mxu0
  %v290 = vadd.f32 %v78, %v289
  %v291 = vpop.f32.mrf.mxu0
  %v292 = vadd.f32 %v82, %v291
  %v293 = vpop.f32.mrf.mxu0
  %v294 = vadd.f32 %v78, %v293
  %v295 = vpop.f32.mrf.mxu0
  %v296 = vadd.f32 %v82, %v295
  %297 = vmatprep.mubr.bf16.mxu0 %v38
  %298 = vmatmul.mubr.bf16.gmra.mxu0 %v37
  %v299 = vpop.f32.mrf.mxu0
  %v300 = vadd.f32 %v78, %v299
  %v301 = vpop.f32.mrf.mxu0
  %v302 = vadd.f32 %v82, %v301
  %v303 = vpop.f32.mrf.mxu0
  %v304 = vadd.f32 %v78, %v303
  %v305 = vpop.f32.mrf.mxu0
  %v306 = vadd.f32 %v82, %v305
  %307 = vmatprep.mubr.bf16.mxu0 %v40
  %308 = vmatmul.mubr.bf16.gmra.mxu0 %v39
  %v309 = vpop.f32.mrf.mxu0
  %v310 = vadd.f32 %v78, %v309
  %v311 = vpop.f32.mrf.mxu0
  %v312 = vadd.f32 %v82, %v311
  %v313 = vpop.f32.mrf.mxu0
  %v314 = vadd.f32 %v78, %v313
  %v315 = vpop.f32.mrf.mxu0
  %v316 = vadd.f32 %v82, %v315
  %317 = vdwg.mxu0
  %v318 = vld [vmem:[%s3] sm:$0xff]
  %v319 = vld [vmem:[%s3 + $0x8] sm:$0xff]
  %v320 = vld [vmem:[%s3 + $0x10] sm:$0xff]
  %v321 = vld [vmem:[%s3 + $0x18] sm:$0xff]
  %v322 = vld [vmem:[%s3 + $0x20] sm:$0xff]
  %v323 = vld [vmem:[%s3 + $0x28] sm:$0xff]
  %v324 = vld [vmem:[%s3 + $0x30] sm:$0xff]
  %v325 = vld [vmem:[%s3 + $0x38] sm:$0xff]
  %v326 = vld [vmem:[%s3 + $0x40] sm:$0xff]
  %v327 = vld [vmem:[%s3 + $0x48] sm:$0xff]
  %v328 = vld [vmem:[%s3 + $0x50] sm:$0xff]
  %v329 = vld [vmem:[%s3 + $0x58] sm:$0xff]
  %v330 = vld [vmem:[%s3 + $0x60] sm:$0xff]
  %v331 = vld [vmem:[%s3 + $0x68] sm:$0xff]
  %v332 = vld [vmem:[%s3 + $0x70] sm:$0xff]
  %v333 = vld [vmem:[%s3 + $0x78] sm:$0xff]
  %v334 = vadd.f32 %v280, %v318
  %v335 = vadd.f32 %v282, %v319
  %v336 = vadd.f32 %v284, %v320
  %v337 = vadd.f32 %v286, %v321
  %v338 = vadd.f32 %v290, %v322
  %v339 = vadd.f32 %v292, %v323
  %v340 = vadd.f32 %v294, %v324
  %v341 = vadd.f32 %v296, %v325
  %v342 = vadd.f32 %v300, %v326
  %v343 = vadd.f32 %v302, %v327
  %v344 = vadd.f32 %v304, %v328
  %v345 = vadd.f32 %v306, %v329
  %v346 = vadd.f32 %v310, %v330
  %v347 = vadd.f32 %v312, %v331
  %v348 = vadd.f32 %v314, %v332
  %v349 = vadd.f32 %v316, %v333
  %350 = vst [vmem:[%s4] sm:$0xff] %v334
  %351 = vst [vmem:[%s4 + $0x8] sm:$0xff] %v335
  %352 = vst [vmem:[%s4 + $0x10] sm:$0xff] %v336
  %353 = vst [vmem:[%s4 + $0x18] sm:$0xff] %v337
  %354 = vst [vmem:[%s4 + $0x20] sm:$0xff] %v338
  %355 = vst [vmem:[%s4 + $0x28] sm:$0xff] %v339
  %356 = vst [vmem:[%s4 + $0x30] sm:$0xff] %v340
  %357 = vst [vmem:[%s4 + $0x38] sm:$0xff] %v341
  %358 = vst [vmem:[%s4 + $0x40] sm:$0xff] %v342
  %359 = vst [vmem:[%s4 + $0x48] sm:$0xff] %v343
  %360 = vst [vmem:[%s4 + $0x50] sm:$0xff] %v344
  %361 = vst [vmem:[%s4 + $0x58] sm:$0xff] %v345
  %362 = vst [vmem:[%s4 + $0x60] sm:$0xff] %v346
  %363 = vst [vmem:[%s4 + $0x68] sm:$0xff] %v347
  %364 = vst [vmem:[%s4 + $0x70] sm:$0xff] %v348
  %365 = vst [vmem:[%s4 + $0x78] sm:$0xff] %v349
  // Predicated region
  $region18: #{decoder_layer.10} parent=0 // pred_check
    _
  $region19: #{decoder_layer.10} parent=0 // pred_check_branch
    %367 = sbr.rel (0) target = $region21
  $region20: #{decoder_layer.10} parent=0 // pred_region
    _
  $region21: #{decoder_layer.10} parent=0 // pred_fallthru
    _
  // Predicated region
  $region22: #{decoder_layer.10} parent=0 // pred_check
    _
  $region23: #{decoder_layer.10} parent=0 // pred_check_branch
    %369 = sbr.rel (0) target = $region25
  $region24: #{decoder_layer.10} parent=0 // pred_region
    _
  $region25: #{decoder_layer.10} parent=0 // pred_fallthru
    _

// kernel: decoder_layer.8
$region0: #{decoder_layer.8}
  #allocation0 [shape = 'u32[]', space=smem, size = 0x4, offset = 0x4, fixed_abs, tag = 'smem constant byte address 0x4 - core index']
  #allocation1 [shape = 'u32[144,128]{1,0:T(1,128)}', space=vmem, size = 0x12000, scoped, tag = 'internal scratch']
  %s0 = inlined_call_operand.hbm [shape: f32[64,256], index: 0, kind: input, shape index: {}]
  %s1 = inlined_call_operand.hbm [shape: bf16[256,768], index: 1, kind: input, shape index: {}]
  %s2 = inlined_call_operand.vmem [shape: f32[1,768], index: 2, kind: input, shape index: {}]
  %s3 = inlined_call_operand.vmem [shape: f32[1,256], index: 3, kind: input, shape index: {}]
  %s4 = inlined_call_operand.vmem [shape: f32[1,256], index: 4, kind: input, shape index: {}]
  %s5 = inlined_call_operand.vmem [shape: f32[64,768], index: 5, kind: output, shape index: {}]
  %s6 = sld [smem:[#allocation0]]
  $region80: #{decoder_layer.8} parent=0
    _
  %s8 = ssub.s32 1, %s6
  %s9 = scalar_select 0, %s8, %s6
  $region1: #{decoder_layer.8} parent=0
    #allocation2 [shape = 'u8[65536]{0}', space=vmem, size = 0x10000, scoped, tag = 'input window, operand 0, single buffered']
    #allocation3 [shape = 's32[2]{0}', space=sflag, size = 0x8, scoped, tag = 'scoped memory for decoder_layer.8']
    #allocation4 [shape = 'u8[393216]{0}', space=vmem, size = 0x60000, scoped, tag = 'input window, operand 1']
    #allocation5 [shape = 's32[2]{0}', space=sflag, size = 0x8, scoped, tag = 'scoped memory for decoder_layer.8']
    #allocation6 [shape = 'u8[196608]{0}', space=vmem, size = 0x30000, scoped, tag = 'output window, operand 0']
    %10 = vsyncpa [#allocation3], 0
    %11 = vsyncpa [#allocation5], 0
    %s12 = scalar_lea.sflag [#allocation5], 1
    %13 = vsyncpa %s12, 0
    loop: start=0, step=1, limit=4
    $region2: #{decoder_layer.8} parent=1 // loop_pre_header
      _
    $region3: #{decoder_layer.8} parent=1 // loop_header
      %s15 = sphi 0, %s19
      %p16 = scmp.ge.s32.totalorder %s15, 4
      %s22 = sphi 0, %s34
      %s23 = sphi 0, %s30
      %s24 = sphi 0, %s22
      %s25 = sphi 0, %s23
      %s26 = sphi 0, %s24
      %s27 = sphi 0, %s25
      %s37 = sphi 0, %s39
      %s40 = sphi 0, %s37
      %s41 = sphi 0, %s40
      %s57 = sphi 0, %s41
      %s63 = sphi 0, %s65
      %s66 = sphi 0, %s63
      %s67 = sphi 0, %s66
      %s83 = sphi 0, %s67
      %s89 = sphi 0, %s91
      %s92 = sphi 0, %s89
      %s93 = sphi 0, %s92
      %s109 = sphi 0, %s93
      %s113 = sphi 0, %s113
      %s115 = sphi 0, %s113
      %s116 = sphi 0, %s115
      %s130 = sphi 0, %s116
      %s134 = sphi 0, %s134
      %s136 = sphi 0, %s134
      %s137 = sphi 0, %s136
      %s151 = sphi 0, %s137
      %s159 = sphi 0, %s161
      %s162 = sphi 0, %s159
      %s163 = sphi 0, %s162
      %s179 = sphi 0, %s163
    $region4: #{decoder_layer.8} parent=1 // loop_header_branch
      %18 = sbr.rel (%p16) target = $region8
    $region5: #{decoder_layer.8} parent=1 // loop_body
      %s20 = ssub.s32 %s15, 1
      %s21 = ssub.s32 %s15, 2
      %s28 = sadd.s32 1, %s23
      %p29 = scmp.ge.s32.totalorder %s28, 2
      %s30 = scalar_select %p29, 0, %s28
      %s31 = sadd.s32 1, %s22
      %s32 = scalar_select %p29, %s31, %s22
      %p33 = scmp.ge.s32.totalorder %s32, 1
      %s34 = scalar_select %p33, 0, %s32
      %s35 = ssub.s32 %s22, %s34
      %p36 = scmp.eq.s32.totalorder %s35, 0
      %s38 = sadd.s32 %s37, 1
      %s39 = scalar_select %p36, %s37, %s38
      %p42 = pneg %p36
      %p43 = scmp.eq.s32.totalorder %s15, 1
      %p44 = por %p42, %p43
      %p45 = scmp.ne.s32.totalorder %s37, %s40
      %p46 = scmp.eq.s32.totalorder %s15, 0
      %p47 = por %p45, %p46
      %p48 = scmp.ne.s32.totalorder %s37, %s40
      %p49 = scmp.eq.s32.totalorder %s20, 1
      %p50 = por %p48, %p49
      %p51 = scmp.ne.s32.totalorder %s40, %s41
      %p52 = scmp.eq.s32.totalorder %s20, 0
      %p53 = por %p51, %p52
      %p54 = scmp.ne.s32.totalorder %s40, %s41
      %p55 = scmp.eq.s32.totalorder %s21, 1
      %p56 = por %p54, %p55
      %p58 = scmp.ne.s32.totalorder %s41, %s57
      %p59 = scmp.eq.s32.totalorder %s21, 0
      %p60 = por %p58, %p59
      %s61 = ssub.s32 %s23, %s30
      %p62 = scmp.eq.s32.totalorder %s61, 0
      %s64 = sadd.s32 %s63, 1
      %s65 = scalar_select %p62, %s63, %s64
      %p68 = pneg %p62
      %p69 = scmp.eq.s32.totalorder %s15, 1
      %p70 = por %p68, %p69
      %p71 = scmp.ne.s32.totalorder %s63, %s66
      %p72 = scmp.eq.s32.totalorder %s15, 0
      %p73 = por %p71, %p72
      %p74 = scmp.ne.s32.totalorder %s63, %s66
      %p75 = scmp.eq.s32.totalorder %s20, 1
      %p76 = por %p74, %p75
      %p77 = scmp.ne.s32.totalorder %s66, %s67
      %p78 = scmp.eq.s32.totalorder %s20, 0
      %p79 = por %p77, %p78
      %p80 = scmp.ne.s32.totalorder %s66, %s67
      %p81 = scmp.eq.s32.totalorder %s21, 1
      %p82 = por %p80, %p81
      %p84 = scmp.ne.s32.totalorder %s67, %s83
      %p85 = scmp.eq.s32.totalorder %s21, 0
      %p86 = por %p84, %p85
      %s87 = ssub.s32 %s23, %s30
      %p88 = scmp.eq.s32.totalorder %s87, 0
      %s90 = sadd.s32 %s89, 1
      %s91 = scalar_select %p88, %s89, %s90
      %p94 = pneg %p88
      %p95 = scmp.eq.s32.totalorder %s15, 1
      %p96 = por %p94, %p95
      %p97 = scmp.ne.s32.totalorder %s89, %s92
      %p98 = scmp.eq.s32.totalorder %s15, 0
      %p99 = por %p97, %p98
      %p100 = scmp.ne.s32.totalorder %s89, %s92
      %p101 = scmp.eq.s32.totalorder %s20, 1
      %p102 = por %p100, %p101
      %p103 = scmp.ne.s32.totalorder %s92, %s93
      %p104 = scmp.eq.s32.totalorder %s20, 0
      %p105 = por %p103, %p104
      %p106 = scmp.ne.s32.totalorder %s92, %s93
      %p107 = scmp.eq.s32.totalorder %s21, 1
      %p108 = por %p106, %p107
      %p110 = scmp.ne.s32.totalorder %s93, %s109
      %p111 = scmp.eq.s32.totalorder %s21, 0
      %p112 = por %p110, %p111
      %s114 = sadd.s32 %s113, 1
      %p117 = scmp.eq.s32.totalorder %s15, 1
      %p118 = scmp.ne.s32.totalorder %s113, %s115
      %p119 = scmp.eq.s32.totalorder %s15, 0
      %p120 = por %p118, %p119
      %p121 = scmp.ne.s32.totalorder %s113, %s115
      %p122 = scmp.eq.s32.totalorder %s20, 1
      %p123 = por %p121, %p122
      %p124 = scmp.ne.s32.totalorder %s115, %s116
      %p125 = scmp.eq.s32.totalorder %s20, 0
      %p126 = por %p124, %p125
      %p127 = scmp.ne.s32.totalorder %s115, %s116
      %p128 = scmp.eq.s32.totalorder %s21, 1
      %p129 = por %p127, %p128
      %p131 = scmp.ne.s32.totalorder %s116, %s130
      %p132 = scmp.eq.s32.totalorder %s21, 0
      %p133 = por %p131, %p132
      %s135 = sadd.s32 %s134, 1
      %p138 = scmp.eq.s32.totalorder %s15, 1
      %p139 = scmp.ne.s32.totalorder %s134, %s136
      %p140 = scmp.eq.s32.totalorder %s15, 0
      %p141 = por %p139, %p140
      %p142 = scmp.ne.s32.totalorder %s134, %s136
      %p143 = scmp.eq.s32.totalorder %s20, 1
      %p144 = por %p142, %p143
      %p145 = scmp.ne.s32.totalorder %s136, %s137
      %p146 = scmp.eq.s32.totalorder %s20, 0
      %p147 = por %p145, %p146
      %p148 = scmp.ne.s32.totalorder %s136, %s137
      %p149 = scmp.eq.s32.totalorder %s21, 1
      %p150 = por %p148, %p149
      %p152 = scmp.ne.s32.totalorder %s137, %s151
      %p153 = scmp.eq.s32.totalorder %s21, 0
      %p154 = por %p152, %p153
      %s155 = ssub.s32 %s22, %s34
      %s156 = ssub.s32 %s23, %s30
      %s157 = sor.u32 %s155, %s156
      %p158 = scmp.eq.s32.totalorder %s157, 0
      %s160 = sadd.s32 %s159, 1
      %s161 = scalar_select %p158, %s159, %s160
      %p164 = pneg %p158
      %p165 = scmp.eq.s32.totalorder %s15, 1
      %p166 = por %p164, %p165
      %p167 = scmp.ne.s32.totalorder %s159, %s162
      %p168 = scmp.eq.s32.totalorder %s15, 0
      %p169 = por %p167, %p168
      %p170 = scmp.ne.s32.totalorder %s159, %s162
      %p171 = scmp.eq.s32.totalorder %s20, 1
      %p172 = por %p170, %p171
      %p173 = scmp.ne.s32.totalorder %s162, %s163
      %p174 = scmp.eq.s32.totalorder %s20, 0
      %p175 = por %p173, %p174
      %p176 = scmp.ne.s32.totalorder %s162, %s163
      %p177 = scmp.eq.s32.totalorder %s21, 1
      %p178 = por %p176, %p177
      %p180 = scmp.ne.s32.totalorder %s163, %s179
      %p181 = scmp.eq.s32.totalorder %s21, 0
      %p182 = por %p180, %p181
      %p183 = scmp.le.s32.totalorder 1, %s15
      %p184 = scmp.lt.s32.totalorder %s15, 3
      %p185 = pnand %p183, %p184
      %p186 = pneg %p185
      // Predicated region
      $region9: #{decoder_layer.8} parent=5 // pred_check
        _
      $region10: #{decoder_layer.8} parent=5 // pred_check_branch
        %188 = sbr.rel (%p185) target = $region12
      $region11: #{decoder_layer.8} parent=5 // pred_region
        %s189 = ssub.s32 %s15, 1
        // Predicated region
        $region13: #{decoder_layer.8} parent=11 // pred_check
          %p190 = pneg %p53
        $region14: #{decoder_layer.8} parent=11 // pred_check_branch
          %192 = sbr.rel (%p190) target = $region16
        $region15: #{decoder_layer.8} parent=11 // pred_region
          %s193 = smul.u32 8, %s24
          %s195 = ssub.s32 2048, 2048
          %196 = vsyncadd [#allocation3], %s195
          %s197 = smul.addr %s193, 2
          %s198 = smul.addr %s197, 128
          %s199 = scalar_lea.hbm %s0, %s198
          %s200 = sshll.u32 [#allocation2], 4
          %s201 = int_to_ptr.vmem [resolvable:$true] %s200
          %206 = dma.hbm_to_vmem [thread:$0]  %s199, 2048, %s201, [#allocation3], 256, 256, 16
        $region16: #{decoder_layer.8} parent=11 // pred_fallthru
          _
        // Predicated region
        $region17: #{decoder_layer.8} parent=11 // pred_check
          %p207 = pneg %p126
        $region18: #{decoder_layer.8} parent=11 // pred_check_branch
          %209 = sbr.rel (%p207) target = $region20
        $region19: #{decoder_layer.8} parent=11 // pred_region
          _
        $region20: #{decoder_layer.8} parent=11 // pred_fallthru
          _
        // Predicated region
        $region21: #{decoder_layer.8} parent=11 // pred_check
          %p210 = pneg %p147
        $region22: #{decoder_layer.8} parent=11 // pred_check_branch
          %212 = sbr.rel (%p210) target = $region24
        $region23: #{decoder_layer.8} parent=11 // pred_region
          _
        $region24: #{decoder_layer.8} parent=11 // pred_fallthru
          _
      $region12: #{decoder_layer.8} parent=5 // pred_fallthru
        _
      %p213 = scmp.lt.s32.totalorder %s15, 2
      // Predicated region
      $region25: #{decoder_layer.8} parent=5 // pred_check
        %p214 = pneg %p213
      $region26: #{decoder_layer.8} parent=5 // pred_check_branch
        %216 = sbr.rel (%p214) target = $region28
      $region27: #{decoder_layer.8} parent=5 // pred_region
        // Predicated region
        $region29: #{decoder_layer.8} parent=27 // pred_check
          %p217 = pneg %p73
        $region30: #{decoder_layer.8} parent=27 // pred_check_branch
          %219 = sbr.rel (%p217) target = $region32
        $region31: #{decoder_layer.8} parent=27 // pred_region
          %s220 = sand.u32 %s63, 1
          %s221 = scalar_lea.sflag [#allocation5], %s220
          %s222 = sand.u32 %s63, 1
          %s223 = smul.addr %s222, 384
          %s224 = scalar_lea.vmem [#allocation4], %s223
          %s225 = smul.u32 3, %s23
          %s227 = ssub.s32 6144, 6144
          %228 = vsyncadd %s221, %s227
          %s229 = smul.addr %s225, 64
          %s230 = scalar_lea.hbm %s1, %s229
          %s231 = sshll.u32 %s224, 4
          %s232 = int_to_ptr.vmem [resolvable:$true] %s231
          %237 = dma.hbm_to_vmem [thread:$0]  %s230, 6144, %s232, %s221, 384, 192, 12
        $region32: #{decoder_layer.8} parent=27 // pred_fallthru
          _
        // Predicated region
        $region33: #{decoder_layer.8} parent=27 // pred_check
          %p238 = pneg %p99
        $region34: #{decoder_layer.8} parent=27 // pred_check_branch
          %240 = sbr.rel (%p238) target = $region36
        $region35: #{decoder_layer.8} parent=27 // pred_region
          %s241 = smul.u32 3, %s23
          %p242 = scmp.lt.s32.totalorder %s241, 5
          %s243 = scalar_select %p242, %s241, 5
          %s244 = scalar_lea.vmem %s2, %s243
          %s245 = smul.u32 3, %s23
        $region36: #{decoder_layer.8} parent=27 // pred_fallthru
          _
      $region28: #{decoder_layer.8} parent=5 // pred_fallthru
        _
      %p246 = scmp.le.s32.totalorder 1, %s15
      %p247 = scmp.lt.s32.totalorder %s15, 3
      %p248 = pnand %p246, %p247
      %p249 = pneg %p248
      // Predicated region
      $region37: #{decoder_layer.8} parent=5 // pred_check
        _
      $region38: #{decoder_layer.8} parent=5 // pred_check_branch
        %251 = sbr.rel (%p248) target = $region40
      $region39: #{decoder_layer.8} parent=5 // pred_region
        %s252 = ssub.s32 %s15, 1
        // Predicated region
        $region41: #{decoder_layer.8} parent=39 // pred_check
          %p253 = pneg %p53
        $region42: #{decoder_layer.8} parent=39 // pred_check_branch
          %255 = sbr.rel (%p253) target = $region44
        $region43: #{decoder_layer.8} parent=39 // pred_region
          %256 = dma.done [#allocation3], 2048
        $region44: #{decoder_layer.8} parent=39 // pred_fallthru
          _
        %s257 = sand.u32 %s66, 1
        %s258 = scalar_lea.sflag [#allocation5], %s257
        %s259 = sand.u32 %s66, 1
        %s260 = smul.addr %s259, 384
        %s261 = scalar_lea.vmem [#allocation4], %s260
        // Predicated region
        $region45: #{decoder_layer.8} parent=39 // pred_check
          %p262 = pneg %p79
        $region46: #{decoder_layer.8} parent=39 // pred_check_branch
          %264 = sbr.rel (%p262) target = $region48
        $region47: #{decoder_layer.8} parent=39 // pred_region
          %265 = dma.done %s258, 6144
        $region48: #{decoder_layer.8} parent=39 // pred_fallthru
          _
        %p266 = pneg %p53
        %p267 = pneg %p50
        %s268 = sand.u32 %s66, 1
        %s269 = scalar_lea.sflag [#allocation5], %s268
        %s270 = sand.u32 %s66, 1
        %s271 = smul.addr %s270, 384
        %s272 = scalar_lea.vmem [#allocation4], %s271
        %p273 = pneg %p79
        %p274 = pneg %p76
        %s275 = smul.u32 3, %s25
        %p276 = scmp.lt.s32.totalorder %s275, 5
        %s277 = scalar_select %p276, %s275, 5
        %s278 = scalar_lea.vmem %s2, %s277
        %p279 = pneg %p105
        %p280 = pneg %p102
        %p281 = pneg %p126
        %p282 = pneg %p123
        %p283 = pneg %p147
        %p284 = pneg %p144
        %p285 = pneg %p175
        %p286 = pneg %p172
        %s287 = sand.u32 %s162, 1
        %s288 = sand.u32 %s162, 1
        %s289 = smul.addr %s288, 192
        %s290 = scalar_lea.vmem [#allocation6], %s289
        %s291 = smul.u32 8, %s24
        %s292 = smul.u32 3, %s25
        %s293 = smul.u32 3, %s25
        %p294 = scmp.lt.s32.totalorder %s293, 5
        %s295 = scalar_select %p294, %s293, 5
        %s296 = scalar_lea.vmem %s2, %s295
        %s297 = smul.u32 3, %s25
        %s298 = smul.u32 8, %s24
        %s299 = smul.u32 3, %s25
        %v301 = vld [vmem:[#allocation2] sm:$0xff]
        %v302 = vld [vmem:[#allocation2 + $0x8] sm:$0xff]
        %v303 = vld [vmem:[#allocation2 + $0x10] sm:$0xff]
        %v304 = vld [vmem:[#allocation2 + $0x18] sm:$0xff]
        %v305 = vld [vmem:[#allocation2 + $0x20] sm:$0xff]
        %v306 = vld [vmem:[#allocation2 + $0x28] sm:$0xff]
        %v307 = vld [vmem:[#allocation2 + $0x30] sm:$0xff]
        %v308 = vld [vmem:[#allocation2 + $0x38] sm:$0xff]
        %v309 = vld [vmem:[#allocation2 + $0x40] sm:$0xff]
        %v310 = vld [vmem:[#allocation2 + $0x48] sm:$0xff]
        %v311 = vld [vmem:[#allocation2 + $0x50] sm:$0xff]
        %v312 = vld [vmem:[#allocation2 + $0x58] sm:$0xff]
        %v313 = vld [vmem:[#allocation2 + $0x60] sm:$0xff]
        %v314 = vld [vmem:[#allocation2 + $0x68] sm:$0xff]
        %v315 = vld [vmem:[#allocation2 + $0x70] sm:$0xff]
        %v316 = vld [vmem:[#allocation2 + $0x78] sm:$0xff]
        %v317 = vld [vmem:[%s3] sm:$0x3]
        %v318 = vld [vmem:[%s4] sm:$0x3]
        %v319 = vadd.f32 %v301, %v302
        %320 = vadd.xlane.f32.xlu0 %v319
        %v321 = vpop.xlane.xlu0 %320
        %v322 = vadd.f32 %v303, %v304
        %323 = vadd.xlane.f32.xlu0 %v322
        %v324 = vpop.xlane.xlu0 %323
        %v325 = vadd.f32 %v305, %v306
        %326 = vadd.xlane.f32.xlu0 %v325
        %v327 = vpop.xlane.xlu0 %326
        %v328 = vadd.f32 %v307, %v308
        %329 = vadd.xlane.f32.xlu0 %v328
        %v330 = vpop.xlane.xlu0 %329
        %v331 = vadd.f32 %v309, %v310
        %332 = vadd.xlane.f32.xlu0 %v331
        %v333 = vpop.xlane.xlu0 %332
        %v334 = vadd.f32 %v311, %v312
        %335 = vadd.xlane.f32.xlu0 %v334
        %v336 = vpop.xlane.xlu0 %335
        %v337 = vadd.f32 %v313, %v314
        %338 = vadd.xlane.f32.xlu0 %v337
        %v339 = vpop.xlane.xlu0 %338
        %v340 = vadd.f32 %v315, %v316
        %341 = vadd.xlane.f32.xlu0 %v340
        %v342 = vpop.xlane.xlu0 %341
        %v343 = vrcp.pop 256.0
        %v344 = vmul.f32 %v321, %v343
        %v345 = vmul.f32 %v324, %v343
        %v346 = vmul.f32 %v327, %v343
        %v347 = vmul.f32 %v330, %v343
        %v348 = vmul.f32 %v333, %v343
        %v349 = vmul.f32 %v336, %v343
        %v350 = vmul.f32 %v339, %v343
        %v351 = vmul.f32 %v342, %v343
        %v352 = vsub.f32 %v301, %v344
        %v353 = vsub.f32 %v302, %v344
        %v354 = vsub.f32 %v303, %v345
        %v355 = vsub.f32 %v304, %v345
        %v356 = vsub.f32 %v305, %v346
        %v357 = vsub.f32 %v306, %v346
        %v358 = vsub.f32 %v307, %v347
        %v359 = vsub.f32 %v308, %v347
        %v360 = vsub.f32 %v309, %v348
        %v361 = vsub.f32 %v310, %v348
        %v362 = vsub.f32 %v311, %v349
        %v363 = vsub.f32 %v312, %v349
        %v364 = vsub.f32 %v313, %v350
        %v365 = vsub.f32 %v314, %v350
        %v366 = vsub.f32 %v315, %v351
        %v367 = vsub.f32 %v316, %v351
        %v368 = vmul.f32 %v352, %v352
        %v369 = vmul.f32 %v353, %v353
        %v370 = vmul.f32 %v354, %v354
        %v371 = vmul.f32 %v355, %v355
        %v372 = vmul.f32 %v356, %v356
        %v373 = vmul.f32 %v357, %v357
        %v374 = vmul.f32 %v358, %v358
        %v375 = vmul.f32 %v359, %v359
        %v376 = vmul.f32 %v360, %v360
        %v377 = vmul.f32 %v361, %v361
        %v378 = vmul.f32 %v362, %v362
        %v379 = vmul.f32 %v363, %v363
        %v380 = vmul.f32 %v364, %v364
        %v381 = vmul.f32 %v365, %v365
        %v382 = vmul.f32 %v366, %v366
        %v383 = vmul.f32 %v367, %v367
        %v384 = vadd.f32 %v368, %v369
        %385 = vadd.xlane.f32.xlu0 %v384
        %v386 = vpop.xlane.xlu0 %385
        %v387 = vadd.f32 %v370, %v371
        %388 = vadd.xlane.f32.xlu0 %v387
        %v389 = vpop.xlane.xlu0 %388
        %v390 = vadd.f32 %v372, %v373
        %391 = vadd.xlane.f32.xlu0 %v390
        %v392 = vpop.xlane.xlu0 %391
        %v393 = vadd.f32 %v374, %v375
        %394 = vadd.xlane.f32.xlu0 %v393
        %v395 = vpop.xlane.xlu0 %394
        %v396 = vadd.f32 %v376, %v377
        %397 = vadd.xlane.f32.xlu0 %v396
        %v398 = vpop.xlane.xlu0 %397
        %v399 = vadd.f32 %v378, %v379
        %400 = vadd.xlane.f32.xlu0 %v399
        %v401 = vpop.xlane.xlu0 %400
        %v402 = vadd.f32 %v380, %v381
        %403 = vadd.xlane.f32.xlu0 %v402
        %v404 = vpop.xlane.xlu0 %403
        %v405 = vadd.f32 %v382, %v383
        %406 = vadd.xlane.f32.xlu0 %v405
        %v407 = vpop.xlane.xlu0 %406
        %v408 = vmul.f32 %v386, 0.003921569
        %v409 = vmul.f32 %v389, 0.003921569
        %v410 = vmul.f32 %v392, 0.003921569
        %v411 = vmul.f32 %v395, 0.003921569
        %v412 = vmul.f32 %v398, 0.003921569
        %v413 = vmul.f32 %v401, 0.003921569
        %v414 = vmul.f32 %v404, 0.003921569
        %v415 = vmul.f32 %v407, 0.003921569
        %v416 = vrsqrt.pop %v408
        %v417 = vmul.f32 %v408, %v416
        %vm418 = vcmp.eq.f32.partialorder %v408, inf
        %v419 = vsel %vm418, %v408, %v417
        %vm420 = vcmp.eq.f32.partialorder %v408, 0.0
        %v421 = vand.u32 %v408, 2147483648
        %v422 = vsel %vm420, %v421, %v419
        %v423 = vrsqrt.pop %v409
        %v424 = vmul.f32 %v409, %v423
        %vm425 = vcmp.eq.f32.partialorder %v409, inf
        %v426 = vsel %vm425, %v409, %v424
        %vm427 = vcmp.eq.f32.partialorder %v409, 0.0
        %v428 = vand.u32 %v409, 2147483648
        %v429 = vsel %vm427, %v428, %v426
        %v430 = vrsqrt.pop %v410
        %v431 = vmul.f32 %v410, %v430
        %vm432 = vcmp.eq.f32.partialorder %v410, inf
        %v433 = vsel %vm432, %v410, %v431
        %vm434 = vcmp.eq.f32.partialorder %v410, 0.0
        %v435 = vand.u32 %v410, 2147483648
        %v436 = vsel %vm434, %v435, %v433
        %v437 = vrsqrt.pop %v411
        %v438 = vmul.f32 %v411, %v437
        %vm439 = vcmp.eq.f32.partialorder %v411, inf
        %v440 = vsel %vm439, %v411, %v438
        %vm441 = vcmp.eq.f32.partialorder %v411, 0.0
        %v442 = vand.u32 %v411, 2147483648
        %v443 = vsel %vm441, %v442, %v440
        %v444 = vrsqrt.pop %v412
        %v445 = vmul.f32 %v412, %v444
        %vm446 = vcmp.eq.f32.partialorder %v412, inf
        %v447 = vsel %vm446, %v412, %v445
        %vm448 = vcmp.eq.f32.partialorder %v412, 0.0
        %v449 = vand.u32 %v412, 2147483648
        %v450 = vsel %vm448, %v449, %v447
        %v451 = vrsqrt.pop %v413
        %v452 = vmul.f32 %v413, %v451
        %vm453 = vcmp.eq.f32.partialorder %v413, inf
        %v454 = vsel %vm453, %v413, %v452
        %vm455 = vcmp.eq.f32.partialorder %v413, 0.0
        %v456 = vand.u32 %v413, 2147483648
        %v457 = vsel %vm455, %v456, %v454
        %v458 = vrsqrt.pop %v414
        %v459 = vmul.f32 %v414, %v458
        %vm460 = vcmp.eq.f32.partialorder %v414, inf
        %v461 = vsel %vm460, %v414, %v459
        %vm462 = vcmp.eq.f32.partialorder %v414, 0.0
        %v463 = vand.u32 %v414, 2147483648
        %v464 = vsel %vm462, %v463, %v461
        %v465 = vrsqrt.pop %v415
        %v466 = vmul.f32 %v415, %v465
        %vm467 = vcmp.eq.f32.partialorder %v415, inf
        %v468 = vsel %vm467, %v415, %v466
        %vm469 = vcmp.eq.f32.partialorder %v415, 0.0
        %v470 = vand.u32 %v415, 2147483648
        %v471 = vsel %vm469, %v470, %v468
        %v473 = vlaneseq
        %v474 = vshrl.u32 %v473, 7
        %v475 = vsub.s32 0, %v474
        %v476 = vrot.slane %v317, %v475
        %v477 = vlaneseq
        %v478 = vshrl.u32 %v477, 7
        %v479 = vsub.s32 1, %v478
        %v480 = vrot.slane %v317, %v479
        %v483 = vmul.f32 %v476, %v352
        %v484 = vmul.f32 %v480, %v353
        %v485 = vmul.f32 %v476, %v354
        %v486 = vmul.f32 %v480, %v355
        %v487 = vmul.f32 %v476, %v356
        %v488 = vmul.f32 %v480, %v357
        %v489 = vmul.f32 %v476, %v358
        %v490 = vmul.f32 %v480, %v359
        %v491 = vmul.f32 %v476, %v360
        %v492 = vmul.f32 %v480, %v361
        %v493 = vmul.f32 %v476, %v362
        %v494 = vmul.f32 %v480, %v363
        %v495 = vmul.f32 %v476, %v364
        %v496 = vmul.f32 %v480, %v365
        %v497 = vmul.f32 %v476, %v366
        %v498 = vmul.f32 %v480, %v367
        %v499 = vadd.f32 %v422, 1e-06
        %v500 = vadd.f32 %v429, 1e-06
        %v501 = vadd.f32 %v436, 1e-06
        %v502 = vadd.f32 %v443, 1e-06
        %v503 = vadd.f32 %v450, 1e-06
        %v504 = vadd.f32 %v457, 1e-06
        %v505 = vadd.f32 %v464, 1e-06
        %v506 = vadd.f32 %v471, 1e-06
        %v507 = vrcp.pop %v499
        %v508 = vrcp.pop %v500
        %v509 = vrcp.pop %v501
        %v510 = vrcp.pop %v502
        %v511 = vrcp.pop %v503
        %v512 = vrcp.pop %v504
        %v513 = vrcp.pop %v505
        %v514 = vrcp.pop %v506
        %v515 = vmul.f32 %v483, %v507
        %v516 = vmul.f32 %v484, %v507
        %v517 = vmul.f32 %v485, %v508
        %v518 = vmul.f32 %v486, %v508
        %v519 = vmul.f32 %v487, %v509
        %v520 = vmul.f32 %v488, %v509
        %v521 = vmul.f32 %v489, %v510
        %v522 = vmul.f32 %v490, %v510
        %v523 = vmul.f32 %v491, %v511
        %v524 = vmul.f32 %v492, %v511
        %v525 = vmul.f32 %v493, %v512
        %v526 = vmul.f32 %v494, %v512
        %v527 = vmul.f32 %v495, %v513
        %v528 = vmul.f32 %v496, %v513
        %v529 = vmul.f32 %v497, %v514
        %v530 = vmul.f32 %v498, %v514
        %v532 = vlaneseq
        %v533 = vshrl.u32 %v532, 7
        %v534 = vsub.s32 0, %v533
        %v535 = vrot.slane %v318, %v534
        %v536 = vlaneseq
        %v537 = vshrl.u32 %v536, 7
        %v538 = vsub.s32 1, %v537
        %v539 = vrot.slane %v318, %v538
        %v542 = vadd.f32 %v515, %v535
        %v543 = vadd.f32 %v516, %v539
        %v544 = vadd.f32 %v517, %v535
        %v545 = vadd.f32 %v518, %v539
        %v546 = vadd.f32 %v519, %v535
        %v547 = vadd.f32 %v520, %v539
        %v548 = vadd.f32 %v521, %v535
        %v549 = vadd.f32 %v522, %v539
        %v550 = vadd.f32 %v523, %v535
        %v551 = vadd.f32 %v524, %v539
        %v552 = vadd.f32 %v525, %v535
        %v553 = vadd.f32 %v526, %v539
        %v554 = vadd.f32 %v527, %v535
        %v555 = vadd.f32 %v528, %v539
        %v556 = vadd.f32 %v529, %v535
        %v557 = vadd.f32 %v530, %v539
        %v558 = vpack.c.bf16 %v544, %v542
        %v559 = vpack.c.bf16 %v545, %v543
        %v560 = vpack.c.bf16 %v548, %v546
        %v561 = vpack.c.bf16 %v549, %v547
        %v562 = vpack.c.bf16 %v552, %v550
        %v563 = vpack.c.bf16 %v553, %v551
        %v564 = vpack.c.bf16 %v556, %v554
        %v565 = vpack.c.bf16 %v557, %v555
        %v566 = vld [vmem:[%s261] sm:$0xff]
        %v567 = vld [vmem:[%s261 + $0x8] sm:$0xf]
        %v568 = vld [vmem:[%s261 + $0xc] sm:$0xff]
        %v569 = vld [vmem:[%s261 + $0x14] sm:$0xf]
        %v570 = vld [vmem:[%s261 + $0x18] sm:$0xff]
        %v571 = vld [vmem:[%s261 + $0x20] sm:$0xf]
        %v572 = vld [vmem:[%s261 + $0x24] sm:$0xff]
        %v573 = vld [vmem:[%s261 + $0x2c] sm:$0xf]
        %v574 = vld [vmem:[%s261 + $0x30] sm:$0xff]
        %v575 = vld [vmem:[%s261 + $0x38] sm:$0xf]
        %v576 = vld [vmem:[%s261 + $0x3c] sm:$0xff]
        %v577 = vld [vmem:[%s261 + $0x44] sm:$0xf]
        %v578 = vld [vmem:[%s261 + $0x48] sm:$0xff]
        %v579 = vld [vmem:[%s261 + $0x50] sm:$0xf]
        %v580 = vld [vmem:[%s261 + $0x54] sm:$0xff]
        %v581 = vld [vmem:[%s261 + $0x5c] sm:$0xf]
        %v582 = vld [vmem:[%s261 + $0x60] sm:$0xff]
        %v583 = vld [vmem:[%s261 + $0x68] sm:$0xf]
        %v584 = vld [vmem:[%s261 + $0x6c] sm:$0xff]
        %v585 = vld [vmem:[%s261 + $0x74] sm:$0xf]
        %v586 = vld [vmem:[%s261 + $0x78] sm:$0xff]
        %v587 = vld [vmem:[%s261 + $0x80] sm:$0xf]
        %v588 = vld [vmem:[%s261 + $0x84] sm:$0xff]
        %v589 = vld [vmem:[%s261 + $0x8c] sm:$0xf]
        %v590 = vld [vmem:[%s261 + $0x90] sm:$0xff]
        %v591 = vld [vmem:[%s261 + $0x98] sm:$0xf]
        %v592 = vld [vmem:[%s261 + $0x9c] sm:$0xff]
        %v593 = vld [vmem:[%s261 + $0xa4] sm:$0xf]
        %v594 = vld [vmem:[%s261 + $0xa8] sm:$0xff]
        %v595 = vld [vmem:[%s261 + $0xb0] sm:$0xf]
        %v596 = vld [vmem:[%s261 + $0xb4] sm:$0xff]
        %v597 = vld [vmem:[%s261 + $0xbc] sm:$0xf]
        %v598 = vld [vmem:[%s261 + $0xc0] sm:$0xff]
        %v599 = vld [vmem:[%s261 + $0xc8] sm:$0xf]
        %v600 = vld [vmem:[%s261 + $0xcc] sm:$0xff]
        %v601 = vld [vmem:[%s261 + $0xd4] sm:$0xf]
        %v602 = vld [vmem:[%s261 + $0xd8] sm:$0xff]
        %v603 = vld [vmem:[%s261 + $0xe0] sm:$0xf]
        %v604 = vld [vmem:[%s261 + $0xe4] sm:$0xff]
        %v605 = vld [vmem:[%s261 + $0xec] sm:$0xf]
        %v606 = vld [vmem:[%s261 + $0xf0] sm:$0xff]
        %v607 = vld [vmem:[%s261 + $0xf8] sm:$0xf]
        %v608 = vld [vmem:[%s261 + $0xfc] sm:$0xff]
        %v609 = vld [vmem:[%s261 + $0x104] sm:$0xf]
        %v610 = vld [vmem:[%s261 + $0x108] sm:$0xff]
        %v611 = vld [vmem:[%s261 + $0x110] sm:$0xf]
        %v612 = vld [vmem:[%s261 + $0x114] sm:$0xff]
        %v613 = vld [vmem:[%s261 + $0x11c] sm:$0xf]
        %v614 = vld [vmem:[%s261 + $0x120] sm:$0xff]
        %v615 = vld [vmem:[%s261 + $0x128] sm:$0xf]
        %v616 = vld [vmem:[%s261 + $0x12c] sm:$0xff]
        %v617 = vld [vmem:[%s261 + $0x134] sm:$0xf]
        %v618 = vld [vmem:[%s261 + $0x138] sm:$0xff]
        %v619 = vld [vmem:[%s261 + $0x140] sm:$0xf]
        %v620 = vld [vmem:[%s261 + $0x144] sm:$0xff]
        %v621 = vld [vmem:[%s261 + $0x14c] sm:$0xf]
        %v622 = vld [vmem:[%s261 + $0x150] sm:$0xff]
        %v623 = vld [vmem:[%s261 + $0x158] sm:$0xf]
        %v624 = vld [vmem:[%s261 + $0x15c] sm:$0xff]
        %v625 = vld [vmem:[%s261 + $0x164] sm:$0xf]
        %v626 = vld [vmem:[%s261 + $0x168] sm:$0xff]
        %v627 = vld [vmem:[%s261 + $0x170] sm:$0xf]
        %v628 = vld [vmem:[%s261 + $0x174] sm:$0xff]
        %v629 = vld [vmem:[%s261 + $0x17c] sm:$0xf]
        %v630 = vld [vmem:[%s296] sm:$0x7]
        %v632 = vlaneseq
        %v633 = vshrl.u32 %v632, 7
        %v634 = vsub.s32 0, %v633
        %v635 = vrot.slane %v630, %v634
        %v636 = vlaneseq
        %v637 = vshrl.u32 %v636, 7
        %v638 = vsub.s32 1, %v637
        %v639 = vrot.slane %v630, %v638
        %v640 = vlaneseq
        %v641 = vshrl.u32 %v640, 7
        %v642 = vsub.s32 2, %v641
        %v643 = vrot.slane %v630, %v642
        %v711 = vunpack.c.l.b16 %v566
        %v712 = vunpack.c.h.b16 %v566
        %v713 = vunpack.c.l.b16 %v567
        %v714 = vunpack.c.l.b16 %v568
        %v715 = vunpack.c.h.b16 %v568
        %v716 = vunpack.c.l.b16 %v569
        %v717 = vunpack.c.l.b16 %v570
        %v718 = vunpack.c.h.b16 %v570
        %v719 = vunpack.c.l.b16 %v571
        %v720 = vunpack.c.l.b16 %v572
        %v721 = vunpack.c.h.b16 %v572
        %v722 = vunpack.c.l.b16 %v573
        %v723 = vunpack.c.l.b16 %v574
        %v724 = vunpack.c.h.b16 %v574
        %v725 = vunpack.c.l.b16 %v575
        %v726 = vunpack.c.l.b16 %v576
        %v727 = vunpack.c.h.b16 %v576
        %v728 = vunpack.c.l.b16 %v577
        %v729 = vunpack.c.l.b16 %v578
        %v730 = vunpack.c.h.b16 %v578
        %v731 = vunpack.c.l.b16 %v579
        %v732 = vunpack.c.l.b16 %v580
        %v733 = vunpack.c.h.b16 %v580
        %v734 = vunpack.c.l.b16 %v581
        %v735 = vunpack.c.l.b16 %v582
        %v736 = vunpack.c.h.b16 %v582
        %v737 = vunpack.c.l.b16 %v583
        %v738 = vunpack.c.l.b16 %v584
        %v739 = vunpack.c.h.b16 %v584
        %v740 = vunpack.c.l.b16 %v585
        %v741 = vunpack.c.l.b16 %v586
        %v742 = vunpack.c.h.b16 %v586
        %v743 = vunpack.c.l.b16 %v587
        %v744 = vunpack.c.l.b16 %v588
        %v745 = vunpack.c.h.b16 %v588
        %v746 = vunpack.c.l.b16 %v589
        %v747 = vunpack.c.l.b16 %v590
        %v748 = vunpack.c.h.b16 %v590
        %v749 = vunpack.c.l.b16 %v591
        %v750 = vunpack.c.l.b16 %v592
        %v751 = vunpack.c.h.b16 %v592
        %v752 = vunpack.c.l.b16 %v593
        %v753 = vunpack.c.l.b16 %v594
        %v754 = vunpack.c.h.b16 %v594
        %v755 = vunpack.c.l.b16 %v595
        %v756 = vunpack.c.l.b16 %v596
        %v757 = vunpack.c.h.b16 %v596
        %v758 = vunpack.c.l.b16 %v597
        %v759 = vunpack.c.l.b16 %v598
        %v760 = vunpack.c.h.b16 %v598
        %v761 = vunpack.c.l.b16 %v599
        %v762 = vunpack.c.l.b16 %v600
        %v763 = vunpack.c.h.b16 %v600
        %v764 = vunpack.c.l.b16 %v601
        %v765 = vunpack.c.l.b16 %v602
        %v766 = vunpack.c.h.b16 %v602
        %v767 = vunpack.c.l.b16 %v603
        %v768 = vunpack.c.l.b16 %v604
        %v769 = vunpack.c.h.b16 %v604
        %v770 = vunpack.c.l.b16 %v605
        %v771 = vunpack.c.l.b16 %v606
        %v772 = vunpack.c.h.b16 %v606
        %v773 = vunpack.c.l.b16 %v607
        %v774 = vunpack.c.l.b16 %v608
        %v775 = vunpack.c.h.b16 %v608
        %v776 = vunpack.c.l.b16 %v609
        %v777 = vunpack.c.l.b16 %v610
        %v778 = vunpack.c.h.b16 %v610
        %v779 = vunpack.c.l.b16 %v611
        %v780 = vunpack.c.l.b16 %v612
        %v781 = vunpack.c.h.b16 %v612
        %v782 = vunpack.c.l.b16 %v613
        %v783 = vunpack.c.l.b16 %v614
        %v784 = vunpack.c.h.b16 %v614
        %v785 = vunpack.c.l.b16 %v615
        %v786 = vunpack.c.l.b16 %v616
        %v787 = vunpack.c.h.b16 %v616
        %v788 = vunpack.c.l.b16 %v617
        %v789 = vunpack.c.l.b16 %v618
        %v790 = vunpack.c.h.b16 %v618
        %v791 = vunpack.c.l.b16 %v619
        %v792 = vunpack.c.l.b16 %v620
        %v793 = vunpack.c.h.b16 %v620
        %v794 = vunpack.c.l.b16 %v621
        %v795 = vunpack.c.l.b16 %v622
        %v796 = vunpack.c.h.b16 %v622
        %v797 = vunpack.c.l.b16 %v623
        %v798 = vunpack.c.l.b16 %v624
        %v799 = vunpack.c.h.b16 %v624
        %v800 = vunpack.c.l.b16 %v625
        %v801 = vunpack.c.l.b16 %v626
        %v802 = vunpack.c.h.b16 %v626
        %v803 = vunpack.c.l.b16 %v627
        %v804 = vunpack.c.l.b16 %v628
        %v805 = vunpack.c.h.b16 %v628
        %v806 = vunpack.c.l.b16 %v629
        %v807 = vpack.c.b16 %v714, %v711
        %v808 = vpack.c.b16 %v715, %v712
        %v809 = vpack.c.b16 %v716, %v713
        %v810 = vpack.c.b16 %v720, %v717
        %v811 = vpack.c.b16 %v721, %v718
        %v812 = vpack.c.b16 %v722, %v719
        %v813 = vpack.c.b16 %v726, %v723
        %v814 = vpack.c.b16 %v727, %v724
        %v815 = vpack.c.b16 %v728, %v725
        %v816 = vpack.c.b16 %v732, %v729
        %v817 = vpack.c.b16 %v733, %v730
        %v818 = vpack.c.b16 %v734, %v731
        %v819 = vpack.c.b16 %v738, %v735
        %v820 = vpack.c.b16 %v739, %v736
        %v821 = vpack.c.b16 %v740, %v737
        %v822 = vpack.c.b16 %v744, %v741
        %v823 = vpack.c.b16 %v745, %v742
        %v824 = vpack.c.b16 %v746, %v743
        %v825 = vpack.c.b16 %v750, %v747
        %v826 = vpack.c.b16 %v751, %v748
        %v827 = vpack.c.b16 %v752, %v749
        %v828 = vpack.c.b16 %v756, %v753
        %v829 = vpack.c.b16 %v757, %v754
        %v830 = vpack.c.b16 %v758, %v755
        %v831 = vpack.c.b16 %v762, %v759
        %v832 = vpack.c.b16 %v763, %v760
        %v833 = vpack.c.b16 %v764, %v761
        %v834 = vpack.c.b16 %v768, %v765
        %v835 = vpack.c.b16 %v769, %v766
        %v836 = vpack.c.b16 %v770, %v767
        %v837 = vpack.c.b16 %v774, %v771
        %v838 = vpack.c.b16 %v775, %v772
        %v839 = vpack.c.b16 %v776, %v773
        %v840 = vpack.c.b16 %v780, %v777
        %v841 = vpack.c.b16 %v781, %v778
        %v842 = vpack.c.b16 %v782, %v779
        %v843 = vpack.c.b16 %v786, %v783
        %v844 = vpack.c.b16 %v787, %v784
        %v845 = vpack.c.b16 %v788, %v785
        %v846 = vpack.c.b16 %v792, %v789
        %v847 = vpack.c.b16 %v793, %v790
        %v848 = vpack.c.b16 %v794, %v791
        %v849 = vpack.c.b16 %v798, %v795
        %v850 = vpack.c.b16 %v799, %v796
        %v851 = vpack.c.b16 %v800, %v797
        %v852 = vpack.c.b16 %v804, %v801
        %v853 = vpack.c.b16 %v805, %v802
        %v854 = vpack.c.b16 %v806, %v803
        %903 = vmatprep.subr.bf16.mxu0 %v829
        %904 = vmatpush1.bf16.msra.mxu0 %v828
        %905 = vmatprep.subr.bf16.mxu0 %v826
        %906 = vmatpush1.bf16.msra.mxu0 %v825
        %907 = vmatprep.subr.bf16.mxu0 %v823
        %908 = vmatpush1.bf16.msra.mxu0 %v822
        %909 = vmatprep.subr.bf16.mxu0 %v820
        %910 = vmatpush1.bf16.msra.mxu0 %v819
        %911 = vmatprep.subr.bf16.mxu0 %v817
        %912 = vmatpush1.bf16.msra.mxu0 %v816
        %913 = vmatprep.subr.bf16.mxu0 %v814
        %914 = vmatpush1.bf16.msra.mxu0 %v813
        %915 = vmatprep.subr.bf16.mxu0 %v811
        %916 = vmatpush1.bf16.msra.mxu0 %v810
        %917 = vmatprep.subr.bf16.mxu0 %v808
        %918 = vmatpush1.bf16.msra.mxu0 %v807
        %919 = vmatprep.subr.bf16.mxu0 %v853
        %920 = vmatpush2.bf16.msra.mxu0 %v852
        %921 = vmatprep.subr.bf16.mxu0 %v850
        %922 = vmatpush2.bf16.msra.mxu0 %v849
        %923 = vmatprep.subr.bf16.mxu0 %v847
        %924 = vmatpush2.bf16.msra.mxu0 %v846
        %925 = vmatprep.subr.bf16.mxu0 %v844
        %926 = vmatpush2.bf16.msra.mxu0 %v843
        %927 = vmatprep.subr.bf16.mxu0 %v841
        %928 = vmatpush2.bf16.msra.mxu0 %v840
        %929 = vmatprep.subr.bf16.mxu0 %v838
        %930 = vmatpush2.bf16.msra.mxu0 %v837
        %931 = vmatprep.subr.bf16.mxu0 %v835
        %932 = vmatpush2.bf16.msra.mxu0 %v834
        %933 = vmatprep.subr.bf16.mxu0 %v832
        %934 = vmatpush2.bf16.msra.mxu0 %v831
        %935 = vmatprep.mubr.bf16.mxu0 %v559
        %936 = vmatmul.mubr.bf16.gmra.mxu0 %v558
        %v937 = vpop.f32.mrf.mxu0
        %v938 = vadd.f32 %v635, %v937
        %v939 = vpop.f32.mrf.mxu0
        %v940 = vadd.f32 %v639, %v939
        %v941 = vpop.f32.mrf.mxu0
        %v942 = vadd.f32 %v635, %v941
        %v943 = vpop.f32.mrf.mxu0
        %v944 = vadd.f32 %v639, %v943
        %945 = vmatprep.mubr.bf16.mxu0 %v561
        %946 = vmatmul.mubr.bf16.gmra.mxu0 %v560
        %v947 = vpop.f32.mrf.mxu0
        %v948 = vadd.f32 %v635, %v947
        %v949 = vpop.f32.mrf.mxu0
        %v950 = vadd.f32 %v639, %v949
        %v951 = vpop.f32.mrf.mxu0
        %v952 = vadd.f32 %v635, %v951
        %v953 = vpop.f32.mrf.mxu0
        %v954 = vadd.f32 %v639, %v953
        %955 = vmatprep.mubr.bf16.mxu0 %v563
        %956 = vmatmul.mubr.bf16.gmra.mxu0 %v562
        %v957 = vpop.f32.mrf.mxu0
        %v958 = vadd.f32 %v635, %v957
        %v959 = vpop.f32.mrf.mxu0
        %v960 = vadd.f32 %v639, %v959
        %v961 = vpop.f32.mrf.mxu0
        %v962 = vadd.f32 %v635, %v961
        %v963 = vpop.f32.mrf.mxu0
        %v964 = vadd.f32 %v639, %v963
        %965 = vmatprep.mubr.bf16.mxu0 %v565
        %966 = vmatmul.mubr.bf16.gmra.mxu0 %v564
        %v967 = vpop.f32.mrf.mxu0
        %v968 = vadd.f32 %v635, %v967
        %v969 = vpop.f32.mrf.mxu0
        %v970 = vadd.f32 %v639, %v969
        %v971 = vpop.f32.mrf.mxu0
        %v972 = vadd.f32 %v635, %v971
        %v973 = vpop.f32.mrf.mxu0
        %v974 = vadd.f32 %v639, %v973
        %975 = vdwg.mxu0
        %976 = vmatprep.subr.bf16.mxu0 0
        %977 = vmatpush1.bf16.msra.mxu0 %v830
        %978 = vmatprep.subr.bf16.mxu0 0
        %979 = vmatpush1.bf16.msra.mxu0 %v827
        %980 = vmatprep.subr.bf16.mxu0 0
        %981 = vmatpush1.bf16.msra.mxu0 %v824
        %982 = vmatprep.subr.bf16.mxu0 0
        %983 = vmatpush1.bf16.msra.mxu0 %v821
        %984 = vmatprep.subr.bf16.mxu0 0
        %985 = vmatpush1.bf16.msra.mxu0 %v818
        %986 = vmatprep.subr.bf16.mxu0 0
        %987 = vmatpush1.bf16.msra.mxu0 %v815
        %988 = vmatprep.subr.bf16.mxu0 0
        %989 = vmatpush1.bf16.msra.mxu0 %v812
        %990 = vmatprep.subr.bf16.mxu0 0
        %991 = vmatpush1.bf16.msra.mxu0 %v809
        %992 = vmatprep.subr.bf16.mxu0 0
        %993 = vmatpush2.bf16.msra.mxu0 %v854
        %994 = vmatprep.subr.bf16.mxu0 0
        %995 = vmatpush2.bf16.msra.mxu0 %v851
        %996 = vmatprep.subr.bf16.mxu0 0
        %997 = vmatpush2.bf16.msra.mxu0 %v848
        %998 = vmatprep.subr.bf16.mxu0 0
        %999 = vmatpush2.bf16.msra.mxu0 %v845
        %1000 = vmatprep.subr.bf16.mxu0 0
        %1001 = vmatpush2.bf16.msra.mxu0 %v842
        %1002 = vmatprep.subr.bf16.mxu0 0
        %1003 = vmatpush2.bf16.msra.mxu0 %v839
        %1004 = vmatprep.subr.bf16.mxu0 0
        %1005 = vmatpush2.bf16.msra.mxu0 %v836
        %1006 = vmatprep.subr.bf16.mxu0 0
        %1007 = vmatpush2.bf16.msra.mxu0 %v833
        %1008 = vmatprep.mubr.bf16.mxu0 %v559
        %1009 = vmatmul.mubr.bf16.gmra.mxu0 %v558
        %v1010 = vpop.f32.mrf.mxu0
        %v1011 = vadd.f32 %v643, %v1010
        %v1012 = vpop.f32.mrf.mxu0
        %v1013 = vpop.f32.mrf.mxu0
        %v1014 = vadd.f32 %v643, %v1013
        %v1015 = vpop.f32.mrf.mxu0
        %1016 = vmatprep.mubr.bf16.mxu0 %v561
        %1017 = vmatmul.mubr.bf16.gmra.mxu0 %v560
        %v1018 = vpop.f32.mrf.mxu0
        %v1019 = vadd.f32 %v643, %v1018
        %v1020 = vpop.f32.mrf.mxu0
        %v1021 = vpop.f32.mrf.mxu0
        %v1022 = vadd.f32 %v643, %v1021
        %v1023 = vpop.f32.mrf.mxu0
        %1024 = vmatprep.mubr.bf16.mxu0 %v563
        %1025 = vmatmul.mubr.bf16.gmra.mxu0 %v562
        %v1026 = vpop.f32.mrf.mxu0
        %v1027 = vadd.f32 %v643, %v1026
        %v1028 = vpop.f32.mrf.mxu0
        %v1029 = vpop.f32.mrf.mxu0
        %v1030 = vadd.f32 %v643, %v1029
        %v1031 = vpop.f32.mrf.mxu0
        %1032 = vmatprep.mubr.bf16.mxu0 %v565
        %1033 = vmatmul.mubr.bf16.gmra.mxu0 %v564
        %v1034 = vpop.f32.mrf.mxu0
        %v1035 = vadd.f32 %v643, %v1034
        %v1036 = vpop.f32.mrf.mxu0
        %v1037 = vpop.f32.mrf.mxu0
        %v1038 = vadd.f32 %v643, %v1037
        %v1039 = vpop.f32.mrf.mxu0
        %1040 = vdwg.mxu0
        %1041 = vst [vmem:[%s290] sm:$0xff] %v938
        %1042 = vst [vmem:[%s290 + $0x8] sm:$0xff] %v940
        %1043 = vst [vmem:[%s290 + $0x10] sm:$0xff] %v1011
        %1044 = vst [vmem:[%s290 + $0x18] sm:$0xff] %v942
        %1045 = vst [vmem:[%s290 + $0x20] sm:$0xff] %v944
        %1046 = vst [vmem:[%s290 + $0x28] sm:$0xff] %v1014
        %1047 = vst [vmem:[%s290 + $0x30] sm:$0xff] %v948
        %1048 = vst [vmem:[%s290 + $0x38] sm:$0xff] %v950
        %1049 = vst [vmem:[%s290 + $0x40] sm:$0xff] %v1019
        %1050 = vst [vmem:[%s290 + $0x48] sm:$0xff] %v952
        %1051 = vst [vmem:[%s290 + $0x50] sm:$0xff] %v954
        %1052 = vst [vmem:[%s290 + $0x58] sm:$0xff] %v1022
        %1053 = vst [vmem:[%s290 + $0x60] sm:$0xff] %v958
        %1054 = vst [vmem:[%s290 + $0x68] sm:$0xff] %v960
        %1055 = vst [vmem:[%s290 + $0x70] sm:$0xff] %v1027
        %1056 = vst [vmem:[%s290 + $0x78] sm:$0xff] %v962
        %1057 = vst [vmem:[%s290 + $0x80] sm:$0xff] %v964
        %1058 = vst [vmem:[%s290 + $0x88] sm:$0xff] %v1030
        %1059 = vst [vmem:[%s290 + $0x90] sm:$0xff] %v968
        %1060 = vst [vmem:[%s290 + $0x98] sm:$0xff] %v970
        %1061 = vst [vmem:[%s290 + $0xa0] sm:$0xff] %v1035
        %1062 = vst [vmem:[%s290 + $0xa8] sm:$0xff] %v972
        %1063 = vst [vmem:[%s290 + $0xb0] sm:$0xff] %v974
        %1064 = vst [vmem:[%s290 + $0xb8] sm:$0xff] %v1038
        %s1065 = sand.u32 %s162, 1
        %s1066 = sand.u32 %s162, 1
        %s1067 = smul.addr %s1066, 192
        %s1068 = scalar_lea.vmem [#allocation6], %s1067
        // Predicated region
        $region49: #{decoder_layer.8} parent=39 // pred_check
          %p1069 = pneg %p172
        $region50: #{decoder_layer.8} parent=39 // pred_check_branch
          %1071 = sbr.rel (%p1069) target = $region52
        $region51: #{decoder_layer.8} parent=39 // pred_region
          %s1072 = smul.u32 8, %s24
          %s1073 = smul.u32 3, %s25
          %s1074 = smul.addr %s1072, 6
          %s1075 = sadd.s32 %s1073, %s1074
          %s1076 = smul.addr %s1075, 8
          %s1077 = scalar_lea.vmem %s5, %s1076
          // Predicated region
          $region53: #{decoder_layer.8} parent=51 // pred_check
            _
          $region54: #{decoder_layer.8} parent=51 // pred_check_branch
            %1079 = sbr.rel (0) target = $region56
          $region55: #{decoder_layer.8} parent=51 // pred_region
            // Predicated region
            $region57: #{decoder_layer.8} parent=55 // pred_check
              _
            $region58: #{decoder_layer.8} parent=55 // pred_check_branch
              %1081 = sbr.rel (0) target = $region60
            $region59: #{decoder_layer.8} parent=55 // pred_region
              loop: start=0, step=1, limit=1
              $region61: #{decoder_layer.8} parent=59 // loop_pre_header
                _
              $region62: #{decoder_layer.8} parent=59 // loop_header
                %s1083 = sphi 0, %s1087
                %p1084 = scmp.ge.s32.totalorder %s1083, 1
                %s1088 = sphi %s1068, %s1068
                %s1089 = sphi %s1077, %s1077
              $region63: #{decoder_layer.8} parent=59 // loop_header_branch
                %1086 = sbr.rel (%p1084) target = $region67
              $region64: #{decoder_layer.8} parent=59 // loop_body
                %v1090 = vld [vmem:[%s1088] sm:$0xff]
                %1091 = vst [vmem:[%s1089] sm:$0xff] %v1090
                %v1092 = vld [vmem:[%s1088 + $0x8] sm:$0xff]
                %1093 = vst [vmem:[%s1089 + $0x8] sm:$0xff] %v1092
                %v1094 = vld [vmem:[%s1088 + $0x10] sm:$0xff]
                %1095 = vst [vmem:[%s1089 + $0x10] sm:$0xff] %v1094
                %v1096 = vld [vmem:[%s1088 + $0x18] sm:$0xff]
                %1097 = vst [vmem:[%s1089 + $0x30] sm:$0xff] %v1096
                %v1098 = vld [vmem:[%s1088 + $0x20] sm:$0xff]
                %1099 = vst [vmem:[%s1089 + $0x38] sm:$0xff] %v1098
                %v1100 = vld [vmem:[%s1088 + $0x28] sm:$0xff]
                %1101 = vst [vmem:[%s1089 + $0x40] sm:$0xff] %v1100
                %v1102 = vld [vmem:[%s1088 + $0x30] sm:$0xff]
                %1103 = vst [vmem:[%s1089 + $0x60] sm:$0xff] %v1102
                %v1104 = vld [vmem:[%s1088 + $0x38] sm:$0xff]
                %1105 = vst [vmem:[%s1089 + $0x68] sm:$0xff] %v1104
                %v1106 = vld [vmem:[%s1088 + $0x40] sm:$0xff]
                %1107 = vst [vmem:[%s1089 + $0x70] sm:$0xff] %v1106
                %v1108 = vld [vmem:[%s1088 + $0x48] sm:$0xff]
                %1109 = vst [vmem:[%s1089 + $0x90] sm:$0xff] %v1108
                %v1110 = vld [vmem:[%s1088 + $0x50] sm:$0xff]
                %1111 = vst [vmem:[%s1089 + $0x98] sm:$0xff] %v1110
                %v1112 = vld [vmem:[%s1088 + $0x58] sm:$0xff]
                %1113 = vst [vmem:[%s1089 + $0xa0] sm:$0xff] %v1112
                %v1114 = vld [vmem:[%s1088 + $0x60] sm:$0xff]
                %1115 = vst [vmem:[%s1089 + $0xc0] sm:$0xff] %v1114
                %v1116 = vld [vmem:[%s1088 + $0x68] sm:$0xff]
                %1117 = vst [vmem:[%s1089 + $0xc8] sm:$0xff] %v1116
                %v1118 = vld [vmem:[%s1088 + $0x70] sm:$0xff]
                %1119 = vst [vmem:[%s1089 + $0xd0] sm:$0xff] %v1118
                %v1120 = vld [vmem:[%s1088 + $0x78] sm:$0xff]
                %1121 = vst [vmem:[%s1089 + $0xf0] sm:$0xff] %v1120
                %v1122 = vld [vmem:[%s1088 + $0x80] sm:$0xff]
                %1123 = vst [vmem:[%s1089 + $0xf8] sm:$0xff] %v1122
                %v1124 = vld [vmem:[%s1088 + $0x88] sm:$0xff]
                %1125 = vst [vmem:[%s1089 + $0x100] sm:$0xff] %v1124
                %v1126 = vld [vmem:[%s1088 + $0x90] sm:$0xff]
                %1127 = vst [vmem:[%s1089 + $0x120] sm:$0xff] %v1126
                %v1128 = vld [vmem:[%s1088 + $0x98] sm:$0xff]
                %1129 = vst [vmem:[%s1089 + $0x128] sm:$0xff] %v1128
                %v1130 = vld [vmem:[%s1088 + $0xa0] sm:$0xff]
                %1131 = vst [vmem:[%s1089 + $0x130] sm:$0xff] %v1130
                %v1132 = vld [vmem:[%s1088 + $0xa8] sm:$0xff]
                %1133 = vst [vmem:[%s1089 + $0x150] sm:$0xff] %v1132
                %v1134 = vld [vmem:[%s1088 + $0xb0] sm:$0xff]
                %1135 = vst [vmem:[%s1089 + $0x158] sm:$0xff] %v1134
                %v1136 = vld [vmem:[%s1088 + $0xb8] sm:$0xff]
                %1137 = vst [vmem:[%s1089 + $0x160] sm:$0xff] %v1136
              $region65: #{decoder_layer.8} parent=59 // loop_footer
                %s1087 = sadd.s32 1, %s1083
              $region66: #{decoder_layer.8} parent=59 // loop_footer_branch
                %1082 = sbr.rel target = $region62
              $region67: #{decoder_layer.8} parent=59 // loop_exit
                _
            $region60: #{decoder_layer.8} parent=55 // pred_fallthru
              _
            // Predicated region
            $region68: #{decoder_layer.8} parent=55 // pred_check
              _
            $region69: #{decoder_layer.8} parent=55 // pred_check_branch
              %1139 = sbr.rel target = $region71
            $region70: #{decoder_layer.8} parent=55 // pred_region
              _
            $region71: #{decoder_layer.8} parent=55 // pred_fallthru
              _
          $region56: #{decoder_layer.8} parent=51 // pred_fallthru
            _
          %1140 = vnop
        $region52: #{decoder_layer.8} parent=39 // pred_fallthru
          _
      $region40: #{decoder_layer.8} parent=5 // pred_fallthru
        _
      %p1141 = scmp.le.s32.totalorder 2, %s15
      // Predicated region
      $region72: #{decoder_layer.8} parent=5 // pred_check
        %p1142 = pneg %p1141
      $region73: #{decoder_layer.8} parent=5 // pred_check_branch
        %1144 = sbr.rel (%p1142) target = $region75
      $region74: #{decoder_layer.8} parent=5 // pred_region
        %s1145 = ssub.s32 %s15, 2
        // Predicated region
        $region76: #{decoder_layer.8} parent=74 // pred_check
          %p1146 = pneg %p178
        $region77: #{decoder_layer.8} parent=74 // pred_check_branch
          %1148 = sbr.rel (%p1146) target = $region79
        $region78: #{decoder_layer.8} parent=74 // pred_region
          %s1149 = sand.u32 %s163, 1
          %s1150 = sand.u32 %s163, 1
          %s1151 = smul.addr %s1150, 192
          %s1152 = scalar_lea.vmem [#allocation6], %s1151
        $region79: #{decoder_layer.8} parent=74 // pred_fallthru
          _
      $region75: #{decoder_layer.8} parent=5 // pred_fallthru
        _
    $region6: #{decoder_layer.8} parent=1 // loop_footer
      %s19 = sadd.s32 1, %s15
    $region7: #{decoder_layer.8} parent=1 // loop_footer_branch
      %14 = sbr.rel target = $region3
    $region8: #{decoder_layer.8} parent=1 // loop_exit
      _
    %1153 = vsyncpa [#allocation3], 1
    %s1154 = scalar_lea.sflag [#allocation3], 1
    %1155 = vsyncpa %s1154, 1
    %1156 = vsyncpa [#allocation5], 1
    %s1157 = scalar_lea.sflag [#allocation5], 1
    %1158 = vsyncpa %s1157, 1

// kernel: decoder_layer.11
$region0: #{decoder_layer.11}
  #allocation0 [shape = 'u32[]', space=smem, size = 0x4, offset = 0x4, fixed_abs, tag = 'smem constant byte address 0x4 - core index']
  #allocation1 [shape = 'u32[144,128]{1,0:T(1,128)}', space=vmem, size = 0x12000, scoped, tag = 'internal scratch']
  %s0 = inlined_call_operand.vmem [shape: f32[64,256], index: 0, kind: input, shape index: {}]
  %s1 = inlined_call_operand.vmem [shape: bf16[256,256], index: 1, kind: input, shape index: {}]
  %s2 = inlined_call_operand.vmem [shape: f32[1,256], index: 2, kind: input, shape index: {}]
  %s3 = inlined_call_operand.vmem [shape: f32[1,256], index: 3, kind: input, shape index: {}]
  %s4 = inlined_call_operand.vmem [shape: f32[1,256], index: 4, kind: input, shape index: {}]
  %s5 = inlined_call_operand.vmem [shape: f32[64,256], index: 5, kind: output, shape index: {}]
  %s6 = sld [smem:[#allocation0]]
  $region30: #{decoder_layer.11} parent=0
    _
  %s8 = ssub.s32 1, %s6
  %s9 = scalar_select 0, %s8, %s6
  // Predicated region
  $region2: #{decoder_layer.11} parent=0 // pred_check
    _
  $region3: #{decoder_layer.11} parent=0 // pred_check_branch
    %11 = sbr.rel (0) target = $region5
  $region4: #{decoder_layer.11} parent=0 // pred_region
    _
  $region5: #{decoder_layer.11} parent=0 // pred_fallthru
    _
  // Predicated region
  $region6: #{decoder_layer.11} parent=0 // pred_check
    _
  $region7: #{decoder_layer.11} parent=0 // pred_check_branch
    %13 = sbr.rel (0) target = $region9
  $region8: #{decoder_layer.11} parent=0 // pred_region
    _
  $region9: #{decoder_layer.11} parent=0 // pred_fallthru
    _
  // Predicated region
  $region10: #{decoder_layer.11} parent=0 // pred_check
    _
  $region11: #{decoder_layer.11} parent=0 // pred_check_branch
    %15 = sbr.rel (0) target = $region13
  $region12: #{decoder_layer.11} parent=0 // pred_region
    _
  $region13: #{decoder_layer.11} parent=0 // pred_fallthru
    _
  // Predicated region
  $region14: #{decoder_layer.11} parent=0 // pred_check
    _
  $region15: #{decoder_layer.11} parent=0 // pred_check_branch
    %17 = sbr.rel (0) target = $region17
  $region16: #{decoder_layer.11} parent=0 // pred_region
    _
  $region17: #{decoder_layer.11} parent=0 // pred_fallthru
    _
  // Predicated region
  $region18: #{decoder_layer.11} parent=0 // pred_check
    _
  $region19: #{decoder_layer.11} parent=0 // pred_check_branch
    %19 = sbr.rel (0) target = $region21
  $region20: #{decoder_layer.11} parent=0 // pred_region
    _
  $region21: #{decoder_layer.11} parent=0 // pred_fallthru
    _
  %v20 = vld [vmem:[%s0] sm:$0xff]
  %v21 = vld [vmem:[%s0 + $0x8] sm:$0xff]
  %v22 = vld [vmem:[%s0 + $0x10] sm:$0xff]
  %v23 = vld [vmem:[%s0 + $0x18] sm:$0xff]
  %v24 = vld [vmem:[%s0 + $0x20] sm:$0xff]
  %v25 = vld [vmem:[%s0 + $0x28] sm:$0xff]
  %v26 = vld [vmem:[%s0 + $0x30] sm:$0xff]
  %v27 = vld [vmem:[%s0 + $0x38] sm:$0xff]
  %v28 = vld [vmem:[%s0 + $0x40] sm:$0xff]
  %v29 = vld [vmem:[%s0 + $0x48] sm:$0xff]
  %v30 = vld [vmem:[%s0 + $0x50] sm:$0xff]
  %v31 = vld [vmem:[%s0 + $0x58] sm:$0xff]
  %v32 = vld [vmem:[%s0 + $0x60] sm:$0xff]
  %v33 = vld [vmem:[%s0 + $0x68] sm:$0xff]
  %v34 = vld [vmem:[%s0 + $0x70] sm:$0xff]
  %v35 = vld [vmem:[%s0 + $0x78] sm:$0xff]
  %v36 = vld [vmem:[%s3] sm:$0x3]
  %v37 = vld [vmem:[%s4] sm:$0x3]
  %v38 = vadd.f32 %v20, %v21
  %39 = vadd.xlane.f32.xlu0 %v38
  %v40 = vpop.xlane.xlu0 %39
  %v41 = vadd.f32 %v22, %v23
  %42 = vadd.xlane.f32.xlu0 %v41
  %v43 = vpop.xlane.xlu0 %42
  %v44 = vadd.f32 %v24, %v25
  %45 = vadd.xlane.f32.xlu0 %v44
  %v46 = vpop.xlane.xlu0 %45
  %v47 = vadd.f32 %v26, %v27
  %48 = vadd.xlane.f32.xlu0 %v47
  %v49 = vpop.xlane.xlu0 %48
  %v50 = vadd.f32 %v28, %v29
  %51 = vadd.xlane.f32.xlu0 %v50
  %v52 = vpop.xlane.xlu0 %51
  %v53 = vadd.f32 %v30, %v31
  %54 = vadd.xlane.f32.xlu0 %v53
  %v55 = vpop.xlane.xlu0 %54
  %v56 = vadd.f32 %v32, %v33
  %57 = vadd.xlane.f32.xlu0 %v56
  %v58 = vpop.xlane.xlu0 %57
  %v59 = vadd.f32 %v34, %v35
  %60 = vadd.xlane.f32.xlu0 %v59
  %v61 = vpop.xlane.xlu0 %60
  %v62 = vrcp.pop 256.0
  %v63 = vmul.f32 %v40, %v62
  %v64 = vmul.f32 %v43, %v62
  %v65 = vmul.f32 %v46, %v62
  %v66 = vmul.f32 %v49, %v62
  %v67 = vmul.f32 %v52, %v62
  %v68 = vmul.f32 %v55, %v62
  %v69 = vmul.f32 %v58, %v62
  %v70 = vmul.f32 %v61, %v62
  %v71 = vsub.f32 %v20, %v63
  %v72 = vsub.f32 %v21, %v63
  %v73 = vsub.f32 %v22, %v64
  %v74 = vsub.f32 %v23, %v64
  %v75 = vsub.f32 %v24, %v65
  %v76 = vsub.f32 %v25, %v65
  %v77 = vsub.f32 %v26, %v66
  %v78 = vsub.f32 %v27, %v66
  %v79 = vsub.f32 %v28, %v67
  %v80 = vsub.f32 %v29, %v67
  %v81 = vsub.f32 %v30, %v68
  %v82 = vsub.f32 %v31, %v68
  %v83 = vsub.f32 %v32, %v69
  %v84 = vsub.f32 %v33, %v69
  %v85 = vsub.f32 %v34, %v70
  %v86 = vsub.f32 %v35, %v70
  %v87 = vmul.f32 %v71, %v71
  %v88 = vmul.f32 %v72, %v72
  %v89 = vmul.f32 %v73, %v73
  %v90 = vmul.f32 %v74, %v74
  %v91 = vmul.f32 %v75, %v75
  %v92 = vmul.f32 %v76, %v76
  %v93 = vmul.f32 %v77, %v77
  %v94 = vmul.f32 %v78, %v78
  %v95 = vmul.f32 %v79, %v79
  %v96 = vmul.f32 %v80, %v80
  %v97 = vmul.f32 %v81, %v81
  %v98 = vmul.f32 %v82, %v82
  %v99 = vmul.f32 %v83, %v83
  %v100 = vmul.f32 %v84, %v84
  %v101 = vmul.f32 %v85, %v85
  %v102 = vmul.f32 %v86, %v86
  %v103 = vadd.f32 %v87, %v88
  %104 = vadd.xlane.f32.xlu0 %v103
  %v105 = vpop.xlane.xlu0 %104
  %v106 = vadd.f32 %v89, %v90
  %107 = vadd.xlane.f32.xlu0 %v106
  %v108 = vpop.xlane.xlu0 %107
  %v109 = vadd.f32 %v91, %v92
  %110 = vadd.xlane.f32.xlu0 %v109
  %v111 = vpop.xlane.xlu0 %110
  %v112 = vadd.f32 %v93, %v94
  %113 = vadd.xlane.f32.xlu0 %v112
  %v114 = vpop.xlane.xlu0 %113
  %v115 = vadd.f32 %v95, %v96
  %116 = vadd.xlane.f32.xlu0 %v115
  %v117 = vpop.xlane.xlu0 %116
  %v118 = vadd.f32 %v97, %v98
  %119 = vadd.xlane.f32.xlu0 %v118
  %v120 = vpop.xlane.xlu0 %119
  %v121 = vadd.f32 %v99, %v100
  %122 = vadd.xlane.f32.xlu0 %v121
  %v123 = vpop.xlane.xlu0 %122
  %v124 = vadd.f32 %v101, %v102
  %125 = vadd.xlane.f32.xlu0 %v124
  %v126 = vpop.xlane.xlu0 %125
  %v127 = vmul.f32 %v105, 0.003921569
  %v128 = vmul.f32 %v108, 0.003921569
  %v129 = vmul.f32 %v111, 0.003921569
  %v130 = vmul.f32 %v114, 0.003921569
  %v131 = vmul.f32 %v117, 0.003921569
  %v132 = vmul.f32 %v120, 0.003921569
  %v133 = vmul.f32 %v123, 0.003921569
  %v134 = vmul.f32 %v126, 0.003921569
  %v135 = vrsqrt.pop %v127
  %v136 = vmul.f32 %v127, %v135
  %vm137 = vcmp.eq.f32.partialorder %v127, inf
  %v138 = vsel %vm137, %v127, %v136
  %vm139 = vcmp.eq.f32.partialorder %v127, 0.0
  %v140 = vand.u32 %v127, 2147483648
  %v141 = vsel %vm139, %v140, %v138
  %v142 = vrsqrt.pop %v128
  %v143 = vmul.f32 %v128, %v142
  %vm144 = vcmp.eq.f32.partialorder %v128, inf
  %v145 = vsel %vm144, %v128, %v143
  %vm146 = vcmp.eq.f32.partialorder %v128, 0.0
  %v147 = vand.u32 %v128, 2147483648
  %v148 = vsel %vm146, %v147, %v145
  %v149 = vrsqrt.pop %v129
  %v150 = vmul.f32 %v129, %v149
  %vm151 = vcmp.eq.f32.partialorder %v129, inf
  %v152 = vsel %vm151, %v129, %v150
  %vm153 = vcmp.eq.f32.partialorder %v129, 0.0
  %v154 = vand.u32 %v129, 2147483648
  %v155 = vsel %vm153, %v154, %v152
  %v156 = vrsqrt.pop %v130
  %v157 = vmul.f32 %v130, %v156
  %vm158 = vcmp.eq.f32.partialorder %v130, inf
  %v159 = vsel %vm158, %v130, %v157
  %vm160 = vcmp.eq.f32.partialorder %v130, 0.0
  %v161 = vand.u32 %v130, 2147483648
  %v162 = vsel %vm160, %v161, %v159
  %v163 = vrsqrt.pop %v131
  %v164 = vmul.f32 %v131, %v163
  %vm165 = vcmp.eq.f32.partialorder %v131, inf
  %v166 = vsel %vm165, %v131, %v164
  %vm167 = vcmp.eq.f32.partialorder %v131, 0.0
  %v168 = vand.u32 %v131, 2147483648
  %v169 = vsel %vm167, %v168, %v166
  %v170 = vrsqrt.pop %v132
  %v171 = vmul.f32 %v132, %v170
  %vm172 = vcmp.eq.f32.partialorder %v132, inf
  %v173 = vsel %vm172, %v132, %v171
  %vm174 = vcmp.eq.f32.partialorder %v132, 0.0
  %v175 = vand.u32 %v132, 2147483648
  %v176 = vsel %vm174, %v175, %v173
  %v177 = vrsqrt.pop %v133
  %v178 = vmul.f32 %v133, %v177
  %vm179 = vcmp.eq.f32.partialorder %v133, inf
  %v180 = vsel %vm179, %v133, %v178
  %vm181 = vcmp.eq.f32.partialorder %v133, 0.0
  %v182 = vand.u32 %v133, 2147483648
  %v183 = vsel %vm181, %v182, %v180
  %v184 = vrsqrt.pop %v134
  %v185 = vmul.f32 %v134, %v184
  %vm186 = vcmp.eq.f32.partialorder %v134, inf
  %v187 = vsel %vm186, %v134, %v185
  %vm188 = vcmp.eq.f32.partialorder %v134, 0.0
  %v189 = vand.u32 %v134, 2147483648
  %v190 = vsel %vm188, %v189, %v187
  %v192 = vlaneseq
  %v193 = vshrl.u32 %v192, 7
  %v194 = vsub.s32 0, %v193
  %v195 = vrot.slane %v36, %v194
  %v196 = vlaneseq
  %v197 = vshrl.u32 %v196, 7
  %v198 = vsub.s32 1, %v197
  %v199 = vrot.slane %v36, %v198
  %v202 = vmul.f32 %v195, %v71
  %v203 = vmul.f32 %v199, %v72
  %v204 = vmul.f32 %v195, %v73
  %v205 = vmul.f32 %v199, %v74
  %v206 = vmul.f32 %v195, %v75
  %v207 = vmul.f32 %v199, %v76
  %v208 = vmul.f32 %v195, %v77
  %v209 = vmul.f32 %v199, %v78
  %v210 = vmul.f32 %v195, %v79
  %v211 = vmul.f32 %v199, %v80
  %v212 = vmul.f32 %v195, %v81
  %v213 = vmul.f32 %v199, %v82
  %v214 = vmul.f32 %v195, %v83
  %v215 = vmul.f32 %v199, %v84
  %v216 = vmul.f32 %v195, %v85
  %v217 = vmul.f32 %v199, %v86
  %v218 = vadd.f32 %v141, 1e-06
  %v219 = vadd.f32 %v148, 1e-06
  %v220 = vadd.f32 %v155, 1e-06
  %v221 = vadd.f32 %v162, 1e-06
  %v222 = vadd.f32 %v169, 1e-06
  %v223 = vadd.f32 %v176, 1e-06
  %v224 = vadd.f32 %v183, 1e-06
  %v225 = vadd.f32 %v190, 1e-06
  %v226 = vrcp.pop %v218
  %v227 = vrcp.pop %v219
  %v228 = vrcp.pop %v220
  %v229 = vrcp.pop %v221
  %v230 = vrcp.pop %v222
  %v231 = vrcp.pop %v223
  %v232 = vrcp.pop %v224
  %v233 = vrcp.pop %v225
  %v234 = vmul.f32 %v202, %v226
  %v235 = vmul.f32 %v203, %v226
  %v236 = vmul.f32 %v204, %v227
  %v237 = vmul.f32 %v205, %v227
  %v238 = vmul.f32 %v206, %v228
  %v239 = vmul.f32 %v207, %v228
  %v240 = vmul.f32 %v208, %v229
  %v241 = vmul.f32 %v209, %v229
  %v242 = vmul.f32 %v210, %v230
  %v243 = vmul.f32 %v211, %v230
  %v244 = vmul.f32 %v212, %v231
  %v245 = vmul.f32 %v213, %v231
  %v246 = vmul.f32 %v214, %v232
  %v247 = vmul.f32 %v215, %v232
  %v248 = vmul.f32 %v216, %v233
  %v249 = vmul.f32 %v217, %v233
  %v251 = vlaneseq
  %v252 = vshrl.u32 %v251, 7
  %v253 = vsub.s32 0, %v252
  %v254 = vrot.slane %v37, %v253
  %v255 = vlaneseq
  %v256 = vshrl.u32 %v255, 7
  %v257 = vsub.s32 1, %v256
  %v258 = vrot.slane %v37, %v257
  %v261 = vadd.f32 %v234, %v254
  %v262 = vadd.f32 %v235, %v258
  %v263 = vadd.f32 %v236, %v254
  %v264 = vadd.f32 %v237, %v258
  %v265 = vadd.f32 %v238, %v254
  %v266 = vadd.f32 %v239, %v258
  %v267 = vadd.f32 %v240, %v254
  %v268 = vadd.f32 %v241, %v258
  %v269 = vadd.f32 %v242, %v254
  %v270 = vadd.f32 %v243, %v258
  %v271 = vadd.f32 %v244, %v254
  %v272 = vadd.f32 %v245, %v258
  %v273 = vadd.f32 %v246, %v254
  %v274 = vadd.f32 %v247, %v258
  %v275 = vadd.f32 %v248, %v254
  %v276 = vadd.f32 %v249, %v258
  %v277 = vpack.c.bf16 %v263, %v261
  %v278 = vpack.c.bf16 %v264, %v262
  %v279 = vpack.c.bf16 %v267, %v265
  %v280 = vpack.c.bf16 %v268, %v266
  %v281 = vpack.c.bf16 %v271, %v269
  %v282 = vpack.c.bf16 %v272, %v270
  %v283 = vpack.c.bf16 %v275, %v273
  %v284 = vpack.c.bf16 %v276, %v274
  %v285 = vld [vmem:[%s1] sm:$0xff]
  %v286 = vld [vmem:[%s1 + $0x8] sm:$0xff]
  %v287 = vld [vmem:[%s1 + $0x10] sm:$0xff]
  %v288 = vld [vmem:[%s1 + $0x18] sm:$0xff]
  %v289 = vld [vmem:[%s1 + $0x20] sm:$0xff]
  %v290 = vld [vmem:[%s1 + $0x28] sm:$0xff]
  %v291 = vld [vmem:[%s1 + $0x30] sm:$0xff]
  %v292 = vld [vmem:[%s1 + $0x38] sm:$0xff]
  %v293 = vld [vmem:[%s1 + $0x40] sm:$0xff]
  %v294 = vld [vmem:[%s1 + $0x48] sm:$0xff]
  %v295 = vld [vmem:[%s1 + $0x50] sm:$0xff]
  %v296 = vld [vmem:[%s1 + $0x58] sm:$0xff]
  %v297 = vld [vmem:[%s1 + $0x60] sm:$0xff]
  %v298 = vld [vmem:[%s1 + $0x68] sm:$0xff]
  %v299 = vld [vmem:[%s1 + $0x70] sm:$0xff]
  %v300 = vld [vmem:[%s1 + $0x78] sm:$0xff]
  %v301 = vld [vmem:[%s1 + $0x80] sm:$0xff]
  %v302 = vld [vmem:[%s1 + $0x88] sm:$0xff]
  %v303 = vld [vmem:[%s1 + $0x90] sm:$0xff]
  %v304 = vld [vmem:[%s1 + $0x98] sm:$0xff]
  %v305 = vld [vmem:[%s1 + $0xa0] sm:$0xff]
  %v306 = vld [vmem:[%s1 + $0xa8] sm:$0xff]
  %v307 = vld [vmem:[%s1 + $0xb0] sm:$0xff]
  %v308 = vld [vmem:[%s1 + $0xb8] sm:$0xff]
  %v309 = vld [vmem:[%s1 + $0xc0] sm:$0xff]
  %v310 = vld [vmem:[%s1 + $0xc8] sm:$0xff]
  %v311 = vld [vmem:[%s1 + $0xd0] sm:$0xff]
  %v312 = vld [vmem:[%s1 + $0xd8] sm:$0xff]
  %v313 = vld [vmem:[%s1 + $0xe0] sm:$0xff]
  %v314 = vld [vmem:[%s1 + $0xe8] sm:$0xff]
  %v315 = vld [vmem:[%s1 + $0xf0] sm:$0xff]
  %v316 = vld [vmem:[%s1 + $0xf8] sm:$0xff]
  %v317 = vld [vmem:[%s2] sm:$0x3]
  %v319 = vlaneseq
  %v320 = vshrl.u32 %v319, 7
  %v321 = vsub.s32 0, %v320
  %v322 = vrot.slane %v317, %v321
  %v323 = vlaneseq
  %v324 = vshrl.u32 %v323, 7
  %v325 = vsub.s32 1, %v324
  %v326 = vrot.slane %v317, %v325
  %v361 = vunpack.c.l.b16 %v285
  %v362 = vunpack.c.h.b16 %v285
  %v363 = vunpack.c.l.b16 %v286
  %v364 = vunpack.c.h.b16 %v286
  %v365 = vunpack.c.l.b16 %v287
  %v366 = vunpack.c.h.b16 %v287
  %v367 = vunpack.c.l.b16 %v288
  %v368 = vunpack.c.h.b16 %v288
  %v369 = vunpack.c.l.b16 %v289
  %v370 = vunpack.c.h.b16 %v289
  %v371 = vunpack.c.l.b16 %v290
  %v372 = vunpack.c.h.b16 %v290
  %v373 = vunpack.c.l.b16 %v291
  %v374 = vunpack.c.h.b16 %v291
  %v375 = vunpack.c.l.b16 %v292
  %v376 = vunpack.c.h.b16 %v292
  %v377 = vunpack.c.l.b16 %v293
  %v378 = vunpack.c.h.b16 %v293
  %v379 = vunpack.c.l.b16 %v294
  %v380 = vunpack.c.h.b16 %v294
  %v381 = vunpack.c.l.b16 %v295
  %v382 = vunpack.c.h.b16 %v295
  %v383 = vunpack.c.l.b16 %v296
  %v384 = vunpack.c.h.b16 %v296
  %v385 = vunpack.c.l.b16 %v297
  %v386 = vunpack.c.h.b16 %v297
  %v387 = vunpack.c.l.b16 %v298
  %v388 = vunpack.c.h.b16 %v298
  %v389 = vunpack.c.l.b16 %v299
  %v390 = vunpack.c.h.b16 %v299
  %v391 = vunpack.c.l.b16 %v300
  %v392 = vunpack.c.h.b16 %v300
  %v393 = vunpack.c.l.b16 %v301
  %v394 = vunpack.c.h.b16 %v301
  %v395 = vunpack.c.l.b16 %v302
  %v396 = vunpack.c.h.b16 %v302
  %v397 = vunpack.c.l.b16 %v303
  %v398 = vunpack.c.h.b16 %v303
  %v399 = vunpack.c.l.b16 %v304
  %v400 = vunpack.c.h.b16 %v304
  %v401 = vunpack.c.l.b16 %v305
  %v402 = vunpack.c.h.b16 %v305
  %v403 = vunpack.c.l.b16 %v306
  %v404 = vunpack.c.h.b16 %v306
  %v405 = vunpack.c.l.b16 %v307
  %v406 = vunpack.c.h.b16 %v307
  %v407 = vunpack.c.l.b16 %v308
  %v408 = vunpack.c.h.b16 %v308
  %v409 = vunpack.c.l.b16 %v309
  %v410 = vunpack.c.h.b16 %v309
  %v411 = vunpack.c.l.b16 %v310
  %v412 = vunpack.c.h.b16 %v310
  %v413 = vunpack.c.l.b16 %v311
  %v414 = vunpack.c.h.b16 %v311
  %v415 = vunpack.c.l.b16 %v312
  %v416 = vunpack.c.h.b16 %v312
  %v417 = vunpack.c.l.b16 %v313
  %v418 = vunpack.c.h.b16 %v313
  %v419 = vunpack.c.l.b16 %v314
  %v420 = vunpack.c.h.b16 %v314
  %v421 = vunpack.c.l.b16 %v315
  %v422 = vunpack.c.h.b16 %v315
  %v423 = vunpack.c.l.b16 %v316
  %v424 = vunpack.c.h.b16 %v316
  %v425 = vpack.c.b16 %v363, %v361
  %v426 = vpack.c.b16 %v364, %v362
  %v427 = vpack.c.b16 %v367, %v365
  %v428 = vpack.c.b16 %v368, %v366
  %v429 = vpack.c.b16 %v371, %v369
  %v430 = vpack.c.b16 %v372, %v370
  %v431 = vpack.c.b16 %v375, %v373
  %v432 = vpack.c.b16 %v376, %v374
  %v433 = vpack.c.b16 %v379, %v377
  %v434 = vpack.c.b16 %v380, %v378
  %v435 = vpack.c.b16 %v383, %v381
  %v436 = vpack.c.b16 %v384, %v382
  %v437 = vpack.c.b16 %v387, %v385
  %v438 = vpack.c.b16 %v388, %v386
  %v439 = vpack.c.b16 %v391, %v389
  %v440 = vpack.c.b16 %v392, %v390
  %v441 = vpack.c.b16 %v395, %v393
  %v442 = vpack.c.b16 %v396, %v394
  %v443 = vpack.c.b16 %v399, %v397
  %v444 = vpack.c.b16 %v400, %v398
  %v445 = vpack.c.b16 %v403, %v401
  %v446 = vpack.c.b16 %v404, %v402
  %v447 = vpack.c.b16 %v407, %v405
  %v448 = vpack.c.b16 %v408, %v406
  %v449 = vpack.c.b16 %v411, %v409
  %v450 = vpack.c.b16 %v412, %v410
  %v451 = vpack.c.b16 %v415, %v413
  %v452 = vpack.c.b16 %v416, %v414
  %v453 = vpack.c.b16 %v419, %v417
  %v454 = vpack.c.b16 %v420, %v418
  %v455 = vpack.c.b16 %v423, %v421
  %v456 = vpack.c.b16 %v424, %v422
  %489 = vmatprep.subr.bf16.mxu0 %v440
  %490 = vmatpush1.bf16.msra.mxu0 %v439
  %491 = vmatprep.subr.bf16.mxu0 %v438
  %492 = vmatpush1.bf16.msra.mxu0 %v437
  %493 = vmatprep.subr.bf16.mxu0 %v436
  %494 = vmatpush1.bf16.msra.mxu0 %v435
  %495 = vmatprep.subr.bf16.mxu0 %v434
  %496 = vmatpush1.bf16.msra.mxu0 %v433
  %497 = vmatprep.subr.bf16.mxu0 %v432
  %498 = vmatpush1.bf16.msra.mxu0 %v431
  %499 = vmatprep.subr.bf16.mxu0 %v430
  %500 = vmatpush1.bf16.msra.mxu0 %v429
  %501 = vmatprep.subr.bf16.mxu0 %v428
  %502 = vmatpush1.bf16.msra.mxu0 %v427
  %503 = vmatprep.subr.bf16.mxu0 %v426
  %504 = vmatpush1.bf16.msra.mxu0 %v425
  %505 = vmatprep.subr.bf16.mxu0 %v456
  %506 = vmatpush2.bf16.msra.mxu0 %v455
  %507 = vmatprep.subr.bf16.mxu0 %v454
  %508 = vmatpush2.bf16.msra.mxu0 %v453
  %509 = vmatprep.subr.bf16.mxu0 %v452
  %510 = vmatpush2.bf16.msra.mxu0 %v451
  %511 = vmatprep.subr.bf16.mxu0 %v450
  %512 = vmatpush2.bf16.msra.mxu0 %v449
  %513 = vmatprep.subr.bf16.mxu0 %v448
  %514 = vmatpush2.bf16.msra.mxu0 %v447
  %515 = vmatprep.subr.bf16.mxu0 %v446
  %516 = vmatpush2.bf16.msra.mxu0 %v445
  %517 = vmatprep.subr.bf16.mxu0 %v444
  %518 = vmatpush2.bf16.msra.mxu0 %v443
  %519 = vmatprep.subr.bf16.mxu0 %v442
  %520 = vmatpush2.bf16.msra.mxu0 %v441
  %521 = vmatprep.mubr.bf16.mxu0 %v278
  %522 = vmatmul.mubr.bf16.gmra.mxu0 %v277
  %v523 = vpop.f32.mrf.mxu0
  %v524 = vadd.f32 %v322, %v523
  %v525 = vpop.f32.mrf.mxu0
  %v526 = vadd.f32 %v326, %v525
  %v527 = vpop.f32.mrf.mxu0
  %v528 = vadd.f32 %v322, %v527
  %v529 = vpop.f32.mrf.mxu0
  %v530 = vadd.f32 %v326, %v529
  %531 = vmatprep.mubr.bf16.mxu0 %v280
  %532 = vmatmul.mubr.bf16.gmra.mxu0 %v279
  %v533 = vpop.f32.mrf.mxu0
  %v534 = vadd.f32 %v322, %v533
  %v535 = vpop.f32.mrf.mxu0
  %v536 = vadd.f32 %v326, %v535
  %v537 = vpop.f32.mrf.mxu0
  %v538 = vadd.f32 %v322, %v537
  %v539 = vpop.f32.mrf.mxu0
  %v540 = vadd.f32 %v326, %v539
  %541 = vmatprep.mubr.bf16.mxu0 %v282
  %542 = vmatmul.mubr.bf16.gmra.mxu0 %v281
  %v543 = vpop.f32.mrf.mxu0
  %v544 = vadd.f32 %v322, %v543
  %v545 = vpop.f32.mrf.mxu0
  %v546 = vadd.f32 %v326, %v545
  %v547 = vpop.f32.mrf.mxu0
  %v548 = vadd.f32 %v322, %v547
  %v549 = vpop.f32.mrf.mxu0
  %v550 = vadd.f32 %v326, %v549
  %551 = vmatprep.mubr.bf16.mxu0 %v284
  %552 = vmatmul.mubr.bf16.gmra.mxu0 %v283
  %v553 = vpop.f32.mrf.mxu0
  %v554 = vadd.f32 %v322, %v553
  %v555 = vpop.f32.mrf.mxu0
  %v556 = vadd.f32 %v326, %v555
  %v557 = vpop.f32.mrf.mxu0
  %v558 = vadd.f32 %v322, %v557
  %v559 = vpop.f32.mrf.mxu0
  %v560 = vadd.f32 %v326, %v559
  %561 = vdwg.mxu0
  %562 = vst [vmem:[%s5] sm:$0xff] %v524
  %563 = vst [vmem:[%s5 + $0x8] sm:$0xff] %v526
  %564 = vst [vmem:[%s5 + $0x10] sm:$0xff] %v528
  %565 = vst [vmem:[%s5 + $0x18] sm:$0xff] %v530
  %566 = vst [vmem:[%s5 + $0x20] sm:$0xff] %v534
  %567 = vst [vmem:[%s5 + $0x28] sm:$0xff] %v536
  %568 = vst [vmem:[%s5 + $0x30] sm:$0xff] %v538
  %569 = vst [vmem:[%s5 + $0x38] sm:$0xff] %v540
  %570 = vst [vmem:[%s5 + $0x40] sm:$0xff] %v544
  %571 = vst [vmem:[%s5 + $0x48] sm:$0xff] %v546
  %572 = vst [vmem:[%s5 + $0x50] sm:$0xff] %v548
  %573 = vst [vmem:[%s5 + $0x58] sm:$0xff] %v550
  %574 = vst [vmem:[%s5 + $0x60] sm:$0xff] %v554
  %575 = vst [vmem:[%s5 + $0x68] sm:$0xff] %v556
  %576 = vst [vmem:[%s5 + $0x70] sm:$0xff] %v558
  %577 = vst [vmem:[%s5 + $0x78] sm:$0xff] %v560
  // Predicated region
  $region22: #{decoder_layer.11} parent=0 // pred_check
    _
  $region23: #{decoder_layer.11} parent=0 // pred_check_branch
    %579 = sbr.rel (0) target = $region25
  $region24: #{decoder_layer.11} parent=0 // pred_region
    _
  $region25: #{decoder_layer.11} parent=0 // pred_fallthru
    _
  // Predicated region
  $region26: #{decoder_layer.11} parent=0 // pred_check
    _
  $region27: #{decoder_layer.11} parent=0 // pred_check_branch
    %581 = sbr.rel (0) target = $region29
  $region28: #{decoder_layer.11} parent=0 // pred_region
    _
  $region29: #{decoder_layer.11} parent=0 // pred_fallthru
    _

// kernel: decoder_layer.9
$region0: #{decoder_layer.9}
  #allocation0 [shape = 'u32[]', space=smem, size = 0x4, offset = 0x4, fixed_abs, tag = 'smem constant byte address 0x4 - core index']
  #allocation1 [shape = 'u32[144,128]{1,0:T(1,128)}', space=vmem, size = 0x12000, scoped, tag = 'internal scratch']
  %s0 = inlined_call_operand.vmem [shape: f32[2,32,768], index: 0, kind: input, shape index: {}]
  %s1 = inlined_call_operand.vmem [shape: f32[2,32,256], index: 1, kind: output, shape index: {}]
  %s2 = sld [smem:[#allocation0]]
  $region37: #{decoder_layer.9} parent=0
    _
  %s4 = ssub.s32 1, %s2
  %s5 = scalar_select 0, %s4, %s2
  loop: start=0, step=1, limit=4
  $region2: #{decoder_layer.9} parent=0 // loop_pre_header
    _
  $region3: #{decoder_layer.9} parent=0 // loop_header
    %s7 = sphi 0, %s11
    %p8 = scmp.ge.s32.totalorder %s7, 4
    %s17 = sphi 0, %s19
    %s20 = sphi 0, %s17
    %s21 = sphi 0, %s20
    %s37 = sphi 0, %s21
    %s43 = sphi 0, %s45
    %s46 = sphi 0, %s43
    %s47 = sphi 0, %s46
    %s63 = sphi 0, %s47
  $region4: #{decoder_layer.9} parent=0 // loop_header_branch
    %10 = sbr.rel (%p8) target = $region8
  $region5: #{decoder_layer.9} parent=0 // loop_body
    %s12 = ssub.s32 %s7, 1
    %s13 = ssub.s32 %s7, 2
    %s14 = sadd.s32 %s7, 1
    %s15 = ssub.s32 %s7, %s14
    %p16 = scmp.eq.s32.totalorder %s15, 0
    %s18 = sadd.s32 %s17, 1
    %s19 = scalar_select %p16, %s17, %s18
    %p22 = pneg %p16
    %p23 = scmp.eq.s32.totalorder %s7, 1
    %p24 = por %p22, %p23
    %p25 = scmp.ne.s32.totalorder %s17, %s20
    %p26 = scmp.eq.s32.totalorder %s7, 0
    %p27 = por %p25, %p26
    %p28 = scmp.ne.s32.totalorder %s17, %s20
    %p29 = scmp.eq.s32.totalorder %s12, 1
    %p30 = por %p28, %p29
    %p31 = scmp.ne.s32.totalorder %s20, %s21
    %p32 = scmp.eq.s32.totalorder %s12, 0
    %p33 = por %p31, %p32
    %p34 = scmp.ne.s32.totalorder %s20, %s21
    %p35 = scmp.eq.s32.totalorder %s13, 1
    %p36 = por %p34, %p35
    %p38 = scmp.ne.s32.totalorder %s21, %s37
    %p39 = scmp.eq.s32.totalorder %s13, 0
    %p40 = por %p38, %p39
    %s41 = ssub.s32 %s7, %s14
    %p42 = scmp.eq.s32.totalorder %s41, 0
    %s44 = sadd.s32 %s43, 1
    %s45 = scalar_select %p42, %s43, %s44
    %p48 = pneg %p42
    %p49 = scmp.eq.s32.totalorder %s7, 1
    %p50 = por %p48, %p49
    %p51 = scmp.ne.s32.totalorder %s43, %s46
    %p52 = scmp.eq.s32.totalorder %s7, 0
    %p53 = por %p51, %p52
    %p54 = scmp.ne.s32.totalorder %s43, %s46
    %p55 = scmp.eq.s32.totalorder %s12, 1
    %p56 = por %p54, %p55
    %p57 = scmp.ne.s32.totalorder %s46, %s47
    %p58 = scmp.eq.s32.totalorder %s12, 0
    %p59 = por %p57, %p58
    %p60 = scmp.ne.s32.totalorder %s46, %s47
    %p61 = scmp.eq.s32.totalorder %s13, 1
    %p62 = por %p60, %p61
    %p64 = scmp.ne.s32.totalorder %s47, %s63
    %p65 = scmp.eq.s32.totalorder %s13, 0
    %p66 = por %p64, %p65
    %p67 = scmp.le.s32.totalorder 1, %s7
    %p68 = scmp.lt.s32.totalorder %s7, 3
    %p69 = pnand %p67, %p68
    %p70 = pneg %p69
    // Predicated region
    $region9: #{decoder_layer.9} parent=5 // pred_check
      _
    $region10: #{decoder_layer.9} parent=5 // pred_check_branch
      %72 = sbr.rel (%p69) target = $region12
    $region11: #{decoder_layer.9} parent=5 // pred_region
      %s73 = ssub.s32 %s7, 1
    $region12: #{decoder_layer.9} parent=5 // pred_fallthru
      _
    %p74 = scmp.lt.s32.totalorder %s7, 2
    // Predicated region
    $region13: #{decoder_layer.9} parent=5 // pred_check
      %p75 = pneg %p74
    $region14: #{decoder_layer.9} parent=5 // pred_check_branch
      %77 = sbr.rel (%p75) target = $region16
    $region15: #{decoder_layer.9} parent=5 // pred_region
      // Predicated region
      $region17: #{decoder_layer.9} parent=15 // pred_check
        %p78 = pneg %p27
      $region18: #{decoder_layer.9} parent=15 // pred_check_branch
        %80 = sbr.rel (%p78) target = $region20
      $region19: #{decoder_layer.9} parent=15 // pred_region
        %p81 = scmp.lt.s32.totalorder %s7, 1
        %s82 = scalar_select %p81, %s7, 1
        %s83 = smul.addr %s82, 24
        %s84 = smul.addr %s83, 8
        %s85 = scalar_lea.vmem %s0, %s84
      $region20: #{decoder_layer.9} parent=15 // pred_fallthru
        _
    $region16: #{decoder_layer.9} parent=5 // pred_fallthru
      _
    %p86 = scmp.le.s32.totalorder 1, %s7
    %p87 = scmp.lt.s32.totalorder %s7, 3
    %p88 = pnand %p86, %p87
    %p89 = pneg %p88
    // Predicated region
    $region21: #{decoder_layer.9} parent=5 // pred_check
      _
    $region22: #{decoder_layer.9} parent=5 // pred_check_branch
      %91 = sbr.rel (%p88) target = $region24
    $region23: #{decoder_layer.9} parent=5 // pred_region
      %s92 = ssub.s32 %s7, 1
      %p93 = scmp.lt.s32.totalorder %s12, 1
      %s94 = scalar_select %p93, %s12, 1
      %s95 = smul.addr %s94, 24
      %s96 = smul.addr %s95, 8
      %s97 = scalar_lea.vmem %s0, %s96
      %p98 = pneg %p33
      %p99 = pneg %p30
      %p100 = pneg %p59
      %p101 = pneg %p56
      %p102 = scmp.lt.s32.totalorder %s12, 1
      %s103 = scalar_select %p102, %s12, 1
      %s104 = smul.addr %s103, 8
      %s105 = smul.addr %s104, 8
      %s106 = scalar_lea.vmem %s1, %s105
      %p107 = scmp.lt.s32.totalorder %s12, 1
      %s108 = scalar_select %p107, %s12, 1
      %s109 = smul.addr %s108, 24
      %s110 = smul.addr %s109, 8
      %s111 = scalar_lea.vmem %s0, %s110
      %p112 = scmp.lt.s32.totalorder %s12, 1
      %s113 = scalar_select %p112, %s12, 1
      %s114 = smul.addr %s113, 8
      %s115 = smul.addr %s114, 8
      %s116 = scalar_lea.vmem %s1, %s115
      %v118 = vld [vmem:[%s111] sm:$0xff]
      %v119 = vld [vmem:[%s111 + $0x8] sm:$0xff]
      %v120 = vld [vmem:[%s111 + $0x30] sm:$0xff]
      %v121 = vld [vmem:[%s111 + $0x38] sm:$0xff]
      %v122 = vld [vmem:[%s111 + $0x60] sm:$0xff]
      %v123 = vld [vmem:[%s111 + $0x68] sm:$0xff]
      %v124 = vld [vmem:[%s111 + $0x90] sm:$0xff]
      %v125 = vld [vmem:[%s111 + $0x98] sm:$0xff]
      %v126 = vld [vmem:[%s111 + $0x10] sm:$0xff]
      %v127 = vld [vmem:[%s111 + $0x18] sm:$0xff]
      %v128 = vld [vmem:[%s111 + $0x40] sm:$0xff]
      %v129 = vld [vmem:[%s111 + $0x48] sm:$0xff]
      %v130 = vld [vmem:[%s111 + $0x70] sm:$0xff]
      %v131 = vld [vmem:[%s111 + $0x78] sm:$0xff]
      %v132 = vld [vmem:[%s111 + $0xa0] sm:$0xff]
      %v133 = vld [vmem:[%s111 + $0xa8] sm:$0xff]
      %v134 = vld [vmem:[%s111 + $0x20] sm:$0xff]
      %v135 = vld [vmem:[%s111 + $0x28] sm:$0xff]
      %v136 = vld [vmem:[%s111 + $0x50] sm:$0xff]
      %v137 = vld [vmem:[%s111 + $0x58] sm:$0xff]
      %v138 = vld [vmem:[%s111 + $0x80] sm:$0xff]
      %v139 = vld [vmem:[%s111 + $0x88] sm:$0xff]
      %v140 = vld [vmem:[%s111 + $0xb0] sm:$0xff]
      %v141 = vld [vmem:[%s111 + $0xb8] sm:$0xff]
      %v142 = vpack.c.bf16 %v120, %v118
      %v143 = vpack.c.bf16 %v121, %v119
      %v144 = vpack.c.bf16 %v124, %v122
      %v145 = vpack.c.bf16 %v125, %v123
      %v146 = vpack.c.bf16 %v128, %v126
      %v147 = vpack.c.bf16 %v129, %v127
      %v148 = vpack.c.bf16 %v132, %v130
      %v149 = vpack.c.bf16 %v133, %v131
      %v150 = vpack.c.bf16 %v136, %v134
      %v151 = vpack.c.bf16 %v137, %v135
      %v152 = vpack.c.bf16 %v140, %v138
      %v153 = vpack.c.bf16 %v141, %v139
      %v154 = vlaneseq
      %v155 = vshrl.u32 %v154, 7
      %v156 = vadd.s32 %v155, 8
      %v157 = vadd.s32 %v155, 16
      %v158 = vadd.s32 %v155, 24
      %v159 = vlaneseq
      %v160 = vand.u32 %v159, 127
      %vm161 = vcmp.ge.s32.totalorder %v155, %v160
      %vm162 = vcmp.ge.s32.totalorder %v156, %v160
      %vm163 = vcmp.ge.s32.totalorder %v157, %v160
      %vm164 = vcmp.ge.s32.totalorder %v158, %v160
      %vm165 = vcmask 261120
      %v167 = vsel %vm165, %v142, 0
      %v170 = vsel %vm165, %v144, 0
      %v173 = vsel %vm165, %v146, 0
      %v176 = vsel %vm165, %v148, 0
      %178 = vmatprep.subr.bf16.mxu0 0
      %179 = vmatpush1.bf16.xpose.msra.mxu0 0
      %180 = vmatprep.subr.bf16.mxu0 0
      %181 = vmatpush1.bf16.xpose.msra.mxu0 0
      %182 = vmatprep.subr.bf16.mxu0 0
      %183 = vmatpush1.bf16.xpose.msra.mxu0 0
      %184 = vmatprep.subr.bf16.mxu0 0
      %185 = vmatpush1.bf16.xpose.msra.mxu0 0
      %186 = vmatprep.subr.bf16.mxu0 0
      %187 = vmatpush1.bf16.xpose.msra.mxu0 0
      %188 = vmatprep.subr.bf16.mxu0 0
      %189 = vmatpush1.bf16.xpose.msra.mxu0 0
      %190 = vmatprep.subr.bf16.mxu0 0
      %191 = vmatpush1.bf16.xpose.msra.mxu0 %v176
      %192 = vmatprep.subr.bf16.mxu0 0
      %193 = vmatpush1.bf16.xpose.msra.mxu0 %v173
      %194 = vmatprep.subr.bf16.mxu0 0
      %195 = vmatpush2.bf16.xpose.msra.mxu0 0
      %196 = vmatprep.subr.bf16.mxu0 0
      %197 = vmatpush2.bf16.xpose.msra.mxu0 0
      %198 = vmatprep.subr.bf16.mxu0 0
      %199 = vmatpush2.bf16.xpose.msra.mxu0 0
      %200 = vmatprep.subr.bf16.mxu0 0
      %201 = vmatpush2.bf16.xpose.msra.mxu0 0
      %202 = vmatprep.subr.bf16.mxu0 0
      %203 = vmatpush2.bf16.xpose.msra.mxu0 0
      %204 = vmatprep.subr.bf16.mxu0 0
      %205 = vmatpush2.bf16.xpose.msra.mxu0 0
      %206 = vmatprep.subr.bf16.mxu0 0
      %207 = vmatpush2.bf16.xpose.msra.mxu0 0
      %208 = vmatprep.subr.bf16.mxu0 0
      %209 = vmatpush2.bf16.xpose.msra.mxu0 0
      %210 = vmatprep.mubr.bf16.mxu0 0
      %211 = vmatmul.mubr.bf16.gmra.mxu0 %v167
      %v212 = vpop.f32.mrf.mxu0
      %v213 = vadd.f32 0.0, %v212
      %v214 = vpop.f32.mrf.mxu0
      %v215 = vpop.f32.mrf.mxu0
      %v216 = vadd.f32 0.0, %v215
      %v217 = vpop.f32.mrf.mxu0
      %218 = vmatprep.mubr.bf16.mxu0 0
      %219 = vmatmul.mubr.bf16.gmra.mxu0 %v170
      %v220 = vpop.f32.mrf.mxu0
      %v221 = vadd.f32 0.0, %v220
      %v222 = vpop.f32.mrf.mxu0
      %v223 = vpop.f32.mrf.mxu0
      %v224 = vadd.f32 0.0, %v223
      %v225 = vpop.f32.mrf.mxu0
      %226 = vdwg.mxu0
      %v227 = vmul.f32 %v213, 0.17677669
      %v228 = vmul.f32 %v216, 0.17677669
      %v229 = vmul.f32 %v221, 0.17677669
      %v230 = vmul.f32 %v224, 0.17677669
      %v231 = vsel %vm161, %v227, -1e+09
      %v232 = vsel %vm162, %v228, -1e+09
      %v233 = vsel %vm163, %v229, -1e+09
      %v234 = vsel %vm164, %v230, -1e+09
      %v235 = vsel %vm165, %v231, -inf
      %236 = vmax.xlane.f32.xlu0 %v235
      %v237 = vpop.xlane.xlu0 %236
      %v238 = vsel %vm165, %v232, -inf
      %239 = vmax.xlane.f32.xlu0 %v238
      %v240 = vpop.xlane.xlu0 %239
      %v241 = vsel %vm165, %v233, -inf
      %242 = vmax.xlane.f32.xlu0 %v241
      %v243 = vpop.xlane.xlu0 %242
      %v244 = vsel %vm165, %v234, -inf
      %245 = vmax.xlane.f32.xlu0 %v244
      %v246 = vpop.xlane.xlu0 %245
      %v247 = vsub.f32 %v231, %v237
      %v248 = vsub.f32 %v232, %v240
      %v249 = vsub.f32 %v233, %v243
      %v250 = vsub.f32 %v234, %v246
      %v251 = vmul.f32 %v247, 1.442695
      %v252 = vpow.pop %v251
      %v253 = vmul.f32 %v248, 1.442695
      %v254 = vpow.pop %v253
      %v255 = vmul.f32 %v249, 1.442695
      %v256 = vpow.pop %v255
      %v257 = vmul.f32 %v250, 1.442695
      %v258 = vpow.pop %v257
      %v259 = vsel %vm165, %v252, 0.0
      %260 = vadd.xlane.f32.xlu0 %v259
      %v261 = vpop.xlane.xlu0 %260
      %v262 = vsel %vm165, %v254, 0.0
      %263 = vadd.xlane.f32.xlu0 %v262
      %v264 = vpop.xlane.xlu0 %263
      %v265 = vsel %vm165, %v256, 0.0
      %266 = vadd.xlane.f32.xlu0 %v265
      %v267 = vpop.xlane.xlu0 %266
      %v268 = vsel %vm165, %v258, 0.0
      %269 = vadd.xlane.f32.xlu0 %v268
      %v270 = vpop.xlane.xlu0 %269
      %v271 = vrcp.pop %v261
      %v272 = vrcp.pop %v264
      %v273 = vrcp.pop %v267
      %v274 = vrcp.pop %v270
      %v275 = vmul.f32 %v252, %v271
      %v276 = vmul.f32 %v254, %v272
      %v277 = vmul.f32 %v256, %v273
      %v278 = vmul.f32 %v258, %v274
      %v279 = vpack.c.bf16 %v276, %v275
      %v280 = vpack.c.bf16 %v278, %v277
      %v282 = vsel %vm165, %v279, 0
      %v285 = vsel %vm165, %v280, 0
      %287 = vmatprep.subr.bf16.mxu0 0
      %288 = vmatpush1.bf16.msra.mxu0 0
      %289 = vmatprep.subr.bf16.mxu0 0
      %290 = vmatpush1.bf16.msra.mxu0 0
      %291 = vmatprep.subr.bf16.mxu0 0
      %292 = vmatpush1.bf16.msra.mxu0 0
      %293 = vmatprep.subr.bf16.mxu0 0
      %294 = vmatpush1.bf16.msra.mxu0 0
      %295 = vmatprep.subr.bf16.mxu0 0
      %296 = vmatpush1.bf16.msra.mxu0 0
      %297 = vmatprep.subr.bf16.mxu0 0
      %298 = vmatpush1.bf16.msra.mxu0 0
      %299 = vmatprep.subr.bf16.mxu0 0
      %300 = vmatpush1.bf16.msra.mxu0 %v152
      %301 = vmatprep.subr.bf16.mxu0 0
      %302 = vmatpush1.bf16.msra.mxu0 %v150
      %303 = vmatprep.subr.bf16.mxu0 0
      %304 = vmatpush2.bf16.msra.mxu0 0
      %305 = vmatprep.subr.bf16.mxu0 0
      %306 = vmatpush2.bf16.msra.mxu0 0
      %307 = vmatprep.subr.bf16.mxu0 0
      %308 = vmatpush2.bf16.msra.mxu0 0
      %309 = vmatprep.subr.bf16.mxu0 0
      %310 = vmatpush2.bf16.msra.mxu0 0
      %311 = vmatprep.subr.bf16.mxu0 0
      %312 = vmatpush2.bf16.msra.mxu0 0
      %313 = vmatprep.subr.bf16.mxu0 0
      %314 = vmatpush2.bf16.msra.mxu0 0
      %315 = vmatprep.subr.bf16.mxu0 0
      %316 = vmatpush2.bf16.msra.mxu0 0
      %317 = vmatprep.subr.bf16.mxu0 0
      %318 = vmatpush2.bf16.msra.mxu0 0
      %319 = vmatprep.mubr.bf16.mxu0 0
      %320 = vmatmul.mubr.bf16.gmra.mxu0 %v282
      %v321 = vpop.f32.mrf.mxu0
      %v322 = vadd.f32 0.0, %v321
      %v323 = vpop.f32.mrf.mxu0
      %v324 = vpop.f32.mrf.mxu0
      %v325 = vadd.f32 0.0, %v324
      %v326 = vpop.f32.mrf.mxu0
      %327 = vmatprep.mubr.bf16.mxu0 0
      %328 = vmatmul.mubr.bf16.gmra.mxu0 %v285
      %v329 = vpop.f32.mrf.mxu0
      %v330 = vadd.f32 0.0, %v329
      %v331 = vpop.f32.mrf.mxu0
      %v332 = vpop.f32.mrf.mxu0
      %v333 = vadd.f32 0.0, %v332
      %v334 = vpop.f32.mrf.mxu0
      %335 = vdwg.mxu0
      %338 = vrot.lane.b32.xlu0 %v142, 96
      %v339 = vpop.permute.xlu0 %338
      %340 = vrot.lane.b32.xlu0 %v144, 96
      %v341 = vpop.permute.xlu0 %340
      %344 = vrot.lane.b32.xlu0 %v146, 96
      %v345 = vpop.permute.xlu0 %344
      %346 = vrot.lane.b32.xlu0 %v148, 96
      %v347 = vpop.permute.xlu0 %346
      %v349 = vsel %vm165, %v339, 0
      %v352 = vsel %vm165, %v341, 0
      %v355 = vsel %vm165, %v345, 0
      %v358 = vsel %vm165, %v347, 0
      %360 = vmatprep.subr.bf16.mxu0 0
      %361 = vmatpush1.bf16.xpose.msra.mxu0 0
      %362 = vmatprep.subr.bf16.mxu0 0
      %363 = vmatpush1.bf16.xpose.msra.mxu0 0
      %364 = vmatprep.subr.bf16.mxu0 0
      %365 = vmatpush1.bf16.xpose.msra.mxu0 0
      %366 = vmatprep.subr.bf16.mxu0 0
      %367 = vmatpush1.bf16.xpose.msra.mxu0 0
      %368 = vmatprep.subr.bf16.mxu0 0
      %369 = vmatpush1.bf16.xpose.msra.mxu0 0
      %370 = vmatprep.subr.bf16.mxu0 0
      %371 = vmatpush1.bf16.xpose.msra.mxu0 0
      %372 = vmatprep.subr.bf16.mxu0 0
      %373 = vmatpush1.bf16.xpose.msra.mxu0 %v358
      %374 = vmatprep.subr.bf16.mxu0 0
      %375 = vmatpush1.bf16.xpose.msra.mxu0 %v355
      %376 = vmatprep.subr.bf16.mxu0 0
      %377 = vmatpush2.bf16.xpose.msra.mxu0 0
      %378 = vmatprep.subr.bf16.mxu0 0
      %379 = vmatpush2.bf16.xpose.msra.mxu0 0
      %380 = vmatprep.subr.bf16.mxu0 0
      %381 = vmatpush2.bf16.xpose.msra.mxu0 0
      %382 = vmatprep.subr.bf16.mxu0 0
      %383 = vmatpush2.bf16.xpose.msra.mxu0 0
      %384 = vmatprep.subr.bf16.mxu0 0
      %385 = vmatpush2.bf16.xpose.msra.mxu0 0
      %386 = vmatprep.subr.bf16.mxu0 0
      %387 = vmatpush2.bf16.xpose.msra.mxu0 0
      %388 = vmatprep.subr.bf16.mxu0 0
      %389 = vmatpush2.bf16.xpose.msra.mxu0 0
      %390 = vmatprep.subr.bf16.mxu0 0
      %391 = vmatpush2.bf16.xpose.msra.mxu0 0
      %392 = vmatprep.mubr.bf16.mxu0 0
      %393 = vmatmul.mubr.bf16.gmra.mxu0 %v349
      %v394 = vpop.f32.mrf.mxu0
      %v395 = vadd.f32 0.0, %v394
      %v396 = vpop.f32.mrf.mxu0
      %v397 = vpop.f32.mrf.mxu0
      %v398 = vadd.f32 0.0, %v397
      %v399 = vpop.f32.mrf.mxu0
      %400 = vmatprep.mubr.bf16.mxu0 0
      %401 = vmatmul.mubr.bf16.gmra.mxu0 %v352
      %v402 = vpop.f32.mrf.mxu0
      %v403 = vadd.f32 0.0, %v402
      %v404 = vpop.f32.mrf.mxu0
      %v405 = vpop.f32.mrf.mxu0
      %v406 = vadd.f32 0.0, %v405
      %v407 = vpop.f32.mrf.mxu0
      %408 = vdwg.mxu0
      %v409 = vmul.f32 %v395, 0.17677669
      %v410 = vmul.f32 %v398, 0.17677669
      %v411 = vmul.f32 %v403, 0.17677669
      %v412 = vmul.f32 %v406, 0.17677669
      %v413 = vsel %vm161, %v409, -1e+09
      %v414 = vsel %vm162, %v410, -1e+09
      %v415 = vsel %vm163, %v411, -1e+09
      %v416 = vsel %vm164, %v412, -1e+09
      %v417 = vsel %vm165, %v413, -inf
      %418 = vmax.xlane.f32.xlu0 %v417
      %v419 = vpop.xlane.xlu0 %418
      %v420 = vsel %vm165, %v414, -inf
      %421 = vmax.xlane.f32.xlu0 %v420
      %v422 = vpop.xlane.xlu0 %421
      %v423 = vsel %vm165, %v415, -inf
      %424 = vmax.xlane.f32.xlu0 %v423
      %v425 = vpop.xlane.xlu0 %424
      %v426 = vsel %vm165, %v416, -inf
      %427 = vmax.xlane.f32.xlu0 %v426
      %v428 = vpop.xlane.xlu0 %427
      %v429 = vsub.f32 %v413, %v419
      %v430 = vsub.f32 %v414, %v422
      %v431 = vsub.f32 %v415, %v425
      %v432 = vsub.f32 %v416, %v428
      %v433 = vmul.f32 %v429, 1.442695
      %v434 = vpow.pop %v433
      %v435 = vmul.f32 %v430, 1.442695
      %v436 = vpow.pop %v435
      %v437 = vmul.f32 %v431, 1.442695
      %v438 = vpow.pop %v437
      %v439 = vmul.f32 %v432, 1.442695
      %v440 = vpow.pop %v439
      %v441 = vsel %vm165, %v434, 0.0
      %442 = vadd.xlane.f32.xlu0 %v441
      %v443 = vpop.xlane.xlu0 %442
      %v444 = vsel %vm165, %v436, 0.0
      %445 = vadd.xlane.f32.xlu0 %v444
      %v446 = vpop.xlane.xlu0 %445
      %v447 = vsel %vm165, %v438, 0.0
      %448 = vadd.xlane.f32.xlu0 %v447
      %v449 = vpop.xlane.xlu0 %448
      %v450 = vsel %vm165, %v440, 0.0
      %451 = vadd.xlane.f32.xlu0 %v450
      %v452 = vpop.xlane.xlu0 %451
      %v453 = vrcp.pop %v443
      %v454 = vrcp.pop %v446
      %v455 = vrcp.pop %v449
      %v456 = vrcp.pop %v452
      %v457 = vmul.f32 %v434, %v453
      %v458 = vmul.f32 %v436, %v454
      %v459 = vmul.f32 %v438, %v455
      %v460 = vmul.f32 %v440, %v456
      %v461 = vpack.c.bf16 %v458, %v457
      %v462 = vpack.c.bf16 %v460, %v459
      %465 = vrot.lane.b32.xlu0 %v150, 96
      %v466 = vpop.permute.xlu0 %465
      %467 = vrot.lane.b32.xlu0 %v152, 96
      %v468 = vpop.permute.xlu0 %467
      %v472 = vsel %vm165, %v461, 0
      %v475 = vsel %vm165, %v462, 0
      %477 = vmatprep.subr.bf16.mxu0 0
      %478 = vmatpush1.bf16.msra.mxu0 0
      %479 = vmatprep.subr.bf16.mxu0 0
      %480 = vmatpush1.bf16.msra.mxu0 0
      %481 = vmatprep.subr.bf16.mxu0 0
      %482 = vmatpush1.bf16.msra.mxu0 0
      %483 = vmatprep.subr.bf16.mxu0 0
      %484 = vmatpush1.bf16.msra.mxu0 0
      %485 = vmatprep.subr.bf16.mxu0 0
      %486 = vmatpush1.bf16.msra.mxu0 0
      %487 = vmatprep.subr.bf16.mxu0 0
      %488 = vmatpush1.bf16.msra.mxu0 0
      %489 = vmatprep.subr.bf16.mxu0 0
      %490 = vmatpush1.bf16.msra.mxu0 %v468
      %491 = vmatprep.subr.bf16.mxu0 0
      %492 = vmatpush1.bf16.msra.mxu0 %v466
      %493 = vmatprep.subr.bf16.mxu0 0
      %494 = vmatpush2.bf16.msra.mxu0 0
      %495 = vmatprep.subr.bf16.mxu0 0
      %496 = vmatpush2.bf16.msra.mxu0 0
      %497 = vmatprep.subr.bf16.mxu0 0
      %498 = vmatpush2.bf16.msra.mxu0 0
      %499 = vmatprep.subr.bf16.mxu0 0
      %500 = vmatpush2.bf16.msra.mxu0 0
      %501 = vmatprep.subr.bf16.mxu0 0
      %502 = vmatpush2.bf16.msra.mxu0 0
      %503 = vmatprep.subr.bf16.mxu0 0
      %504 = vmatpush2.bf16.msra.mxu0 0
      %505 = vmatprep.subr.bf16.mxu0 0
      %506 = vmatpush2.bf16.msra.mxu0 0
      %507 = vmatprep.subr.bf16.mxu0 0
      %508 = vmatpush2.bf16.msra.mxu0 0
      %509 = vmatprep.mubr.bf16.mxu0 0
      %510 = vmatmul.mubr.bf16.gmra.mxu0 %v472
      %v511 = vpop.f32.mrf.mxu0
      %v512 = vadd.f32 0.0, %v511
      %v513 = vpop.f32.mrf.mxu0
      %v514 = vpop.f32.mrf.mxu0
      %v515 = vadd.f32 0.0, %v514
      %v516 = vpop.f32.mrf.mxu0
      %517 = vmatprep.mubr.bf16.mxu0 0
      %518 = vmatmul.mubr.bf16.gmra.mxu0 %v475
      %v519 = vpop.f32.mrf.mxu0
      %v520 = vadd.f32 0.0, %v519
      %v521 = vpop.f32.mrf.mxu0
      %v522 = vpop.f32.mrf.mxu0
      %v523 = vadd.f32 0.0, %v522
      %v524 = vpop.f32.mrf.mxu0
      %525 = vdwg.mxu0
      %526 = vrot.lane.b32.xlu0 %v142, 64
      %v527 = vpop.permute.xlu0 %526
      %528 = vrot.lane.b32.xlu0 %v144, 64
      %v529 = vpop.permute.xlu0 %528
      %530 = vrot.lane.b32.xlu0 %v146, 64
      %v531 = vpop.permute.xlu0 %530
      %532 = vrot.lane.b32.xlu0 %v148, 64
      %v533 = vpop.permute.xlu0 %532
      %v535 = vsel %vm165, %v527, 0
      %v538 = vsel %vm165, %v529, 0
      %v541 = vsel %vm165, %v531, 0
      %v544 = vsel %vm165, %v533, 0
      %546 = vmatprep.subr.bf16.mxu0 0
      %547 = vmatpush1.bf16.xpose.msra.mxu0 0
      %548 = vmatprep.subr.bf16.mxu0 0
      %549 = vmatpush1.bf16.xpose.msra.mxu0 0
      %550 = vmatprep.subr.bf16.mxu0 0
      %551 = vmatpush1.bf16.xpose.msra.mxu0 0
      %552 = vmatprep.subr.bf16.mxu0 0
      %553 = vmatpush1.bf16.xpose.msra.mxu0 0
      %554 = vmatprep.subr.bf16.mxu0 0
      %555 = vmatpush1.bf16.xpose.msra.mxu0 0
      %556 = vmatprep.subr.bf16.mxu0 0
      %557 = vmatpush1.bf16.xpose.msra.mxu0 0
      %558 = vmatprep.subr.bf16.mxu0 0
      %559 = vmatpush1.bf16.xpose.msra.mxu0 %v544
      %560 = vmatprep.subr.bf16.mxu0 0
      %561 = vmatpush1.bf16.xpose.msra.mxu0 %v541
      %562 = vmatprep.subr.bf16.mxu0 0
      %563 = vmatpush2.bf16.xpose.msra.mxu0 0
      %564 = vmatprep.subr.bf16.mxu0 0
      %565 = vmatpush2.bf16.xpose.msra.mxu0 0
      %566 = vmatprep.subr.bf16.mxu0 0
      %567 = vmatpush2.bf16.xpose.msra.mxu0 0
      %568 = vmatprep.subr.bf16.mxu0 0
      %569 = vmatpush2.bf16.xpose.msra.mxu0 0
      %570 = vmatprep.subr.bf16.mxu0 0
      %571 = vmatpush2.bf16.xpose.msra.mxu0 0
      %572 = vmatprep.subr.bf16.mxu0 0
      %573 = vmatpush2.bf16.xpose.msra.mxu0 0
      %574 = vmatprep.subr.bf16.mxu0 0
      %575 = vmatpush2.bf16.xpose.msra.mxu0 0
      %576 = vmatprep.subr.bf16.mxu0 0
      %577 = vmatpush2.bf16.xpose.msra.mxu0 0
      %578 = vmatprep.mubr.bf16.mxu0 0
      %579 = vmatmul.mubr.bf16.gmra.mxu0 %v535
      %v580 = vpop.f32.mrf.mxu0
      %v581 = vadd.f32 0.0, %v580
      %v582 = vpop.f32.mrf.mxu0
      %v583 = vpop.f32.mrf.mxu0
      %v584 = vadd.f32 0.0, %v583
      %v585 = vpop.f32.mrf.mxu0
      %586 = vmatprep.mubr.bf16.mxu0 0
      %587 = vmatmul.mubr.bf16.gmra.mxu0 %v538
      %v588 = vpop.f32.mrf.mxu0
      %v589 = vadd.f32 0.0, %v588
      %v590 = vpop.f32.mrf.mxu0
      %v591 = vpop.f32.mrf.mxu0
      %v592 = vadd.f32 0.0, %v591
      %v593 = vpop.f32.mrf.mxu0
      %594 = vdwg.mxu0
      %v595 = vmul.f32 %v581, 0.17677669
      %v596 = vmul.f32 %v584, 0.17677669
      %v597 = vmul.f32 %v589, 0.17677669
      %v598 = vmul.f32 %v592, 0.17677669
      %v599 = vsel %vm161, %v595, -1e+09
      %v600 = vsel %vm162, %v596, -1e+09
      %v601 = vsel %vm163, %v597, -1e+09
      %v602 = vsel %vm164, %v598, -1e+09
      %v603 = vsel %vm165, %v599, -inf
      %604 = vmax.xlane.f32.xlu0 %v603
      %v605 = vpop.xlane.xlu0 %604
      %v606 = vsel %vm165, %v600, -inf
      %607 = vmax.xlane.f32.xlu0 %v606
      %v608 = vpop.xlane.xlu0 %607
      %v609 = vsel %vm165, %v601, -inf
      %610 = vmax.xlane.f32.xlu0 %v609
      %v611 = vpop.xlane.xlu0 %610
      %v612 = vsel %vm165, %v602, -inf
      %613 = vmax.xlane.f32.xlu0 %v612
      %v614 = vpop.xlane.xlu0 %613
      %v615 = vsub.f32 %v599, %v605
      %v616 = vsub.f32 %v600, %v608
      %v617 = vsub.f32 %v601, %v611
      %v618 = vsub.f32 %v602, %v614
      %v619 = vmul.f32 %v615, 1.442695
      %v620 = vpow.pop %v619
      %v621 = vmul.f32 %v616, 1.442695
      %v622 = vpow.pop %v621
      %v623 = vmul.f32 %v617, 1.442695
      %v624 = vpow.pop %v623
      %v625 = vmul.f32 %v618, 1.442695
      %v626 = vpow.pop %v625
      %v627 = vsel %vm165, %v620, 0.0
      %628 = vadd.xlane.f32.xlu0 %v627
      %v629 = vpop.xlane.xlu0 %628
      %v630 = vsel %vm165, %v622, 0.0
      %631 = vadd.xlane.f32.xlu0 %v630
      %v632 = vpop.xlane.xlu0 %631
      %v633 = vsel %vm165, %v624, 0.0
      %634 = vadd.xlane.f32.xlu0 %v633
      %v635 = vpop.xlane.xlu0 %634
      %v636 = vsel %vm165, %v626, 0.0
      %637 = vadd.xlane.f32.xlu0 %v636
      %v638 = vpop.xlane.xlu0 %637
      %v639 = vrcp.pop %v629
      %v640 = vrcp.pop %v632
      %v641 = vrcp.pop %v635
      %v642 = vrcp.pop %v638
      %v643 = vmul.f32 %v620, %v639
      %v644 = vmul.f32 %v622, %v640
      %v645 = vmul.f32 %v624, %v641
      %v646 = vmul.f32 %v626, %v642
      %v647 = vpack.c.bf16 %v644, %v643
      %v648 = vpack.c.bf16 %v646, %v645
      %649 = vrot.lane.b32.xlu0 %v150, 64
      %v650 = vpop.permute.xlu0 %649
      %651 = vrot.lane.b32.xlu0 %v152, 64
      %v652 = vpop.permute.xlu0 %651
      %v656 = vsel %vm165, %v647, 0
      %v659 = vsel %vm165, %v648, 0
      %661 = vmatprep.subr.bf16.mxu0 0
      %662 = vmatpush1.bf16.msra.mxu0 0
      %663 = vmatprep.subr.bf16.mxu0 0
      %664 = vmatpush1.bf16.msra.mxu0 0
      %665 = vmatprep.subr.bf16.mxu0 0
      %666 = vmatpush1.bf16.msra.mxu0 0
      %667 = vmatprep.subr.bf16.mxu0 0
      %668 = vmatpush1.bf16.msra.mxu0 0
      %669 = vmatprep.subr.bf16.mxu0 0
      %670 = vmatpush1.bf16.msra.mxu0 0
      %671 = vmatprep.subr.bf16.mxu0 0
      %672 = vmatpush1.bf16.msra.mxu0 0
      %673 = vmatprep.subr.bf16.mxu0 0
      %674 = vmatpush1.bf16.msra.mxu0 %v652
      %675 = vmatprep.subr.bf16.mxu0 0
      %676 = vmatpush1.bf16.msra.mxu0 %v650
      %677 = vmatprep.subr.bf16.mxu0 0
      %678 = vmatpush2.bf16.msra.mxu0 0
      %679 = vmatprep.subr.bf16.mxu0 0
      %680 = vmatpush2.bf16.msra.mxu0 0
      %681 = vmatprep.subr.bf16.mxu0 0
      %682 = vmatpush2.bf16.msra.mxu0 0
      %683 = vmatprep.subr.bf16.mxu0 0
      %684 = vmatpush2.bf16.msra.mxu0 0
      %685 = vmatprep.subr.bf16.mxu0 0
      %686 = vmatpush2.bf16.msra.mxu0 0
      %687 = vmatprep.subr.bf16.mxu0 0
      %688 = vmatpush2.bf16.msra.mxu0 0
      %689 = vmatprep.subr.bf16.mxu0 0
      %690 = vmatpush2.bf16.msra.mxu0 0
      %691 = vmatprep.subr.bf16.mxu0 0
      %692 = vmatpush2.bf16.msra.mxu0 0
      %693 = vmatprep.mubr.bf16.mxu0 0
      %694 = vmatmul.mubr.bf16.gmra.mxu0 %v656
      %v695 = vpop.f32.mrf.mxu0
      %v696 = vadd.f32 0.0, %v695
      %v697 = vpop.f32.mrf.mxu0
      %v698 = vpop.f32.mrf.mxu0
      %v699 = vadd.f32 0.0, %v698
      %v700 = vpop.f32.mrf.mxu0
      %701 = vmatprep.mubr.bf16.mxu0 0
      %702 = vmatmul.mubr.bf16.gmra.mxu0 %v659
      %v703 = vpop.f32.mrf.mxu0
      %v704 = vadd.f32 0.0, %v703
      %v705 = vpop.f32.mrf.mxu0
      %v706 = vpop.f32.mrf.mxu0
      %v707 = vadd.f32 0.0, %v706
      %v708 = vpop.f32.mrf.mxu0
      %709 = vdwg.mxu0
      %710 = vrot.lane.b32.xlu0 %v142, 32
      %v711 = vpop.permute.xlu0 %710
      %712 = vrot.lane.b32.xlu0 %v144, 32
      %v713 = vpop.permute.xlu0 %712
      %714 = vrot.lane.b32.xlu0 %v146, 32
      %v715 = vpop.permute.xlu0 %714
      %716 = vrot.lane.b32.xlu0 %v148, 32
      %v717 = vpop.permute.xlu0 %716
      %v719 = vsel %vm165, %v711, 0
      %v722 = vsel %vm165, %v713, 0
      %v725 = vsel %vm165, %v715, 0
      %v728 = vsel %vm165, %v717, 0
      %730 = vmatprep.subr.bf16.mxu0 0
      %731 = vmatpush1.bf16.xpose.msra.mxu0 0
      %732 = vmatprep.subr.bf16.mxu0 0
      %733 = vmatpush1.bf16.xpose.msra.mxu0 0
      %734 = vmatprep.subr.bf16.mxu0 0
      %735 = vmatpush1.bf16.xpose.msra.mxu0 0
      %736 = vmatprep.subr.bf16.mxu0 0
      %737 = vmatpush1.bf16.xpose.msra.mxu0 0
      %738 = vmatprep.subr.bf16.mxu0 0
      %739 = vmatpush1.bf16.xpose.msra.mxu0 0
      %740 = vmatprep.subr.bf16.mxu0 0
      %741 = vmatpush1.bf16.xpose.msra.mxu0 0
      %742 = vmatprep.subr.bf16.mxu0 0
      %743 = vmatpush1.bf16.xpose.msra.mxu0 %v728
      %744 = vmatprep.subr.bf16.mxu0 0
      %745 = vmatpush1.bf16.xpose.msra.mxu0 %v725
      %746 = vmatprep.subr.bf16.mxu0 0
      %747 = vmatpush2.bf16.xpose.msra.mxu0 0
      %748 = vmatprep.subr.bf16.mxu0 0
      %749 = vmatpush2.bf16.xpose.msra.mxu0 0
      %750 = vmatprep.subr.bf16.mxu0 0
      %751 = vmatpush2.bf16.xpose.msra.mxu0 0
      %752 = vmatprep.subr.bf16.mxu0 0
      %753 = vmatpush2.bf16.xpose.msra.mxu0 0
      %754 = vmatprep.subr.bf16.mxu0 0
      %755 = vmatpush2.bf16.xpose.msra.mxu0 0
      %756 = vmatprep.subr.bf16.mxu0 0
      %757 = vmatpush2.bf16.xpose.msra.mxu0 0
      %758 = vmatprep.subr.bf16.mxu0 0
      %759 = vmatpush2.bf16.xpose.msra.mxu0 0
      %760 = vmatprep.subr.bf16.mxu0 0
      %761 = vmatpush2.bf16.xpose.msra.mxu0 0
      %762 = vmatprep.mubr.bf16.mxu0 0
      %763 = vmatmul.mubr.bf16.gmra.mxu0 %v719
      %v764 = vpop.f32.mrf.mxu0
      %v765 = vadd.f32 0.0, %v764
      %v766 = vpop.f32.mrf.mxu0
      %v767 = vpop.f32.mrf.mxu0
      %v768 = vadd.f32 0.0, %v767
      %v769 = vpop.f32.mrf.mxu0
      %770 = vmatprep.mubr.bf16.mxu0 0
      %771 = vmatmul.mubr.bf16.gmra.mxu0 %v722
      %v772 = vpop.f32.mrf.mxu0
      %v773 = vadd.f32 0.0, %v772
      %v774 = vpop.f32.mrf.mxu0
      %v775 = vpop.f32.mrf.mxu0
      %v776 = vadd.f32 0.0, %v775
      %v777 = vpop.f32.mrf.mxu0
      %778 = vdwg.mxu0
      %v779 = vmul.f32 %v765, 0.17677669
      %v780 = vmul.f32 %v768, 0.17677669
      %v781 = vmul.f32 %v773, 0.17677669
      %v782 = vmul.f32 %v776, 0.17677669
      %v783 = vsel %vm161, %v779, -1e+09
      %v784 = vsel %vm162, %v780, -1e+09
      %v785 = vsel %vm163, %v781, -1e+09
      %v786 = vsel %vm164, %v782, -1e+09
      %v787 = vsel %vm165, %v783, -inf
      %788 = vmax.xlane.f32.xlu0 %v787
      %v789 = vpop.xlane.xlu0 %788
      %v790 = vsel %vm165, %v784, -inf
      %791 = vmax.xlane.f32.xlu0 %v790
      %v792 = vpop.xlane.xlu0 %791
      %v793 = vsel %vm165, %v785, -inf
      %794 = vmax.xlane.f32.xlu0 %v793
      %v795 = vpop.xlane.xlu0 %794
      %v796 = vsel %vm165, %v786, -inf
      %797 = vmax.xlane.f32.xlu0 %v796
      %v798 = vpop.xlane.xlu0 %797
      %v799 = vsub.f32 %v783, %v789
      %v800 = vsub.f32 %v784, %v792
      %v801 = vsub.f32 %v785, %v795
      %v802 = vsub.f32 %v786, %v798
      %v803 = vmul.f32 %v799, 1.442695
      %v804 = vpow.pop %v803
      %v805 = vmul.f32 %v800, 1.442695
      %v806 = vpow.pop %v805
      %v807 = vmul.f32 %v801, 1.442695
      %v808 = vpow.pop %v807
      %v809 = vmul.f32 %v802, 1.442695
      %v810 = vpow.pop %v809
      %v811 = vsel %vm165, %v804, 0.0
      %812 = vadd.xlane.f32.xlu0 %v811
      %v813 = vpop.xlane.xlu0 %812
      %v814 = vsel %vm165, %v806, 0.0
      %815 = vadd.xlane.f32.xlu0 %v814
      %v816 = vpop.xlane.xlu0 %815
      %v817 = vsel %vm165, %v808, 0.0
      %818 = vadd.xlane.f32.xlu0 %v817
      %v819 = vpop.xlane.xlu0 %818
      %v820 = vsel %vm165, %v810, 0.0
      %821 = vadd.xlane.f32.xlu0 %v820
      %v822 = vpop.xlane.xlu0 %821
      %v823 = vrcp.pop %v813
      %v824 = vrcp.pop %v816
      %v825 = vrcp.pop %v819
      %v826 = vrcp.pop %v822
      %v827 = vmul.f32 %v804, %v823
      %v828 = vmul.f32 %v806, %v824
      %v829 = vmul.f32 %v808, %v825
      %v830 = vmul.f32 %v810, %v826
      %v831 = vpack.c.bf16 %v828, %v827
      %v832 = vpack.c.bf16 %v830, %v829
      %833 = vrot.lane.b32.xlu0 %v150, 32
      %v834 = vpop.permute.xlu0 %833
      %835 = vrot.lane.b32.xlu0 %v152, 32
      %v836 = vpop.permute.xlu0 %835
      %v840 = vsel %vm165, %v831, 0
      %v843 = vsel %vm165, %v832, 0
      %845 = vmatprep.subr.bf16.mxu0 0
      %846 = vmatpush1.bf16.msra.mxu0 0
      %847 = vmatprep.subr.bf16.mxu0 0
      %848 = vmatpush1.bf16.msra.mxu0 0
      %849 = vmatprep.subr.bf16.mxu0 0
      %850 = vmatpush1.bf16.msra.mxu0 0
      %851 = vmatprep.subr.bf16.mxu0 0
      %852 = vmatpush1.bf16.msra.mxu0 0
      %853 = vmatprep.subr.bf16.mxu0 0
      %854 = vmatpush1.bf16.msra.mxu0 0
      %855 = vmatprep.subr.bf16.mxu0 0
      %856 = vmatpush1.bf16.msra.mxu0 0
      %857 = vmatprep.subr.bf16.mxu0 0
      %858 = vmatpush1.bf16.msra.mxu0 %v836
      %859 = vmatprep.subr.bf16.mxu0 0
      %860 = vmatpush1.bf16.msra.mxu0 %v834
      %861 = vmatprep.subr.bf16.mxu0 0
      %862 = vmatpush2.bf16.msra.mxu0 0
      %863 = vmatprep.subr.bf16.mxu0 0
      %864 = vmatpush2.bf16.msra.mxu0 0
      %865 = vmatprep.subr.bf16.mxu0 0
      %866 = vmatpush2.bf16.msra.mxu0 0
      %867 = vmatprep.subr.bf16.mxu0 0
      %868 = vmatpush2.bf16.msra.mxu0 0
      %869 = vmatprep.subr.bf16.mxu0 0
      %870 = vmatpush2.bf16.msra.mxu0 0
      %871 = vmatprep.subr.bf16.mxu0 0
      %872 = vmatpush2.bf16.msra.mxu0 0
      %873 = vmatprep.subr.bf16.mxu0 0
      %874 = vmatpush2.bf16.msra.mxu0 0
      %875 = vmatprep.subr.bf16.mxu0 0
      %876 = vmatpush2.bf16.msra.mxu0 0
      %877 = vmatprep.mubr.bf16.mxu0 0
      %878 = vmatmul.mubr.bf16.gmra.mxu0 %v840
      %v879 = vpop.f32.mrf.mxu0
      %v880 = vadd.f32 0.0, %v879
      %v881 = vpop.f32.mrf.mxu0
      %v882 = vpop.f32.mrf.mxu0
      %v883 = vadd.f32 0.0, %v882
      %v884 = vpop.f32.mrf.mxu0
      %885 = vmatprep.mubr.bf16.mxu0 0
      %886 = vmatmul.mubr.bf16.gmra.mxu0 %v843
      %v887 = vpop.f32.mrf.mxu0
      %v888 = vadd.f32 0.0, %v887
      %v889 = vpop.f32.mrf.mxu0
      %v890 = vpop.f32.mrf.mxu0
      %v891 = vadd.f32 0.0, %v890
      %v892 = vpop.f32.mrf.mxu0
      %893 = vdwg.mxu0
      %v895 = vsel %vm165, %v143, 0
      %v898 = vsel %vm165, %v145, 0
      %v901 = vsel %vm165, %v147, 0
      %v904 = vsel %vm165, %v149, 0
      %906 = vmatprep.subr.bf16.mxu0 0
      %907 = vmatpush1.bf16.xpose.msra.mxu0 0
      %908 = vmatprep.subr.bf16.mxu0 0
      %909 = vmatpush1.bf16.xpose.msra.mxu0 0
      %910 = vmatprep.subr.bf16.mxu0 0
      %911 = vmatpush1.bf16.xpose.msra.mxu0 0
      %912 = vmatprep.subr.bf16.mxu0 0
      %913 = vmatpush1.bf16.xpose.msra.mxu0 0
      %914 = vmatprep.subr.bf16.mxu0 0
      %915 = vmatpush1.bf16.xpose.msra.mxu0 0
      %916 = vmatprep.subr.bf16.mxu0 0
      %917 = vmatpush1.bf16.xpose.msra.mxu0 0
      %918 = vmatprep.subr.bf16.mxu0 0
      %919 = vmatpush1.bf16.xpose.msra.mxu0 %v904
      %920 = vmatprep.subr.bf16.mxu0 0
      %921 = vmatpush1.bf16.xpose.msra.mxu0 %v901
      %922 = vmatprep.subr.bf16.mxu0 0
      %923 = vmatpush2.bf16.xpose.msra.mxu0 0
      %924 = vmatprep.subr.bf16.mxu0 0
      %925 = vmatpush2.bf16.xpose.msra.mxu0 0
      %926 = vmatprep.subr.bf16.mxu0 0
      %927 = vmatpush2.bf16.xpose.msra.mxu0 0
      %928 = vmatprep.subr.bf16.mxu0 0
      %929 = vmatpush2.bf16.xpose.msra.mxu0 0
      %930 = vmatprep.subr.bf16.mxu0 0
      %931 = vmatpush2.bf16.xpose.msra.mxu0 0
      %932 = vmatprep.subr.bf16.mxu0 0
      %933 = vmatpush2.bf16.xpose.msra.mxu0 0
      %934 = vmatprep.subr.bf16.mxu0 0
      %935 = vmatpush2.bf16.xpose.msra.mxu0 0
      %936 = vmatprep.subr.bf16.mxu0 0
      %937 = vmatpush2.bf16.xpose.msra.mxu0 0
      %938 = vmatprep.mubr.bf16.mxu0 0
      %939 = vmatmul.mubr.bf16.gmra.mxu0 %v895
      %v940 = vpop.f32.mrf.mxu0
      %v941 = vadd.f32 0.0, %v940
      %v942 = vpop.f32.mrf.mxu0
      %v943 = vpop.f32.mrf.mxu0
      %v944 = vadd.f32 0.0, %v943
      %v945 = vpop.f32.mrf.mxu0
      %946 = vmatprep.mubr.bf16.mxu0 0
      %947 = vmatmul.mubr.bf16.gmra.mxu0 %v898
      %v948 = vpop.f32.mrf.mxu0
      %v949 = vadd.f32 0.0, %v948
      %v950 = vpop.f32.mrf.mxu0
      %v951 = vpop.f32.mrf.mxu0
      %v952 = vadd.f32 0.0, %v951
      %v953 = vpop.f32.mrf.mxu0
      %954 = vdwg.mxu0
      %v955 = vmul.f32 %v941, 0.17677669
      %v956 = vmul.f32 %v944, 0.17677669
      %v957 = vmul.f32 %v949, 0.17677669
      %v958 = vmul.f32 %v952, 0.17677669
      %v959 = vsel %vm161, %v955, -1e+09
      %v960 = vsel %vm162, %v956, -1e+09
      %v961 = vsel %vm163, %v957, -1e+09
      %v962 = vsel %vm164, %v958, -1e+09
      %v963 = vsel %vm165, %v959, -inf
      %964 = vmax.xlane.f32.xlu0 %v963
      %v965 = vpop.xlane.xlu0 %964
      %v966 = vsel %vm165, %v960, -inf
      %967 = vmax.xlane.f32.xlu0 %v966
      %v968 = vpop.xlane.xlu0 %967
      %v969 = vsel %vm165, %v961, -inf
      %970 = vmax.xlane.f32.xlu0 %v969
      %v971 = vpop.xlane.xlu0 %970
      %v972 = vsel %vm165, %v962, -inf
      %973 = vmax.xlane.f32.xlu0 %v972
      %v974 = vpop.xlane.xlu0 %973
      %v975 = vsub.f32 %v959, %v965
      %v976 = vsub.f32 %v960, %v968
      %v977 = vsub.f32 %v961, %v971
      %v978 = vsub.f32 %v962, %v974
      %v979 = vmul.f32 %v975, 1.442695
      %v980 = vpow.pop %v979
      %v981 = vmul.f32 %v976, 1.442695
      %v982 = vpow.pop %v981
      %v983 = vmul.f32 %v977, 1.442695
      %v984 = vpow.pop %v983
      %v985 = vmul.f32 %v978, 1.442695
      %v986 = vpow.pop %v985
      %v987 = vsel %vm165, %v980, 0.0
      %988 = vadd.xlane.f32.xlu0 %v987
      %v989 = vpop.xlane.xlu0 %988
      %v990 = vsel %vm165, %v982, 0.0
      %991 = vadd.xlane.f32.xlu0 %v990
      %v992 = vpop.xlane.xlu0 %991
      %v993 = vsel %vm165, %v984, 0.0
      %994 = vadd.xlane.f32.xlu0 %v993
      %v995 = vpop.xlane.xlu0 %994
      %v996 = vsel %vm165, %v986, 0.0
      %997 = vadd.xlane.f32.xlu0 %v996
      %v998 = vpop.xlane.xlu0 %997
      %v999 = vrcp.pop %v989
      %v1000 = vrcp.pop %v992
      %v1001 = vrcp.pop %v995
      %v1002 = vrcp.pop %v998
      %v1003 = vmul.f32 %v980, %v999
      %v1004 = vmul.f32 %v982, %v1000
      %v1005 = vmul.f32 %v984, %v1001
      %v1006 = vmul.f32 %v986, %v1002
      %v1007 = vpack.c.bf16 %v1004, %v1003
      %v1008 = vpack.c.bf16 %v1006, %v1005
      %v1010 = vsel %vm165, %v1007, 0
      %v1013 = vsel %vm165, %v1008, 0
      %1015 = vmatprep.subr.bf16.mxu0 0
      %1016 = vmatpush1.bf16.msra.mxu0 0
      %1017 = vmatprep.subr.bf16.mxu0 0
      %1018 = vmatpush1.bf16.msra.mxu0 0
      %1019 = vmatprep.subr.bf16.mxu0 0
      %1020 = vmatpush1.bf16.msra.mxu0 0
      %1021 = vmatprep.subr.bf16.mxu0 0
      %1022 = vmatpush1.bf16.msra.mxu0 0
      %1023 = vmatprep.subr.bf16.mxu0 0
      %1024 = vmatpush1.bf16.msra.mxu0 0
      %1025 = vmatprep.subr.bf16.mxu0 0
      %1026 = vmatpush1.bf16.msra.mxu0 0
      %1027 = vmatprep.subr.bf16.mxu0 0
      %1028 = vmatpush1.bf16.msra.mxu0 %v153
      %1029 = vmatprep.subr.bf16.mxu0 0
      %1030 = vmatpush1.bf16.msra.mxu0 %v151
      %1031 = vmatprep.subr.bf16.mxu0 0
      %1032 = vmatpush2.bf16.msra.mxu0 0
      %1033 = vmatprep.subr.bf16.mxu0 0
      %1034 = vmatpush2.bf16.msra.mxu0 0
      %1035 = vmatprep.subr.bf16.mxu0 0
      %1036 = vmatpush2.bf16.msra.mxu0 0
      %1037 = vmatprep.subr.bf16.mxu0 0
      %1038 = vmatpush2.bf16.msra.mxu0 0
      %1039 = vmatprep.subr.bf16.mxu0 0
      %1040 = vmatpush2.bf16.msra.mxu0 0
      %1041 = vmatprep.subr.bf16.mxu0 0
      %1042 = vmatpush2.bf16.msra.mxu0 0
      %1043 = vmatprep.subr.bf16.mxu0 0
      %1044 = vmatpush2.bf16.msra.mxu0 0
      %1045 = vmatprep.subr.bf16.mxu0 0
      %1046 = vmatpush2.bf16.msra.mxu0 0
      %1047 = vmatprep.mubr.bf16.mxu0 0
      %1048 = vmatmul.mubr.bf16.gmra.mxu0 %v1010
      %v1049 = vpop.f32.mrf.mxu0
      %v1050 = vadd.f32 0.0, %v1049
      %v1051 = vpop.f32.mrf.mxu0
      %v1052 = vpop.f32.mrf.mxu0
      %v1053 = vadd.f32 0.0, %v1052
      %v1054 = vpop.f32.mrf.mxu0
      %1055 = vmatprep.mubr.bf16.mxu0 0
      %1056 = vmatmul.mubr.bf16.gmra.mxu0 %v1013
      %v1057 = vpop.f32.mrf.mxu0
      %v1058 = vadd.f32 0.0, %v1057
      %v1059 = vpop.f32.mrf.mxu0
      %v1060 = vpop.f32.mrf.mxu0
      %v1061 = vadd.f32 0.0, %v1060
      %v1062 = vpop.f32.mrf.mxu0
      %1063 = vdwg.mxu0
      %1066 = vrot.lane.b32.xlu0 %v143, 96
      %v1067 = vpop.permute.xlu0 %1066
      %1068 = vrot.lane.b32.xlu0 %v145, 96
      %v1069 = vpop.permute.xlu0 %1068
      %1072 = vrot.lane.b32.xlu0 %v147, 96
      %v1073 = vpop.permute.xlu0 %1072
      %1074 = vrot.lane.b32.xlu0 %v149, 96
      %v1075 = vpop.permute.xlu0 %1074
      %v1077 = vsel %vm165, %v1067, 0
      %v1080 = vsel %vm165, %v1069, 0
      %v1083 = vsel %vm165, %v1073, 0
      %v1086 = vsel %vm165, %v1075, 0
      %1088 = vmatprep.subr.bf16.mxu0 0
      %1089 = vmatpush1.bf16.xpose.msra.mxu0 0
      %1090 = vmatprep.subr.bf16.mxu0 0
      %1091 = vmatpush1.bf16.xpose.msra.mxu0 0
      %1092 = vmatprep.subr.bf16.mxu0 0
      %1093 = vmatpush1.bf16.xpose.msra.mxu0 0
      %1094 = vmatprep.subr.bf16.mxu0 0
      %1095 = vmatpush1.bf16.xpose.msra.mxu0 0
      %1096 = vmatprep.subr.bf16.mxu0 0
      %1097 = vmatpush1.bf16.xpose.msra.mxu0 0
      %1098 = vmatprep.subr.bf16.mxu0 0
      %1099 = vmatpush1.bf16.xpose.msra.mxu0 0
      %1100 = vmatprep.subr.bf16.mxu0 0
      %1101 = vmatpush1.bf16.xpose.msra.mxu0 %v1086
      %1102 = vmatprep.subr.bf16.mxu0 0
      %1103 = vmatpush1.bf16.xpose.msra.mxu0 %v1083
      %1104 = vmatprep.subr.bf16.mxu0 0
      %1105 = vmatpush2.bf16.xpose.msra.mxu0 0
      %1106 = vmatprep.subr.bf16.mxu0 0
      %1107 = vmatpush2.bf16.xpose.msra.mxu0 0
      %1108 = vmatprep.subr.bf16.mxu0 0
      %1109 = vmatpush2.bf16.xpose.msra.mxu0 0
      %1110 = vmatprep.subr.bf16.mxu0 0
      %1111 = vmatpush2.bf16.xpose.msra.mxu0 0
      %1112 = vmatprep.subr.bf16.mxu0 0
      %1113 = vmatpush2.bf16.xpose.msra.mxu0 0
      %1114 = vmatprep.subr.bf16.mxu0 0
      %1115 = vmatpush2.bf16.xpose.msra.mxu0 0
      %1116 = vmatprep.subr.bf16.mxu0 0
      %1117 = vmatpush2.bf16.xpose.msra.mxu0 0
      %1118 = vmatprep.subr.bf16.mxu0 0
      %1119 = vmatpush2.bf16.xpose.msra.mxu0 0
      %1120 = vmatprep.mubr.bf16.mxu0 0
      %1121 = vmatmul.mubr.bf16.gmra.mxu0 %v1077
      %v1122 = vpop.f32.mrf.mxu0
      %v1123 = vadd.f32 0.0, %v1122
      %v1124 = vpop.f32.mrf.mxu0
      %v1125 = vpop.f32.mrf.mxu0
      %v1126 = vadd.f32 0.0, %v1125
      %v1127 = vpop.f32.mrf.mxu0
      %1128 = vmatprep.mubr.bf16.mxu0 0
      %1129 = vmatmul.mubr.bf16.gmra.mxu0 %v1080
      %v1130 = vpop.f32.mrf.mxu0
      %v1131 = vadd.f32 0.0, %v1130
      %v1132 = vpop.f32.mrf.mxu0
      %v1133 = vpop.f32.mrf.mxu0
      %v1134 = vadd.f32 0.0, %v1133
      %v1135 = vpop.f32.mrf.mxu0
      %1136 = vdwg.mxu0
      %v1137 = vmul.f32 %v1123, 0.17677669
      %v1138 = vmul.f32 %v1126, 0.17677669
      %v1139 = vmul.f32 %v1131, 0.17677669
      %v1140 = vmul.f32 %v1134, 0.17677669
      %v1141 = vsel %vm161, %v1137, -1e+09
      %v1142 = vsel %vm162, %v1138, -1e+09
      %v1143 = vsel %vm163, %v1139, -1e+09
      %v1144 = vsel %vm164, %v1140, -1e+09
      %v1145 = vsel %vm165, %v1141, -inf
      %1146 = vmax.xlane.f32.xlu0 %v1145
      %v1147 = vpop.xlane.xlu0 %1146
      %v1148 = vsel %vm165, %v1142, -inf
      %1149 = vmax.xlane.f32.xlu0 %v1148
      %v1150 = vpop.xlane.xlu0 %1149
      %v1151 = vsel %vm165, %v1143, -inf
      %1152 = vmax.xlane.f32.xlu0 %v1151
      %v1153 = vpop.xlane.xlu0 %1152
      %v1154 = vsel %vm165, %v1144, -inf
      %1155 = vmax.xlane.f32.xlu0 %v1154
      %v1156 = vpop.xlane.xlu0 %1155
      %v1157 = vsub.f32 %v1141, %v1147
      %v1158 = vsub.f32 %v1142, %v1150
      %v1159 = vsub.f32 %v1143, %v1153
      %v1160 = vsub.f32 %v1144, %v1156
      %v1161 = vmul.f32 %v1157, 1.442695
      %v1162 = vpow.pop %v1161
      %v1163 = vmul.f32 %v1158, 1.442695
      %v1164 = vpow.pop %v1163
      %v1165 = vmul.f32 %v1159, 1.442695
      %v1166 = vpow.pop %v1165
      %v1167 = vmul.f32 %v1160, 1.442695
      %v1168 = vpow.pop %v1167
      %v1169 = vsel %vm165, %v1162, 0.0
      %1170 = vadd.xlane.f32.xlu0 %v1169
      %v1171 = vpop.xlane.xlu0 %1170
      %v1172 = vsel %vm165, %v1164, 0.0
      %1173 = vadd.xlane.f32.xlu0 %v1172
      %v1174 = vpop.xlane.xlu0 %1173
      %v1175 = vsel %vm165, %v1166, 0.0
      %1176 = vadd.xlane.f32.xlu0 %v1175
      %v1177 = vpop.xlane.xlu0 %1176
      %v1178 = vsel %vm165, %v1168, 0.0
      %1179 = vadd.xlane.f32.xlu0 %v1178
      %v1180 = vpop.xlane.xlu0 %1179
      %v1181 = vrcp.pop %v1171
      %v1182 = vrcp.pop %v1174
      %v1183 = vrcp.pop %v1177
      %v1184 = vrcp.pop %v1180
      %v1185 = vmul.f32 %v1162, %v1181
      %v1186 = vmul.f32 %v1164, %v1182
      %v1187 = vmul.f32 %v1166, %v1183
      %v1188 = vmul.f32 %v1168, %v1184
      %v1189 = vpack.c.bf16 %v1186, %v1185
      %v1190 = vpack.c.bf16 %v1188, %v1187
      %1193 = vrot.lane.b32.xlu0 %v151, 96
      %v1194 = vpop.permute.xlu0 %1193
      %1195 = vrot.lane.b32.xlu0 %v153, 96
      %v1196 = vpop.permute.xlu0 %1195
      %v1200 = vsel %vm165, %v1189, 0
      %v1203 = vsel %vm165, %v1190, 0
      %1205 = vmatprep.subr.bf16.mxu0 0
      %1206 = vmatpush1.bf16.msra.mxu0 0
      %1207 = vmatprep.subr.bf16.mxu0 0
      %1208 = vmatpush1.bf16.msra.mxu0 0
      %1209 = vmatprep.subr.bf16.mxu0 0
      %1210 = vmatpush1.bf16.msra.mxu0 0
      %1211 = vmatprep.subr.bf16.mxu0 0
      %1212 = vmatpush1.bf16.msra.mxu0 0
      %1213 = vmatprep.subr.bf16.mxu0 0
      %1214 = vmatpush1.bf16.msra.mxu0 0
      %1215 = vmatprep.subr.bf16.mxu0 0
      %1216 = vmatpush1.bf16.msra.mxu0 0
      %1217 = vmatprep.subr.bf16.mxu0 0
      %1218 = vmatpush1.bf16.msra.mxu0 %v1196
      %1219 = vmatprep.subr.bf16.mxu0 0
      %1220 = vmatpush1.bf16.msra.mxu0 %v1194
      %1221 = vmatprep.subr.bf16.mxu0 0
      %1222 = vmatpush2.bf16.msra.mxu0 0
      %1223 = vmatprep.subr.bf16.mxu0 0
      %1224 = vmatpush2.bf16.msra.mxu0 0
      %1225 = vmatprep.subr.bf16.mxu0 0
      %1226 = vmatpush2.bf16.msra.mxu0 0
      %1227 = vmatprep.subr.bf16.mxu0 0
      %1228 = vmatpush2.bf16.msra.mxu0 0
      %1229 = vmatprep.subr.bf16.mxu0 0
      %1230 = vmatpush2.bf16.msra.mxu0 0
      %1231 = vmatprep.subr.bf16.mxu0 0
      %1232 = vmatpush2.bf16.msra.mxu0 0
      %1233 = vmatprep.subr.bf16.mxu0 0
      %1234 = vmatpush2.bf16.msra.mxu0 0
      %1235 = vmatprep.subr.bf16.mxu0 0
      %1236 = vmatpush2.bf16.msra.mxu0 0
      %1237 = vmatprep.mubr.bf16.mxu0 0
      %1238 = vmatmul.mubr.bf16.gmra.mxu0 %v1200
      %v1239 = vpop.f32.mrf.mxu0
      %v1240 = vadd.f32 0.0, %v1239
      %v1241 = vpop.f32.mrf.mxu0
      %v1242 = vpop.f32.mrf.mxu0
      %v1243 = vadd.f32 0.0, %v1242
      %v1244 = vpop.f32.mrf.mxu0
      %1245 = vmatprep.mubr.bf16.mxu0 0
      %1246 = vmatmul.mubr.bf16.gmra.mxu0 %v1203
      %v1247 = vpop.f32.mrf.mxu0
      %v1248 = vadd.f32 0.0, %v1247
      %v1249 = vpop.f32.mrf.mxu0
      %v1250 = vpop.f32.mrf.mxu0
      %v1251 = vadd.f32 0.0, %v1250
      %v1252 = vpop.f32.mrf.mxu0
      %1253 = vdwg.mxu0
      %1254 = vrot.lane.b32.xlu0 %v143, 64
      %v1255 = vpop.permute.xlu0 %1254
      %1256 = vrot.lane.b32.xlu0 %v145, 64
      %v1257 = vpop.permute.xlu0 %1256
      %1258 = vrot.lane.b32.xlu0 %v147, 64
      %v1259 = vpop.permute.xlu0 %1258
      %1260 = vrot.lane.b32.xlu0 %v149, 64
      %v1261 = vpop.permute.xlu0 %1260
      %v1263 = vsel %vm165, %v1255, 0
      %v1266 = vsel %vm165, %v1257, 0
      %v1269 = vsel %vm165, %v1259, 0
      %v1272 = vsel %vm165, %v1261, 0
      %1274 = vmatprep.subr.bf16.mxu0 0
      %1275 = vmatpush1.bf16.xpose.msra.mxu0 0
      %1276 = vmatprep.subr.bf16.mxu0 0
      %1277 = vmatpush1.bf16.xpose.msra.mxu0 0
      %1278 = vmatprep.subr.bf16.mxu0 0
      %1279 = vmatpush1.bf16.xpose.msra.mxu0 0
      %1280 = vmatprep.subr.bf16.mxu0 0
      %1281 = vmatpush1.bf16.xpose.msra.mxu0 0
      %1282 = vmatprep.subr.bf16.mxu0 0
      %1283 = vmatpush1.bf16.xpose.msra.mxu0 0
      %1284 = vmatprep.subr.bf16.mxu0 0
      %1285 = vmatpush1.bf16.xpose.msra.mxu0 0
      %1286 = vmatprep.subr.bf16.mxu0 0
      %1287 = vmatpush1.bf16.xpose.msra.mxu0 %v1272
      %1288 = vmatprep.subr.bf16.mxu0 0
      %1289 = vmatpush1.bf16.xpose.msra.mxu0 %v1269
      %1290 = vmatprep.subr.bf16.mxu0 0
      %1291 = vmatpush2.bf16.xpose.msra.mxu0 0
      %1292 = vmatprep.subr.bf16.mxu0 0
      %1293 = vmatpush2.bf16.xpose.msra.mxu0 0
      %1294 = vmatprep.subr.bf16.mxu0 0
      %1295 = vmatpush2.bf16.xpose.msra.mxu0 0
      %1296 = vmatprep.subr.bf16.mxu0 0
      %1297 = vmatpush2.bf16.xpose.msra.mxu0 0
      %1298 = vmatprep.subr.bf16.mxu0 0
      %1299 = vmatpush2.bf16.xpose.msra.mxu0 0
      %1300 = vmatprep.subr.bf16.mxu0 0
      %1301 = vmatpush2.bf16.xpose.msra.mxu0 0
      %1302 = vmatprep.subr.bf16.mxu0 0
      %1303 = vmatpush2.bf16.xpose.msra.mxu0 0
      %1304 = vmatprep.subr.bf16.mxu0 0
      %1305 = vmatpush2.bf16.xpose.msra.mxu0 0
      %1306 = vmatprep.mubr.bf16.mxu0 0
      %1307 = vmatmul.mubr.bf16.gmra.mxu0 %v1263
      %v1308 = vpop.f32.mrf.mxu0
      %v1309 = vadd.f32 0.0, %v1308
      %v1310 = vpop.f32.mrf.mxu0
      %v1311 = vpop.f32.mrf.mxu0
      %v1312 = vadd.f32 0.0, %v1311
      %v1313 = vpop.f32.mrf.mxu0
      %1314 = vmatprep.mubr.bf16.mxu0 0
      %1315 = vmatmul.mubr.bf16.gmra.mxu0 %v1266
      %v1316 = vpop.f32.mrf.mxu0
      %v1317 = vadd.f32 0.0, %v1316
      %v1318 = vpop.f32.mrf.mxu0
      %v1319 = vpop.f32.mrf.mxu0
      %v1320 = vadd.f32 0.0, %v1319
      %v1321 = vpop.f32.mrf.mxu0
      %1322 = vdwg.mxu0
      %v1323 = vmul.f32 %v1309, 0.17677669
      %v1324 = vmul.f32 %v1312, 0.17677669
      %v1325 = vmul.f32 %v1317, 0.17677669
      %v1326 = vmul.f32 %v1320, 0.17677669
      %v1327 = vsel %vm161, %v1323, -1e+09
      %v1328 = vsel %vm162, %v1324, -1e+09
      %v1329 = vsel %vm163, %v1325, -1e+09
      %v1330 = vsel %vm164, %v1326, -1e+09
      %v1331 = vsel %vm165, %v1327, -inf
      %1332 = vmax.xlane.f32.xlu0 %v1331
      %v1333 = vpop.xlane.xlu0 %1332
      %v1334 = vsel %vm165, %v1328, -inf
      %1335 = vmax.xlane.f32.xlu0 %v1334
      %v1336 = vpop.xlane.xlu0 %1335
      %v1337 = vsel %vm165, %v1329, -inf
      %1338 = vmax.xlane.f32.xlu0 %v1337
      %v1339 = vpop.xlane.xlu0 %1338
      %v1340 = vsel %vm165, %v1330, -inf
      %1341 = vmax.xlane.f32.xlu0 %v1340
      %v1342 = vpop.xlane.xlu0 %1341
      %v1343 = vsub.f32 %v1327, %v1333
      %v1344 = vsub.f32 %v1328, %v1336
      %v1345 = vsub.f32 %v1329, %v1339
      %v1346 = vsub.f32 %v1330, %v1342
      %v1347 = vmul.f32 %v1343, 1.442695
      %v1348 = vpow.pop %v1347
      %v1349 = vmul.f32 %v1344, 1.442695
      %v1350 = vpow.pop %v1349
      %v1351 = vmul.f32 %v1345, 1.442695
      %v1352 = vpow.pop %v1351
      %v1353 = vmul.f32 %v1346, 1.442695
      %v1354 = vpow.pop %v1353
      %v1355 = vsel %vm165, %v1348, 0.0
      %1356 = vadd.xlane.f32.xlu0 %v1355
      %v1357 = vpop.xlane.xlu0 %1356
      %v1358 = vsel %vm165, %v1350, 0.0
      %1359 = vadd.xlane.f32.xlu0 %v1358
      %v1360 = vpop.xlane.xlu0 %1359
      %v1361 = vsel %vm165, %v1352, 0.0
      %1362 = vadd.xlane.f32.xlu0 %v1361
      %v1363 = vpop.xlane.xlu0 %1362
      %v1364 = vsel %vm165, %v1354, 0.0
      %1365 = vadd.xlane.f32.xlu0 %v1364
      %v1366 = vpop.xlane.xlu0 %1365
      %v1367 = vrcp.pop %v1357
      %v1368 = vrcp.pop %v1360
      %v1369 = vrcp.pop %v1363
      %v1370 = vrcp.pop %v1366
      %v1371 = vmul.f32 %v1348, %v1367
      %v1372 = vmul.f32 %v1350, %v1368
      %v1373 = vmul.f32 %v1352, %v1369
      %v1374 = vmul.f32 %v1354, %v1370
      %v1375 = vpack.c.bf16 %v1372, %v1371
      %v1376 = vpack.c.bf16 %v1374, %v1373
      %1377 = vrot.lane.b32.xlu0 %v151, 64
      %v1378 = vpop.permute.xlu0 %1377
      %1379 = vrot.lane.b32.xlu0 %v153, 64
      %v1380 = vpop.permute.xlu0 %1379
      %v1384 = vsel %vm165, %v1375, 0
      %v1387 = vsel %vm165, %v1376, 0
      %1389 = vmatprep.subr.bf16.mxu0 0
      %1390 = vmatpush1.bf16.msra.mxu0 0
      %1391 = vmatprep.subr.bf16.mxu0 0
      %1392 = vmatpush1.bf16.msra.mxu0 0
      %1393 = vmatprep.subr.bf16.mxu0 0
      %1394 = vmatpush1.bf16.msra.mxu0 0
      %1395 = vmatprep.subr.bf16.mxu0 0
      %1396 = vmatpush1.bf16.msra.mxu0 0
      %1397 = vmatprep.subr.bf16.mxu0 0
      %1398 = vmatpush1.bf16.msra.mxu0 0
      %1399 = vmatprep.subr.bf16.mxu0 0
      %1400 = vmatpush1.bf16.msra.mxu0 0
      %1401 = vmatprep.subr.bf16.mxu0 0
      %1402 = vmatpush1.bf16.msra.mxu0 %v1380
      %1403 = vmatprep.subr.bf16.mxu0 0
      %1404 = vmatpush1.bf16.msra.mxu0 %v1378
      %1405 = vmatprep.subr.bf16.mxu0 0
      %1406 = vmatpush2.bf16.msra.mxu0 0
      %1407 = vmatprep.subr.bf16.mxu0 0
      %1408 = vmatpush2.bf16.msra.mxu0 0
      %1409 = vmatprep.subr.bf16.mxu0 0
      %1410 = vmatpush2.bf16.msra.mxu0 0
      %1411 = vmatprep.subr.bf16.mxu0 0
      %1412 = vmatpush2.bf16.msra.mxu0 0
      %1413 = vmatprep.subr.bf16.mxu0 0
      %1414 = vmatpush2.bf16.msra.mxu0 0
      %1415 = vmatprep.subr.bf16.mxu0 0
      %1416 = vmatpush2.bf16.msra.mxu0 0
      %1417 = vmatprep.subr.bf16.mxu0 0
      %1418 = vmatpush2.bf16.msra.mxu0 0
      %1419 = vmatprep.subr.bf16.mxu0 0
      %1420 = vmatpush2.bf16.msra.mxu0 0
      %1421 = vmatprep.mubr.bf16.mxu0 0
      %1422 = vmatmul.mubr.bf16.gmra.mxu0 %v1384
      %v1423 = vpop.f32.mrf.mxu0
      %v1424 = vadd.f32 0.0, %v1423
      %v1425 = vpop.f32.mrf.mxu0
      %v1426 = vpop.f32.mrf.mxu0
      %v1427 = vadd.f32 0.0, %v1426
      %v1428 = vpop.f32.mrf.mxu0
      %1429 = vmatprep.mubr.bf16.mxu0 0
      %1430 = vmatmul.mubr.bf16.gmra.mxu0 %v1387
      %v1431 = vpop.f32.mrf.mxu0
      %v1432 = vadd.f32 0.0, %v1431
      %v1433 = vpop.f32.mrf.mxu0
      %v1434 = vpop.f32.mrf.mxu0
      %v1435 = vadd.f32 0.0, %v1434
      %v1436 = vpop.f32.mrf.mxu0
      %1437 = vdwg.mxu0
      %1438 = vrot.lane.b32.xlu0 %v143, 32
      %v1439 = vpop.permute.xlu0 %1438
      %1440 = vrot.lane.b32.xlu0 %v145, 32
      %v1441 = vpop.permute.xlu0 %1440
      %1442 = vrot.lane.b32.xlu0 %v147, 32
      %v1443 = vpop.permute.xlu0 %1442
      %1444 = vrot.lane.b32.xlu0 %v149, 32
      %v1445 = vpop.permute.xlu0 %1444
      %v1447 = vsel %vm165, %v1439, 0
      %v1450 = vsel %vm165, %v1441, 0
      %v1453 = vsel %vm165, %v1443, 0
      %v1456 = vsel %vm165, %v1445, 0
      %1458 = vmatprep.subr.bf16.mxu0 0
      %1459 = vmatpush1.bf16.xpose.msra.mxu0 0
      %1460 = vmatprep.subr.bf16.mxu0 0
      %1461 = vmatpush1.bf16.xpose.msra.mxu0 0
      %1462 = vmatprep.subr.bf16.mxu0 0
      %1463 = vmatpush1.bf16.xpose.msra.mxu0 0
      %1464 = vmatprep.subr.bf16.mxu0 0
      %1465 = vmatpush1.bf16.xpose.msra.mxu0 0
      %1466 = vmatprep.subr.bf16.mxu0 0
      %1467 = vmatpush1.bf16.xpose.msra.mxu0 0
      %1468 = vmatprep.subr.bf16.mxu0 0
      %1469 = vmatpush1.bf16.xpose.msra.mxu0 0
      %1470 = vmatprep.subr.bf16.mxu0 0
      %1471 = vmatpush1.bf16.xpose.msra.mxu0 %v1456
      %1472 = vmatprep.subr.bf16.mxu0 0
      %1473 = vmatpush1.bf16.xpose.msra.mxu0 %v1453
      %1474 = vmatprep.subr.bf16.mxu0 0
      %1475 = vmatpush2.bf16.xpose.msra.mxu0 0
      %1476 = vmatprep.subr.bf16.mxu0 0
      %1477 = vmatpush2.bf16.xpose.msra.mxu0 0
      %1478 = vmatprep.subr.bf16.mxu0 0
      %1479 = vmatpush2.bf16.xpose.msra.mxu0 0
      %1480 = vmatprep.subr.bf16.mxu0 0
      %1481 = vmatpush2.bf16.xpose.msra.mxu0 0
      %1482 = vmatprep.subr.bf16.mxu0 0
      %1483 = vmatpush2.bf16.xpose.msra.mxu0 0
      %1484 = vmatprep.subr.bf16.mxu0 0
      %1485 = vmatpush2.bf16.xpose.msra.mxu0 0
      %1486 = vmatprep.subr.bf16.mxu0 0
      %1487 = vmatpush2.bf16.xpose.msra.mxu0 0
      %1488 = vmatprep.subr.bf16.mxu0 0
      %1489 = vmatpush2.bf16.xpose.msra.mxu0 0
      %1490 = vmatprep.mubr.bf16.mxu0 0
      %1491 = vmatmul.mubr.bf16.gmra.mxu0 %v1447
      %v1492 = vpop.f32.mrf.mxu0
      %v1493 = vadd.f32 0.0, %v1492
      %v1494 = vpop.f32.mrf.mxu0
      %v1495 = vpop.f32.mrf.mxu0
      %v1496 = vadd.f32 0.0, %v1495
      %v1497 = vpop.f32.mrf.mxu0
      %1498 = vmatprep.mubr.bf16.mxu0 0
      %1499 = vmatmul.mubr.bf16.gmra.mxu0 %v1450
      %v1500 = vpop.f32.mrf.mxu0
      %v1501 = vadd.f32 0.0, %v1500
      %v1502 = vpop.f32.mrf.mxu0
      %v1503 = vpop.f32.mrf.mxu0
      %v1504 = vadd.f32 0.0, %v1503
      %v1505 = vpop.f32.mrf.mxu0
      %1506 = vdwg.mxu0
      %v1507 = vmul.f32 %v1493, 0.17677669
      %v1508 = vmul.f32 %v1496, 0.17677669
      %v1509 = vmul.f32 %v1501, 0.17677669
      %v1510 = vmul.f32 %v1504, 0.17677669
      %v1511 = vsel %vm161, %v1507, -1e+09
      %v1512 = vsel %vm162, %v1508, -1e+09
      %v1513 = vsel %vm163, %v1509, -1e+09
      %v1514 = vsel %vm164, %v1510, -1e+09
      %v1515 = vsel %vm165, %v1511, -inf
      %1516 = vmax.xlane.f32.xlu0 %v1515
      %v1517 = vpop.xlane.xlu0 %1516
      %v1518 = vsel %vm165, %v1512, -inf
      %1519 = vmax.xlane.f32.xlu0 %v1518
      %v1520 = vpop.xlane.xlu0 %1519
      %v1521 = vsel %vm165, %v1513, -inf
      %1522 = vmax.xlane.f32.xlu0 %v1521
      %v1523 = vpop.xlane.xlu0 %1522
      %v1524 = vsel %vm165, %v1514, -inf
      %1525 = vmax.xlane.f32.xlu0 %v1524
      %v1526 = vpop.xlane.xlu0 %1525
      %v1527 = vsub.f32 %v1511, %v1517
      %v1528 = vsub.f32 %v1512, %v1520
      %v1529 = vsub.f32 %v1513, %v1523
      %v1530 = vsub.f32 %v1514, %v1526
      %v1531 = vmul.f32 %v1527, 1.442695
      %v1532 = vpow.pop %v1531
      %v1533 = vmul.f32 %v1528, 1.442695
      %v1534 = vpow.pop %v1533
      %v1535 = vmul.f32 %v1529, 1.442695
      %v1536 = vpow.pop %v1535
      %v1537 = vmul.f32 %v1530, 1.442695
      %v1538 = vpow.pop %v1537
      %v1539 = vsel %vm165, %v1532, 0.0
      %1540 = vadd.xlane.f32.xlu0 %v1539
      %v1541 = vpop.xlane.xlu0 %1540
      %v1542 = vsel %vm165, %v1534, 0.0
      %1543 = vadd.xlane.f32.xlu0 %v1542
      %v1544 = vpop.xlane.xlu0 %1543
      %v1545 = vsel %vm165, %v1536, 0.0
      %1546 = vadd.xlane.f32.xlu0 %v1545
      %v1547 = vpop.xlane.xlu0 %1546
      %v1548 = vsel %vm165, %v1538, 0.0
      %1549 = vadd.xlane.f32.xlu0 %v1548
      %v1550 = vpop.xlane.xlu0 %1549
      %v1551 = vrcp.pop %v1541
      %v1552 = vrcp.pop %v1544
      %v1553 = vrcp.pop %v1547
      %v1554 = vrcp.pop %v1550
      %v1555 = vmul.f32 %v1532, %v1551
      %v1556 = vmul.f32 %v1534, %v1552
      %v1557 = vmul.f32 %v1536, %v1553
      %v1558 = vmul.f32 %v1538, %v1554
      %v1559 = vpack.c.bf16 %v1556, %v1555
      %v1560 = vpack.c.bf16 %v1558, %v1557
      %1561 = vrot.lane.b32.xlu0 %v151, 32
      %v1562 = vpop.permute.xlu0 %1561
      %1563 = vrot.lane.b32.xlu0 %v153, 32
      %v1564 = vpop.permute.xlu0 %1563
      %v1568 = vsel %vm165, %v1559, 0
      %v1571 = vsel %vm165, %v1560, 0
      %1573 = vmatprep.subr.bf16.mxu0 0
      %1574 = vmatpush1.bf16.msra.mxu0 0
      %1575 = vmatprep.subr.bf16.mxu0 0
      %1576 = vmatpush1.bf16.msra.mxu0 0
      %1577 = vmatprep.subr.bf16.mxu0 0
      %1578 = vmatpush1.bf16.msra.mxu0 0
      %1579 = vmatprep.subr.bf16.mxu0 0
      %1580 = vmatpush1.bf16.msra.mxu0 0
      %1581 = vmatprep.subr.bf16.mxu0 0
      %1582 = vmatpush1.bf16.msra.mxu0 0
      %1583 = vmatprep.subr.bf16.mxu0 0
      %1584 = vmatpush1.bf16.msra.mxu0 0
      %1585 = vmatprep.subr.bf16.mxu0 0
      %1586 = vmatpush1.bf16.msra.mxu0 %v1564
      %1587 = vmatprep.subr.bf16.mxu0 0
      %1588 = vmatpush1.bf16.msra.mxu0 %v1562
      %1589 = vmatprep.subr.bf16.mxu0 0
      %1590 = vmatpush2.bf16.msra.mxu0 0
      %1591 = vmatprep.subr.bf16.mxu0 0
      %1592 = vmatpush2.bf16.msra.mxu0 0
      %1593 = vmatprep.subr.bf16.mxu0 0
      %1594 = vmatpush2.bf16.msra.mxu0 0
      %1595 = vmatprep.subr.bf16.mxu0 0
      %1596 = vmatpush2.bf16.msra.mxu0 0
      %1597 = vmatprep.subr.bf16.mxu0 0
      %1598 = vmatpush2.bf16.msra.mxu0 0
      %1599 = vmatprep.subr.bf16.mxu0 0
      %1600 = vmatpush2.bf16.msra.mxu0 0
      %1601 = vmatprep.subr.bf16.mxu0 0
      %1602 = vmatpush2.bf16.msra.mxu0 0
      %1603 = vmatprep.subr.bf16.mxu0 0
      %1604 = vmatpush2.bf16.msra.mxu0 0
      %1605 = vmatprep.mubr.bf16.mxu0 0
      %1606 = vmatmul.mubr.bf16.gmra.mxu0 %v1568
      %v1607 = vpop.f32.mrf.mxu0
      %v1608 = vadd.f32 0.0, %v1607
      %v1609 = vpop.f32.mrf.mxu0
      %v1610 = vpop.f32.mrf.mxu0
      %v1611 = vadd.f32 0.0, %v1610
      %v1612 = vpop.f32.mrf.mxu0
      %1613 = vmatprep.mubr.bf16.mxu0 0
      %1614 = vmatmul.mubr.bf16.gmra.mxu0 %v1571
      %v1615 = vpop.f32.mrf.mxu0
      %v1616 = vadd.f32 0.0, %v1615
      %v1617 = vpop.f32.mrf.mxu0
      %v1618 = vpop.f32.mrf.mxu0
      %v1619 = vadd.f32 0.0, %v1618
      %v1620 = vpop.f32.mrf.mxu0
      %1621 = vdwg.mxu0
      %1626 = vrot.lane.b32.xlu0 %v512, 32
      %v1627 = vpop.permute.xlu0 %1626
      %1628 = vrot.lane.b32.xlu0 %v515, 32
      %v1629 = vpop.permute.xlu0 %1628
      %1630 = vrot.lane.b32.xlu0 %v520, 32
      %v1631 = vpop.permute.xlu0 %1630
      %1632 = vrot.lane.b32.xlu0 %v523, 32
      %v1633 = vpop.permute.xlu0 %1632
      %1642 = vrot.lane.b32.xlu0 %v696, 64
      %v1643 = vpop.permute.xlu0 %1642
      %1644 = vrot.lane.b32.xlu0 %v699, 64
      %v1645 = vpop.permute.xlu0 %1644
      %1646 = vrot.lane.b32.xlu0 %v704, 64
      %v1647 = vpop.permute.xlu0 %1646
      %1648 = vrot.lane.b32.xlu0 %v707, 64
      %v1649 = vpop.permute.xlu0 %1648
      %1658 = vrot.lane.b32.xlu0 %v880, 96
      %v1659 = vpop.permute.xlu0 %1658
      %1660 = vrot.lane.b32.xlu0 %v883, 96
      %v1661 = vpop.permute.xlu0 %1660
      %1662 = vrot.lane.b32.xlu0 %v888, 96
      %v1663 = vpop.permute.xlu0 %1662
      %1664 = vrot.lane.b32.xlu0 %v891, 96
      %v1665 = vpop.permute.xlu0 %1664
      %1674 = vrot.lane.b32.xlu0 %v1240, 32
      %v1675 = vpop.permute.xlu0 %1674
      %1676 = vrot.lane.b32.xlu0 %v1243, 32
      %v1677 = vpop.permute.xlu0 %1676
      %1678 = vrot.lane.b32.xlu0 %v1248, 32
      %v1679 = vpop.permute.xlu0 %1678
      %1680 = vrot.lane.b32.xlu0 %v1251, 32
      %v1681 = vpop.permute.xlu0 %1680
      %1690 = vrot.lane.b32.xlu0 %v1424, 64
      %v1691 = vpop.permute.xlu0 %1690
      %1692 = vrot.lane.b32.xlu0 %v1427, 64
      %v1693 = vpop.permute.xlu0 %1692
      %1694 = vrot.lane.b32.xlu0 %v1432, 64
      %v1695 = vpop.permute.xlu0 %1694
      %1696 = vrot.lane.b32.xlu0 %v1435, 64
      %v1697 = vpop.permute.xlu0 %1696
      %1706 = vrot.lane.b32.xlu0 %v1608, 96
      %v1707 = vpop.permute.xlu0 %1706
      %1708 = vrot.lane.b32.xlu0 %v1611, 96
      %v1709 = vpop.permute.xlu0 %1708
      %1710 = vrot.lane.b32.xlu0 %v1616, 96
      %v1711 = vpop.permute.xlu0 %1710
      %1712 = vrot.lane.b32.xlu0 %v1619, 96
      %v1713 = vpop.permute.xlu0 %1712
      %v1718 = vsel %vm165, %v322, %v1627
      %v1719 = vsel %vm165, %v325, %v1629
      %v1720 = vsel %vm165, %v330, %v1631
      %v1721 = vsel %vm165, %v333, %v1633
      %vm1722 = vcmask 523264
      %v1723 = vsel %vm1722, %v1718, %v1643
      %v1724 = vsel %vm1722, %v1719, %v1645
      %v1725 = vsel %vm1722, %v1720, %v1647
      %v1726 = vsel %vm1722, %v1721, %v1649
      %vm1727 = vcmask 785408
      %v1728 = vsel %vm1727, %v1723, %v1659
      %v1729 = vsel %vm1727, %v1724, %v1661
      %v1730 = vsel %vm1727, %v1725, %v1663
      %v1731 = vsel %vm1727, %v1726, %v1665
      %v1732 = vsel %vm165, %v1050, %v1675
      %v1733 = vsel %vm165, %v1053, %v1677
      %v1734 = vsel %vm165, %v1058, %v1679
      %v1735 = vsel %vm165, %v1061, %v1681
      %v1736 = vsel %vm1722, %v1732, %v1691
      %v1737 = vsel %vm1722, %v1733, %v1693
      %v1738 = vsel %vm1722, %v1734, %v1695
      %v1739 = vsel %vm1722, %v1735, %v1697
      %v1740 = vsel %vm1727, %v1736, %v1707
      %v1741 = vsel %vm1727, %v1737, %v1709
      %v1742 = vsel %vm1727, %v1738, %v1711
      %v1743 = vsel %vm1727, %v1739, %v1713
      %1744 = vst [vmem:[%s116] sm:$0xff] %v1728
      %1745 = vst [vmem:[%s116 + $0x8] sm:$0xff] %v1740
      %1746 = vst [vmem:[%s116 + $0x10] sm:$0xff] %v1729
      %1747 = vst [vmem:[%s116 + $0x18] sm:$0xff] %v1741
      %1748 = vst [vmem:[%s116 + $0x20] sm:$0xff] %v1730
      %1749 = vst [vmem:[%s116 + $0x28] sm:$0xff] %v1742
      %1750 = vst [vmem:[%s116 + $0x30] sm:$0xff] %v1731
      %1751 = vst [vmem:[%s116 + $0x38] sm:$0xff] %v1743
      %p1752 = scmp.lt.s32.totalorder %s12, 1
      %s1753 = scalar_select %p1752, %s12, 1
      %s1754 = smul.addr %s1753, 8
      %s1755 = smul.addr %s1754, 8
      %s1756 = scalar_lea.vmem %s1, %s1755
      // Predicated region
      $region25: #{decoder_layer.9} parent=23 // pred_check
        %p1757 = pneg %p56
      $region26: #{decoder_layer.9} parent=23 // pred_check_branch
        %1759 = sbr.rel (%p1757) target = $region28
      $region27: #{decoder_layer.9} parent=23 // pred_region
        _
      $region28: #{decoder_layer.9} parent=23 // pred_fallthru
        _
    $region24: #{decoder_layer.9} parent=5 // pred_fallthru
      _
    %p1760 = scmp.le.s32.totalorder 2, %s7
    // Predicated region
    $region29: #{decoder_layer.9} parent=5 // pred_check
      %p1761 = pneg %p1760
    $region30: #{decoder_layer.9} parent=5 // pred_check_branch
      %1763 = sbr.rel (%p1761) target = $region32
    $region31: #{decoder_layer.9} parent=5 // pred_region
      %s1764 = ssub.s32 %s7, 2
      // Predicated region
      $region33: #{decoder_layer.9} parent=31 // pred_check
        %p1765 = pneg %p62
      $region34: #{decoder_layer.9} parent=31 // pred_check_branch
        %1767 = sbr.rel (%p1765) target = $region36
      $region35: #{decoder_layer.9} parent=31 // pred_region
        %p1768 = scmp.lt.s32.totalorder %s13, 1
        %s1769 = scalar_select %p1768, %s13, 1
        %s1770 = smul.addr %s1769, 8
        %s1771 = smul.addr %s1770, 8
        %s1772 = scalar_lea.vmem %s1, %s1771
      $region36: #{decoder_layer.9} parent=31 // pred_fallthru
        _
    $region32: #{decoder_layer.9} parent=5 // pred_fallthru
      _
  $region6: #{decoder_layer.9} parent=0 // loop_footer
    %s11 = sadd.s32 1, %s7
  $region7: #{decoder_layer.9} parent=0 // loop_footer_branch
    %6 = sbr.rel target = $region3
  $region8: #{decoder_layer.9} parent=0 // loop_exit
    _

// kernel: decoder_layer.12
$region0: #{decoder_layer.12}
  #allocation0 [shape = 'u32[]', space=smem, size = 0x4, offset = 0x4, fixed_abs, tag = 'smem constant byte address 0x4 - core index']
  #allocation1 [shape = 'u32[144,128]{1,0:T(1,128)}', space=vmem, size = 0x12000, scoped, tag = 'internal scratch']
  %s0 = inlined_call_operand.vmem [shape: f32[64,256], index: 0, kind: input, shape index: {}]
  %s1 = inlined_call_operand.vmem [shape: bf16[256,512], index: 1, kind: input, shape index: {}]
  %s2 = inlined_call_operand.vmem [shape: f32[1,512], index: 2, kind: input, shape index: {}]
  %s3 = inlined_call_operand.vmem [shape: f32[64,512], index: 3, kind: output, shape index: {}]
  %s4 = sld [smem:[#allocation0]]
  $region22: #{decoder_layer.12} parent=0
    _
  %s6 = ssub.s32 1, %s4
  %s7 = scalar_select 0, %s6, %s4
  // Predicated region
  $region2: #{decoder_layer.12} parent=0 // pred_check
    _
  $region3: #{decoder_layer.12} parent=0 // pred_check_branch
    %9 = sbr.rel (0) target = $region5
  $region4: #{decoder_layer.12} parent=0 // pred_region
    _
  $region5: #{decoder_layer.12} parent=0 // pred_fallthru
    _
  // Predicated region
  $region6: #{decoder_layer.12} parent=0 // pred_check
    _
  $region7: #{decoder_layer.12} parent=0 // pred_check_branch
    %11 = sbr.rel (0) target = $region9
  $region8: #{decoder_layer.12} parent=0 // pred_region
    _
  $region9: #{decoder_layer.12} parent=0 // pred_fallthru
    _
  // Predicated region
  $region10: #{decoder_layer.12} parent=0 // pred_check
    _
  $region11: #{decoder_layer.12} parent=0 // pred_check_branch
    %13 = sbr.rel (0) target = $region13
  $region12: #{decoder_layer.12} parent=0 // pred_region
    _
  $region13: #{decoder_layer.12} parent=0 // pred_fallthru
    _
  %v14 = vld [vmem:[%s0] sm:$0xff]
  %v15 = vld [vmem:[%s0 + $0x8] sm:$0xff]
  %v16 = vld [vmem:[%s0 + $0x10] sm:$0xff]
  %v17 = vld [vmem:[%s0 + $0x18] sm:$0xff]
  %v18 = vld [vmem:[%s0 + $0x20] sm:$0xff]
  %v19 = vld [vmem:[%s0 + $0x28] sm:$0xff]
  %v20 = vld [vmem:[%s0 + $0x30] sm:$0xff]
  %v21 = vld [vmem:[%s0 + $0x38] sm:$0xff]
  %v22 = vld [vmem:[%s0 + $0x40] sm:$0xff]
  %v23 = vld [vmem:[%s0 + $0x48] sm:$0xff]
  %v24 = vld [vmem:[%s0 + $0x50] sm:$0xff]
  %v25 = vld [vmem:[%s0 + $0x58] sm:$0xff]
  %v26 = vld [vmem:[%s0 + $0x60] sm:$0xff]
  %v27 = vld [vmem:[%s0 + $0x68] sm:$0xff]
  %v28 = vld [vmem:[%s0 + $0x70] sm:$0xff]
  %v29 = vld [vmem:[%s0 + $0x78] sm:$0xff]
  %v30 = vpack.c.bf16 %v16, %v14
  %v31 = vpack.c.bf16 %v17, %v15
  %v32 = vpack.c.bf16 %v20, %v18
  %v33 = vpack.c.bf16 %v21, %v19
  %v34 = vpack.c.bf16 %v24, %v22
  %v35 = vpack.c.bf16 %v25, %v23
  %v36 = vpack.c.bf16 %v28, %v26
  %v37 = vpack.c.bf16 %v29, %v27
  %v38 = vld [vmem:[%s1] sm:$0xff]
  %v39 = vld [vmem:[%s1 + $0x8] sm:$0xff]
  %v40 = vld [vmem:[%s1 + $0x10] sm:$0xff]
  %v41 = vld [vmem:[%s1 + $0x18] sm:$0xff]
  %v42 = vld [vmem:[%s1 + $0x20] sm:$0xff]
  %v43 = vld [vmem:[%s1 + $0x28] sm:$0xff]
  %v44 = vld [vmem:[%s1 + $0x30] sm:$0xff]
  %v45 = vld [vmem:[%s1 + $0x38] sm:$0xff]
  %v46 = vld [vmem:[%s1 + $0x40] sm:$0xff]
  %v47 = vld [vmem:[%s1 + $0x48] sm:$0xff]
  %v48 = vld [vmem:[%s1 + $0x50] sm:$0xff]
  %v49 = vld [vmem:[%s1 + $0x58] sm:$0xff]
  %v50 = vld [vmem:[%s1 + $0x60] sm:$0xff]
  %v51 = vld [vmem:[%s1 + $0x68] sm:$0xff]
  %v52 = vld [vmem:[%s1 + $0x70] sm:$0xff]
  %v53 = vld [vmem:[%s1 + $0x78] sm:$0xff]
  %v54 = vld [vmem:[%s1 + $0x80] sm:$0xff]
  %v55 = vld [vmem:[%s1 + $0x88] sm:$0xff]
  %v56 = vld [vmem:[%s1 + $0x90] sm:$0xff]
  %v57 = vld [vmem:[%s1 + $0x98] sm:$0xff]
  %v58 = vld [vmem:[%s1 + $0xa0] sm:$0xff]
  %v59 = vld [vmem:[%s1 + $0xa8] sm:$0xff]
  %v60 = vld [vmem:[%s1 + $0xb0] sm:$0xff]
  %v61 = vld [vmem:[%s1 + $0xb8] sm:$0xff]
  %v62 = vld [vmem:[%s1 + $0xc0] sm:$0xff]
  %v63 = vld [vmem:[%s1 + $0xc8] sm:$0xff]
  %v64 = vld [vmem:[%s1 + $0xd0] sm:$0xff]
  %v65 = vld [vmem:[%s1 + $0xd8] sm:$0xff]
  %v66 = vld [vmem:[%s1 + $0xe0] sm:$0xff]
  %v67 = vld [vmem:[%s1 + $0xe8] sm:$0xff]
  %v68 = vld [vmem:[%s1 + $0xf0] sm:$0xff]
  %v69 = vld [vmem:[%s1 + $0xf8] sm:$0xff]
  %v70 = vld [vmem:[%s1 + $0x100] sm:$0xff]
  %v71 = vld [vmem:[%s1 + $0x108] sm:$0xff]
  %v72 = vld [vmem:[%s1 + $0x110] sm:$0xff]
  %v73 = vld [vmem:[%s1 + $0x118] sm:$0xff]
  %v74 = vld [vmem:[%s1 + $0x120] sm:$0xff]
  %v75 = vld [vmem:[%s1 + $0x128] sm:$0xff]
  %v76 = vld [vmem:[%s1 + $0x130] sm:$0xff]
  %v77 = vld [vmem:[%s1 + $0x138] sm:$0xff]
  %v78 = vld [vmem:[%s1 + $0x140] sm:$0xff]
  %v79 = vld [vmem:[%s1 + $0x148] sm:$0xff]
  %v80 = vld [vmem:[%s1 + $0x150] sm:$0xff]
  %v81 = vld [vmem:[%s1 + $0x158] sm:$0xff]
  %v82 = vld [vmem:[%s1 + $0x160] sm:$0xff]
  %v83 = vld [vmem:[%s1 + $0x168] sm:$0xff]
  %v84 = vld [vmem:[%s1 + $0x170] sm:$0xff]
  %v85 = vld [vmem:[%s1 + $0x178] sm:$0xff]
  %v86 = vld [vmem:[%s1 + $0x180] sm:$0xff]
  %v87 = vld [vmem:[%s1 + $0x188] sm:$0xff]
  %v88 = vld [vmem:[%s1 + $0x190] sm:$0xff]
  %v89 = vld [vmem:[%s1 + $0x198] sm:$0xff]
  %v90 = vld [vmem:[%s1 + $0x1a0] sm:$0xff]
  %v91 = vld [vmem:[%s1 + $0x1a8] sm:$0xff]
  %v92 = vld [vmem:[%s1 + $0x1b0] sm:$0xff]
  %v93 = vld [vmem:[%s1 + $0x1b8] sm:$0xff]
  %v94 = vld [vmem:[%s1 + $0x1c0] sm:$0xff]
  %v95 = vld [vmem:[%s1 + $0x1c8] sm:$0xff]
  %v96 = vld [vmem:[%s1 + $0x1d0] sm:$0xff]
  %v97 = vld [vmem:[%s1 + $0x1d8] sm:$0xff]
  %v98 = vld [vmem:[%s1 + $0x1e0] sm:$0xff]
  %v99 = vld [vmem:[%s1 + $0x1e8] sm:$0xff]
  %v100 = vld [vmem:[%s1 + $0x1f0] sm:$0xff]
  %v101 = vld [vmem:[%s1 + $0x1f8] sm:$0xff]
  %v102 = vld [vmem:[%s2] sm:$0xf]
  %v104 = vlaneseq
  %v105 = vshrl.u32 %v104, 7
  %v106 = vsub.s32 0, %v105
  %v107 = vrot.slane %v102, %v106
  %v108 = vlaneseq
  %v109 = vshrl.u32 %v108, 7
  %v110 = vsub.s32 1, %v109
  %v111 = vrot.slane %v102, %v110
  %v112 = vlaneseq
  %v113 = vshrl.u32 %v112, 7
  %v114 = vsub.s32 2, %v113
  %v115 = vrot.slane %v102, %v114
  %v116 = vlaneseq
  %v117 = vshrl.u32 %v116, 7
  %v118 = vsub.s32 3, %v117
  %v119 = vrot.slane %v102, %v118
  %v188 = vunpack.c.l.b16 %v38
  %v189 = vunpack.c.h.b16 %v38
  %v190 = vunpack.c.l.b16 %v39
  %v191 = vunpack.c.h.b16 %v39
  %v192 = vunpack.c.l.b16 %v40
  %v193 = vunpack.c.h.b16 %v40
  %v194 = vunpack.c.l.b16 %v41
  %v195 = vunpack.c.h.b16 %v41
  %v196 = vunpack.c.l.b16 %v42
  %v197 = vunpack.c.h.b16 %v42
  %v198 = vunpack.c.l.b16 %v43
  %v199 = vunpack.c.h.b16 %v43
  %v200 = vunpack.c.l.b16 %v44
  %v201 = vunpack.c.h.b16 %v44
  %v202 = vunpack.c.l.b16 %v45
  %v203 = vunpack.c.h.b16 %v45
  %v204 = vunpack.c.l.b16 %v46
  %v205 = vunpack.c.h.b16 %v46
  %v206 = vunpack.c.l.b16 %v47
  %v207 = vunpack.c.h.b16 %v47
  %v208 = vunpack.c.l.b16 %v48
  %v209 = vunpack.c.h.b16 %v48
  %v210 = vunpack.c.l.b16 %v49
  %v211 = vunpack.c.h.b16 %v49
  %v212 = vunpack.c.l.b16 %v50
  %v213 = vunpack.c.h.b16 %v50
  %v214 = vunpack.c.l.b16 %v51
  %v215 = vunpack.c.h.b16 %v51
  %v216 = vunpack.c.l.b16 %v52
  %v217 = vunpack.c.h.b16 %v52
  %v218 = vunpack.c.l.b16 %v53
  %v219 = vunpack.c.h.b16 %v53
  %v220 = vunpack.c.l.b16 %v54
  %v221 = vunpack.c.h.b16 %v54
  %v222 = vunpack.c.l.b16 %v55
  %v223 = vunpack.c.h.b16 %v55
  %v224 = vunpack.c.l.b16 %v56
  %v225 = vunpack.c.h.b16 %v56
  %v226 = vunpack.c.l.b16 %v57
  %v227 = vunpack.c.h.b16 %v57
  %v228 = vunpack.c.l.b16 %v58
  %v229 = vunpack.c.h.b16 %v58
  %v230 = vunpack.c.l.b16 %v59
  %v231 = vunpack.c.h.b16 %v59
  %v232 = vunpack.c.l.b16 %v60
  %v233 = vunpack.c.h.b16 %v60
  %v234 = vunpack.c.l.b16 %v61
  %v235 = vunpack.c.h.b16 %v61
  %v236 = vunpack.c.l.b16 %v62
  %v237 = vunpack.c.h.b16 %v62
  %v238 = vunpack.c.l.b16 %v63
  %v239 = vunpack.c.h.b16 %v63
  %v240 = vunpack.c.l.b16 %v64
  %v241 = vunpack.c.h.b16 %v64
  %v242 = vunpack.c.l.b16 %v65
  %v243 = vunpack.c.h.b16 %v65
  %v244 = vunpack.c.l.b16 %v66
  %v245 = vunpack.c.h.b16 %v66
  %v246 = vunpack.c.l.b16 %v67
  %v247 = vunpack.c.h.b16 %v67
  %v248 = vunpack.c.l.b16 %v68
  %v249 = vunpack.c.h.b16 %v68
  %v250 = vunpack.c.l.b16 %v69
  %v251 = vunpack.c.h.b16 %v69
  %v252 = vunpack.c.l.b16 %v70
  %v253 = vunpack.c.h.b16 %v70
  %v254 = vunpack.c.l.b16 %v71
  %v255 = vunpack.c.h.b16 %v71
  %v256 = vunpack.c.l.b16 %v72
  %v257 = vunpack.c.h.b16 %v72
  %v258 = vunpack.c.l.b16 %v73
  %v259 = vunpack.c.h.b16 %v73
  %v260 = vunpack.c.l.b16 %v74
  %v261 = vunpack.c.h.b16 %v74
  %v262 = vunpack.c.l.b16 %v75
  %v263 = vunpack.c.h.b16 %v75
  %v264 = vunpack.c.l.b16 %v76
  %v265 = vunpack.c.h.b16 %v76
  %v266 = vunpack.c.l.b16 %v77
  %v267 = vunpack.c.h.b16 %v77
  %v268 = vunpack.c.l.b16 %v78
  %v269 = vunpack.c.h.b16 %v78
  %v270 = vunpack.c.l.b16 %v79
  %v271 = vunpack.c.h.b16 %v79
  %v272 = vunpack.c.l.b16 %v80
  %v273 = vunpack.c.h.b16 %v80
  %v274 = vunpack.c.l.b16 %v81
  %v275 = vunpack.c.h.b16 %v81
  %v276 = vunpack.c.l.b16 %v82
  %v277 = vunpack.c.h.b16 %v82
  %v278 = vunpack.c.l.b16 %v83
  %v279 = vunpack.c.h.b16 %v83
  %v280 = vunpack.c.l.b16 %v84
  %v281 = vunpack.c.h.b16 %v84
  %v282 = vunpack.c.l.b16 %v85
  %v283 = vunpack.c.h.b16 %v85
  %v284 = vunpack.c.l.b16 %v86
  %v285 = vunpack.c.h.b16 %v86
  %v286 = vunpack.c.l.b16 %v87
  %v287 = vunpack.c.h.b16 %v87
  %v288 = vunpack.c.l.b16 %v88
  %v289 = vunpack.c.h.b16 %v88
  %v290 = vunpack.c.l.b16 %v89
  %v291 = vunpack.c.h.b16 %v89
  %v292 = vunpack.c.l.b16 %v90
  %v293 = vunpack.c.h.b16 %v90
  %v294 = vunpack.c.l.b16 %v91
  %v295 = vunpack.c.h.b16 %v91
  %v296 = vunpack.c.l.b16 %v92
  %v297 = vunpack.c.h.b16 %v92
  %v298 = vunpack.c.l.b16 %v93
  %v299 = vunpack.c.h.b16 %v93
  %v300 = vunpack.c.l.b16 %v94
  %v301 = vunpack.c.h.b16 %v94
  %v302 = vunpack.c.l.b16 %v95
  %v303 = vunpack.c.h.b16 %v95
  %v304 = vunpack.c.l.b16 %v96
  %v305 = vunpack.c.h.b16 %v96
  %v306 = vunpack.c.l.b16 %v97
  %v307 = vunpack.c.h.b16 %v97
  %v308 = vunpack.c.l.b16 %v98
  %v309 = vunpack.c.h.b16 %v98
  %v310 = vunpack.c.l.b16 %v99
  %v311 = vunpack.c.h.b16 %v99
  %v312 = vunpack.c.l.b16 %v100
  %v313 = vunpack.c.h.b16 %v100
  %v314 = vunpack.c.l.b16 %v101
  %v315 = vunpack.c.h.b16 %v101
  %v316 = vpack.c.b16 %v192, %v188
  %v317 = vpack.c.b16 %v193, %v189
  %v318 = vpack.c.b16 %v194, %v190
  %v319 = vpack.c.b16 %v195, %v191
  %v320 = vpack.c.b16 %v200, %v196
  %v321 = vpack.c.b16 %v201, %v197
  %v322 = vpack.c.b16 %v202, %v198
  %v323 = vpack.c.b16 %v203, %v199
  %v324 = vpack.c.b16 %v208, %v204
  %v325 = vpack.c.b16 %v209, %v205
  %v326 = vpack.c.b16 %v210, %v206
  %v327 = vpack.c.b16 %v211, %v207
  %v328 = vpack.c.b16 %v216, %v212
  %v329 = vpack.c.b16 %v217, %v213
  %v330 = vpack.c.b16 %v218, %v214
  %v331 = vpack.c.b16 %v219, %v215
  %v332 = vpack.c.b16 %v224, %v220
  %v333 = vpack.c.b16 %v225, %v221
  %v334 = vpack.c.b16 %v226, %v222
  %v335 = vpack.c.b16 %v227, %v223
  %v336 = vpack.c.b16 %v232, %v228
  %v337 = vpack.c.b16 %v233, %v229
  %v338 = vpack.c.b16 %v234, %v230
  %v339 = vpack.c.b16 %v235, %v231
  %v340 = vpack.c.b16 %v240, %v236
  %v341 = vpack.c.b16 %v241, %v237
  %v342 = vpack.c.b16 %v242, %v238
  %v343 = vpack.c.b16 %v243, %v239
  %v344 = vpack.c.b16 %v248, %v244
  %v345 = vpack.c.b16 %v249, %v245
  %v346 = vpack.c.b16 %v250, %v246
  %v347 = vpack.c.b16 %v251, %v247
  %v348 = vpack.c.b16 %v256, %v252
  %v349 = vpack.c.b16 %v257, %v253
  %v350 = vpack.c.b16 %v258, %v254
  %v351 = vpack.c.b16 %v259, %v255
  %v352 = vpack.c.b16 %v264, %v260
  %v353 = vpack.c.b16 %v265, %v261
  %v354 = vpack.c.b16 %v266, %v262
  %v355 = vpack.c.b16 %v267, %v263
  %v356 = vpack.c.b16 %v272, %v268
  %v357 = vpack.c.b16 %v273, %v269
  %v358 = vpack.c.b16 %v274, %v270
  %v359 = vpack.c.b16 %v275, %v271
  %v360 = vpack.c.b16 %v280, %v276
  %v361 = vpack.c.b16 %v281, %v277
  %v362 = vpack.c.b16 %v282, %v278
  %v363 = vpack.c.b16 %v283, %v279
  %v364 = vpack.c.b16 %v288, %v284
  %v365 = vpack.c.b16 %v289, %v285
  %v366 = vpack.c.b16 %v290, %v286
  %v367 = vpack.c.b16 %v291, %v287
  %v368 = vpack.c.b16 %v296, %v292
  %v369 = vpack.c.b16 %v297, %v293
  %v370 = vpack.c.b16 %v298, %v294
  %v371 = vpack.c.b16 %v299, %v295
  %v372 = vpack.c.b16 %v304, %v300
  %v373 = vpack.c.b16 %v305, %v301
  %v374 = vpack.c.b16 %v306, %v302
  %v375 = vpack.c.b16 %v307, %v303
  %v376 = vpack.c.b16 %v312, %v308
  %v377 = vpack.c.b16 %v313, %v309
  %v378 = vpack.c.b16 %v314, %v310
  %v379 = vpack.c.b16 %v315, %v311
  %444 = vmatprep.subr.bf16.mxu0 %v345
  %445 = vmatpush1.bf16.msra.mxu0 %v344
  %446 = vmatprep.subr.bf16.mxu0 %v341
  %447 = vmatpush1.bf16.msra.mxu0 %v340
  %448 = vmatprep.subr.bf16.mxu0 %v337
  %449 = vmatpush1.bf16.msra.mxu0 %v336
  %450 = vmatprep.subr.bf16.mxu0 %v333
  %451 = vmatpush1.bf16.msra.mxu0 %v332
  %452 = vmatprep.subr.bf16.mxu0 %v329
  %453 = vmatpush1.bf16.msra.mxu0 %v328
  %454 = vmatprep.subr.bf16.mxu0 %v325
  %455 = vmatpush1.bf16.msra.mxu0 %v324
  %456 = vmatprep.subr.bf16.mxu0 %v321
  %457 = vmatpush1.bf16.msra.mxu0 %v320
  %458 = vmatprep.subr.bf16.mxu0 %v317
  %459 = vmatpush1.bf16.msra.mxu0 %v316
  %460 = vmatprep.subr.bf16.mxu0 %v377
  %461 = vmatpush2.bf16.msra.mxu0 %v376
  %462 = vmatprep.subr.bf16.mxu0 %v373
  %463 = vmatpush2.bf16.msra.mxu0 %v372
  %464 = vmatprep.subr.bf16.mxu0 %v369
  %465 = vmatpush2.bf16.msra.mxu0 %v368
  %466 = vmatprep.subr.bf16.mxu0 %v365
  %467 = vmatpush2.bf16.msra.mxu0 %v364
  %468 = vmatprep.subr.bf16.mxu0 %v361
  %469 = vmatpush2.bf16.msra.mxu0 %v360
  %470 = vmatprep.subr.bf16.mxu0 %v357
  %471 = vmatpush2.bf16.msra.mxu0 %v356
  %472 = vmatprep.subr.bf16.mxu0 %v353
  %473 = vmatpush2.bf16.msra.mxu0 %v352
  %474 = vmatprep.subr.bf16.mxu0 %v349
  %475 = vmatpush2.bf16.msra.mxu0 %v348
  %476 = vmatprep.mubr.bf16.mxu0 %v31
  %477 = vmatmul.mubr.bf16.gmra.mxu0 %v30
  %v478 = vpop.f32.mrf.mxu0
  %v479 = vadd.f32 %v107, %v478
  %v480 = vpop.f32.mrf.mxu0
  %v481 = vadd.f32 %v111, %v480
  %v482 = vpop.f32.mrf.mxu0
  %v483 = vadd.f32 %v107, %v482
  %v484 = vpop.f32.mrf.mxu0
  %v485 = vadd.f32 %v111, %v484
  %486 = vmatprep.mubr.bf16.mxu0 %v33
  %487 = vmatmul.mubr.bf16.gmra.mxu0 %v32
  %v488 = vpop.f32.mrf.mxu0
  %v489 = vadd.f32 %v107, %v488
  %v490 = vpop.f32.mrf.mxu0
  %v491 = vadd.f32 %v111, %v490
  %v492 = vpop.f32.mrf.mxu0
  %v493 = vadd.f32 %v107, %v492
  %v494 = vpop.f32.mrf.mxu0
  %v495 = vadd.f32 %v111, %v494
  %496 = vmatprep.mubr.bf16.mxu0 %v35
  %497 = vmatmul.mubr.bf16.gmra.mxu0 %v34
  %v498 = vpop.f32.mrf.mxu0
  %v499 = vadd.f32 %v107, %v498
  %v500 = vpop.f32.mrf.mxu0
  %v501 = vadd.f32 %v111, %v500
  %v502 = vpop.f32.mrf.mxu0
  %v503 = vadd.f32 %v107, %v502
  %v504 = vpop.f32.mrf.mxu0
  %v505 = vadd.f32 %v111, %v504
  %506 = vmatprep.mubr.bf16.mxu0 %v37
  %507 = vmatmul.mubr.bf16.gmra.mxu0 %v36
  %v508 = vpop.f32.mrf.mxu0
  %v509 = vadd.f32 %v107, %v508
  %v510 = vpop.f32.mrf.mxu0
  %v511 = vadd.f32 %v111, %v510
  %v512 = vpop.f32.mrf.mxu0
  %v513 = vadd.f32 %v107, %v512
  %v514 = vpop.f32.mrf.mxu0
  %v515 = vadd.f32 %v111, %v514
  %516 = vdwg.mxu0
  %517 = vmatprep.subr.bf16.mxu0 %v347
  %518 = vmatpush1.bf16.msra.mxu0 %v346
  %519 = vmatprep.subr.bf16.mxu0 %v343
  %520 = vmatpush1.bf16.msra.mxu0 %v342
  %521 = vmatprep.subr.bf16.mxu0 %v339
  %522 = vmatpush1.bf16.msra.mxu0 %v338
  %523 = vmatprep.subr.bf16.mxu0 %v335
  %524 = vmatpush1.bf16.msra.mxu0 %v334
  %525 = vmatprep.subr.bf16.mxu0 %v331
  %526 = vmatpush1.bf16.msra.mxu0 %v330
  %527 = vmatprep.subr.bf16.mxu0 %v327
  %528 = vmatpush1.bf16.msra.mxu0 %v326
  %529 = vmatprep.subr.bf16.mxu0 %v323
  %530 = vmatpush1.bf16.msra.mxu0 %v322
  %531 = vmatprep.subr.bf16.mxu0 %v319
  %532 = vmatpush1.bf16.msra.mxu0 %v318
  %533 = vmatprep.subr.bf16.mxu0 %v379
  %534 = vmatpush2.bf16.msra.mxu0 %v378
  %535 = vmatprep.subr.bf16.mxu0 %v375
  %536 = vmatpush2.bf16.msra.mxu0 %v374
  %537 = vmatprep.subr.bf16.mxu0 %v371
  %538 = vmatpush2.bf16.msra.mxu0 %v370
  %539 = vmatprep.subr.bf16.mxu0 %v367
  %540 = vmatpush2.bf16.msra.mxu0 %v366
  %541 = vmatprep.subr.bf16.mxu0 %v363
  %542 = vmatpush2.bf16.msra.mxu0 %v362
  %543 = vmatprep.subr.bf16.mxu0 %v359
  %544 = vmatpush2.bf16.msra.mxu0 %v358
  %545 = vmatprep.subr.bf16.mxu0 %v355
  %546 = vmatpush2.bf16.msra.mxu0 %v354
  %547 = vmatprep.subr.bf16.mxu0 %v351
  %548 = vmatpush2.bf16.msra.mxu0 %v350
  %549 = vmatprep.mubr.bf16.mxu0 %v31
  %550 = vmatmul.mubr.bf16.gmra.mxu0 %v30
  %v551 = vpop.f32.mrf.mxu0
  %v552 = vadd.f32 %v115, %v551
  %v553 = vpop.f32.mrf.mxu0
  %v554 = vadd.f32 %v119, %v553
  %v555 = vpop.f32.mrf.mxu0
  %v556 = vadd.f32 %v115, %v555
  %v557 = vpop.f32.mrf.mxu0
  %v558 = vadd.f32 %v119, %v557
  %559 = vmatprep.mubr.bf16.mxu0 %v33
  %560 = vmatmul.mubr.bf16.gmra.mxu0 %v32
  %v561 = vpop.f32.mrf.mxu0
  %v562 = vadd.f32 %v115, %v561
  %v563 = vpop.f32.mrf.mxu0
  %v564 = vadd.f32 %v119, %v563
  %v565 = vpop.f32.mrf.mxu0
  %v566 = vadd.f32 %v115, %v565
  %v567 = vpop.f32.mrf.mxu0
  %v568 = vadd.f32 %v119, %v567
  %569 = vmatprep.mubr.bf16.mxu0 %v35
  %570 = vmatmul.mubr.bf16.gmra.mxu0 %v34
  %v571 = vpop.f32.mrf.mxu0
  %v572 = vadd.f32 %v115, %v571
  %v573 = vpop.f32.mrf.mxu0
  %v574 = vadd.f32 %v119, %v573
  %v575 = vpop.f32.mrf.mxu0
  %v576 = vadd.f32 %v115, %v575
  %v577 = vpop.f32.mrf.mxu0
  %v578 = vadd.f32 %v119, %v577
  %579 = vmatprep.mubr.bf16.mxu0 %v37
  %580 = vmatmul.mubr.bf16.gmra.mxu0 %v36
  %v581 = vpop.f32.mrf.mxu0
  %v582 = vadd.f32 %v115, %v581
  %v583 = vpop.f32.mrf.mxu0
  %v584 = vadd.f32 %v119, %v583
  %v585 = vpop.f32.mrf.mxu0
  %v586 = vadd.f32 %v115, %v585
  %v587 = vpop.f32.mrf.mxu0
  %v588 = vadd.f32 %v119, %v587
  %589 = vdwg.mxu0
  %590 = vst [vmem:[%s3] sm:$0xff] %v479
  %591 = vst [vmem:[%s3 + $0x8] sm:$0xff] %v481
  %592 = vst [vmem:[%s3 + $0x10] sm:$0xff] %v552
  %593 = vst [vmem:[%s3 + $0x18] sm:$0xff] %v554
  %594 = vst [vmem:[%s3 + $0x20] sm:$0xff] %v483
  %595 = vst [vmem:[%s3 + $0x28] sm:$0xff] %v485
  %596 = vst [vmem:[%s3 + $0x30] sm:$0xff] %v556
  %597 = vst [vmem:[%s3 + $0x38] sm:$0xff] %v558
  %598 = vst [vmem:[%s3 + $0x40] sm:$0xff] %v489
  %599 = vst [vmem:[%s3 + $0x48] sm:$0xff] %v491
  %600 = vst [vmem:[%s3 + $0x50] sm:$0xff] %v562
  %601 = vst [vmem:[%s3 + $0x58] sm:$0xff] %v564
  %602 = vst [vmem:[%s3 + $0x60] sm:$0xff] %v493
  %603 = vst [vmem:[%s3 + $0x68] sm:$0xff] %v495
  %604 = vst [vmem:[%s3 + $0x70] sm:$0xff] %v566
  %605 = vst [vmem:[%s3 + $0x78] sm:$0xff] %v568
  %606 = vst [vmem:[%s3 + $0x80] sm:$0xff] %v499
  %607 = vst [vmem:[%s3 + $0x88] sm:$0xff] %v501
  %608 = vst [vmem:[%s3 + $0x90] sm:$0xff] %v572
  %609 = vst [vmem:[%s3 + $0x98] sm:$0xff] %v574
  %610 = vst [vmem:[%s3 + $0xa0] sm:$0xff] %v503
  %611 = vst [vmem:[%s3 + $0xa8] sm:$0xff] %v505
  %612 = vst [vmem:[%s3 + $0xb0] sm:$0xff] %v576
  %613 = vst [vmem:[%s3 + $0xb8] sm:$0xff] %v578
  %614 = vst [vmem:[%s3 + $0xc0] sm:$0xff] %v509
  %615 = vst [vmem:[%s3 + $0xc8] sm:$0xff] %v511
  %616 = vst [vmem:[%s3 + $0xd0] sm:$0xff] %v582
  %617 = vst [vmem:[%s3 + $0xd8] sm:$0xff] %v584
  %618 = vst [vmem:[%s3 + $0xe0] sm:$0xff] %v513
  %619 = vst [vmem:[%s3 + $0xe8] sm:$0xff] %v515
  %620 = vst [vmem:[%s3 + $0xf0] sm:$0xff] %v586
  %621 = vst [vmem:[%s3 + $0xf8] sm:$0xff] %v588
  // Predicated region
  $region14: #{decoder_layer.12} parent=0 // pred_check
    _
  $region15: #{decoder_layer.12} parent=0 // pred_check_branch
    %623 = sbr.rel (0) target = $region17
  $region16: #{decoder_layer.12} parent=0 // pred_region
    _
  $region17: #{decoder_layer.12} parent=0 // pred_fallthru
    _
  // Predicated region
  $region18: #{decoder_layer.12} parent=0 // pred_check
    _
  $region19: #{decoder_layer.12} parent=0 // pred_check_branch
    %625 = sbr.rel (0) target = $region21
  $region20: #{decoder_layer.12} parent=0 // pred_region
    _
  $region21: #{decoder_layer.12} parent=0 // pred_fallthru
    _

// kernel: decoder_layer.13
$region0: #{decoder_layer.13}
  #allocation0 [shape = 'u32[]', space=smem, size = 0x4, offset = 0x4, fixed_abs, tag = 'smem constant byte address 0x4 - core index']
  #allocation1 [shape = 'u32[144,128]{1,0:T(1,128)}', space=vmem, size = 0x12000, scoped, tag = 'internal scratch']
  %s0 = inlined_call_operand.vmem [shape: f32[2,32,256], index: 0, kind: input, shape index: {}]
  %s1 = inlined_call_operand.vmem [shape: f32[2,32,512], index: 1, kind: input, shape index: {}]
  %s2 = inlined_call_operand.vmem [shape: f32[2,32,256], index: 2, kind: output, shape index: {}]
  %s3 = sld [smem:[#allocation0]]
  $region41: #{decoder_layer.13} parent=0
    _
  %s5 = ssub.s32 1, %s3
  %s6 = scalar_select 0, %s5, %s3
  loop: start=0, step=1, limit=4
  $region2: #{decoder_layer.13} parent=0 // loop_pre_header
    _
  $region3: #{decoder_layer.13} parent=0 // loop_header
    %s8 = sphi 0, %s12
    %p9 = scmp.ge.s32.totalorder %s8, 4
    %s18 = sphi 0, %s20
    %s21 = sphi 0, %s18
    %s22 = sphi 0, %s21
    %s38 = sphi 0, %s22
    %s44 = sphi 0, %s46
    %s47 = sphi 0, %s44
    %s48 = sphi 0, %s47
    %s64 = sphi 0, %s48
    %s70 = sphi 0, %s72
    %s73 = sphi 0, %s70
    %s74 = sphi 0, %s73
    %s90 = sphi 0, %s74
  $region4: #{decoder_layer.13} parent=0 // loop_header_branch
    %11 = sbr.rel (%p9) target = $region8
  $region5: #{decoder_layer.13} parent=0 // loop_body
    %s13 = ssub.s32 %s8, 1
    %s14 = ssub.s32 %s8, 2
    %s15 = sadd.s32 %s8, 1
    %s16 = ssub.s32 %s8, %s15
    %p17 = scmp.eq.s32.totalorder %s16, 0
    %s19 = sadd.s32 %s18, 1
    %s20 = scalar_select %p17, %s18, %s19
    %p23 = pneg %p17
    %p24 = scmp.eq.s32.totalorder %s8, 1
    %p25 = por %p23, %p24
    %p26 = scmp.ne.s32.totalorder %s18, %s21
    %p27 = scmp.eq.s32.totalorder %s8, 0
    %p28 = por %p26, %p27
    %p29 = scmp.ne.s32.totalorder %s18, %s21
    %p30 = scmp.eq.s32.totalorder %s13, 1
    %p31 = por %p29, %p30
    %p32 = scmp.ne.s32.totalorder %s21, %s22
    %p33 = scmp.eq.s32.totalorder %s13, 0
    %p34 = por %p32, %p33
    %p35 = scmp.ne.s32.totalorder %s21, %s22
    %p36 = scmp.eq.s32.totalorder %s14, 1
    %p37 = por %p35, %p36
    %p39 = scmp.ne.s32.totalorder %s22, %s38
    %p40 = scmp.eq.s32.totalorder %s14, 0
    %p41 = por %p39, %p40
    %s42 = ssub.s32 %s8, %s15
    %p43 = scmp.eq.s32.totalorder %s42, 0
    %s45 = sadd.s32 %s44, 1
    %s46 = scalar_select %p43, %s44, %s45
    %p49 = pneg %p43
    %p50 = scmp.eq.s32.totalorder %s8, 1
    %p51 = por %p49, %p50
    %p52 = scmp.ne.s32.totalorder %s44, %s47
    %p53 = scmp.eq.s32.totalorder %s8, 0
    %p54 = por %p52, %p53
    %p55 = scmp.ne.s32.totalorder %s44, %s47
    %p56 = scmp.eq.s32.totalorder %s13, 1
    %p57 = por %p55, %p56
    %p58 = scmp.ne.s32.totalorder %s47, %s48
    %p59 = scmp.eq.s32.totalorder %s13, 0
    %p60 = por %p58, %p59
    %p61 = scmp.ne.s32.totalorder %s47, %s48
    %p62 = scmp.eq.s32.totalorder %s14, 1
    %p63 = por %p61, %p62
    %p65 = scmp.ne.s32.totalorder %s48, %s64
    %p66 = scmp.eq.s32.totalorder %s14, 0
    %p67 = por %p65, %p66
    %s68 = ssub.s32 %s8, %s15
    %p69 = scmp.eq.s32.totalorder %s68, 0
    %s71 = sadd.s32 %s70, 1
    %s72 = scalar_select %p69, %s70, %s71
    %p75 = pneg %p69
    %p76 = scmp.eq.s32.totalorder %s8, 1
    %p77 = por %p75, %p76
    %p78 = scmp.ne.s32.totalorder %s70, %s73
    %p79 = scmp.eq.s32.totalorder %s8, 0
    %p80 = por %p78, %p79
    %p81 = scmp.ne.s32.totalorder %s70, %s73
    %p82 = scmp.eq.s32.totalorder %s13, 1
    %p83 = por %p81, %p82
    %p84 = scmp.ne.s32.totalorder %s73, %s74
    %p85 = scmp.eq.s32.totalorder %s13, 0
    %p86 = por %p84, %p85
    %p87 = scmp.ne.s32.totalorder %s73, %s74
    %p88 = scmp.eq.s32.totalorder %s14, 1
    %p89 = por %p87, %p88
    %p91 = scmp.ne.s32.totalorder %s74, %s90
    %p92 = scmp.eq.s32.totalorder %s14, 0
    %p93 = por %p91, %p92
    %p94 = scmp.le.s32.totalorder 1, %s8
    %p95 = scmp.lt.s32.totalorder %s8, 3
    %p96 = pnand %p94, %p95
    %p97 = pneg %p96
    // Predicated region
    $region9: #{decoder_layer.13} parent=5 // pred_check
      _
    $region10: #{decoder_layer.13} parent=5 // pred_check_branch
      %99 = sbr.rel (%p96) target = $region12
    $region11: #{decoder_layer.13} parent=5 // pred_region
      %s100 = ssub.s32 %s8, 1
    $region12: #{decoder_layer.13} parent=5 // pred_fallthru
      _
    %p101 = scmp.lt.s32.totalorder %s8, 2
    // Predicated region
    $region13: #{decoder_layer.13} parent=5 // pred_check
      %p102 = pneg %p101
    $region14: #{decoder_layer.13} parent=5 // pred_check_branch
      %104 = sbr.rel (%p102) target = $region16
    $region15: #{decoder_layer.13} parent=5 // pred_region
      // Predicated region
      $region17: #{decoder_layer.13} parent=15 // pred_check
        %p105 = pneg %p28
      $region18: #{decoder_layer.13} parent=15 // pred_check_branch
        %107 = sbr.rel (%p105) target = $region20
      $region19: #{decoder_layer.13} parent=15 // pred_region
        %p108 = scmp.lt.s32.totalorder %s8, 1
        %s109 = scalar_select %p108, %s8, 1
        %s110 = smul.addr %s109, 8
        %s111 = smul.addr %s110, 8
        %s112 = scalar_lea.vmem %s0, %s111
      $region20: #{decoder_layer.13} parent=15 // pred_fallthru
        _
      // Predicated region
      $region21: #{decoder_layer.13} parent=15 // pred_check
        %p113 = pneg %p54
      $region22: #{decoder_layer.13} parent=15 // pred_check_branch
        %115 = sbr.rel (%p113) target = $region24
      $region23: #{decoder_layer.13} parent=15 // pred_region
        %p116 = scmp.lt.s32.totalorder %s8, 1
        %s117 = scalar_select %p116, %s8, 1
        %s118 = smul.addr %s117, 16
        %s119 = smul.addr %s118, 8
        %s120 = scalar_lea.vmem %s1, %s119
      $region24: #{decoder_layer.13} parent=15 // pred_fallthru
        _
    $region16: #{decoder_layer.13} parent=5 // pred_fallthru
      _
    %p121 = scmp.le.s32.totalorder 1, %s8
    %p122 = scmp.lt.s32.totalorder %s8, 3
    %p123 = pnand %p121, %p122
    %p124 = pneg %p123
    // Predicated region
    $region25: #{decoder_layer.13} parent=5 // pred_check
      _
    $region26: #{decoder_layer.13} parent=5 // pred_check_branch
      %126 = sbr.rel (%p123) target = $region28
    $region27: #{decoder_layer.13} parent=5 // pred_region
      %s127 = ssub.s32 %s8, 1
      %p128 = scmp.lt.s32.totalorder %s13, 1
      %s129 = scalar_select %p128, %s13, 1
      %s130 = smul.addr %s129, 8
      %s131 = smul.addr %s130, 8
      %s132 = scalar_lea.vmem %s0, %s131
      %p133 = pneg %p34
      %p134 = pneg %p31
      %p135 = scmp.lt.s32.totalorder %s13, 1
      %s136 = scalar_select %p135, %s13, 1
      %s137 = smul.addr %s136, 16
      %s138 = smul.addr %s137, 8
      %s139 = scalar_lea.vmem %s1, %s138
      %p140 = pneg %p60
      %p141 = pneg %p57
      %p142 = pneg %p86
      %p143 = pneg %p83
      %p144 = scmp.lt.s32.totalorder %s13, 1
      %s145 = scalar_select %p144, %s13, 1
      %s146 = smul.addr %s145, 8
      %s147 = smul.addr %s146, 8
      %s148 = scalar_lea.vmem %s2, %s147
      %p149 = scmp.lt.s32.totalorder %s13, 1
      %s150 = scalar_select %p149, %s13, 1
      %s151 = smul.addr %s150, 8
      %s152 = smul.addr %s151, 8
      %s153 = scalar_lea.vmem %s0, %s152
      %p154 = scmp.lt.s32.totalorder %s13, 1
      %s155 = scalar_select %p154, %s13, 1
      %s156 = smul.addr %s155, 16
      %s157 = smul.addr %s156, 8
      %s158 = scalar_lea.vmem %s1, %s157
      %p159 = scmp.lt.s32.totalorder %s13, 1
      %s160 = scalar_select %p159, %s13, 1
      %s161 = smul.addr %s160, 8
      %s162 = smul.addr %s161, 8
      %s163 = scalar_lea.vmem %s2, %s162
      %v165 = vld [vmem:[%s153] sm:$0xff]
      %v166 = vld [vmem:[%s153 + $0x8] sm:$0xff]
      %v167 = vld [vmem:[%s153 + $0x10] sm:$0xff]
      %v168 = vld [vmem:[%s153 + $0x18] sm:$0xff]
      %v169 = vld [vmem:[%s153 + $0x20] sm:$0xff]
      %v170 = vld [vmem:[%s153 + $0x28] sm:$0xff]
      %v171 = vld [vmem:[%s153 + $0x30] sm:$0xff]
      %v172 = vld [vmem:[%s153 + $0x38] sm:$0xff]
      %v173 = vld [vmem:[%s158] sm:$0xff]
      %v174 = vld [vmem:[%s158 + $0x8] sm:$0xff]
      %v175 = vld [vmem:[%s158 + $0x20] sm:$0xff]
      %v176 = vld [vmem:[%s158 + $0x28] sm:$0xff]
      %v177 = vld [vmem:[%s158 + $0x40] sm:$0xff]
      %v178 = vld [vmem:[%s158 + $0x48] sm:$0xff]
      %v179 = vld [vmem:[%s158 + $0x60] sm:$0xff]
      %v180 = vld [vmem:[%s158 + $0x68] sm:$0xff]
      %v181 = vld [vmem:[%s158 + $0x10] sm:$0xff]
      %v182 = vld [vmem:[%s158 + $0x18] sm:$0xff]
      %v183 = vld [vmem:[%s158 + $0x30] sm:$0xff]
      %v184 = vld [vmem:[%s158 + $0x38] sm:$0xff]
      %v185 = vld [vmem:[%s158 + $0x50] sm:$0xff]
      %v186 = vld [vmem:[%s158 + $0x58] sm:$0xff]
      %v187 = vld [vmem:[%s158 + $0x70] sm:$0xff]
      %v188 = vld [vmem:[%s158 + $0x78] sm:$0xff]
      %v189 = vpack.c.bf16 %v167, %v165
      %v190 = vpack.c.bf16 %v168, %v166
      %v191 = vpack.c.bf16 %v171, %v169
      %v192 = vpack.c.bf16 %v172, %v170
      %v193 = vpack.c.bf16 %v175, %v173
      %v194 = vpack.c.bf16 %v176, %v174
      %v195 = vpack.c.bf16 %v179, %v177
      %v196 = vpack.c.bf16 %v180, %v178
      %v197 = vpack.c.bf16 %v183, %v181
      %v198 = vpack.c.bf16 %v184, %v182
      %v199 = vpack.c.bf16 %v187, %v185
      %v200 = vpack.c.bf16 %v188, %v186
      %vm201 = vcmask 261120
      %v203 = vsel %vm201, %v189, 0
      %v206 = vsel %vm201, %v191, 0
      %v209 = vsel %vm201, %v193, 0
      %v212 = vsel %vm201, %v195, 0
      %214 = vmatprep.subr.bf16.mxu0 0
      %215 = vmatpush1.bf16.xpose.msra.mxu0 0
      %216 = vmatprep.subr.bf16.mxu0 0
      %217 = vmatpush1.bf16.xpose.msra.mxu0 0
      %218 = vmatprep.subr.bf16.mxu0 0
      %219 = vmatpush1.bf16.xpose.msra.mxu0 0
      %220 = vmatprep.subr.bf16.mxu0 0
      %221 = vmatpush1.bf16.xpose.msra.mxu0 0
      %222 = vmatprep.subr.bf16.mxu0 0
      %223 = vmatpush1.bf16.xpose.msra.mxu0 0
      %224 = vmatprep.subr.bf16.mxu0 0
      %225 = vmatpush1.bf16.xpose.msra.mxu0 0
      %226 = vmatprep.subr.bf16.mxu0 0
      %227 = vmatpush1.bf16.xpose.msra.mxu0 %v212
      %228 = vmatprep.subr.bf16.mxu0 0
      %229 = vmatpush1.bf16.xpose.msra.mxu0 %v209
      %230 = vmatprep.subr.bf16.mxu0 0
      %231 = vmatpush2.bf16.xpose.msra.mxu0 0
      %232 = vmatprep.subr.bf16.mxu0 0
      %233 = vmatpush2.bf16.xpose.msra.mxu0 0
      %234 = vmatprep.subr.bf16.mxu0 0
      %235 = vmatpush2.bf16.xpose.msra.mxu0 0
      %236 = vmatprep.subr.bf16.mxu0 0
      %237 = vmatpush2.bf16.xpose.msra.mxu0 0
      %238 = vmatprep.subr.bf16.mxu0 0
      %239 = vmatpush2.bf16.xpose.msra.mxu0 0
      %240 = vmatprep.subr.bf16.mxu0 0
      %241 = vmatpush2.bf16.xpose.msra.mxu0 0
      %242 = vmatprep.subr.bf16.mxu0 0
      %243 = vmatpush2.bf16.xpose.msra.mxu0 0
      %244 = vmatprep.subr.bf16.mxu0 0
      %245 = vmatpush2.bf16.xpose.msra.mxu0 0
      %246 = vmatprep.mubr.bf16.mxu0 0
      %247 = vmatmul.mubr.bf16.gmra.mxu0 %v203
      %v248 = vpop.f32.mrf.mxu0
      %v249 = vadd.f32 0.0, %v248
      %v250 = vpop.f32.mrf.mxu0
      %v251 = vpop.f32.mrf.mxu0
      %v252 = vadd.f32 0.0, %v251
      %v253 = vpop.f32.mrf.mxu0
      %254 = vmatprep.mubr.bf16.mxu0 0
      %255 = vmatmul.mubr.bf16.gmra.mxu0 %v206
      %v256 = vpop.f32.mrf.mxu0
      %v257 = vadd.f32 0.0, %v256
      %v258 = vpop.f32.mrf.mxu0
      %v259 = vpop.f32.mrf.mxu0
      %v260 = vadd.f32 0.0, %v259
      %v261 = vpop.f32.mrf.mxu0
      %262 = vdwg.mxu0
      %v263 = vmul.f32 %v249, 0.17677669
      %v264 = vmul.f32 %v252, 0.17677669
      %v265 = vmul.f32 %v257, 0.17677669
      %v266 = vmul.f32 %v260, 0.17677669
      %v267 = vsel %vm201, %v263, -inf
      %268 = vmax.xlane.f32.xlu0 %v267
      %v269 = vpop.xlane.xlu0 %268
      %v270 = vsel %vm201, %v264, -inf
      %271 = vmax.xlane.f32.xlu0 %v270
      %v272 = vpop.xlane.xlu0 %271
      %v273 = vsel %vm201, %v265, -inf
      %274 = vmax.xlane.f32.xlu0 %v273
      %v275 = vpop.xlane.xlu0 %274
      %v276 = vsel %vm201, %v266, -inf
      %277 = vmax.xlane.f32.xlu0 %v276
      %v278 = vpop.xlane.xlu0 %277
      %v279 = vsub.f32 %v263, %v269
      %v280 = vsub.f32 %v264, %v272
      %v281 = vsub.f32 %v265, %v275
      %v282 = vsub.f32 %v266, %v278
      %v283 = vmul.f32 %v279, 1.442695
      %v284 = vpow.pop %v283
      %v285 = vmul.f32 %v280, 1.442695
      %v286 = vpow.pop %v285
      %v287 = vmul.f32 %v281, 1.442695
      %v288 = vpow.pop %v287
      %v289 = vmul.f32 %v282, 1.442695
      %v290 = vpow.pop %v289
      %v291 = vsel %vm201, %v284, 0.0
      %292 = vadd.xlane.f32.xlu0 %v291
      %v293 = vpop.xlane.xlu0 %292
      %v294 = vsel %vm201, %v286, 0.0
      %295 = vadd.xlane.f32.xlu0 %v294
      %v296 = vpop.xlane.xlu0 %295
      %v297 = vsel %vm201, %v288, 0.0
      %298 = vadd.xlane.f32.xlu0 %v297
      %v299 = vpop.xlane.xlu0 %298
      %v300 = vsel %vm201, %v290, 0.0
      %301 = vadd.xlane.f32.xlu0 %v300
      %v302 = vpop.xlane.xlu0 %301
      %v303 = vrcp.pop %v293
      %v304 = vrcp.pop %v296
      %v305 = vrcp.pop %v299
      %v306 = vrcp.pop %v302
      %v307 = vmul.f32 %v284, %v303
      %v308 = vmul.f32 %v286, %v304
      %v309 = vmul.f32 %v288, %v305
      %v310 = vmul.f32 %v290, %v306
      %v311 = vpack.c.bf16 %v308, %v307
      %v312 = vpack.c.bf16 %v310, %v309
      %v314 = vsel %vm201, %v311, 0
      %v317 = vsel %vm201, %v312, 0
      %319 = vmatprep.subr.bf16.mxu0 0
      %320 = vmatpush1.bf16.msra.mxu0 0
      %321 = vmatprep.subr.bf16.mxu0 0
      %322 = vmatpush1.bf16.msra.mxu0 0
      %323 = vmatprep.subr.bf16.mxu0 0
      %324 = vmatpush1.bf16.msra.mxu0 0
      %325 = vmatprep.subr.bf16.mxu0 0
      %326 = vmatpush1.bf16.msra.mxu0 0
      %327 = vmatprep.subr.bf16.mxu0 0
      %328 = vmatpush1.bf16.msra.mxu0 0
      %329 = vmatprep.subr.bf16.mxu0 0
      %330 = vmatpush1.bf16.msra.mxu0 0
      %331 = vmatprep.subr.bf16.mxu0 0
      %332 = vmatpush1.bf16.msra.mxu0 %v199
      %333 = vmatprep.subr.bf16.mxu0 0
      %334 = vmatpush1.bf16.msra.mxu0 %v197
      %335 = vmatprep.subr.bf16.mxu0 0
      %336 = vmatpush2.bf16.msra.mxu0 0
      %337 = vmatprep.subr.bf16.mxu0 0
      %338 = vmatpush2.bf16.msra.mxu0 0
      %339 = vmatprep.subr.bf16.mxu0 0
      %340 = vmatpush2.bf16.msra.mxu0 0
      %341 = vmatprep.subr.bf16.mxu0 0
      %342 = vmatpush2.bf16.msra.mxu0 0
      %343 = vmatprep.subr.bf16.mxu0 0
      %344 = vmatpush2.bf16.msra.mxu0 0
      %345 = vmatprep.subr.bf16.mxu0 0
      %346 = vmatpush2.bf16.msra.mxu0 0
      %347 = vmatprep.subr.bf16.mxu0 0
      %348 = vmatpush2.bf16.msra.mxu0 0
      %349 = vmatprep.subr.bf16.mxu0 0
      %350 = vmatpush2.bf16.msra.mxu0 0
      %351 = vmatprep.mubr.bf16.mxu0 0
      %352 = vmatmul.mubr.bf16.gmra.mxu0 %v314
      %v353 = vpop.f32.mrf.mxu0
      %v354 = vadd.f32 0.0, %v353
      %v355 = vpop.f32.mrf.mxu0
      %v356 = vpop.f32.mrf.mxu0
      %v357 = vadd.f32 0.0, %v356
      %v358 = vpop.f32.mrf.mxu0
      %359 = vmatprep.mubr.bf16.mxu0 0
      %360 = vmatmul.mubr.bf16.gmra.mxu0 %v317
      %v361 = vpop.f32.mrf.mxu0
      %v362 = vadd.f32 0.0, %v361
      %v363 = vpop.f32.mrf.mxu0
      %v364 = vpop.f32.mrf.mxu0
      %v365 = vadd.f32 0.0, %v364
      %v366 = vpop.f32.mrf.mxu0
      %367 = vdwg.mxu0
      %370 = vrot.lane.b32.xlu0 %v189, 96
      %v371 = vpop.permute.xlu0 %370
      %372 = vrot.lane.b32.xlu0 %v191, 96
      %v373 = vpop.permute.xlu0 %372
      %376 = vrot.lane.b32.xlu0 %v193, 96
      %v377 = vpop.permute.xlu0 %376
      %378 = vrot.lane.b32.xlu0 %v195, 96
      %v379 = vpop.permute.xlu0 %378
      %v381 = vsel %vm201, %v371, 0
      %v384 = vsel %vm201, %v373, 0
      %v387 = vsel %vm201, %v377, 0
      %v390 = vsel %vm201, %v379, 0
      %392 = vmatprep.subr.bf16.mxu0 0
      %393 = vmatpush1.bf16.xpose.msra.mxu0 0
      %394 = vmatprep.subr.bf16.mxu0 0
      %395 = vmatpush1.bf16.xpose.msra.mxu0 0
      %396 = vmatprep.subr.bf16.mxu0 0
      %397 = vmatpush1.bf16.xpose.msra.mxu0 0
      %398 = vmatprep.subr.bf16.mxu0 0
      %399 = vmatpush1.bf16.xpose.msra.mxu0 0
      %400 = vmatprep.subr.bf16.mxu0 0
      %401 = vmatpush1.bf16.xpose.msra.mxu0 0
      %402 = vmatprep.subr.bf16.mxu0 0
      %403 = vmatpush1.bf16.xpose.msra.mxu0 0
      %404 = vmatprep.subr.bf16.mxu0 0
      %405 = vmatpush1.bf16.xpose.msra.mxu0 %v390
      %406 = vmatprep.subr.bf16.mxu0 0
      %407 = vmatpush1.bf16.xpose.msra.mxu0 %v387
      %408 = vmatprep.subr.bf16.mxu0 0
      %409 = vmatpush2.bf16.xpose.msra.mxu0 0
      %410 = vmatprep.subr.bf16.mxu0 0
      %411 = vmatpush2.bf16.xpose.msra.mxu0 0
      %412 = vmatprep.subr.bf16.mxu0 0
      %413 = vmatpush2.bf16.xpose.msra.mxu0 0
      %414 = vmatprep.subr.bf16.mxu0 0
      %415 = vmatpush2.bf16.xpose.msra.mxu0 0
      %416 = vmatprep.subr.bf16.mxu0 0
      %417 = vmatpush2.bf16.xpose.msra.mxu0 0
      %418 = vmatprep.subr.bf16.mxu0 0
      %419 = vmatpush2.bf16.xpose.msra.mxu0 0
      %420 = vmatprep.subr.bf16.mxu0 0
      %421 = vmatpush2.bf16.xpose.msra.mxu0 0
      %422 = vmatprep.subr.bf16.mxu0 0
      %423 = vmatpush2.bf16.xpose.msra.mxu0 0
      %424 = vmatprep.mubr.bf16.mxu0 0
      %425 = vmatmul.mubr.bf16.gmra.mxu0 %v381
      %v426 = vpop.f32.mrf.mxu0
      %v427 = vadd.f32 0.0, %v426
      %v428 = vpop.f32.mrf.mxu0
      %v429 = vpop.f32.mrf.mxu0
      %v430 = vadd.f32 0.0, %v429
      %v431 = vpop.f32.mrf.mxu0
      %432 = vmatprep.mubr.bf16.mxu0 0
      %433 = vmatmul.mubr.bf16.gmra.mxu0 %v384
      %v434 = vpop.f32.mrf.mxu0
      %v435 = vadd.f32 0.0, %v434
      %v436 = vpop.f32.mrf.mxu0
      %v437 = vpop.f32.mrf.mxu0
      %v438 = vadd.f32 0.0, %v437
      %v439 = vpop.f32.mrf.mxu0
      %440 = vdwg.mxu0
      %v441 = vmul.f32 %v427, 0.17677669
      %v442 = vmul.f32 %v430, 0.17677669
      %v443 = vmul.f32 %v435, 0.17677669
      %v444 = vmul.f32 %v438, 0.17677669
      %v445 = vsel %vm201, %v441, -inf
      %446 = vmax.xlane.f32.xlu0 %v445
      %v447 = vpop.xlane.xlu0 %446
      %v448 = vsel %vm201, %v442, -inf
      %449 = vmax.xlane.f32.xlu0 %v448
      %v450 = vpop.xlane.xlu0 %449
      %v451 = vsel %vm201, %v443, -inf
      %452 = vmax.xlane.f32.xlu0 %v451
      %v453 = vpop.xlane.xlu0 %452
      %v454 = vsel %vm201, %v444, -inf
      %455 = vmax.xlane.f32.xlu0 %v454
      %v456 = vpop.xlane.xlu0 %455
      %v457 = vsub.f32 %v441, %v447
      %v458 = vsub.f32 %v442, %v450
      %v459 = vsub.f32 %v443, %v453
      %v460 = vsub.f32 %v444, %v456
      %v461 = vmul.f32 %v457, 1.442695
      %v462 = vpow.pop %v461
      %v463 = vmul.f32 %v458, 1.442695
      %v464 = vpow.pop %v463
      %v465 = vmul.f32 %v459, 1.442695
      %v466 = vpow.pop %v465
      %v467 = vmul.f32 %v460, 1.442695
      %v468 = vpow.pop %v467
      %v469 = vsel %vm201, %v462, 0.0
      %470 = vadd.xlane.f32.xlu0 %v469
      %v471 = vpop.xlane.xlu0 %470
      %v472 = vsel %vm201, %v464, 0.0
      %473 = vadd.xlane.f32.xlu0 %v472
      %v474 = vpop.xlane.xlu0 %473
      %v475 = vsel %vm201, %v466, 0.0
      %476 = vadd.xlane.f32.xlu0 %v475
      %v477 = vpop.xlane.xlu0 %476
      %v478 = vsel %vm201, %v468, 0.0
      %479 = vadd.xlane.f32.xlu0 %v478
      %v480 = vpop.xlane.xlu0 %479
      %v481 = vrcp.pop %v471
      %v482 = vrcp.pop %v474
      %v483 = vrcp.pop %v477
      %v484 = vrcp.pop %v480
      %v485 = vmul.f32 %v462, %v481
      %v486 = vmul.f32 %v464, %v482
      %v487 = vmul.f32 %v466, %v483
      %v488 = vmul.f32 %v468, %v484
      %v489 = vpack.c.bf16 %v486, %v485
      %v490 = vpack.c.bf16 %v488, %v487
      %493 = vrot.lane.b32.xlu0 %v197, 96
      %v494 = vpop.permute.xlu0 %493
      %495 = vrot.lane.b32.xlu0 %v199, 96
      %v496 = vpop.permute.xlu0 %495
      %v500 = vsel %vm201, %v489, 0
      %v503 = vsel %vm201, %v490, 0
      %505 = vmatprep.subr.bf16.mxu0 0
      %506 = vmatpush1.bf16.msra.mxu0 0
      %507 = vmatprep.subr.bf16.mxu0 0
      %508 = vmatpush1.bf16.msra.mxu0 0
      %509 = vmatprep.subr.bf16.mxu0 0
      %510 = vmatpush1.bf16.msra.mxu0 0
      %511 = vmatprep.subr.bf16.mxu0 0
      %512 = vmatpush1.bf16.msra.mxu0 0
      %513 = vmatprep.subr.bf16.mxu0 0
      %514 = vmatpush1.bf16.msra.mxu0 0
      %515 = vmatprep.subr.bf16.mxu0 0
      %516 = vmatpush1.bf16.msra.mxu0 0
      %517 = vmatprep.subr.bf16.mxu0 0
      %518 = vmatpush1.bf16.msra.mxu0 %v496
      %519 = vmatprep.subr.bf16.mxu0 0
      %520 = vmatpush1.bf16.msra.mxu0 %v494
      %521 = vmatprep.subr.bf16.mxu0 0
      %522 = vmatpush2.bf16.msra.mxu0 0
      %523 = vmatprep.subr.bf16.mxu0 0
      %524 = vmatpush2.bf16.msra.mxu0 0
      %525 = vmatprep.subr.bf16.mxu0 0
      %526 = vmatpush2.bf16.msra.mxu0 0
      %527 = vmatprep.subr.bf16.mxu0 0
      %528 = vmatpush2.bf16.msra.mxu0 0
      %529 = vmatprep.subr.bf16.mxu0 0
      %530 = vmatpush2.bf16.msra.mxu0 0
      %531 = vmatprep.subr.bf16.mxu0 0
      %532 = vmatpush2.bf16.msra.mxu0 0
      %533 = vmatprep.subr.bf16.mxu0 0
      %534 = vmatpush2.bf16.msra.mxu0 0
      %535 = vmatprep.subr.bf16.mxu0 0
      %536 = vmatpush2.bf16.msra.mxu0 0
      %537 = vmatprep.mubr.bf16.mxu0 0
      %538 = vmatmul.mubr.bf16.gmra.mxu0 %v500
      %v539 = vpop.f32.mrf.mxu0
      %v540 = vadd.f32 0.0, %v539
      %v541 = vpop.f32.mrf.mxu0
      %v542 = vpop.f32.mrf.mxu0
      %v543 = vadd.f32 0.0, %v542
      %v544 = vpop.f32.mrf.mxu0
      %545 = vmatprep.mubr.bf16.mxu0 0
      %546 = vmatmul.mubr.bf16.gmra.mxu0 %v503
      %v547 = vpop.f32.mrf.mxu0
      %v548 = vadd.f32 0.0, %v547
      %v549 = vpop.f32.mrf.mxu0
      %v550 = vpop.f32.mrf.mxu0
      %v551 = vadd.f32 0.0, %v550
      %v552 = vpop.f32.mrf.mxu0
      %553 = vdwg.mxu0
      %554 = vrot.lane.b32.xlu0 %v189, 64
      %v555 = vpop.permute.xlu0 %554
      %556 = vrot.lane.b32.xlu0 %v191, 64
      %v557 = vpop.permute.xlu0 %556
      %558 = vrot.lane.b32.xlu0 %v193, 64
      %v559 = vpop.permute.xlu0 %558
      %560 = vrot.lane.b32.xlu0 %v195, 64
      %v561 = vpop.permute.xlu0 %560
      %v563 = vsel %vm201, %v555, 0
      %v566 = vsel %vm201, %v557, 0
      %v569 = vsel %vm201, %v559, 0
      %v572 = vsel %vm201, %v561, 0
      %574 = vmatprep.subr.bf16.mxu0 0
      %575 = vmatpush1.bf16.xpose.msra.mxu0 0
      %576 = vmatprep.subr.bf16.mxu0 0
      %577 = vmatpush1.bf16.xpose.msra.mxu0 0
      %578 = vmatprep.subr.bf16.mxu0 0
      %579 = vmatpush1.bf16.xpose.msra.mxu0 0
      %580 = vmatprep.subr.bf16.mxu0 0
      %581 = vmatpush1.bf16.xpose.msra.mxu0 0
      %582 = vmatprep.subr.bf16.mxu0 0
      %583 = vmatpush1.bf16.xpose.msra.mxu0 0
      %584 = vmatprep.subr.bf16.mxu0 0
      %585 = vmatpush1.bf16.xpose.msra.mxu0 0
      %586 = vmatprep.subr.bf16.mxu0 0
      %587 = vmatpush1.bf16.xpose.msra.mxu0 %v572
      %588 = vmatprep.subr.bf16.mxu0 0
      %589 = vmatpush1.bf16.xpose.msra.mxu0 %v569
      %590 = vmatprep.subr.bf16.mxu0 0
      %591 = vmatpush2.bf16.xpose.msra.mxu0 0
      %592 = vmatprep.subr.bf16.mxu0 0
      %593 = vmatpush2.bf16.xpose.msra.mxu0 0
      %594 = vmatprep.subr.bf16.mxu0 0
      %595 = vmatpush2.bf16.xpose.msra.mxu0 0
      %596 = vmatprep.subr.bf16.mxu0 0
      %597 = vmatpush2.bf16.xpose.msra.mxu0 0
      %598 = vmatprep.subr.bf16.mxu0 0
      %599 = vmatpush2.bf16.xpose.msra.mxu0 0
      %600 = vmatprep.subr.bf16.mxu0 0
      %601 = vmatpush2.bf16.xpose.msra.mxu0 0
      %602 = vmatprep.subr.bf16.mxu0 0
      %603 = vmatpush2.bf16.xpose.msra.mxu0 0
      %604 = vmatprep.subr.bf16.mxu0 0
      %605 = vmatpush2.bf16.xpose.msra.mxu0 0
      %606 = vmatprep.mubr.bf16.mxu0 0
      %607 = vmatmul.mubr.bf16.gmra.mxu0 %v563
      %v608 = vpop.f32.mrf.mxu0
      %v609 = vadd.f32 0.0, %v608
      %v610 = vpop.f32.mrf.mxu0
      %v611 = vpop.f32.mrf.mxu0
      %v612 = vadd.f32 0.0, %v611
      %v613 = vpop.f32.mrf.mxu0
      %614 = vmatprep.mubr.bf16.mxu0 0
      %615 = vmatmul.mubr.bf16.gmra.mxu0 %v566
      %v616 = vpop.f32.mrf.mxu0
      %v617 = vadd.f32 0.0, %v616
      %v618 = vpop.f32.mrf.mxu0
      %v619 = vpop.f32.mrf.mxu0
      %v620 = vadd.f32 0.0, %v619
      %v621 = vpop.f32.mrf.mxu0
      %622 = vdwg.mxu0
      %v623 = vmul.f32 %v609, 0.17677669
      %v624 = vmul.f32 %v612, 0.17677669
      %v625 = vmul.f32 %v617, 0.17677669
      %v626 = vmul.f32 %v620, 0.17677669
      %v627 = vsel %vm201, %v623, -inf
      %628 = vmax.xlane.f32.xlu0 %v627
      %v629 = vpop.xlane.xlu0 %628
      %v630 = vsel %vm201, %v624, -inf
      %631 = vmax.xlane.f32.xlu0 %v630
      %v632 = vpop.xlane.xlu0 %631
      %v633 = vsel %vm201, %v625, -inf
      %634 = vmax.xlane.f32.xlu0 %v633
      %v635 = vpop.xlane.xlu0 %634
      %v636 = vsel %vm201, %v626, -inf
      %637 = vmax.xlane.f32.xlu0 %v636
      %v638 = vpop.xlane.xlu0 %637
      %v639 = vsub.f32 %v623, %v629
      %v640 = vsub.f32 %v624, %v632
      %v641 = vsub.f32 %v625, %v635
      %v642 = vsub.f32 %v626, %v638
      %v643 = vmul.f32 %v639, 1.442695
      %v644 = vpow.pop %v643
      %v645 = vmul.f32 %v640, 1.442695
      %v646 = vpow.pop %v645
      %v647 = vmul.f32 %v641, 1.442695
      %v648 = vpow.pop %v647
      %v649 = vmul.f32 %v642, 1.442695
      %v650 = vpow.pop %v649
      %v651 = vsel %vm201, %v644, 0.0
      %652 = vadd.xlane.f32.xlu0 %v651
      %v653 = vpop.xlane.xlu0 %652
      %v654 = vsel %vm201, %v646, 0.0
      %655 = vadd.xlane.f32.xlu0 %v654
      %v656 = vpop.xlane.xlu0 %655
      %v657 = vsel %vm201, %v648, 0.0
      %658 = vadd.xlane.f32.xlu0 %v657
      %v659 = vpop.xlane.xlu0 %658
      %v660 = vsel %vm201, %v650, 0.0
      %661 = vadd.xlane.f32.xlu0 %v660
      %v662 = vpop.xlane.xlu0 %661
      %v663 = vrcp.pop %v653
      %v664 = vrcp.pop %v656
      %v665 = vrcp.pop %v659
      %v666 = vrcp.pop %v662
      %v667 = vmul.f32 %v644, %v663
      %v668 = vmul.f32 %v646, %v664
      %v669 = vmul.f32 %v648, %v665
      %v670 = vmul.f32 %v650, %v666
      %v671 = vpack.c.bf16 %v668, %v667
      %v672 = vpack.c.bf16 %v670, %v669
      %673 = vrot.lane.b32.xlu0 %v197, 64
      %v674 = vpop.permute.xlu0 %673
      %675 = vrot.lane.b32.xlu0 %v199, 64
      %v676 = vpop.permute.xlu0 %675
      %v680 = vsel %vm201, %v671, 0
      %v683 = vsel %vm201, %v672, 0
      %685 = vmatprep.subr.bf16.mxu0 0
      %686 = vmatpush1.bf16.msra.mxu0 0
      %687 = vmatprep.subr.bf16.mxu0 0
      %688 = vmatpush1.bf16.msra.mxu0 0
      %689 = vmatprep.subr.bf16.mxu0 0
      %690 = vmatpush1.bf16.msra.mxu0 0
      %691 = vmatprep.subr.bf16.mxu0 0
      %692 = vmatpush1.bf16.msra.mxu0 0
      %693 = vmatprep.subr.bf16.mxu0 0
      %694 = vmatpush1.bf16.msra.mxu0 0
      %695 = vmatprep.subr.bf16.mxu0 0
      %696 = vmatpush1.bf16.msra.mxu0 0
      %697 = vmatprep.subr.bf16.mxu0 0
      %698 = vmatpush1.bf16.msra.mxu0 %v676
      %699 = vmatprep.subr.bf16.mxu0 0
      %700 = vmatpush1.bf16.msra.mxu0 %v674
      %701 = vmatprep.subr.bf16.mxu0 0
      %702 = vmatpush2.bf16.msra.mxu0 0
      %703 = vmatprep.subr.bf16.mxu0 0
      %704 = vmatpush2.bf16.msra.mxu0 0
      %705 = vmatprep.subr.bf16.mxu0 0
      %706 = vmatpush2.bf16.msra.mxu0 0
      %707 = vmatprep.subr.bf16.mxu0 0
      %708 = vmatpush2.bf16.msra.mxu0 0
      %709 = vmatprep.subr.bf16.mxu0 0
      %710 = vmatpush2.bf16.msra.mxu0 0
      %711 = vmatprep.subr.bf16.mxu0 0
      %712 = vmatpush2.bf16.msra.mxu0 0
      %713 = vmatprep.subr.bf16.mxu0 0
      %714 = vmatpush2.bf16.msra.mxu0 0
      %715 = vmatprep.subr.bf16.mxu0 0
      %716 = vmatpush2.bf16.msra.mxu0 0
      %717 = vmatprep.mubr.bf16.mxu0 0
      %718 = vmatmul.mubr.bf16.gmra.mxu0 %v680
      %v719 = vpop.f32.mrf.mxu0
      %v720 = vadd.f32 0.0, %v719
      %v721 = vpop.f32.mrf.mxu0
      %v722 = vpop.f32.mrf.mxu0
      %v723 = vadd.f32 0.0, %v722
      %v724 = vpop.f32.mrf.mxu0
      %725 = vmatprep.mubr.bf16.mxu0 0
      %726 = vmatmul.mubr.bf16.gmra.mxu0 %v683
      %v727 = vpop.f32.mrf.mxu0
      %v728 = vadd.f32 0.0, %v727
      %v729 = vpop.f32.mrf.mxu0
      %v730 = vpop.f32.mrf.mxu0
      %v731 = vadd.f32 0.0, %v730
      %v732 = vpop.f32.mrf.mxu0
      %733 = vdwg.mxu0
      %734 = vrot.lane.b32.xlu0 %v189, 32
      %v735 = vpop.permute.xlu0 %734
      %736 = vrot.lane.b32.xlu0 %v191, 32
      %v737 = vpop.permute.xlu0 %736
      %738 = vrot.lane.b32.xlu0 %v193, 32
      %v739 = vpop.permute.xlu0 %738
      %740 = vrot.lane.b32.xlu0 %v195, 32
      %v741 = vpop.permute.xlu0 %740
      %v743 = vsel %vm201, %v735, 0
      %v746 = vsel %vm201, %v737, 0
      %v749 = vsel %vm201, %v739, 0
      %v752 = vsel %vm201, %v741, 0
      %754 = vmatprep.subr.bf16.mxu0 0
      %755 = vmatpush1.bf16.xpose.msra.mxu0 0
      %756 = vmatprep.subr.bf16.mxu0 0
      %757 = vmatpush1.bf16.xpose.msra.mxu0 0
      %758 = vmatprep.subr.bf16.mxu0 0
      %759 = vmatpush1.bf16.xpose.msra.mxu0 0
      %760 = vmatprep.subr.bf16.mxu0 0
      %761 = vmatpush1.bf16.xpose.msra.mxu0 0
      %762 = vmatprep.subr.bf16.mxu0 0
      %763 = vmatpush1.bf16.xpose.msra.mxu0 0
      %764 = vmatprep.subr.bf16.mxu0 0
      %765 = vmatpush1.bf16.xpose.msra.mxu0 0
      %766 = vmatprep.subr.bf16.mxu0 0
      %767 = vmatpush1.bf16.xpose.msra.mxu0 %v752
      %768 = vmatprep.subr.bf16.mxu0 0
      %769 = vmatpush1.bf16.xpose.msra.mxu0 %v749
      %770 = vmatprep.subr.bf16.mxu0 0
      %771 = vmatpush2.bf16.xpose.msra.mxu0 0
      %772 = vmatprep.subr.bf16.mxu0 0
      %773 = vmatpush2.bf16.xpose.msra.mxu0 0
      %774 = vmatprep.subr.bf16.mxu0 0
      %775 = vmatpush2.bf16.xpose.msra.mxu0 0
      %776 = vmatprep.subr.bf16.mxu0 0
      %777 = vmatpush2.bf16.xpose.msra.mxu0 0
      %778 = vmatprep.subr.bf16.mxu0 0
      %779 = vmatpush2.bf16.xpose.msra.mxu0 0
      %780 = vmatprep.subr.bf16.mxu0 0
      %781 = vmatpush2.bf16.xpose.msra.mxu0 0
      %782 = vmatprep.subr.bf16.mxu0 0
      %783 = vmatpush2.bf16.xpose.msra.mxu0 0
      %784 = vmatprep.subr.bf16.mxu0 0
      %785 = vmatpush2.bf16.xpose.msra.mxu0 0
      %786 = vmatprep.mubr.bf16.mxu0 0
      %787 = vmatmul.mubr.bf16.gmra.mxu0 %v743
      %v788 = vpop.f32.mrf.mxu0
      %v789 = vadd.f32 0.0, %v788
      %v790 = vpop.f32.mrf.mxu0
      %v791 = vpop.f32.mrf.mxu0
      %v792 = vadd.f32 0.0, %v791
      %v793 = vpop.f32.mrf.mxu0
      %794 = vmatprep.mubr.bf16.mxu0 0
      %795 = vmatmul.mubr.bf16.gmra.mxu0 %v746
      %v796 = vpop.f32.mrf.mxu0
      %v797 = vadd.f32 0.0, %v796
      %v798 = vpop.f32.mrf.mxu0
      %v799 = vpop.f32.mrf.mxu0
      %v800 = vadd.f32 0.0, %v799
      %v801 = vpop.f32.mrf.mxu0
      %802 = vdwg.mxu0
      %v803 = vmul.f32 %v789, 0.17677669
      %v804 = vmul.f32 %v792, 0.17677669
      %v805 = vmul.f32 %v797, 0.17677669
      %v806 = vmul.f32 %v800, 0.17677669
      %v807 = vsel %vm201, %v803, -inf
      %808 = vmax.xlane.f32.xlu0 %v807
      %v809 = vpop.xlane.xlu0 %808
      %v810 = vsel %vm201, %v804, -inf
      %811 = vmax.xlane.f32.xlu0 %v810
      %v812 = vpop.xlane.xlu0 %811
      %v813 = vsel %vm201, %v805, -inf
      %814 = vmax.xlane.f32.xlu0 %v813
      %v815 = vpop.xlane.xlu0 %814
      %v816 = vsel %vm201, %v806, -inf
      %817 = vmax.xlane.f32.xlu0 %v816
      %v818 = vpop.xlane.xlu0 %817
      %v819 = vsub.f32 %v803, %v809
      %v820 = vsub.f32 %v804, %v812
      %v821 = vsub.f32 %v805, %v815
      %v822 = vsub.f32 %v806, %v818
      %v823 = vmul.f32 %v819, 1.442695
      %v824 = vpow.pop %v823
      %v825 = vmul.f32 %v820, 1.442695
      %v826 = vpow.pop %v825
      %v827 = vmul.f32 %v821, 1.442695
      %v828 = vpow.pop %v827
      %v829 = vmul.f32 %v822, 1.442695
      %v830 = vpow.pop %v829
      %v831 = vsel %vm201, %v824, 0.0
      %832 = vadd.xlane.f32.xlu0 %v831
      %v833 = vpop.xlane.xlu0 %832
      %v834 = vsel %vm201, %v826, 0.0
      %835 = vadd.xlane.f32.xlu0 %v834
      %v836 = vpop.xlane.xlu0 %835
      %v837 = vsel %vm201, %v828, 0.0
      %838 = vadd.xlane.f32.xlu0 %v837
      %v839 = vpop.xlane.xlu0 %838
      %v840 = vsel %vm201, %v830, 0.0
      %841 = vadd.xlane.f32.xlu0 %v840
      %v842 = vpop.xlane.xlu0 %841
      %v843 = vrcp.pop %v833
      %v844 = vrcp.pop %v836
      %v845 = vrcp.pop %v839
      %v846 = vrcp.pop %v842
      %v847 = vmul.f32 %v824, %v843
      %v848 = vmul.f32 %v826, %v844
      %v849 = vmul.f32 %v828, %v845
      %v850 = vmul.f32 %v830, %v846
      %v851 = vpack.c.bf16 %v848, %v847
      %v852 = vpack.c.bf16 %v850, %v849
      %853 = vrot.lane.b32.xlu0 %v197, 32
      %v854 = vpop.permute.xlu0 %853
      %855 = vrot.lane.b32.xlu0 %v199, 32
      %v856 = vpop.permute.xlu0 %855
      %v860 = vsel %vm201, %v851, 0
      %v863 = vsel %vm201, %v852, 0
      %865 = vmatprep.subr.bf16.mxu0 0
      %866 = vmatpush1.bf16.msra.mxu0 0
      %867 = vmatprep.subr.bf16.mxu0 0
      %868 = vmatpush1.bf16.msra.mxu0 0
      %869 = vmatprep.subr.bf16.mxu0 0
      %870 = vmatpush1.bf16.msra.mxu0 0
      %871 = vmatprep.subr.bf16.mxu0 0
      %872 = vmatpush1.bf16.msra.mxu0 0
      %873 = vmatprep.subr.bf16.mxu0 0
      %874 = vmatpush1.bf16.msra.mxu0 0
      %875 = vmatprep.subr.bf16.mxu0 0
      %876 = vmatpush1.bf16.msra.mxu0 0
      %877 = vmatprep.subr.bf16.mxu0 0
      %878 = vmatpush1.bf16.msra.mxu0 %v856
      %879 = vmatprep.subr.bf16.mxu0 0
      %880 = vmatpush1.bf16.msra.mxu0 %v854
      %881 = vmatprep.subr.bf16.mxu0 0
      %882 = vmatpush2.bf16.msra.mxu0 0
      %883 = vmatprep.subr.bf16.mxu0 0
      %884 = vmatpush2.bf16.msra.mxu0 0
      %885 = vmatprep.subr.bf16.mxu0 0
      %886 = vmatpush2.bf16.msra.mxu0 0
      %887 = vmatprep.subr.bf16.mxu0 0
      %888 = vmatpush2.bf16.msra.mxu0 0
      %889 = vmatprep.subr.bf16.mxu0 0
      %890 = vmatpush2.bf16.msra.mxu0 0
      %891 = vmatprep.subr.bf16.mxu0 0
      %892 = vmatpush2.bf16.msra.mxu0 0
      %893 = vmatprep.subr.bf16.mxu0 0
      %894 = vmatpush2.bf16.msra.mxu0 0
      %895 = vmatprep.subr.bf16.mxu0 0
      %896 = vmatpush2.bf16.msra.mxu0 0
      %897 = vmatprep.mubr.bf16.mxu0 0
      %898 = vmatmul.mubr.bf16.gmra.mxu0 %v860
      %v899 = vpop.f32.mrf.mxu0
      %v900 = vadd.f32 0.0, %v899
      %v901 = vpop.f32.mrf.mxu0
      %v902 = vpop.f32.mrf.mxu0
      %v903 = vadd.f32 0.0, %v902
      %v904 = vpop.f32.mrf.mxu0
      %905 = vmatprep.mubr.bf16.mxu0 0
      %906 = vmatmul.mubr.bf16.gmra.mxu0 %v863
      %v907 = vpop.f32.mrf.mxu0
      %v908 = vadd.f32 0.0, %v907
      %v909 = vpop.f32.mrf.mxu0
      %v910 = vpop.f32.mrf.mxu0
      %v911 = vadd.f32 0.0, %v910
      %v912 = vpop.f32.mrf.mxu0
      %913 = vdwg.mxu0
      %v915 = vsel %vm201, %v190, 0
      %v918 = vsel %vm201, %v192, 0
      %v921 = vsel %vm201, %v194, 0
      %v924 = vsel %vm201, %v196, 0
      %926 = vmatprep.subr.bf16.mxu0 0
      %927 = vmatpush1.bf16.xpose.msra.mxu0 0
      %928 = vmatprep.subr.bf16.mxu0 0
      %929 = vmatpush1.bf16.xpose.msra.mxu0 0
      %930 = vmatprep.subr.bf16.mxu0 0
      %931 = vmatpush1.bf16.xpose.msra.mxu0 0
      %932 = vmatprep.subr.bf16.mxu0 0
      %933 = vmatpush1.bf16.xpose.msra.mxu0 0
      %934 = vmatprep.subr.bf16.mxu0 0
      %935 = vmatpush1.bf16.xpose.msra.mxu0 0
      %936 = vmatprep.subr.bf16.mxu0 0
      %937 = vmatpush1.bf16.xpose.msra.mxu0 0
      %938 = vmatprep.subr.bf16.mxu0 0
      %939 = vmatpush1.bf16.xpose.msra.mxu0 %v924
      %940 = vmatprep.subr.bf16.mxu0 0
      %941 = vmatpush1.bf16.xpose.msra.mxu0 %v921
      %942 = vmatprep.subr.bf16.mxu0 0
      %943 = vmatpush2.bf16.xpose.msra.mxu0 0
      %944 = vmatprep.subr.bf16.mxu0 0
      %945 = vmatpush2.bf16.xpose.msra.mxu0 0
      %946 = vmatprep.subr.bf16.mxu0 0
      %947 = vmatpush2.bf16.xpose.msra.mxu0 0
      %948 = vmatprep.subr.bf16.mxu0 0
      %949 = vmatpush2.bf16.xpose.msra.mxu0 0
      %950 = vmatprep.subr.bf16.mxu0 0
      %951 = vmatpush2.bf16.xpose.msra.mxu0 0
      %952 = vmatprep.subr.bf16.mxu0 0
      %953 = vmatpush2.bf16.xpose.msra.mxu0 0
      %954 = vmatprep.subr.bf16.mxu0 0
      %955 = vmatpush2.bf16.xpose.msra.mxu0 0
      %956 = vmatprep.subr.bf16.mxu0 0
      %957 = vmatpush2.bf16.xpose.msra.mxu0 0
      %958 = vmatprep.mubr.bf16.mxu0 0
      %959 = vmatmul.mubr.bf16.gmra.mxu0 %v915
      %v960 = vpop.f32.mrf.mxu0
      %v961 = vadd.f32 0.0, %v960
      %v962 = vpop.f32.mrf.mxu0
      %v963 = vpop.f32.mrf.mxu0
      %v964 = vadd.f32 0.0, %v963
      %v965 = vpop.f32.mrf.mxu0
      %966 = vmatprep.mubr.bf16.mxu0 0
      %967 = vmatmul.mubr.bf16.gmra.mxu0 %v918
      %v968 = vpop.f32.mrf.mxu0
      %v969 = vadd.f32 0.0, %v968
      %v970 = vpop.f32.mrf.mxu0
      %v971 = vpop.f32.mrf.mxu0
      %v972 = vadd.f32 0.0, %v971
      %v973 = vpop.f32.mrf.mxu0
      %974 = vdwg.mxu0
      %v975 = vmul.f32 %v961, 0.17677669
      %v976 = vmul.f32 %v964, 0.17677669
      %v977 = vmul.f32 %v969, 0.17677669
      %v978 = vmul.f32 %v972, 0.17677669
      %v979 = vsel %vm201, %v975, -inf
      %980 = vmax.xlane.f32.xlu0 %v979
      %v981 = vpop.xlane.xlu0 %980
      %v982 = vsel %vm201, %v976, -inf
      %983 = vmax.xlane.f32.xlu0 %v982
      %v984 = vpop.xlane.xlu0 %983
      %v985 = vsel %vm201, %v977, -inf
      %986 = vmax.xlane.f32.xlu0 %v985
      %v987 = vpop.xlane.xlu0 %986
      %v988 = vsel %vm201, %v978, -inf
      %989 = vmax.xlane.f32.xlu0 %v988
      %v990 = vpop.xlane.xlu0 %989
      %v991 = vsub.f32 %v975, %v981
      %v992 = vsub.f32 %v976, %v984
      %v993 = vsub.f32 %v977, %v987
      %v994 = vsub.f32 %v978, %v990
      %v995 = vmul.f32 %v991, 1.442695
      %v996 = vpow.pop %v995
      %v997 = vmul.f32 %v992, 1.442695
      %v998 = vpow.pop %v997
      %v999 = vmul.f32 %v993, 1.442695
      %v1000 = vpow.pop %v999
      %v1001 = vmul.f32 %v994, 1.442695
      %v1002 = vpow.pop %v1001
      %v1003 = vsel %vm201, %v996, 0.0
      %1004 = vadd.xlane.f32.xlu0 %v1003
      %v1005 = vpop.xlane.xlu0 %1004
      %v1006 = vsel %vm201, %v998, 0.0
      %1007 = vadd.xlane.f32.xlu0 %v1006
      %v1008 = vpop.xlane.xlu0 %1007
      %v1009 = vsel %vm201, %v1000, 0.0
      %1010 = vadd.xlane.f32.xlu0 %v1009
      %v1011 = vpop.xlane.xlu0 %1010
      %v1012 = vsel %vm201, %v1002, 0.0
      %1013 = vadd.xlane.f32.xlu0 %v1012
      %v1014 = vpop.xlane.xlu0 %1013
      %v1015 = vrcp.pop %v1005
      %v1016 = vrcp.pop %v1008
      %v1017 = vrcp.pop %v1011
      %v1018 = vrcp.pop %v1014
      %v1019 = vmul.f32 %v996, %v1015
      %v1020 = vmul.f32 %v998, %v1016
      %v1021 = vmul.f32 %v1000, %v1017
      %v1022 = vmul.f32 %v1002, %v1018
      %v1023 = vpack.c.bf16 %v1020, %v1019
      %v1024 = vpack.c.bf16 %v1022, %v1021
      %v1026 = vsel %vm201, %v1023, 0
      %v1029 = vsel %vm201, %v1024, 0
      %1031 = vmatprep.subr.bf16.mxu0 0
      %1032 = vmatpush1.bf16.msra.mxu0 0
      %1033 = vmatprep.subr.bf16.mxu0 0
      %1034 = vmatpush1.bf16.msra.mxu0 0
      %1035 = vmatprep.subr.bf16.mxu0 0
      %1036 = vmatpush1.bf16.msra.mxu0 0
      %1037 = vmatprep.subr.bf16.mxu0 0
      %1038 = vmatpush1.bf16.msra.mxu0 0
      %1039 = vmatprep.subr.bf16.mxu0 0
      %1040 = vmatpush1.bf16.msra.mxu0 0
      %1041 = vmatprep.subr.bf16.mxu0 0
      %1042 = vmatpush1.bf16.msra.mxu0 0
      %1043 = vmatprep.subr.bf16.mxu0 0
      %1044 = vmatpush1.bf16.msra.mxu0 %v200
      %1045 = vmatprep.subr.bf16.mxu0 0
      %1046 = vmatpush1.bf16.msra.mxu0 %v198
      %1047 = vmatprep.subr.bf16.mxu0 0
      %1048 = vmatpush2.bf16.msra.mxu0 0
      %1049 = vmatprep.subr.bf16.mxu0 0
      %1050 = vmatpush2.bf16.msra.mxu0 0
      %1051 = vmatprep.subr.bf16.mxu0 0
      %1052 = vmatpush2.bf16.msra.mxu0 0
      %1053 = vmatprep.subr.bf16.mxu0 0
      %1054 = vmatpush2.bf16.msra.mxu0 0
      %1055 = vmatprep.subr.bf16.mxu0 0
      %1056 = vmatpush2.bf16.msra.mxu0 0
      %1057 = vmatprep.subr.bf16.mxu0 0
      %1058 = vmatpush2.bf16.msra.mxu0 0
      %1059 = vmatprep.subr.bf16.mxu0 0
      %1060 = vmatpush2.bf16.msra.mxu0 0
      %1061 = vmatprep.subr.bf16.mxu0 0
      %1062 = vmatpush2.bf16.msra.mxu0 0
      %1063 = vmatprep.mubr.bf16.mxu0 0
      %1064 = vmatmul.mubr.bf16.gmra.mxu0 %v1026
      %v1065 = vpop.f32.mrf.mxu0
      %v1066 = vadd.f32 0.0, %v1065
      %v1067 = vpop.f32.mrf.mxu0
      %v1068 = vpop.f32.mrf.mxu0
      %v1069 = vadd.f32 0.0, %v1068
      %v1070 = vpop.f32.mrf.mxu0
      %1071 = vmatprep.mubr.bf16.mxu0 0
      %1072 = vmatmul.mubr.bf16.gmra.mxu0 %v1029
      %v1073 = vpop.f32.mrf.mxu0
      %v1074 = vadd.f32 0.0, %v1073
      %v1075 = vpop.f32.mrf.mxu0
      %v1076 = vpop.f32.mrf.mxu0
      %v1077 = vadd.f32 0.0, %v1076
      %v1078 = vpop.f32.mrf.mxu0
      %1079 = vdwg.mxu0
      %1082 = vrot.lane.b32.xlu0 %v190, 96
      %v1083 = vpop.permute.xlu0 %1082
      %1084 = vrot.lane.b32.xlu0 %v192, 96
      %v1085 = vpop.permute.xlu0 %1084
      %1088 = vrot.lane.b32.xlu0 %v194, 96
      %v1089 = vpop.permute.xlu0 %1088
      %1090 = vrot.lane.b32.xlu0 %v196, 96
      %v1091 = vpop.permute.xlu0 %1090
      %v1093 = vsel %vm201, %v1083, 0
      %v1096 = vsel %vm201, %v1085, 0
      %v1099 = vsel %vm201, %v1089, 0
      %v1102 = vsel %vm201, %v1091, 0
      %1104 = vmatprep.subr.bf16.mxu0 0
      %1105 = vmatpush1.bf16.xpose.msra.mxu0 0
      %1106 = vmatprep.subr.bf16.mxu0 0
      %1107 = vmatpush1.bf16.xpose.msra.mxu0 0
      %1108 = vmatprep.subr.bf16.mxu0 0
      %1109 = vmatpush1.bf16.xpose.msra.mxu0 0
      %1110 = vmatprep.subr.bf16.mxu0 0
      %1111 = vmatpush1.bf16.xpose.msra.mxu0 0
      %1112 = vmatprep.subr.bf16.mxu0 0
      %1113 = vmatpush1.bf16.xpose.msra.mxu0 0
      %1114 = vmatprep.subr.bf16.mxu0 0
      %1115 = vmatpush1.bf16.xpose.msra.mxu0 0
      %1116 = vmatprep.subr.bf16.mxu0 0
      %1117 = vmatpush1.bf16.xpose.msra.mxu0 %v1102
      %1118 = vmatprep.subr.bf16.mxu0 0
      %1119 = vmatpush1.bf16.xpose.msra.mxu0 %v1099
      %1120 = vmatprep.subr.bf16.mxu0 0
      %1121 = vmatpush2.bf16.xpose.msra.mxu0 0
      %1122 = vmatprep.subr.bf16.mxu0 0
      %1123 = vmatpush2.bf16.xpose.msra.mxu0 0
      %1124 = vmatprep.subr.bf16.mxu0 0
      %1125 = vmatpush2.bf16.xpose.msra.mxu0 0
      %1126 = vmatprep.subr.bf16.mxu0 0
      %1127 = vmatpush2.bf16.xpose.msra.mxu0 0
      %1128 = vmatprep.subr.bf16.mxu0 0
      %1129 = vmatpush2.bf16.xpose.msra.mxu0 0
      %1130 = vmatprep.subr.bf16.mxu0 0
      %1131 = vmatpush2.bf16.xpose.msra.mxu0 0
      %1132 = vmatprep.subr.bf16.mxu0 0
      %1133 = vmatpush2.bf16.xpose.msra.mxu0 0
      %1134 = vmatprep.subr.bf16.mxu0 0
      %1135 = vmatpush2.bf16.xpose.msra.mxu0 0
      %1136 = vmatprep.mubr.bf16.mxu0 0
      %1137 = vmatmul.mubr.bf16.gmra.mxu0 %v1093
      %v1138 = vpop.f32.mrf.mxu0
      %v1139 = vadd.f32 0.0, %v1138
      %v1140 = vpop.f32.mrf.mxu0
      %v1141 = vpop.f32.mrf.mxu0
      %v1142 = vadd.f32 0.0, %v1141
      %v1143 = vpop.f32.mrf.mxu0
      %1144 = vmatprep.mubr.bf16.mxu0 0
      %1145 = vmatmul.mubr.bf16.gmra.mxu0 %v1096
      %v1146 = vpop.f32.mrf.mxu0
      %v1147 = vadd.f32 0.0, %v1146
      %v1148 = vpop.f32.mrf.mxu0
      %v1149 = vpop.f32.mrf.mxu0
      %v1150 = vadd.f32 0.0, %v1149
      %v1151 = vpop.f32.mrf.mxu0
      %1152 = vdwg.mxu0
      %v1153 = vmul.f32 %v1139, 0.17677669
      %v1154 = vmul.f32 %v1142, 0.17677669
      %v1155 = vmul.f32 %v1147, 0.17677669
      %v1156 = vmul.f32 %v1150, 0.17677669
      %v1157 = vsel %vm201, %v1153, -inf
      %1158 = vmax.xlane.f32.xlu0 %v1157
      %v1159 = vpop.xlane.xlu0 %1158
      %v1160 = vsel %vm201, %v1154, -inf
      %1161 = vmax.xlane.f32.xlu0 %v1160
      %v1162 = vpop.xlane.xlu0 %1161
      %v1163 = vsel %vm201, %v1155, -inf
      %1164 = vmax.xlane.f32.xlu0 %v1163
      %v1165 = vpop.xlane.xlu0 %1164
      %v1166 = vsel %vm201, %v1156, -inf
      %1167 = vmax.xlane.f32.xlu0 %v1166
      %v1168 = vpop.xlane.xlu0 %1167
      %v1169 = vsub.f32 %v1153, %v1159
      %v1170 = vsub.f32 %v1154, %v1162
      %v1171 = vsub.f32 %v1155, %v1165
      %v1172 = vsub.f32 %v1156, %v1168
      %v1173 = vmul.f32 %v1169, 1.442695
      %v1174 = vpow.pop %v1173
      %v1175 = vmul.f32 %v1170, 1.442695
      %v1176 = vpow.pop %v1175
      %v1177 = vmul.f32 %v1171, 1.442695
      %v1178 = vpow.pop %v1177
      %v1179 = vmul.f32 %v1172, 1.442695
      %v1180 = vpow.pop %v1179
      %v1181 = vsel %vm201, %v1174, 0.0
      %1182 = vadd.xlane.f32.xlu0 %v1181
      %v1183 = vpop.xlane.xlu0 %1182
      %v1184 = vsel %vm201, %v1176, 0.0
      %1185 = vadd.xlane.f32.xlu0 %v1184
      %v1186 = vpop.xlane.xlu0 %1185
      %v1187 = vsel %vm201, %v1178, 0.0
      %1188 = vadd.xlane.f32.xlu0 %v1187
      %v1189 = vpop.xlane.xlu0 %1188
      %v1190 = vsel %vm201, %v1180, 0.0
      %1191 = vadd.xlane.f32.xlu0 %v1190
      %v1192 = vpop.xlane.xlu0 %1191
      %v1193 = vrcp.pop %v1183
      %v1194 = vrcp.pop %v1186
      %v1195 = vrcp.pop %v1189
      %v1196 = vrcp.pop %v1192
      %v1197 = vmul.f32 %v1174, %v1193
      %v1198 = vmul.f32 %v1176, %v1194
      %v1199 = vmul.f32 %v1178, %v1195
      %v1200 = vmul.f32 %v1180, %v1196
      %v1201 = vpack.c.bf16 %v1198, %v1197
      %v1202 = vpack.c.bf16 %v1200, %v1199
      %1205 = vrot.lane.b32.xlu0 %v198, 96
      %v1206 = vpop.permute.xlu0 %1205
      %1207 = vrot.lane.b32.xlu0 %v200, 96
      %v1208 = vpop.permute.xlu0 %1207
      %v1212 = vsel %vm201, %v1201, 0
      %v1215 = vsel %vm201, %v1202, 0
      %1217 = vmatprep.subr.bf16.mxu0 0
      %1218 = vmatpush1.bf16.msra.mxu0 0
      %1219 = vmatprep.subr.bf16.mxu0 0
      %1220 = vmatpush1.bf16.msra.mxu0 0
      %1221 = vmatprep.subr.bf16.mxu0 0
      %1222 = vmatpush1.bf16.msra.mxu0 0
      %1223 = vmatprep.subr.bf16.mxu0 0
      %1224 = vmatpush1.bf16.msra.mxu0 0
      %1225 = vmatprep.subr.bf16.mxu0 0
      %1226 = vmatpush1.bf16.msra.mxu0 0
      %1227 = vmatprep.subr.bf16.mxu0 0
      %1228 = vmatpush1.bf16.msra.mxu0 0
      %1229 = vmatprep.subr.bf16.mxu0 0
      %1230 = vmatpush1.bf16.msra.mxu0 %v1208
      %1231 = vmatprep.subr.bf16.mxu0 0
      %1232 = vmatpush1.bf16.msra.mxu0 %v1206
      %1233 = vmatprep.subr.bf16.mxu0 0
      %1234 = vmatpush2.bf16.msra.mxu0 0
      %1235 = vmatprep.subr.bf16.mxu0 0
      %1236 = vmatpush2.bf16.msra.mxu0 0
      %1237 = vmatprep.subr.bf16.mxu0 0
      %1238 = vmatpush2.bf16.msra.mxu0 0
      %1239 = vmatprep.subr.bf16.mxu0 0
      %1240 = vmatpush2.bf16.msra.mxu0 0
      %1241 = vmatprep.subr.bf16.mxu0 0
      %1242 = vmatpush2.bf16.msra.mxu0 0
      %1243 = vmatprep.subr.bf16.mxu0 0
      %1244 = vmatpush2.bf16.msra.mxu0 0
      %1245 = vmatprep.subr.bf16.mxu0 0
      %1246 = vmatpush2.bf16.msra.mxu0 0
      %1247 = vmatprep.subr.bf16.mxu0 0
      %1248 = vmatpush2.bf16.msra.mxu0 0
      %1249 = vmatprep.mubr.bf16.mxu0 0
      %1250 = vmatmul.mubr.bf16.gmra.mxu0 %v1212
      %v1251 = vpop.f32.mrf.mxu0
      %v1252 = vadd.f32 0.0, %v1251
      %v1253 = vpop.f32.mrf.mxu0
      %v1254 = vpop.f32.mrf.mxu0
      %v1255 = vadd.f32 0.0, %v1254
      %v1256 = vpop.f32.mrf.mxu0
      %1257 = vmatprep.mubr.bf16.mxu0 0
      %1258 = vmatmul.mubr.bf16.gmra.mxu0 %v1215
      %v1259 = vpop.f32.mrf.mxu0
      %v1260 = vadd.f32 0.0, %v1259
      %v1261 = vpop.f32.mrf.mxu0
      %v1262 = vpop.f32.mrf.mxu0
      %v1263 = vadd.f32 0.0, %v1262
      %v1264 = vpop.f32.mrf.mxu0
      %1265 = vdwg.mxu0
      %1266 = vrot.lane.b32.xlu0 %v190, 64
      %v1267 = vpop.permute.xlu0 %1266
      %1268 = vrot.lane.b32.xlu0 %v192, 64
      %v1269 = vpop.permute.xlu0 %1268
      %1270 = vrot.lane.b32.xlu0 %v194, 64
      %v1271 = vpop.permute.xlu0 %1270
      %1272 = vrot.lane.b32.xlu0 %v196, 64
      %v1273 = vpop.permute.xlu0 %1272
      %v1275 = vsel %vm201, %v1267, 0
      %v1278 = vsel %vm201, %v1269, 0
      %v1281 = vsel %vm201, %v1271, 0
      %v1284 = vsel %vm201, %v1273, 0
      %1286 = vmatprep.subr.bf16.mxu0 0
      %1287 = vmatpush1.bf16.xpose.msra.mxu0 0
      %1288 = vmatprep.subr.bf16.mxu0 0
      %1289 = vmatpush1.bf16.xpose.msra.mxu0 0
      %1290 = vmatprep.subr.bf16.mxu0 0
      %1291 = vmatpush1.bf16.xpose.msra.mxu0 0
      %1292 = vmatprep.subr.bf16.mxu0 0
      %1293 = vmatpush1.bf16.xpose.msra.mxu0 0
      %1294 = vmatprep.subr.bf16.mxu0 0
      %1295 = vmatpush1.bf16.xpose.msra.mxu0 0
      %1296 = vmatprep.subr.bf16.mxu0 0
      %1297 = vmatpush1.bf16.xpose.msra.mxu0 0
      %1298 = vmatprep.subr.bf16.mxu0 0
      %1299 = vmatpush1.bf16.xpose.msra.mxu0 %v1284
      %1300 = vmatprep.subr.bf16.mxu0 0
      %1301 = vmatpush1.bf16.xpose.msra.mxu0 %v1281
      %1302 = vmatprep.subr.bf16.mxu0 0
      %1303 = vmatpush2.bf16.xpose.msra.mxu0 0
      %1304 = vmatprep.subr.bf16.mxu0 0
      %1305 = vmatpush2.bf16.xpose.msra.mxu0 0
      %1306 = vmatprep.subr.bf16.mxu0 0
      %1307 = vmatpush2.bf16.xpose.msra.mxu0 0
      %1308 = vmatprep.subr.bf16.mxu0 0
      %1309 = vmatpush2.bf16.xpose.msra.mxu0 0
      %1310 = vmatprep.subr.bf16.mxu0 0
      %1311 = vmatpush2.bf16.xpose.msra.mxu0 0
      %1312 = vmatprep.subr.bf16.mxu0 0
      %1313 = vmatpush2.bf16.xpose.msra.mxu0 0
      %1314 = vmatprep.subr.bf16.mxu0 0
      %1315 = vmatpush2.bf16.xpose.msra.mxu0 0
      %1316 = vmatprep.subr.bf16.mxu0 0
      %1317 = vmatpush2.bf16.xpose.msra.mxu0 0
      %1318 = vmatprep.mubr.bf16.mxu0 0
      %1319 = vmatmul.mubr.bf16.gmra.mxu0 %v1275
      %v1320 = vpop.f32.mrf.mxu0
      %v1321 = vadd.f32 0.0, %v1320
      %v1322 = vpop.f32.mrf.mxu0
      %v1323 = vpop.f32.mrf.mxu0
      %v1324 = vadd.f32 0.0, %v1323
      %v1325 = vpop.f32.mrf.mxu0
      %1326 = vmatprep.mubr.bf16.mxu0 0
      %1327 = vmatmul.mubr.bf16.gmra.mxu0 %v1278
      %v1328 = vpop.f32.mrf.mxu0
      %v1329 = vadd.f32 0.0, %v1328
      %v1330 = vpop.f32.mrf.mxu0
      %v1331 = vpop.f32.mrf.mxu0
      %v1332 = vadd.f32 0.0, %v1331
      %v1333 = vpop.f32.mrf.mxu0
      %1334 = vdwg.mxu0
      %v1335 = vmul.f32 %v1321, 0.17677669
      %v1336 = vmul.f32 %v1324, 0.17677669
      %v1337 = vmul.f32 %v1329, 0.17677669
      %v1338 = vmul.f32 %v1332, 0.17677669
      %v1339 = vsel %vm201, %v1335, -inf
      %1340 = vmax.xlane.f32.xlu0 %v1339
      %v1341 = vpop.xlane.xlu0 %1340
      %v1342 = vsel %vm201, %v1336, -inf
      %1343 = vmax.xlane.f32.xlu0 %v1342
      %v1344 = vpop.xlane.xlu0 %1343
      %v1345 = vsel %vm201, %v1337, -inf
      %1346 = vmax.xlane.f32.xlu0 %v1345
      %v1347 = vpop.xlane.xlu0 %1346
      %v1348 = vsel %vm201, %v1338, -inf
      %1349 = vmax.xlane.f32.xlu0 %v1348
      %v1350 = vpop.xlane.xlu0 %1349
      %v1351 = vsub.f32 %v1335, %v1341
      %v1352 = vsub.f32 %v1336, %v1344
      %v1353 = vsub.f32 %v1337, %v1347
      %v1354 = vsub.f32 %v1338, %v1350
      %v1355 = vmul.f32 %v1351, 1.442695
      %v1356 = vpow.pop %v1355
      %v1357 = vmul.f32 %v1352, 1.442695
      %v1358 = vpow.pop %v1357
      %v1359 = vmul.f32 %v1353, 1.442695
      %v1360 = vpow.pop %v1359
      %v1361 = vmul.f32 %v1354, 1.442695
      %v1362 = vpow.pop %v1361
      %v1363 = vsel %vm201, %v1356, 0.0
      %1364 = vadd.xlane.f32.xlu0 %v1363
      %v1365 = vpop.xlane.xlu0 %1364
      %v1366 = vsel %vm201, %v1358, 0.0
      %1367 = vadd.xlane.f32.xlu0 %v1366
      %v1368 = vpop.xlane.xlu0 %1367
      %v1369 = vsel %vm201, %v1360, 0.0
      %1370 = vadd.xlane.f32.xlu0 %v1369
      %v1371 = vpop.xlane.xlu0 %1370
      %v1372 = vsel %vm201, %v1362, 0.0
      %1373 = vadd.xlane.f32.xlu0 %v1372
      %v1374 = vpop.xlane.xlu0 %1373
      %v1375 = vrcp.pop %v1365
      %v1376 = vrcp.pop %v1368
      %v1377 = vrcp.pop %v1371
      %v1378 = vrcp.pop %v1374
      %v1379 = vmul.f32 %v1356, %v1375
      %v1380 = vmul.f32 %v1358, %v1376
      %v1381 = vmul.f32 %v1360, %v1377
      %v1382 = vmul.f32 %v1362, %v1378
      %v1383 = vpack.c.bf16 %v1380, %v1379
      %v1384 = vpack.c.bf16 %v1382, %v1381
      %1385 = vrot.lane.b32.xlu0 %v198, 64
      %v1386 = vpop.permute.xlu0 %1385
      %1387 = vrot.lane.b32.xlu0 %v200, 64
      %v1388 = vpop.permute.xlu0 %1387
      %v1392 = vsel %vm201, %v1383, 0
      %v1395 = vsel %vm201, %v1384, 0
      %1397 = vmatprep.subr.bf16.mxu0 0
      %1398 = vmatpush1.bf16.msra.mxu0 0
      %1399 = vmatprep.subr.bf16.mxu0 0
      %1400 = vmatpush1.bf16.msra.mxu0 0
      %1401 = vmatprep.subr.bf16.mxu0 0
      %1402 = vmatpush1.bf16.msra.mxu0 0
      %1403 = vmatprep.subr.bf16.mxu0 0
      %1404 = vmatpush1.bf16.msra.mxu0 0
      %1405 = vmatprep.subr.bf16.mxu0 0
      %1406 = vmatpush1.bf16.msra.mxu0 0
      %1407 = vmatprep.subr.bf16.mxu0 0
      %1408 = vmatpush1.bf16.msra.mxu0 0
      %1409 = vmatprep.subr.bf16.mxu0 0
      %1410 = vmatpush1.bf16.msra.mxu0 %v1388
      %1411 = vmatprep.subr.bf16.mxu0 0
      %1412 = vmatpush1.bf16.msra.mxu0 %v1386
      %1413 = vmatprep.subr.bf16.mxu0 0
      %1414 = vmatpush2.bf16.msra.mxu0 0
      %1415 = vmatprep.subr.bf16.mxu0 0
      %1416 = vmatpush2.bf16.msra.mxu0 0
      %1417 = vmatprep.subr.bf16.mxu0 0
      %1418 = vmatpush2.bf16.msra.mxu0 0
      %1419 = vmatprep.subr.bf16.mxu0 0
      %1420 = vmatpush2.bf16.msra.mxu0 0
      %1421 = vmatprep.subr.bf16.mxu0 0
      %1422 = vmatpush2.bf16.msra.mxu0 0
      %1423 = vmatprep.subr.bf16.mxu0 0
      %1424 = vmatpush2.bf16.msra.mxu0 0
      %1425 = vmatprep.subr.bf16.mxu0 0
      %1426 = vmatpush2.bf16.msra.mxu0 0
      %1427 = vmatprep.subr.bf16.mxu0 0
      %1428 = vmatpush2.bf16.msra.mxu0 0
      %1429 = vmatprep.mubr.bf16.mxu0 0
      %1430 = vmatmul.mubr.bf16.gmra.mxu0 %v1392
      %v1431 = vpop.f32.mrf.mxu0
      %v1432 = vadd.f32 0.0, %v1431
      %v1433 = vpop.f32.mrf.mxu0
      %v1434 = vpop.f32.mrf.mxu0
      %v1435 = vadd.f32 0.0, %v1434
      %v1436 = vpop.f32.mrf.mxu0
      %1437 = vmatprep.mubr.bf16.mxu0 0
      %1438 = vmatmul.mubr.bf16.gmra.mxu0 %v1395
      %v1439 = vpop.f32.mrf.mxu0
      %v1440 = vadd.f32 0.0, %v1439
      %v1441 = vpop.f32.mrf.mxu0
      %v1442 = vpop.f32.mrf.mxu0
      %v1443 = vadd.f32 0.0, %v1442
      %v1444 = vpop.f32.mrf.mxu0
      %1445 = vdwg.mxu0
      %1446 = vrot.lane.b32.xlu0 %v190, 32
      %v1447 = vpop.permute.xlu0 %1446
      %1448 = vrot.lane.b32.xlu0 %v192, 32
      %v1449 = vpop.permute.xlu0 %1448
      %1450 = vrot.lane.b32.xlu0 %v194, 32
      %v1451 = vpop.permute.xlu0 %1450
      %1452 = vrot.lane.b32.xlu0 %v196, 32
      %v1453 = vpop.permute.xlu0 %1452
      %v1455 = vsel %vm201, %v1447, 0
      %v1458 = vsel %vm201, %v1449, 0
      %v1461 = vsel %vm201, %v1451, 0
      %v1464 = vsel %vm201, %v1453, 0
      %1466 = vmatprep.subr.bf16.mxu0 0
      %1467 = vmatpush1.bf16.xpose.msra.mxu0 0
      %1468 = vmatprep.subr.bf16.mxu0 0
      %1469 = vmatpush1.bf16.xpose.msra.mxu0 0
      %1470 = vmatprep.subr.bf16.mxu0 0
      %1471 = vmatpush1.bf16.xpose.msra.mxu0 0
      %1472 = vmatprep.subr.bf16.mxu0 0
      %1473 = vmatpush1.bf16.xpose.msra.mxu0 0
      %1474 = vmatprep.subr.bf16.mxu0 0
      %1475 = vmatpush1.bf16.xpose.msra.mxu0 0
      %1476 = vmatprep.subr.bf16.mxu0 0
      %1477 = vmatpush1.bf16.xpose.msra.mxu0 0
      %1478 = vmatprep.subr.bf16.mxu0 0
      %1479 = vmatpush1.bf16.xpose.msra.mxu0 %v1464
      %1480 = vmatprep.subr.bf16.mxu0 0
      %1481 = vmatpush1.bf16.xpose.msra.mxu0 %v1461
      %1482 = vmatprep.subr.bf16.mxu0 0
      %1483 = vmatpush2.bf16.xpose.msra.mxu0 0
      %1484 = vmatprep.subr.bf16.mxu0 0
      %1485 = vmatpush2.bf16.xpose.msra.mxu0 0
      %1486 = vmatprep.subr.bf16.mxu0 0
      %1487 = vmatpush2.bf16.xpose.msra.mxu0 0
      %1488 = vmatprep.subr.bf16.mxu0 0
      %1489 = vmatpush2.bf16.xpose.msra.mxu0 0
      %1490 = vmatprep.subr.bf16.mxu0 0
      %1491 = vmatpush2.bf16.xpose.msra.mxu0 0
      %1492 = vmatprep.subr.bf16.mxu0 0
      %1493 = vmatpush2.bf16.xpose.msra.mxu0 0
      %1494 = vmatprep.subr.bf16.mxu0 0
      %1495 = vmatpush2.bf16.xpose.msra.mxu0 0
      %1496 = vmatprep.subr.bf16.mxu0 0
      %1497 = vmatpush2.bf16.xpose.msra.mxu0 0
      %1498 = vmatprep.mubr.bf16.mxu0 0
      %1499 = vmatmul.mubr.bf16.gmra.mxu0 %v1455
      %v1500 = vpop.f32.mrf.mxu0
      %v1501 = vadd.f32 0.0, %v1500
      %v1502 = vpop.f32.mrf.mxu0
      %v1503 = vpop.f32.mrf.mxu0
      %v1504 = vadd.f32 0.0, %v1503
      %v1505 = vpop.f32.mrf.mxu0
      %1506 = vmatprep.mubr.bf16.mxu0 0
      %1507 = vmatmul.mubr.bf16.gmra.mxu0 %v1458
      %v1508 = vpop.f32.mrf.mxu0
      %v1509 = vadd.f32 0.0, %v1508
      %v1510 = vpop.f32.mrf.mxu0
      %v1511 = vpop.f32.mrf.mxu0
      %v1512 = vadd.f32 0.0, %v1511
      %v1513 = vpop.f32.mrf.mxu0
      %1514 = vdwg.mxu0
      %v1515 = vmul.f32 %v1501, 0.17677669
      %v1516 = vmul.f32 %v1504, 0.17677669
      %v1517 = vmul.f32 %v1509, 0.17677669
      %v1518 = vmul.f32 %v1512, 0.17677669
      %v1519 = vsel %vm201, %v1515, -inf
      %1520 = vmax.xlane.f32.xlu0 %v1519
      %v1521 = vpop.xlane.xlu0 %1520
      %v1522 = vsel %vm201, %v1516, -inf
      %1523 = vmax.xlane.f32.xlu0 %v1522
      %v1524 = vpop.xlane.xlu0 %1523
      %v1525 = vsel %vm201, %v1517, -inf
      %1526 = vmax.xlane.f32.xlu0 %v1525
      %v1527 = vpop.xlane.xlu0 %1526
      %v1528 = vsel %vm201, %v1518, -inf
      %1529 = vmax.xlane.f32.xlu0 %v1528
      %v1530 = vpop.xlane.xlu0 %1529
      %v1531 = vsub.f32 %v1515, %v1521
      %v1532 = vsub.f32 %v1516, %v1524
      %v1533 = vsub.f32 %v1517, %v1527
      %v1534 = vsub.f32 %v1518, %v1530
      %v1535 = vmul.f32 %v1531, 1.442695
      %v1536 = vpow.pop %v1535
      %v1537 = vmul.f32 %v1532, 1.442695
      %v1538 = vpow.pop %v1537
      %v1539 = vmul.f32 %v1533, 1.442695
      %v1540 = vpow.pop %v1539
      %v1541 = vmul.f32 %v1534, 1.442695
      %v1542 = vpow.pop %v1541
      %v1543 = vsel %vm201, %v1536, 0.0
      %1544 = vadd.xlane.f32.xlu0 %v1543
      %v1545 = vpop.xlane.xlu0 %1544
      %v1546 = vsel %vm201, %v1538, 0.0
      %1547 = vadd.xlane.f32.xlu0 %v1546
      %v1548 = vpop.xlane.xlu0 %1547
      %v1549 = vsel %vm201, %v1540, 0.0
      %1550 = vadd.xlane.f32.xlu0 %v1549
      %v1551 = vpop.xlane.xlu0 %1550
      %v1552 = vsel %vm201, %v1542, 0.0
      %1553 = vadd.xlane.f32.xlu0 %v1552
      %v1554 = vpop.xlane.xlu0 %1553
      %v1555 = vrcp.pop %v1545
      %v1556 = vrcp.pop %v1548
      %v1557 = vrcp.pop %v1551
      %v1558 = vrcp.pop %v1554
      %v1559 = vmul.f32 %v1536, %v1555
      %v1560 = vmul.f32 %v1538, %v1556
      %v1561 = vmul.f32 %v1540, %v1557
      %v1562 = vmul.f32 %v1542, %v1558
      %v1563 = vpack.c.bf16 %v1560, %v1559
      %v1564 = vpack.c.bf16 %v1562, %v1561
      %1565 = vrot.lane.b32.xlu0 %v198, 32
      %v1566 = vpop.permute.xlu0 %1565
      %1567 = vrot.lane.b32.xlu0 %v200, 32
      %v1568 = vpop.permute.xlu0 %1567
      %v1572 = vsel %vm201, %v1563, 0
      %v1575 = vsel %vm201, %v1564, 0
      %1577 = vmatprep.subr.bf16.mxu0 0
      %1578 = vmatpush1.bf16.msra.mxu0 0
      %1579 = vmatprep.subr.bf16.mxu0 0
      %1580 = vmatpush1.bf16.msra.mxu0 0
      %1581 = vmatprep.subr.bf16.mxu0 0
      %1582 = vmatpush1.bf16.msra.mxu0 0
      %1583 = vmatprep.subr.bf16.mxu0 0
      %1584 = vmatpush1.bf16.msra.mxu0 0
      %1585 = vmatprep.subr.bf16.mxu0 0
      %1586 = vmatpush1.bf16.msra.mxu0 0
      %1587 = vmatprep.subr.bf16.mxu0 0
      %1588 = vmatpush1.bf16.msra.mxu0 0
      %1589 = vmatprep.subr.bf16.mxu0 0
      %1590 = vmatpush1.bf16.msra.mxu0 %v1568
      %1591 = vmatprep.subr.bf16.mxu0 0
      %1592 = vmatpush1.bf16.msra.mxu0 %v1566
      %1593 = vmatprep.subr.bf16.mxu0 0
      %1594 = vmatpush2.bf16.msra.mxu0 0
      %1595 = vmatprep.subr.bf16.mxu0 0
      %1596 = vmatpush2.bf16.msra.mxu0 0
      %1597 = vmatprep.subr.bf16.mxu0 0
      %1598 = vmatpush2.bf16.msra.mxu0 0
      %1599 = vmatprep.subr.bf16.mxu0 0
      %1600 = vmatpush2.bf16.msra.mxu0 0
      %1601 = vmatprep.subr.bf16.mxu0 0
      %1602 = vmatpush2.bf16.msra.mxu0 0
      %1603 = vmatprep.subr.bf16.mxu0 0
      %1604 = vmatpush2.bf16.msra.mxu0 0
      %1605 = vmatprep.subr.bf16.mxu0 0
      %1606 = vmatpush2.bf16.msra.mxu0 0
      %1607 = vmatprep.subr.bf16.mxu0 0
      %1608 = vmatpush2.bf16.msra.mxu0 0
      %1609 = vmatprep.mubr.bf16.mxu0 0
      %1610 = vmatmul.mubr.bf16.gmra.mxu0 %v1572
      %v1611 = vpop.f32.mrf.mxu0
      %v1612 = vadd.f32 0.0, %v1611
      %v1613 = vpop.f32.mrf.mxu0
      %v1614 = vpop.f32.mrf.mxu0
      %v1615 = vadd.f32 0.0, %v1614
      %v1616 = vpop.f32.mrf.mxu0
      %1617 = vmatprep.mubr.bf16.mxu0 0
      %1618 = vmatmul.mubr.bf16.gmra.mxu0 %v1575
      %v1619 = vpop.f32.mrf.mxu0
      %v1620 = vadd.f32 0.0, %v1619
      %v1621 = vpop.f32.mrf.mxu0
      %v1622 = vpop.f32.mrf.mxu0
      %v1623 = vadd.f32 0.0, %v1622
      %v1624 = vpop.f32.mrf.mxu0
      %1625 = vdwg.mxu0
      %1630 = vrot.lane.b32.xlu0 %v540, 32
      %v1631 = vpop.permute.xlu0 %1630
      %1632 = vrot.lane.b32.xlu0 %v543, 32
      %v1633 = vpop.permute.xlu0 %1632
      %1634 = vrot.lane.b32.xlu0 %v548, 32
      %v1635 = vpop.permute.xlu0 %1634
      %1636 = vrot.lane.b32.xlu0 %v551, 32
      %v1637 = vpop.permute.xlu0 %1636
      %1646 = vrot.lane.b32.xlu0 %v720, 64
      %v1647 = vpop.permute.xlu0 %1646
      %1648 = vrot.lane.b32.xlu0 %v723, 64
      %v1649 = vpop.permute.xlu0 %1648
      %1650 = vrot.lane.b32.xlu0 %v728, 64
      %v1651 = vpop.permute.xlu0 %1650
      %1652 = vrot.lane.b32.xlu0 %v731, 64
      %v1653 = vpop.permute.xlu0 %1652
      %1662 = vrot.lane.b32.xlu0 %v900, 96
      %v1663 = vpop.permute.xlu0 %1662
      %1664 = vrot.lane.b32.xlu0 %v903, 96
      %v1665 = vpop.permute.xlu0 %1664
      %1666 = vrot.lane.b32.xlu0 %v908, 96
      %v1667 = vpop.permute.xlu0 %1666
      %1668 = vrot.lane.b32.xlu0 %v911, 96
      %v1669 = vpop.permute.xlu0 %1668
      %1678 = vrot.lane.b32.xlu0 %v1252, 32
      %v1679 = vpop.permute.xlu0 %1678
      %1680 = vrot.lane.b32.xlu0 %v1255, 32
      %v1681 = vpop.permute.xlu0 %1680
      %1682 = vrot.lane.b32.xlu0 %v1260, 32
      %v1683 = vpop.permute.xlu0 %1682
      %1684 = vrot.lane.b32.xlu0 %v1263, 32
      %v1685 = vpop.permute.xlu0 %1684
      %1694 = vrot.lane.b32.xlu0 %v1432, 64
      %v1695 = vpop.permute.xlu0 %1694
      %1696 = vrot.lane.b32.xlu0 %v1435, 64
      %v1697 = vpop.permute.xlu0 %1696
      %1698 = vrot.lane.b32.xlu0 %v1440, 64
      %v1699 = vpop.permute.xlu0 %1698
      %1700 = vrot.lane.b32.xlu0 %v1443, 64
      %v1701 = vpop.permute.xlu0 %1700
      %1710 = vrot.lane.b32.xlu0 %v1612, 96
      %v1711 = vpop.permute.xlu0 %1710
      %1712 = vrot.lane.b32.xlu0 %v1615, 96
      %v1713 = vpop.permute.xlu0 %1712
      %1714 = vrot.lane.b32.xlu0 %v1620, 96
      %v1715 = vpop.permute.xlu0 %1714
      %1716 = vrot.lane.b32.xlu0 %v1623, 96
      %v1717 = vpop.permute.xlu0 %1716
      %v1722 = vsel %vm201, %v354, %v1631
      %v1723 = vsel %vm201, %v357, %v1633
      %v1724 = vsel %vm201, %v362, %v1635
      %v1725 = vsel %vm201, %v365, %v1637
      %vm1726 = vcmask 523264
      %v1727 = vsel %vm1726, %v1722, %v1647
      %v1728 = vsel %vm1726, %v1723, %v1649
      %v1729 = vsel %vm1726, %v1724, %v1651
      %v1730 = vsel %vm1726, %v1725, %v1653
      %vm1731 = vcmask 785408
      %v1732 = vsel %vm1731, %v1727, %v1663
      %v1733 = vsel %vm1731, %v1728, %v1665
      %v1734 = vsel %vm1731, %v1729, %v1667
      %v1735 = vsel %vm1731, %v1730, %v1669
      %v1736 = vsel %vm201, %v1066, %v1679
      %v1737 = vsel %vm201, %v1069, %v1681
      %v1738 = vsel %vm201, %v1074, %v1683
      %v1739 = vsel %vm201, %v1077, %v1685
      %v1740 = vsel %vm1726, %v1736, %v1695
      %v1741 = vsel %vm1726, %v1737, %v1697
      %v1742 = vsel %vm1726, %v1738, %v1699
      %v1743 = vsel %vm1726, %v1739, %v1701
      %v1744 = vsel %vm1731, %v1740, %v1711
      %v1745 = vsel %vm1731, %v1741, %v1713
      %v1746 = vsel %vm1731, %v1742, %v1715
      %v1747 = vsel %vm1731, %v1743, %v1717
      %1748 = vst [vmem:[%s163] sm:$0xff] %v1732
      %1749 = vst [vmem:[%s163 + $0x8] sm:$0xff] %v1744
      %1750 = vst [vmem:[%s163 + $0x10] sm:$0xff] %v1733
      %1751 = vst [vmem:[%s163 + $0x18] sm:$0xff] %v1745
      %1752 = vst [vmem:[%s163 + $0x20] sm:$0xff] %v1734
      %1753 = vst [vmem:[%s163 + $0x28] sm:$0xff] %v1746
      %1754 = vst [vmem:[%s163 + $0x30] sm:$0xff] %v1735
      %1755 = vst [vmem:[%s163 + $0x38] sm:$0xff] %v1747
      %p1756 = scmp.lt.s32.totalorder %s13, 1
      %s1757 = scalar_select %p1756, %s13, 1
      %s1758 = smul.addr %s1757, 8
      %s1759 = smul.addr %s1758, 8
      %s1760 = scalar_lea.vmem %s2, %s1759
      // Predicated region
      $region29: #{decoder_layer.13} parent=27 // pred_check
        %p1761 = pneg %p83
      $region30: #{decoder_layer.13} parent=27 // pred_check_branch
        %1763 = sbr.rel (%p1761) target = $region32
      $region31: #{decoder_layer.13} parent=27 // pred_region
        _
      $region32: #{decoder_layer.13} parent=27 // pred_fallthru
        _
    $region28: #{decoder_layer.13} parent=5 // pred_fallthru
      _
    %p1764 = scmp.le.s32.totalorder 2, %s8
    // Predicated region
    $region33: #{decoder_layer.13} parent=5 // pred_check
      %p1765 = pneg %p1764
    $region34: #{decoder_layer.13} parent=5 // pred_check_branch
      %1767 = sbr.rel (%p1765) target = $region36
    $region35: #{decoder_layer.13} parent=5 // pred_region
      %s1768 = ssub.s32 %s8, 2
      // Predicated region
      $region37: #{decoder_layer.13} parent=35 // pred_check
        %p1769 = pneg %p89
      $region38: #{decoder_layer.13} parent=35 // pred_check_branch
        %1771 = sbr.rel (%p1769) target = $region40
      $region39: #{decoder_layer.13} parent=35 // pred_region
        %p1772 = scmp.lt.s32.totalorder %s14, 1
        %s1773 = scalar_select %p1772, %s14, 1
        %s1774 = smul.addr %s1773, 8
        %s1775 = smul.addr %s1774, 8
        %s1776 = scalar_lea.vmem %s2, %s1775
      $region40: #{decoder_layer.13} parent=35 // pred_fallthru
        _
    $region36: #{decoder_layer.13} parent=5 // pred_fallthru
      _
  $region6: #{decoder_layer.13} parent=0 // loop_footer
    %s12 = sadd.s32 1, %s8
  $region7: #{decoder_layer.13} parent=0 // loop_footer_branch
    %7 = sbr.rel target = $region3
  $region8: #{decoder_layer.13} parent=0 // loop_exit
    _

// kernel: decoder_layer.15
$region0: #{decoder_layer.15}
  #allocation0 [shape = 'u32[]', space=smem, size = 0x4, offset = 0x4, fixed_abs, tag = 'smem constant byte address 0x4 - core index']
  #allocation1 [shape = 'u32[144,128]{1,0:T(1,128)}', space=vmem, size = 0x12000, scoped, tag = 'internal scratch']
  %s0 = inlined_call_operand.vmem [shape: f32[64,256], index: 0, kind: input, shape index: {}]
  %s1 = inlined_call_operand.vmem [shape: f32[1,256], index: 1, kind: input, shape index: {}]
  %s2 = inlined_call_operand.vmem [shape: f32[1,256], index: 2, kind: input, shape index: {}]
  %s3 = inlined_call_operand.vmem [shape: bf16[256,1024], index: 3, kind: input, shape index: {}]
  %s4 = inlined_call_operand.vmem [shape: f32[1,1024], index: 4, kind: input, shape index: {}]
  %s5 = inlined_call_operand.vmem [shape: bf16[1024,256], index: 5, kind: input, shape index: {}]
  %s6 = inlined_call_operand.vmem [shape: f32[1,256], index: 6, kind: input, shape index: {}]
  %s7 = inlined_call_operand.hbm [shape: f32[64,256], index: 7, kind: output, shape index: {}]
  %s8 = sld [smem:[#allocation0]]
  $region38: #{decoder_layer.15} parent=0
    _
  %s10 = ssub.s32 1, %s8
  %s11 = scalar_select 0, %s10, %s8
  $region1: #{decoder_layer.15} parent=0
    #allocation2 [shape = 'u8[65536]{0}', space=vmem, size = 0x10000, scoped, tag = 'output window, operand 0, single buffered']
    #allocation3 [shape = 's32[1]{0}', space=sflag, size = 0x4, scoped, tag = 'scoped memory for decoder_layer.15']
    %12 = vsyncpa [#allocation3], 0
    // Predicated region
    $region2: #{decoder_layer.15} parent=1 // pred_check
      _
    $region3: #{decoder_layer.15} parent=1 // pred_check_branch
      %14 = sbr.rel (0) target = $region5
    $region4: #{decoder_layer.15} parent=1 // pred_region
      _
    $region5: #{decoder_layer.15} parent=1 // pred_fallthru
      _
    // Predicated region
    $region6: #{decoder_layer.15} parent=1 // pred_check
      _
    $region7: #{decoder_layer.15} parent=1 // pred_check_branch
      %16 = sbr.rel (0) target = $region9
    $region8: #{decoder_layer.15} parent=1 // pred_region
      _
    $region9: #{decoder_layer.15} parent=1 // pred_fallthru
      _
    // Predicated region
    $region10: #{decoder_layer.15} parent=1 // pred_check
      _
    $region11: #{decoder_layer.15} parent=1 // pred_check_branch
      %18 = sbr.rel (0) target = $region13
    $region12: #{decoder_layer.15} parent=1 // pred_region
      _
    $region13: #{decoder_layer.15} parent=1 // pred_fallthru
      _
    // Predicated region
    $region14: #{decoder_layer.15} parent=1 // pred_check
      _
    $region15: #{decoder_layer.15} parent=1 // pred_check_branch
      %20 = sbr.rel (0) target = $region17
    $region16: #{decoder_layer.15} parent=1 // pred_region
      _
    $region17: #{decoder_layer.15} parent=1 // pred_fallthru
      _
    // Predicated region
    $region18: #{decoder_layer.15} parent=1 // pred_check
      _
    $region19: #{decoder_layer.15} parent=1 // pred_check_branch
      %22 = sbr.rel (0) target = $region21
    $region20: #{decoder_layer.15} parent=1 // pred_region
      _
    $region21: #{decoder_layer.15} parent=1 // pred_fallthru
      _
    // Predicated region
    $region22: #{decoder_layer.15} parent=1 // pred_check
      _
    $region23: #{decoder_layer.15} parent=1 // pred_check_branch
      %24 = sbr.rel (0) target = $region25
    $region24: #{decoder_layer.15} parent=1 // pred_region
      _
    $region25: #{decoder_layer.15} parent=1 // pred_fallthru
      _
    // Predicated region
    $region26: #{decoder_layer.15} parent=1 // pred_check
      _
    $region27: #{decoder_layer.15} parent=1 // pred_check_branch
      %26 = sbr.rel (0) target = $region29
    $region28: #{decoder_layer.15} parent=1 // pred_region
      _
    $region29: #{decoder_layer.15} parent=1 // pred_fallthru
      _
    %v27 = vld [vmem:[%s0] sm:$0xff]
    %v28 = vld [vmem:[%s0 + $0x8] sm:$0xff]
    %v29 = vld [vmem:[%s0 + $0x10] sm:$0xff]
    %v30 = vld [vmem:[%s0 + $0x18] sm:$0xff]
    %v31 = vld [vmem:[%s0 + $0x20] sm:$0xff]
    %v32 = vld [vmem:[%s0 + $0x28] sm:$0xff]
    %v33 = vld [vmem:[%s0 + $0x30] sm:$0xff]
    %v34 = vld [vmem:[%s0 + $0x38] sm:$0xff]
    %v35 = vld [vmem:[%s0 + $0x40] sm:$0xff]
    %v36 = vld [vmem:[%s0 + $0x48] sm:$0xff]
    %v37 = vld [vmem:[%s0 + $0x50] sm:$0xff]
    %v38 = vld [vmem:[%s0 + $0x58] sm:$0xff]
    %v39 = vld [vmem:[%s0 + $0x60] sm:$0xff]
    %v40 = vld [vmem:[%s0 + $0x68] sm:$0xff]
    %v41 = vld [vmem:[%s0 + $0x70] sm:$0xff]
    %v42 = vld [vmem:[%s0 + $0x78] sm:$0xff]
    %v43 = vld [vmem:[%s1] sm:$0x3]
    %v44 = vld [vmem:[%s2] sm:$0x3]
    %v45 = vadd.f32 %v27, %v28
    %46 = vadd.xlane.f32.xlu0 %v45
    %v47 = vpop.xlane.xlu0 %46
    %v48 = vadd.f32 %v29, %v30
    %49 = vadd.xlane.f32.xlu0 %v48
    %v50 = vpop.xlane.xlu0 %49
    %v51 = vadd.f32 %v31, %v32
    %52 = vadd.xlane.f32.xlu0 %v51
    %v53 = vpop.xlane.xlu0 %52
    %v54 = vadd.f32 %v33, %v34
    %55 = vadd.xlane.f32.xlu0 %v54
    %v56 = vpop.xlane.xlu0 %55
    %v57 = vadd.f32 %v35, %v36
    %58 = vadd.xlane.f32.xlu0 %v57
    %v59 = vpop.xlane.xlu0 %58
    %v60 = vadd.f32 %v37, %v38
    %61 = vadd.xlane.f32.xlu0 %v60
    %v62 = vpop.xlane.xlu0 %61
    %v63 = vadd.f32 %v39, %v40
    %64 = vadd.xlane.f32.xlu0 %v63
    %v65 = vpop.xlane.xlu0 %64
    %v66 = vadd.f32 %v41, %v42
    %67 = vadd.xlane.f32.xlu0 %v66
    %v68 = vpop.xlane.xlu0 %67
    %v69 = vrcp.pop 256.0
    %v70 = vmul.f32 %v47, %v69
    %v71 = vmul.f32 %v50, %v69
    %v72 = vmul.f32 %v53, %v69
    %v73 = vmul.f32 %v56, %v69
    %v74 = vmul.f32 %v59, %v69
    %v75 = vmul.f32 %v62, %v69
    %v76 = vmul.f32 %v65, %v69
    %v77 = vmul.f32 %v68, %v69
    %v78 = vsub.f32 %v27, %v70
    %v79 = vsub.f32 %v28, %v70
    %v80 = vsub.f32 %v29, %v71
    %v81 = vsub.f32 %v30, %v71
    %v82 = vsub.f32 %v31, %v72
    %v83 = vsub.f32 %v32, %v72
    %v84 = vsub.f32 %v33, %v73
    %v85 = vsub.f32 %v34, %v73
    %v86 = vsub.f32 %v35, %v74
    %v87 = vsub.f32 %v36, %v74
    %v88 = vsub.f32 %v37, %v75
    %v89 = vsub.f32 %v38, %v75
    %v90 = vsub.f32 %v39, %v76
    %v91 = vsub.f32 %v40, %v76
    %v92 = vsub.f32 %v41, %v77
    %v93 = vsub.f32 %v42, %v77
    %v94 = vmul.f32 %v78, %v78
    %v95 = vmul.f32 %v79, %v79
    %v96 = vmul.f32 %v80, %v80
    %v97 = vmul.f32 %v81, %v81
    %v98 = vmul.f32 %v82, %v82
    %v99 = vmul.f32 %v83, %v83
    %v100 = vmul.f32 %v84, %v84
    %v101 = vmul.f32 %v85, %v85
    %v102 = vmul.f32 %v86, %v86
    %v103 = vmul.f32 %v87, %v87
    %v104 = vmul.f32 %v88, %v88
    %v105 = vmul.f32 %v89, %v89
    %v106 = vmul.f32 %v90, %v90
    %v107 = vmul.f32 %v91, %v91
    %v108 = vmul.f32 %v92, %v92
    %v109 = vmul.f32 %v93, %v93
    %v110 = vadd.f32 %v94, %v95
    %111 = vadd.xlane.f32.xlu0 %v110
    %v112 = vpop.xlane.xlu0 %111
    %v113 = vadd.f32 %v96, %v97
    %114 = vadd.xlane.f32.xlu0 %v113
    %v115 = vpop.xlane.xlu0 %114
    %v116 = vadd.f32 %v98, %v99
    %117 = vadd.xlane.f32.xlu0 %v116
    %v118 = vpop.xlane.xlu0 %117
    %v119 = vadd.f32 %v100, %v101
    %120 = vadd.xlane.f32.xlu0 %v119
    %v121 = vpop.xlane.xlu0 %120
    %v122 = vadd.f32 %v102, %v103
    %123 = vadd.xlane.f32.xlu0 %v122
    %v124 = vpop.xlane.xlu0 %123
    %v125 = vadd.f32 %v104, %v105
    %126 = vadd.xlane.f32.xlu0 %v125
    %v127 = vpop.xlane.xlu0 %126
    %v128 = vadd.f32 %v106, %v107
    %129 = vadd.xlane.f32.xlu0 %v128
    %v130 = vpop.xlane.xlu0 %129
    %v131 = vadd.f32 %v108, %v109
    %132 = vadd.xlane.f32.xlu0 %v131
    %v133 = vpop.xlane.xlu0 %132
    %v134 = vmul.f32 %v112, 0.003921569
    %v135 = vmul.f32 %v115, 0.003921569
    %v136 = vmul.f32 %v118, 0.003921569
    %v137 = vmul.f32 %v121, 0.003921569
    %v138 = vmul.f32 %v124, 0.003921569
    %v139 = vmul.f32 %v127, 0.003921569
    %v140 = vmul.f32 %v130, 0.003921569
    %v141 = vmul.f32 %v133, 0.003921569
    %v142 = vrsqrt.pop %v134
    %v143 = vmul.f32 %v134, %v142
    %vm144 = vcmp.eq.f32.partialorder %v134, inf
    %v145 = vsel %vm144, %v134, %v143
    %vm146 = vcmp.eq.f32.partialorder %v134, 0.0
    %v147 = vand.u32 %v134, 2147483648
    %v148 = vsel %vm146, %v147, %v145
    %v149 = vrsqrt.pop %v135
    %v150 = vmul.f32 %v135, %v149
    %vm151 = vcmp.eq.f32.partialorder %v135, inf
    %v152 = vsel %vm151, %v135, %v150
    %vm153 = vcmp.eq.f32.partialorder %v135, 0.0
    %v154 = vand.u32 %v135, 2147483648
    %v155 = vsel %vm153, %v154, %v152
    %v156 = vrsqrt.pop %v136
    %v157 = vmul.f32 %v136, %v156
    %vm158 = vcmp.eq.f32.partialorder %v136, inf
    %v159 = vsel %vm158, %v136, %v157
    %vm160 = vcmp.eq.f32.partialorder %v136, 0.0
    %v161 = vand.u32 %v136, 2147483648
    %v162 = vsel %vm160, %v161, %v159
    %v163 = vrsqrt.pop %v137
    %v164 = vmul.f32 %v137, %v163
    %vm165 = vcmp.eq.f32.partialorder %v137, inf
    %v166 = vsel %vm165, %v137, %v164
    %vm167 = vcmp.eq.f32.partialorder %v137, 0.0
    %v168 = vand.u32 %v137, 2147483648
    %v169 = vsel %vm167, %v168, %v166
    %v170 = vrsqrt.pop %v138
    %v171 = vmul.f32 %v138, %v170
    %vm172 = vcmp.eq.f32.partialorder %v138, inf
    %v173 = vsel %vm172, %v138, %v171
    %vm174 = vcmp.eq.f32.partialorder %v138, 0.0
    %v175 = vand.u32 %v138, 2147483648
    %v176 = vsel %vm174, %v175, %v173
    %v177 = vrsqrt.pop %v139
    %v178 = vmul.f32 %v139, %v177
    %vm179 = vcmp.eq.f32.partialorder %v139, inf
    %v180 = vsel %vm179, %v139, %v178
    %vm181 = vcmp.eq.f32.partialorder %v139, 0.0
    %v182 = vand.u32 %v139, 2147483648
    %v183 = vsel %vm181, %v182, %v180
    %v184 = vrsqrt.pop %v140
    %v185 = vmul.f32 %v140, %v184
    %vm186 = vcmp.eq.f32.partialorder %v140, inf
    %v187 = vsel %vm186, %v140, %v185
    %vm188 = vcmp.eq.f32.partialorder %v140, 0.0
    %v189 = vand.u32 %v140, 2147483648
    %v190 = vsel %vm188, %v189, %v187
    %v191 = vrsqrt.pop %v141
    %v192 = vmul.f32 %v141, %v191
    %vm193 = vcmp.eq.f32.partialorder %v141, inf
    %v194 = vsel %vm193, %v141, %v192
    %vm195 = vcmp.eq.f32.partialorder %v141, 0.0
    %v196 = vand.u32 %v141, 2147483648
    %v197 = vsel %vm195, %v196, %v194
    %v199 = vlaneseq
    %v200 = vshrl.u32 %v199, 7
    %v201 = vsub.s32 0, %v200
    %v202 = vrot.slane %v43, %v201
    %v203 = vlaneseq
    %v204 = vshrl.u32 %v203, 7
    %v205 = vsub.s32 1, %v204
    %v206 = vrot.slane %v43, %v205
    %v209 = vmul.f32 %v202, %v78
    %v210 = vmul.f32 %v206, %v79
    %v211 = vmul.f32 %v202, %v80
    %v212 = vmul.f32 %v206, %v81
    %v213 = vmul.f32 %v202, %v82
    %v214 = vmul.f32 %v206, %v83
    %v215 = vmul.f32 %v202, %v84
    %v216 = vmul.f32 %v206, %v85
    %v217 = vmul.f32 %v202, %v86
    %v218 = vmul.f32 %v206, %v87
    %v219 = vmul.f32 %v202, %v88
    %v220 = vmul.f32 %v206, %v89
    %v221 = vmul.f32 %v202, %v90
    %v222 = vmul.f32 %v206, %v91
    %v223 = vmul.f32 %v202, %v92
    %v224 = vmul.f32 %v206, %v93
    %v225 = vadd.f32 %v148, 1e-06
    %v226 = vadd.f32 %v155, 1e-06
    %v227 = vadd.f32 %v162, 1e-06
    %v228 = vadd.f32 %v169, 1e-06
    %v229 = vadd.f32 %v176, 1e-06
    %v230 = vadd.f32 %v183, 1e-06
    %v231 = vadd.f32 %v190, 1e-06
    %v232 = vadd.f32 %v197, 1e-06
    %v233 = vrcp.pop %v225
    %v234 = vrcp.pop %v226
    %v235 = vrcp.pop %v227
    %v236 = vrcp.pop %v228
    %v237 = vrcp.pop %v229
    %v238 = vrcp.pop %v230
    %v239 = vrcp.pop %v231
    %v240 = vrcp.pop %v232
    %v241 = vmul.f32 %v209, %v233
    %v242 = vmul.f32 %v210, %v233
    %v243 = vmul.f32 %v211, %v234
    %v244 = vmul.f32 %v212, %v234
    %v245 = vmul.f32 %v213, %v235
    %v246 = vmul.f32 %v214, %v235
    %v247 = vmul.f32 %v215, %v236
    %v248 = vmul.f32 %v216, %v236
    %v249 = vmul.f32 %v217, %v237
    %v250 = vmul.f32 %v218, %v237
    %v251 = vmul.f32 %v219, %v238
    %v252 = vmul.f32 %v220, %v238
    %v253 = vmul.f32 %v221, %v239
    %v254 = vmul.f32 %v222, %v239
    %v255 = vmul.f32 %v223, %v240
    %v256 = vmul.f32 %v224, %v240
    %v258 = vlaneseq
    %v259 = vshrl.u32 %v258, 7
    %v260 = vsub.s32 0, %v259
    %v261 = vrot.slane %v44, %v260
    %v262 = vlaneseq
    %v263 = vshrl.u32 %v262, 7
    %v264 = vsub.s32 1, %v263
    %v265 = vrot.slane %v44, %v264
    %v268 = vadd.f32 %v241, %v261
    %v269 = vadd.f32 %v242, %v265
    %v270 = vadd.f32 %v243, %v261
    %v271 = vadd.f32 %v244, %v265
    %v272 = vadd.f32 %v245, %v261
    %v273 = vadd.f32 %v246, %v265
    %v274 = vadd.f32 %v247, %v261
    %v275 = vadd.f32 %v248, %v265
    %v276 = vadd.f32 %v249, %v261
    %v277 = vadd.f32 %v250, %v265
    %v278 = vadd.f32 %v251, %v261
    %v279 = vadd.f32 %v252, %v265
    %v280 = vadd.f32 %v253, %v261
    %v281 = vadd.f32 %v254, %v265
    %v282 = vadd.f32 %v255, %v261
    %v283 = vadd.f32 %v256, %v265
    %v284 = vpack.c.bf16 %v270, %v268
    %v285 = vpack.c.bf16 %v271, %v269
    %v286 = vpack.c.bf16 %v274, %v272
    %v287 = vpack.c.bf16 %v275, %v273
    %v288 = vpack.c.bf16 %v278, %v276
    %v289 = vpack.c.bf16 %v279, %v277
    %v290 = vpack.c.bf16 %v282, %v280
    %v291 = vpack.c.bf16 %v283, %v281
    %v292 = vld [vmem:[%s3] sm:$0xff]
    %v293 = vld [vmem:[%s3 + $0x8] sm:$0xff]
    %v294 = vld [vmem:[%s3 + $0x10] sm:$0xff]
    %v295 = vld [vmem:[%s3 + $0x18] sm:$0xff]
    %v296 = vld [vmem:[%s3 + $0x20] sm:$0xff]
    %v297 = vld [vmem:[%s3 + $0x28] sm:$0xff]
    %v298 = vld [vmem:[%s3 + $0x30] sm:$0xff]
    %v299 = vld [vmem:[%s3 + $0x38] sm:$0xff]
    %v300 = vld [vmem:[%s3 + $0x40] sm:$0xff]
    %v301 = vld [vmem:[%s3 + $0x48] sm:$0xff]
    %v302 = vld [vmem:[%s3 + $0x50] sm:$0xff]
    %v303 = vld [vmem:[%s3 + $0x58] sm:$0xff]
    %v304 = vld [vmem:[%s3 + $0x60] sm:$0xff]
    %v305 = vld [vmem:[%s3 + $0x68] sm:$0xff]
    %v306 = vld [vmem:[%s3 + $0x70] sm:$0xff]
    %v307 = vld [vmem:[%s3 + $0x78] sm:$0xff]
    %v308 = vld [vmem:[%s3 + $0x80] sm:$0xff]
    %v309 = vld [vmem:[%s3 + $0x88] sm:$0xff]
    %v310 = vld [vmem:[%s3 + $0x90] sm:$0xff]
    %v311 = vld [vmem:[%s3 + $0x98] sm:$0xff]
    %v312 = vld [vmem:[%s3 + $0xa0] sm:$0xff]
    %v313 = vld [vmem:[%s3 + $0xa8] sm:$0xff]
    %v314 = vld [vmem:[%s3 + $0xb0] sm:$0xff]
    %v315 = vld [vmem:[%s3 + $0xb8] sm:$0xff]
    %v316 = vld [vmem:[%s3 + $0xc0] sm:$0xff]
    %v317 = vld [vmem:[%s3 + $0xc8] sm:$0xff]
    %v318 = vld [vmem:[%s3 + $0xd0] sm:$0xff]
    %v319 = vld [vmem:[%s3 + $0xd8] sm:$0xff]
    %v320 = vld [vmem:[%s3 + $0xe0] sm:$0xff]
    %v321 = vld [vmem:[%s3 + $0xe8] sm:$0xff]
    %v322 = vld [vmem:[%s3 + $0xf0] sm:$0xff]
    %v323 = vld [vmem:[%s3 + $0xf8] sm:$0xff]
    %v324 = vld [vmem:[%s3 + $0x100] sm:$0xff]
    %v325 = vld [vmem:[%s3 + $0x108] sm:$0xff]
    %v326 = vld [vmem:[%s3 + $0x110] sm:$0xff]
    %v327 = vld [vmem:[%s3 + $0x118] sm:$0xff]
    %v328 = vld [vmem:[%s3 + $0x120] sm:$0xff]
    %v329 = vld [vmem:[%s3 + $0x128] sm:$0xff]
    %v330 = vld [vmem:[%s3 + $0x130] sm:$0xff]
    %v331 = vld [vmem:[%s3 + $0x138] sm:$0xff]
    %v332 = vld [vmem:[%s3 + $0x140] sm:$0xff]
    %v333 = vld [vmem:[%s3 + $0x148] sm:$0xff]
    %v334 = vld [vmem:[%s3 + $0x150] sm:$0xff]
    %v335 = vld [vmem:[%s3 + $0x158] sm:$0xff]
    %v336 = vld [vmem:[%s3 + $0x160] sm:$0xff]
    %v337 = vld [vmem:[%s3 + $0x168] sm:$0xff]
    %v338 = vld [vmem:[%s3 + $0x170] sm:$0xff]
    %v339 = vld [vmem:[%s3 + $0x178] sm:$0xff]
    %v340 = vld [vmem:[%s3 + $0x180] sm:$0xff]
    %v341 = vld [vmem:[%s3 + $0x188] sm:$0xff]
    %v342 = vld [vmem:[%s3 + $0x190] sm:$0xff]
    %v343 = vld [vmem:[%s3 + $0x198] sm:$0xff]
    %v344 = vld [vmem:[%s3 + $0x1a0] sm:$0xff]
    %v345 = vld [vmem:[%s3 + $0x1a8] sm:$0xff]
    %v346 = vld [vmem:[%s3 + $0x1b0] sm:$0xff]
    %v347 = vld [vmem:[%s3 + $0x1b8] sm:$0xff]
    %v348 = vld [vmem:[%s3 + $0x1c0] sm:$0xff]
    %v349 = vld [vmem:[%s3 + $0x1c8] sm:$0xff]
    %v350 = vld [vmem:[%s3 + $0x1d0] sm:$0xff]
    %v351 = vld [vmem:[%s3 + $0x1d8] sm:$0xff]
    %v352 = vld [vmem:[%s3 + $0x1e0] sm:$0xff]
    %v353 = vld [vmem:[%s3 + $0x1e8] sm:$0xff]
    %v354 = vld [vmem:[%s3 + $0x1f0] sm:$0xff]
    %v355 = vld [vmem:[%s3 + $0x1f8] sm:$0xff]
    %v356 = vld [vmem:[%s3 + $0x200] sm:$0xff]
    %v357 = vld [vmem:[%s3 + $0x208] sm:$0xff]
    %v358 = vld [vmem:[%s3 + $0x210] sm:$0xff]
    %v359 = vld [vmem:[%s3 + $0x218] sm:$0xff]
    %v360 = vld [vmem:[%s3 + $0x220] sm:$0xff]
    %v361 = vld [vmem:[%s3 + $0x228] sm:$0xff]
    %v362 = vld [vmem:[%s3 + $0x230] sm:$0xff]
    %v363 = vld [vmem:[%s3 + $0x238] sm:$0xff]
    %v364 = vld [vmem:[%s3 + $0x240] sm:$0xff]
    %v365 = vld [vmem:[%s3 + $0x248] sm:$0xff]
    %v366 = vld [vmem:[%s3 + $0x250] sm:$0xff]
    %v367 = vld [vmem:[%s3 + $0x258] sm:$0xff]
    %v368 = vld [vmem:[%s3 + $0x260] sm:$0xff]
    %v369 = vld [vmem:[%s3 + $0x268] sm:$0xff]
    %v370 = vld [vmem:[%s3 + $0x270] sm:$0xff]
    %v371 = vld [vmem:[%s3 + $0x278] sm:$0xff]
    %v372 = vld [vmem:[%s3 + $0x280] sm:$0xff]
    %v373 = vld [vmem:[%s3 + $0x288] sm:$0xff]
    %v374 = vld [vmem:[%s3 + $0x290] sm:$0xff]
    %v375 = vld [vmem:[%s3 + $0x298] sm:$0xff]
    %v376 = vld [vmem:[%s3 + $0x2a0] sm:$0xff]
    %v377 = vld [vmem:[%s3 + $0x2a8] sm:$0xff]
    %v378 = vld [vmem:[%s3 + $0x2b0] sm:$0xff]
    %v379 = vld [vmem:[%s3 + $0x2b8] sm:$0xff]
    %v380 = vld [vmem:[%s3 + $0x2c0] sm:$0xff]
    %v381 = vld [vmem:[%s3 + $0x2c8] sm:$0xff]
    %v382 = vld [vmem:[%s3 + $0x2d0] sm:$0xff]
    %v383 = vld [vmem:[%s3 + $0x2d8] sm:$0xff]
    %v384 = vld [vmem:[%s3 + $0x2e0] sm:$0xff]
    %v385 = vld [vmem:[%s3 + $0x2e8] sm:$0xff]
    %v386 = vld [vmem:[%s3 + $0x2f0] sm:$0xff]
    %v387 = vld [vmem:[%s3 + $0x2f8] sm:$0xff]
    %v388 = vld [vmem:[%s3 + $0x300] sm:$0xff]
    %v389 = vld [vmem:[%s3 + $0x308] sm:$0xff]
    %v390 = vld [vmem:[%s3 + $0x310] sm:$0xff]
    %v391 = vld [vmem:[%s3 + $0x318] sm:$0xff]
    %v392 = vld [vmem:[%s3 + $0x320] sm:$0xff]
    %v393 = vld [vmem:[%s3 + $0x328] sm:$0xff]
    %v394 = vld [vmem:[%s3 + $0x330] sm:$0xff]
    %v395 = vld [vmem:[%s3 + $0x338] sm:$0xff]
    %v396 = vld [vmem:[%s3 + $0x340] sm:$0xff]
    %v397 = vld [vmem:[%s3 + $0x348] sm:$0xff]
    %v398 = vld [vmem:[%s3 + $0x350] sm:$0xff]
    %v399 = vld [vmem:[%s3 + $0x358] sm:$0xff]
    %v400 = vld [vmem:[%s3 + $0x360] sm:$0xff]
    %v401 = vld [vmem:[%s3 + $0x368] sm:$0xff]
    %v402 = vld [vmem:[%s3 + $0x370] sm:$0xff]
    %v403 = vld [vmem:[%s3 + $0x378] sm:$0xff]
    %v404 = vld [vmem:[%s3 + $0x380] sm:$0xff]
    %v405 = vld [vmem:[%s3 + $0x388] sm:$0xff]
    %v406 = vld [vmem:[%s3 + $0x390] sm:$0xff]
    %v407 = vld [vmem:[%s3 + $0x398] sm:$0xff]
    %v408 = vld [vmem:[%s3 + $0x3a0] sm:$0xff]
    %v409 = vld [vmem:[%s3 + $0x3a8] sm:$0xff]
    %v410 = vld [vmem:[%s3 + $0x3b0] sm:$0xff]
    %v411 = vld [vmem:[%s3 + $0x3b8] sm:$0xff]
    %v412 = vld [vmem:[%s3 + $0x3c0] sm:$0xff]
    %v413 = vld [vmem:[%s3 + $0x3c8] sm:$0xff]
    %v414 = vld [vmem:[%s3 + $0x3d0] sm:$0xff]
    %v415 = vld [vmem:[%s3 + $0x3d8] sm:$0xff]
    %v416 = vld [vmem:[%s3 + $0x3e0] sm:$0xff]
    %v417 = vld [vmem:[%s3 + $0x3e8] sm:$0xff]
    %v418 = vld [vmem:[%s3 + $0x3f0] sm:$0xff]
    %v419 = vld [vmem:[%s3 + $0x3f8] sm:$0xff]
    %v420 = vld [vmem:[%s4] sm:$0xff]
    %v422 = vlaneseq
    %v423 = vshrl.u32 %v422, 7
    %v424 = vsub.s32 0, %v423
    %v425 = vrot.slane %v420, %v424
    %v426 = vlaneseq
    %v427 = vshrl.u32 %v426, 7
    %v428 = vsub.s32 1, %v427
    %v429 = vrot.slane %v420, %v428
    %v430 = vlaneseq
    %v431 = vshrl.u32 %v430, 7
    %v432 = vsub.s32 2, %v431
    %v433 = vrot.slane %v420, %v432
    %v434 = vlaneseq
    %v435 = vshrl.u32 %v434, 7
    %v436 = vsub.s32 3, %v435
    %v437 = vrot.slane %v420, %v436
    %v438 = vlaneseq
    %v439 = vshrl.u32 %v438, 7
    %v440 = vsub.s32 4, %v439
    %v441 = vrot.slane %v420, %v440
    %v442 = vlaneseq
    %v443 = vshrl.u32 %v442, 7
    %v444 = vsub.s32 5, %v443
    %v445 = vrot.slane %v420, %v444
    %v446 = vlaneseq
    %v447 = vshrl.u32 %v446, 7
    %v448 = vsub.s32 6, %v447
    %v449 = vrot.slane %v420, %v448
    %v450 = vlaneseq
    %v451 = vshrl.u32 %v450, 7
    %v452 = vsub.s32 7, %v451
    %v453 = vrot.slane %v420, %v452
    %v590 = vunpack.c.l.b16 %v292
    %v591 = vunpack.c.h.b16 %v292
    %v592 = vunpack.c.l.b16 %v293
    %v593 = vunpack.c.h.b16 %v293
    %v594 = vunpack.c.l.b16 %v294
    %v595 = vunpack.c.h.b16 %v294
    %v596 = vunpack.c.l.b16 %v295
    %v597 = vunpack.c.h.b16 %v295
    %v598 = vunpack.c.l.b16 %v296
    %v599 = vunpack.c.h.b16 %v296
    %v600 = vunpack.c.l.b16 %v297
    %v601 = vunpack.c.h.b16 %v297
    %v602 = vunpack.c.l.b16 %v298
    %v603 = vunpack.c.h.b16 %v298
    %v604 = vunpack.c.l.b16 %v299
    %v605 = vunpack.c.h.b16 %v299
    %v606 = vunpack.c.l.b16 %v300
    %v607 = vunpack.c.h.b16 %v300
    %v608 = vunpack.c.l.b16 %v301
    %v609 = vunpack.c.h.b16 %v301
    %v610 = vunpack.c.l.b16 %v302
    %v611 = vunpack.c.h.b16 %v302
    %v612 = vunpack.c.l.b16 %v303
    %v613 = vunpack.c.h.b16 %v303
    %v614 = vunpack.c.l.b16 %v304
    %v615 = vunpack.c.h.b16 %v304
    %v616 = vunpack.c.l.b16 %v305
    %v617 = vunpack.c.h.b16 %v305
    %v618 = vunpack.c.l.b16 %v306
    %v619 = vunpack.c.h.b16 %v306
    %v620 = vunpack.c.l.b16 %v307
    %v621 = vunpack.c.h.b16 %v307
    %v622 = vunpack.c.l.b16 %v308
    %v623 = vunpack.c.h.b16 %v308
    %v624 = vunpack.c.l.b16 %v309
    %v625 = vunpack.c.h.b16 %v309
    %v626 = vunpack.c.l.b16 %v310
    %v627 = vunpack.c.h.b16 %v310
    %v628 = vunpack.c.l.b16 %v311
    %v629 = vunpack.c.h.b16 %v311
    %v630 = vunpack.c.l.b16 %v312
    %v631 = vunpack.c.h.b16 %v312
    %v632 = vunpack.c.l.b16 %v313
    %v633 = vunpack.c.h.b16 %v313
    %v634 = vunpack.c.l.b16 %v314
    %v635 = vunpack.c.h.b16 %v314
    %v636 = vunpack.c.l.b16 %v315
    %v637 = vunpack.c.h.b16 %v315
    %v638 = vunpack.c.l.b16 %v316
    %v639 = vunpack.c.h.b16 %v316
    %v640 = vunpack.c.l.b16 %v317
    %v641 = vunpack.c.h.b16 %v317
    %v642 = vunpack.c.l.b16 %v318
    %v643 = vunpack.c.h.b16 %v318
    %v644 = vunpack.c.l.b16 %v319
    %v645 = vunpack.c.h.b16 %v319
    %v646 = vunpack.c.l.b16 %v320
    %v647 = vunpack.c.h.b16 %v320
    %v648 = vunpack.c.l.b16 %v321
    %v649 = vunpack.c.h.b16 %v321
    %v650 = vunpack.c.l.b16 %v322
    %v651 = vunpack.c.h.b16 %v322
    %v652 = vunpack.c.l.b16 %v323
    %v653 = vunpack.c.h.b16 %v323
    %v654 = vunpack.c.l.b16 %v324
    %v655 = vunpack.c.h.b16 %v324
    %v656 = vunpack.c.l.b16 %v325
    %v657 = vunpack.c.h.b16 %v325
    %v658 = vunpack.c.l.b16 %v326
    %v659 = vunpack.c.h.b16 %v326
    %v660 = vunpack.c.l.b16 %v327
    %v661 = vunpack.c.h.b16 %v327
    %v662 = vunpack.c.l.b16 %v328
    %v663 = vunpack.c.h.b16 %v328
    %v664 = vunpack.c.l.b16 %v329
    %v665 = vunpack.c.h.b16 %v329
    %v666 = vunpack.c.l.b16 %v330
    %v667 = vunpack.c.h.b16 %v330
    %v668 = vunpack.c.l.b16 %v331
    %v669 = vunpack.c.h.b16 %v331
    %v670 = vunpack.c.l.b16 %v332
    %v671 = vunpack.c.h.b16 %v332
    %v672 = vunpack.c.l.b16 %v333
    %v673 = vunpack.c.h.b16 %v333
    %v674 = vunpack.c.l.b16 %v334
    %v675 = vunpack.c.h.b16 %v334
    %v676 = vunpack.c.l.b16 %v335
    %v677 = vunpack.c.h.b16 %v335
    %v678 = vunpack.c.l.b16 %v336
    %v679 = vunpack.c.h.b16 %v336
    %v680 = vunpack.c.l.b16 %v337
    %v681 = vunpack.c.h.b16 %v337
    %v682 = vunpack.c.l.b16 %v338
    %v683 = vunpack.c.h.b16 %v338
    %v684 = vunpack.c.l.b16 %v339
    %v685 = vunpack.c.h.b16 %v339
    %v686 = vunpack.c.l.b16 %v340
    %v687 = vunpack.c.h.b16 %v340
    %v688 = vunpack.c.l.b16 %v341
    %v689 = vunpack.c.h.b16 %v341
    %v690 = vunpack.c.l.b16 %v342
    %v691 = vunpack.c.h.b16 %v342
    %v692 = vunpack.c.l.b16 %v343
    %v693 = vunpack.c.h.b16 %v343
    %v694 = vunpack.c.l.b16 %v344
    %v695 = vunpack.c.h.b16 %v344
    %v696 = vunpack.c.l.b16 %v345
    %v697 = vunpack.c.h.b16 %v345
    %v698 = vunpack.c.l.b16 %v346
    %v699 = vunpack.c.h.b16 %v346
    %v700 = vunpack.c.l.b16 %v347
    %v701 = vunpack.c.h.b16 %v347
    %v702 = vunpack.c.l.b16 %v348
    %v703 = vunpack.c.h.b16 %v348
    %v704 = vunpack.c.l.b16 %v349
    %v705 = vunpack.c.h.b16 %v349
    %v706 = vunpack.c.l.b16 %v350
    %v707 = vunpack.c.h.b16 %v350
    %v708 = vunpack.c.l.b16 %v351
    %v709 = vunpack.c.h.b16 %v351
    %v710 = vunpack.c.l.b16 %v352
    %v711 = vunpack.c.h.b16 %v352
    %v712 = vunpack.c.l.b16 %v353
    %v713 = vunpack.c.h.b16 %v353
    %v714 = vunpack.c.l.b16 %v354
    %v715 = vunpack.c.h.b16 %v354
    %v716 = vunpack.c.l.b16 %v355
    %v717 = vunpack.c.h.b16 %v355
    %v718 = vunpack.c.l.b16 %v356
    %v719 = vunpack.c.h.b16 %v356
    %v720 = vunpack.c.l.b16 %v357
    %v721 = vunpack.c.h.b16 %v357
    %v722 = vunpack.c.l.b16 %v358
    %v723 = vunpack.c.h.b16 %v358
    %v724 = vunpack.c.l.b16 %v359
    %v725 = vunpack.c.h.b16 %v359
    %v726 = vunpack.c.l.b16 %v360
    %v727 = vunpack.c.h.b16 %v360
    %v728 = vunpack.c.l.b16 %v361
    %v729 = vunpack.c.h.b16 %v361
    %v730 = vunpack.c.l.b16 %v362
    %v731 = vunpack.c.h.b16 %v362
    %v732 = vunpack.c.l.b16 %v363
    %v733 = vunpack.c.h.b16 %v363
    %v734 = vunpack.c.l.b16 %v364
    %v735 = vunpack.c.h.b16 %v364
    %v736 = vunpack.c.l.b16 %v365
    %v737 = vunpack.c.h.b16 %v365
    %v738 = vunpack.c.l.b16 %v366
    %v739 = vunpack.c.h.b16 %v366
    %v740 = vunpack.c.l.b16 %v367
    %v741 = vunpack.c.h.b16 %v367
    %v742 = vunpack.c.l.b16 %v368
    %v743 = vunpack.c.h.b16 %v368
    %v744 = vunpack.c.l.b16 %v369
    %v745 = vunpack.c.h.b16 %v369
    %v746 = vunpack.c.l.b16 %v370
    %v747 = vunpack.c.h.b16 %v370
    %v748 = vunpack.c.l.b16 %v371
    %v749 = vunpack.c.h.b16 %v371
    %v750 = vunpack.c.l.b16 %v372
    %v751 = vunpack.c.h.b16 %v372
    %v752 = vunpack.c.l.b16 %v373
    %v753 = vunpack.c.h.b16 %v373
    %v754 = vunpack.c.l.b16 %v374
    %v755 = vunpack.c.h.b16 %v374
    %v756 = vunpack.c.l.b16 %v375
    %v757 = vunpack.c.h.b16 %v375
    %v758 = vunpack.c.l.b16 %v376
    %v759 = vunpack.c.h.b16 %v376
    %v760 = vunpack.c.l.b16 %v377
    %v761 = vunpack.c.h.b16 %v377
    %v762 = vunpack.c.l.b16 %v378
    %v763 = vunpack.c.h.b16 %v378
    %v764 = vunpack.c.l.b16 %v379
    %v765 = vunpack.c.h.b16 %v379
    %v766 = vunpack.c.l.b16 %v380
    %v767 = vunpack.c.h.b16 %v380
    %v768 = vunpack.c.l.b16 %v381
    %v769 = vunpack.c.h.b16 %v381
    %v770 = vunpack.c.l.b16 %v382
    %v771 = vunpack.c.h.b16 %v382
    %v772 = vunpack.c.l.b16 %v383
    %v773 = vunpack.c.h.b16 %v383
    %v774 = vunpack.c.l.b16 %v384
    %v775 = vunpack.c.h.b16 %v384
    %v776 = vunpack.c.l.b16 %v385
    %v777 = vunpack.c.h.b16 %v385
    %v778 = vunpack.c.l.b16 %v386
    %v779 = vunpack.c.h.b16 %v386
    %v780 = vunpack.c.l.b16 %v387
    %v781 = vunpack.c.h.b16 %v387
    %v782 = vunpack.c.l.b16 %v388
    %v783 = vunpack.c.h.b16 %v388
    %v784 = vunpack.c.l.b16 %v389
    %v785 = vunpack.c.h.b16 %v389
    %v786 = vunpack.c.l.b16 %v390
    %v787 = vunpack.c.h.b16 %v390
    %v788 = vunpack.c.l.b16 %v391
    %v789 = vunpack.c.h.b16 %v391
    %v790 = vunpack.c.l.b16 %v392
    %v791 = vunpack.c.h.b16 %v392
    %v792 = vunpack.c.l.b16 %v393
    %v793 = vunpack.c.h.b16 %v393
    %v794 = vunpack.c.l.b16 %v394
    %v795 = vunpack.c.h.b16 %v394
    %v796 = vunpack.c.l.b16 %v395
    %v797 = vunpack.c.h.b16 %v395
    %v798 = vunpack.c.l.b16 %v396
    %v799 = vunpack.c.h.b16 %v396
    %v800 = vunpack.c.l.b16 %v397
    %v801 = vunpack.c.h.b16 %v397
    %v802 = vunpack.c.l.b16 %v398
    %v803 = vunpack.c.h.b16 %v398
    %v804 = vunpack.c.l.b16 %v399
    %v805 = vunpack.c.h.b16 %v399
    %v806 = vunpack.c.l.b16 %v400
    %v807 = vunpack.c.h.b16 %v400
    %v808 = vunpack.c.l.b16 %v401
    %v809 = vunpack.c.h.b16 %v401
    %v810 = vunpack.c.l.b16 %v402
    %v811 = vunpack.c.h.b16 %v402
    %v812 = vunpack.c.l.b16 %v403
    %v813 = vunpack.c.h.b16 %v403
    %v814 = vunpack.c.l.b16 %v404
    %v815 = vunpack.c.h.b16 %v404
    %v816 = vunpack.c.l.b16 %v405
    %v817 = vunpack.c.h.b16 %v405
    %v818 = vunpack.c.l.b16 %v406
    %v819 = vunpack.c.h.b16 %v406
    %v820 = vunpack.c.l.b16 %v407
    %v821 = vunpack.c.h.b16 %v407
    %v822 = vunpack.c.l.b16 %v408
    %v823 = vunpack.c.h.b16 %v408
    %v824 = vunpack.c.l.b16 %v409
    %v825 = vunpack.c.h.b16 %v409
    %v826 = vunpack.c.l.b16 %v410
    %v827 = vunpack.c.h.b16 %v410
    %v828 = vunpack.c.l.b16 %v411
    %v829 = vunpack.c.h.b16 %v411
    %v830 = vunpack.c.l.b16 %v412
    %v831 = vunpack.c.h.b16 %v412
    %v832 = vunpack.c.l.b16 %v413
    %v833 = vunpack.c.h.b16 %v413
    %v834 = vunpack.c.l.b16 %v414
    %v835 = vunpack.c.h.b16 %v414
    %v836 = vunpack.c.l.b16 %v415
    %v837 = vunpack.c.h.b16 %v415
    %v838 = vunpack.c.l.b16 %v416
    %v839 = vunpack.c.h.b16 %v416
    %v840 = vunpack.c.l.b16 %v417
    %v841 = vunpack.c.h.b16 %v417
    %v842 = vunpack.c.l.b16 %v418
    %v843 = vunpack.c.h.b16 %v418
    %v844 = vunpack.c.l.b16 %v419
    %v845 = vunpack.c.h.b16 %v419
    %v846 = vpack.c.b16 %v598, %v590
    %v847 = vpack.c.b16 %v599, %v591
    %v848 = vpack.c.b16 %v600, %v592
    %v849 = vpack.c.b16 %v601, %v593
    %v850 = vpack.c.b16 %v602, %v594
    %v851 = vpack.c.b16 %v603, %v595
    %v852 = vpack.c.b16 %v604, %v596
    %v853 = vpack.c.b16 %v605, %v597
    %v854 = vpack.c.b16 %v614, %v606
    %v855 = vpack.c.b16 %v615, %v607
    %v856 = vpack.c.b16 %v616, %v608
    %v857 = vpack.c.b16 %v617, %v609
    %v858 = vpack.c.b16 %v618, %v610
    %v859 = vpack.c.b16 %v619, %v611
    %v860 = vpack.c.b16 %v620, %v612
    %v861 = vpack.c.b16 %v621, %v613
    %v862 = vpack.c.b16 %v630, %v622
    %v863 = vpack.c.b16 %v631, %v623
    %v864 = vpack.c.b16 %v632, %v624
    %v865 = vpack.c.b16 %v633, %v625
    %v866 = vpack.c.b16 %v634, %v626
    %v867 = vpack.c.b16 %v635, %v627
    %v868 = vpack.c.b16 %v636, %v628
    %v869 = vpack.c.b16 %v637, %v629
    %v870 = vpack.c.b16 %v646, %v638
    %v871 = vpack.c.b16 %v647, %v639
    %v872 = vpack.c.b16 %v648, %v640
    %v873 = vpack.c.b16 %v649, %v641
    %v874 = vpack.c.b16 %v650, %v642
    %v875 = vpack.c.b16 %v651, %v643
    %v876 = vpack.c.b16 %v652, %v644
    %v877 = vpack.c.b16 %v653, %v645
    %v878 = vpack.c.b16 %v662, %v654
    %v879 = vpack.c.b16 %v663, %v655
    %v880 = vpack.c.b16 %v664, %v656
    %v881 = vpack.c.b16 %v665, %v657
    %v882 = vpack.c.b16 %v666, %v658
    %v883 = vpack.c.b16 %v667, %v659
    %v884 = vpack.c.b16 %v668, %v660
    %v885 = vpack.c.b16 %v669, %v661
    %v886 = vpack.c.b16 %v678, %v670
    %v887 = vpack.c.b16 %v679, %v671
    %v888 = vpack.c.b16 %v680, %v672
    %v889 = vpack.c.b16 %v681, %v673
    %v890 = vpack.c.b16 %v682, %v674
    %v891 = vpack.c.b16 %v683, %v675
    %v892 = vpack.c.b16 %v684, %v676
    %v893 = vpack.c.b16 %v685, %v677
    %v894 = vpack.c.b16 %v694, %v686
    %v895 = vpack.c.b16 %v695, %v687
    %v896 = vpack.c.b16 %v696, %v688
    %v897 = vpack.c.b16 %v697, %v689
    %v898 = vpack.c.b16 %v698, %v690
    %v899 = vpack.c.b16 %v699, %v691
    %v900 = vpack.c.b16 %v700, %v692
    %v901 = vpack.c.b16 %v701, %v693
    %v902 = vpack.c.b16 %v710, %v702
    %v903 = vpack.c.b16 %v711, %v703
    %v904 = vpack.c.b16 %v712, %v704
    %v905 = vpack.c.b16 %v713, %v705
    %v906 = vpack.c.b16 %v714, %v706
    %v907 = vpack.c.b16 %v715, %v707
    %v908 = vpack.c.b16 %v716, %v708
    %v909 = vpack.c.b16 %v717, %v709
    %v910 = vpack.c.b16 %v726, %v718
    %v911 = vpack.c.b16 %v727, %v719
    %v912 = vpack.c.b16 %v728, %v720
    %v913 = vpack.c.b16 %v729, %v721
    %v914 = vpack.c.b16 %v730, %v722
    %v915 = vpack.c.b16 %v731, %v723
    %v916 = vpack.c.b16 %v732, %v724
    %v917 = vpack.c.b16 %v733, %v725
    %v918 = vpack.c.b16 %v742, %v734
    %v919 = vpack.c.b16 %v743, %v735
    %v920 = vpack.c.b16 %v744, %v736
    %v921 = vpack.c.b16 %v745, %v737
    %v922 = vpack.c.b16 %v746, %v738
    %v923 = vpack.c.b16 %v747, %v739
    %v924 = vpack.c.b16 %v748, %v740
    %v925 = vpack.c.b16 %v749, %v741
    %v926 = vpack.c.b16 %v758, %v750
    %v927 = vpack.c.b16 %v759, %v751
    %v928 = vpack.c.b16 %v760, %v752
    %v929 = vpack.c.b16 %v761, %v753
    %v930 = vpack.c.b16 %v762, %v754
    %v931 = vpack.c.b16 %v763, %v755
    %v932 = vpack.c.b16 %v764, %v756
    %v933 = vpack.c.b16 %v765, %v757
    %v934 = vpack.c.b16 %v774, %v766
    %v935 = vpack.c.b16 %v775, %v767
    %v936 = vpack.c.b16 %v776, %v768
    %v937 = vpack.c.b16 %v777, %v769
    %v938 = vpack.c.b16 %v778, %v770
    %v939 = vpack.c.b16 %v779, %v771
    %v940 = vpack.c.b16 %v780, %v772
    %v941 = vpack.c.b16 %v781, %v773
    %v942 = vpack.c.b16 %v790, %v782
    %v943 = vpack.c.b16 %v791, %v783
    %v944 = vpack.c.b16 %v792, %v784
    %v945 = vpack.c.b16 %v793, %v785
    %v946 = vpack.c.b16 %v794, %v786
    %v947 = vpack.c.b16 %v795, %v787
    %v948 = vpack.c.b16 %v796, %v788
    %v949 = vpack.c.b16 %v797, %v789
    %v950 = vpack.c.b16 %v806, %v798
    %v951 = vpack.c.b16 %v807, %v799
    %v952 = vpack.c.b16 %v808, %v800
    %v953 = vpack.c.b16 %v809, %v801
    %v954 = vpack.c.b16 %v810, %v802
    %v955 = vpack.c.b16 %v811, %v803
    %v956 = vpack.c.b16 %v812, %v804
    %v957 = vpack.c.b16 %v813, %v805
    %v958 = vpack.c.b16 %v822, %v814
    %v959 = vpack.c.b16 %v823, %v815
    %v960 = vpack.c.b16 %v824, %v816
    %v961 = vpack.c.b16 %v825, %v817
    %v962 = vpack.c.b16 %v826, %v818
    %v963 = vpack.c.b16 %v827, %v819
    %v964 = vpack.c.b16 %v828, %v820
    %v965 = vpack.c.b16 %v829, %v821
    %v966 = vpack.c.b16 %v838, %v830
    %v967 = vpack.c.b16 %v839, %v831
    %v968 = vpack.c.b16 %v840, %v832
    %v969 = vpack.c.b16 %v841, %v833
    %v970 = vpack.c.b16 %v842, %v834
    %v971 = vpack.c.b16 %v843, %v835
    %v972 = vpack.c.b16 %v844, %v836
    %v973 = vpack.c.b16 %v845, %v837
    %1102 = vmatprep.subr.bf16.mxu0 %v903
    %1103 = vmatpush1.bf16.msra.mxu0 %v902
    %1104 = vmatprep.subr.bf16.mxu0 %v895
    %1105 = vmatpush1.bf16.msra.mxu0 %v894
    %1106 = vmatprep.subr.bf16.mxu0 %v887
    %1107 = vmatpush1.bf16.msra.mxu0 %v886
    %1108 = vmatprep.subr.bf16.mxu0 %v879
    %1109 = vmatpush1.bf16.msra.mxu0 %v878
    %1110 = vmatprep.subr.bf16.mxu0 %v871
    %1111 = vmatpush1.bf16.msra.mxu0 %v870
    %1112 = vmatprep.subr.bf16.mxu0 %v863
    %1113 = vmatpush1.bf16.msra.mxu0 %v862
    %1114 = vmatprep.subr.bf16.mxu0 %v855
    %1115 = vmatpush1.bf16.msra.mxu0 %v854
    %1116 = vmatprep.subr.bf16.mxu0 %v847
    %1117 = vmatpush1.bf16.msra.mxu0 %v846
    %1118 = vmatprep.subr.bf16.mxu0 %v967
    %1119 = vmatpush2.bf16.msra.mxu0 %v966
    %1120 = vmatprep.subr.bf16.mxu0 %v959
    %1121 = vmatpush2.bf16.msra.mxu0 %v958
    %1122 = vmatprep.subr.bf16.mxu0 %v951
    %1123 = vmatpush2.bf16.msra.mxu0 %v950
    %1124 = vmatprep.subr.bf16.mxu0 %v943
    %1125 = vmatpush2.bf16.msra.mxu0 %v942
    %1126 = vmatprep.subr.bf16.mxu0 %v935
    %1127 = vmatpush2.bf16.msra.mxu0 %v934
    %1128 = vmatprep.subr.bf16.mxu0 %v927
    %1129 = vmatpush2.bf16.msra.mxu0 %v926
    %1130 = vmatprep.subr.bf16.mxu0 %v919
    %1131 = vmatpush2.bf16.msra.mxu0 %v918
    %1132 = vmatprep.subr.bf16.mxu0 %v911
    %1133 = vmatpush2.bf16.msra.mxu0 %v910
    %1134 = vmatprep.mubr.bf16.mxu0 %v285
    %1135 = vmatmul.mubr.bf16.gmra.mxu0 %v284
    %v1136 = vpop.f32.mrf.mxu0
    %v1137 = vadd.f32 %v425, %v1136
    %v1138 = vpop.f32.mrf.mxu0
    %v1139 = vadd.f32 %v429, %v1138
    %v1140 = vpop.f32.mrf.mxu0
    %v1141 = vadd.f32 %v425, %v1140
    %v1142 = vpop.f32.mrf.mxu0
    %v1143 = vadd.f32 %v429, %v1142
    %1144 = vmatprep.mubr.bf16.mxu0 %v287
    %1145 = vmatmul.mubr.bf16.gmra.mxu0 %v286
    %v1146 = vpop.f32.mrf.mxu0
    %v1147 = vadd.f32 %v425, %v1146
    %v1148 = vpop.f32.mrf.mxu0
    %v1149 = vadd.f32 %v429, %v1148
    %v1150 = vpop.f32.mrf.mxu0
    %v1151 = vadd.f32 %v425, %v1150
    %v1152 = vpop.f32.mrf.mxu0
    %v1153 = vadd.f32 %v429, %v1152
    %1154 = vmatprep.mubr.bf16.mxu0 %v289
    %1155 = vmatmul.mubr.bf16.gmra.mxu0 %v288
    %v1156 = vpop.f32.mrf.mxu0
    %v1157 = vadd.f32 %v425, %v1156
    %v1158 = vpop.f32.mrf.mxu0
    %v1159 = vadd.f32 %v429, %v1158
    %v1160 = vpop.f32.mrf.mxu0
    %v1161 = vadd.f32 %v425, %v1160
    %v1162 = vpop.f32.mrf.mxu0
    %v1163 = vadd.f32 %v429, %v1162
    %1164 = vmatprep.mubr.bf16.mxu0 %v291
    %1165 = vmatmul.mubr.bf16.gmra.mxu0 %v290
    %v1166 = vpop.f32.mrf.mxu0
    %v1167 = vadd.f32 %v425, %v1166
    %v1168 = vpop.f32.mrf.mxu0
    %v1169 = vadd.f32 %v429, %v1168
    %v1170 = vpop.f32.mrf.mxu0
    %v1171 = vadd.f32 %v425, %v1170
    %v1172 = vpop.f32.mrf.mxu0
    %v1173 = vadd.f32 %v429, %v1172
    %1174 = vdwg.mxu0
    %1175 = vmatprep.subr.bf16.mxu0 %v905
    %1176 = vmatpush1.bf16.msra.mxu0 %v904
    %1177 = vmatprep.subr.bf16.mxu0 %v897
    %1178 = vmatpush1.bf16.msra.mxu0 %v896
    %1179 = vmatprep.subr.bf16.mxu0 %v889
    %1180 = vmatpush1.bf16.msra.mxu0 %v888
    %1181 = vmatprep.subr.bf16.mxu0 %v881
    %1182 = vmatpush1.bf16.msra.mxu0 %v880
    %1183 = vmatprep.subr.bf16.mxu0 %v873
    %1184 = vmatpush1.bf16.msra.mxu0 %v872
    %1185 = vmatprep.subr.bf16.mxu0 %v865
    %1186 = vmatpush1.bf16.msra.mxu0 %v864
    %1187 = vmatprep.subr.bf16.mxu0 %v857
    %1188 = vmatpush1.bf16.msra.mxu0 %v856
    %1189 = vmatprep.subr.bf16.mxu0 %v849
    %1190 = vmatpush1.bf16.msra.mxu0 %v848
    %1191 = vmatprep.subr.bf16.mxu0 %v969
    %1192 = vmatpush2.bf16.msra.mxu0 %v968
    %1193 = vmatprep.subr.bf16.mxu0 %v961
    %1194 = vmatpush2.bf16.msra.mxu0 %v960
    %1195 = vmatprep.subr.bf16.mxu0 %v953
    %1196 = vmatpush2.bf16.msra.mxu0 %v952
    %1197 = vmatprep.subr.bf16.mxu0 %v945
    %1198 = vmatpush2.bf16.msra.mxu0 %v944
    %1199 = vmatprep.subr.bf16.mxu0 %v937
    %1200 = vmatpush2.bf16.msra.mxu0 %v936
    %1201 = vmatprep.subr.bf16.mxu0 %v929
    %1202 = vmatpush2.bf16.msra.mxu0 %v928
    %1203 = vmatprep.subr.bf16.mxu0 %v921
    %1204 = vmatpush2.bf16.msra.mxu0 %v920
    %1205 = vmatprep.subr.bf16.mxu0 %v913
    %1206 = vmatpush2.bf16.msra.mxu0 %v912
    %1207 = vmatprep.mubr.bf16.mxu0 %v285
    %1208 = vmatmul.mubr.bf16.gmra.mxu0 %v284
    %v1209 = vpop.f32.mrf.mxu0
    %v1210 = vadd.f32 %v433, %v1209
    %v1211 = vpop.f32.mrf.mxu0
    %v1212 = vadd.f32 %v437, %v1211
    %v1213 = vpop.f32.mrf.mxu0
    %v1214 = vadd.f32 %v433, %v1213
    %v1215 = vpop.f32.mrf.mxu0
    %v1216 = vadd.f32 %v437, %v1215
    %1217 = vmatprep.mubr.bf16.mxu0 %v287
    %1218 = vmatmul.mubr.bf16.gmra.mxu0 %v286
    %v1219 = vpop.f32.mrf.mxu0
    %v1220 = vadd.f32 %v433, %v1219
    %v1221 = vpop.f32.mrf.mxu0
    %v1222 = vadd.f32 %v437, %v1221
    %v1223 = vpop.f32.mrf.mxu0
    %v1224 = vadd.f32 %v433, %v1223
    %v1225 = vpop.f32.mrf.mxu0
    %v1226 = vadd.f32 %v437, %v1225
    %1227 = vmatprep.mubr.bf16.mxu0 %v289
    %1228 = vmatmul.mubr.bf16.gmra.mxu0 %v288
    %v1229 = vpop.f32.mrf.mxu0
    %v1230 = vadd.f32 %v433, %v1229
    %v1231 = vpop.f32.mrf.mxu0
    %v1232 = vadd.f32 %v437, %v1231
    %v1233 = vpop.f32.mrf.mxu0
    %v1234 = vadd.f32 %v433, %v1233
    %v1235 = vpop.f32.mrf.mxu0
    %v1236 = vadd.f32 %v437, %v1235
    %1237 = vmatprep.mubr.bf16.mxu0 %v291
    %1238 = vmatmul.mubr.bf16.gmra.mxu0 %v290
    %v1239 = vpop.f32.mrf.mxu0
    %v1240 = vadd.f32 %v433, %v1239
    %v1241 = vpop.f32.mrf.mxu0
    %v1242 = vadd.f32 %v437, %v1241
    %v1243 = vpop.f32.mrf.mxu0
    %v1244 = vadd.f32 %v433, %v1243
    %v1245 = vpop.f32.mrf.mxu0
    %v1246 = vadd.f32 %v437, %v1245
    %1247 = vdwg.mxu0
    %1248 = vmatprep.subr.bf16.mxu0 %v907
    %1249 = vmatpush1.bf16.msra.mxu0 %v906
    %1250 = vmatprep.subr.bf16.mxu0 %v899
    %1251 = vmatpush1.bf16.msra.mxu0 %v898
    %1252 = vmatprep.subr.bf16.mxu0 %v891
    %1253 = vmatpush1.bf16.msra.mxu0 %v890
    %1254 = vmatprep.subr.bf16.mxu0 %v883
    %1255 = vmatpush1.bf16.msra.mxu0 %v882
    %1256 = vmatprep.subr.bf16.mxu0 %v875
    %1257 = vmatpush1.bf16.msra.mxu0 %v874
    %1258 = vmatprep.subr.bf16.mxu0 %v867
    %1259 = vmatpush1.bf16.msra.mxu0 %v866
    %1260 = vmatprep.subr.bf16.mxu0 %v859
    %1261 = vmatpush1.bf16.msra.mxu0 %v858
    %1262 = vmatprep.subr.bf16.mxu0 %v851
    %1263 = vmatpush1.bf16.msra.mxu0 %v850
    %1264 = vmatprep.subr.bf16.mxu0 %v971
    %1265 = vmatpush2.bf16.msra.mxu0 %v970
    %1266 = vmatprep.subr.bf16.mxu0 %v963
    %1267 = vmatpush2.bf16.msra.mxu0 %v962
    %1268 = vmatprep.subr.bf16.mxu0 %v955
    %1269 = vmatpush2.bf16.msra.mxu0 %v954
    %1270 = vmatprep.subr.bf16.mxu0 %v947
    %1271 = vmatpush2.bf16.msra.mxu0 %v946
    %1272 = vmatprep.subr.bf16.mxu0 %v939
    %1273 = vmatpush2.bf16.msra.mxu0 %v938
    %1274 = vmatprep.subr.bf16.mxu0 %v931
    %1275 = vmatpush2.bf16.msra.mxu0 %v930
    %1276 = vmatprep.subr.bf16.mxu0 %v923
    %1277 = vmatpush2.bf16.msra.mxu0 %v922
    %1278 = vmatprep.subr.bf16.mxu0 %v915
    %1279 = vmatpush2.bf16.msra.mxu0 %v914
    %1280 = vmatprep.mubr.bf16.mxu0 %v285
    %1281 = vmatmul.mubr.bf16.gmra.mxu0 %v284
    %v1282 = vpop.f32.mrf.mxu0
    %v1283 = vadd.f32 %v441, %v1282
    %v1284 = vpop.f32.mrf.mxu0
    %v1285 = vadd.f32 %v445, %v1284
    %v1286 = vpop.f32.mrf.mxu0
    %v1287 = vadd.f32 %v441, %v1286
    %v1288 = vpop.f32.mrf.mxu0
    %v1289 = vadd.f32 %v445, %v1288
    %1290 = vmatprep.mubr.bf16.mxu0 %v287
    %1291 = vmatmul.mubr.bf16.gmra.mxu0 %v286
    %v1292 = vpop.f32.mrf.mxu0
    %v1293 = vadd.f32 %v441, %v1292
    %v1294 = vpop.f32.mrf.mxu0
    %v1295 = vadd.f32 %v445, %v1294
    %v1296 = vpop.f32.mrf.mxu0
    %v1297 = vadd.f32 %v441, %v1296
    %v1298 = vpop.f32.mrf.mxu0
    %v1299 = vadd.f32 %v445, %v1298
    %1300 = vmatprep.mubr.bf16.mxu0 %v289
    %1301 = vmatmul.mubr.bf16.gmra.mxu0 %v288
    %v1302 = vpop.f32.mrf.mxu0
    %v1303 = vadd.f32 %v441, %v1302
    %v1304 = vpop.f32.mrf.mxu0
    %v1305 = vadd.f32 %v445, %v1304
    %v1306 = vpop.f32.mrf.mxu0
    %v1307 = vadd.f32 %v441, %v1306
    %v1308 = vpop.f32.mrf.mxu0
    %v1309 = vadd.f32 %v445, %v1308
    %1310 = vmatprep.mubr.bf16.mxu0 %v291
    %1311 = vmatmul.mubr.bf16.gmra.mxu0 %v290
    %v1312 = vpop.f32.mrf.mxu0
    %v1313 = vadd.f32 %v441, %v1312
    %v1314 = vpop.f32.mrf.mxu0
    %v1315 = vadd.f32 %v445, %v1314
    %v1316 = vpop.f32.mrf.mxu0
    %v1317 = vadd.f32 %v441, %v1316
    %v1318 = vpop.f32.mrf.mxu0
    %v1319 = vadd.f32 %v445, %v1318
    %1320 = vdwg.mxu0
    %1321 = vmatprep.subr.bf16.mxu0 %v909
    %1322 = vmatpush1.bf16.msra.mxu0 %v908
    %1323 = vmatprep.subr.bf16.mxu0 %v901
    %1324 = vmatpush1.bf16.msra.mxu0 %v900
    %1325 = vmatprep.subr.bf16.mxu0 %v893
    %1326 = vmatpush1.bf16.msra.mxu0 %v892
    %1327 = vmatprep.subr.bf16.mxu0 %v885
    %1328 = vmatpush1.bf16.msra.mxu0 %v884
    %1329 = vmatprep.subr.bf16.mxu0 %v877
    %1330 = vmatpush1.bf16.msra.mxu0 %v876
    %1331 = vmatprep.subr.bf16.mxu0 %v869
    %1332 = vmatpush1.bf16.msra.mxu0 %v868
    %1333 = vmatprep.subr.bf16.mxu0 %v861
    %1334 = vmatpush1.bf16.msra.mxu0 %v860
    %1335 = vmatprep.subr.bf16.mxu0 %v853
    %1336 = vmatpush1.bf16.msra.mxu0 %v852
    %1337 = vmatprep.subr.bf16.mxu0 %v973
    %1338 = vmatpush2.bf16.msra.mxu0 %v972
    %1339 = vmatprep.subr.bf16.mxu0 %v965
    %1340 = vmatpush2.bf16.msra.mxu0 %v964
    %1341 = vmatprep.subr.bf16.mxu0 %v957
    %1342 = vmatpush2.bf16.msra.mxu0 %v956
    %1343 = vmatprep.subr.bf16.mxu0 %v949
    %1344 = vmatpush2.bf16.msra.mxu0 %v948
    %1345 = vmatprep.subr.bf16.mxu0 %v941
    %1346 = vmatpush2.bf16.msra.mxu0 %v940
    %1347 = vmatprep.subr.bf16.mxu0 %v933
    %1348 = vmatpush2.bf16.msra.mxu0 %v932
    %1349 = vmatprep.subr.bf16.mxu0 %v925
    %1350 = vmatpush2.bf16.msra.mxu0 %v924
    %1351 = vmatprep.subr.bf16.mxu0 %v917
    %1352 = vmatpush2.bf16.msra.mxu0 %v916
    %1353 = vmatprep.mubr.bf16.mxu0 %v285
    %1354 = vmatmul.mubr.bf16.gmra.mxu0 %v284
    %v1355 = vpop.f32.mrf.mxu0
    %v1356 = vadd.f32 %v449, %v1355
    %v1357 = vpop.f32.mrf.mxu0
    %v1358 = vadd.f32 %v453, %v1357
    %v1359 = vpop.f32.mrf.mxu0
    %v1360 = vadd.f32 %v449, %v1359
    %v1361 = vpop.f32.mrf.mxu0
    %v1362 = vadd.f32 %v453, %v1361
    %1363 = vmatprep.mubr.bf16.mxu0 %v287
    %1364 = vmatmul.mubr.bf16.gmra.mxu0 %v286
    %v1365 = vpop.f32.mrf.mxu0
    %v1366 = vadd.f32 %v449, %v1365
    %v1367 = vpop.f32.mrf.mxu0
    %v1368 = vadd.f32 %v453, %v1367
    %v1369 = vpop.f32.mrf.mxu0
    %v1370 = vadd.f32 %v449, %v1369
    %v1371 = vpop.f32.mrf.mxu0
    %v1372 = vadd.f32 %v453, %v1371
    %1373 = vmatprep.mubr.bf16.mxu0 %v289
    %1374 = vmatmul.mubr.bf16.gmra.mxu0 %v288
    %v1375 = vpop.f32.mrf.mxu0
    %v1376 = vadd.f32 %v449, %v1375
    %v1377 = vpop.f32.mrf.mxu0
    %v1378 = vadd.f32 %v453, %v1377
    %v1379 = vpop.f32.mrf.mxu0
    %v1380 = vadd.f32 %v449, %v1379
    %v1381 = vpop.f32.mrf.mxu0
    %v1382 = vadd.f32 %v453, %v1381
    %1383 = vmatprep.mubr.bf16.mxu0 %v291
    %1384 = vmatmul.mubr.bf16.gmra.mxu0 %v290
    %v1385 = vpop.f32.mrf.mxu0
    %v1386 = vadd.f32 %v449, %v1385
    %v1387 = vpop.f32.mrf.mxu0
    %v1388 = vadd.f32 %v453, %v1387
    %v1389 = vpop.f32.mrf.mxu0
    %v1390 = vadd.f32 %v449, %v1389
    %v1391 = vpop.f32.mrf.mxu0
    %v1392 = vadd.f32 %v453, %v1391
    %1393 = vdwg.mxu0
    %v1394 = vmax.f32 %v1137, 0.0
    %v1395 = vmax.f32 %v1139, 0.0
    %v1396 = vmax.f32 %v1210, 0.0
    %v1397 = vmax.f32 %v1212, 0.0
    %v1398 = vmax.f32 %v1283, 0.0
    %v1399 = vmax.f32 %v1285, 0.0
    %v1400 = vmax.f32 %v1356, 0.0
    %v1401 = vmax.f32 %v1358, 0.0
    %v1402 = vmax.f32 %v1141, 0.0
    %v1403 = vmax.f32 %v1143, 0.0
    %v1404 = vmax.f32 %v1214, 0.0
    %v1405 = vmax.f32 %v1216, 0.0
    %v1406 = vmax.f32 %v1287, 0.0
    %v1407 = vmax.f32 %v1289, 0.0
    %v1408 = vmax.f32 %v1360, 0.0
    %v1409 = vmax.f32 %v1362, 0.0
    %v1410 = vmax.f32 %v1147, 0.0
    %v1411 = vmax.f32 %v1149, 0.0
    %v1412 = vmax.f32 %v1220, 0.0
    %v1413 = vmax.f32 %v1222, 0.0
    %v1414 = vmax.f32 %v1293, 0.0
    %v1415 = vmax.f32 %v1295, 0.0
    %v1416 = vmax.f32 %v1366, 0.0
    %v1417 = vmax.f32 %v1368, 0.0
    %v1418 = vmax.f32 %v1151, 0.0
    %v1419 = vmax.f32 %v1153, 0.0
    %v1420 = vmax.f32 %v1224, 0.0
    %v1421 = vmax.f32 %v1226, 0.0
    %v1422 = vmax.f32 %v1297, 0.0
    %v1423 = vmax.f32 %v1299, 0.0
    %v1424 = vmax.f32 %v1370, 0.0
    %v1425 = vmax.f32 %v1372, 0.0
    %v1426 = vmax.f32 %v1157, 0.0
    %v1427 = vmax.f32 %v1159, 0.0
    %v1428 = vmax.f32 %v1230, 0.0
    %v1429 = vmax.f32 %v1232, 0.0
    %v1430 = vmax.f32 %v1303, 0.0
    %v1431 = vmax.f32 %v1305, 0.0
    %v1432 = vmax.f32 %v1376, 0.0
    %v1433 = vmax.f32 %v1378, 0.0
    %v1434 = vmax.f32 %v1161, 0.0
    %v1435 = vmax.f32 %v1163, 0.0
    %v1436 = vmax.f32 %v1234, 0.0
    %v1437 = vmax.f32 %v1236, 0.0
    %v1438 = vmax.f32 %v1307, 0.0
    %v1439 = vmax.f32 %v1309, 0.0
    %v1440 = vmax.f32 %v1380, 0.0
    %v1441 = vmax.f32 %v1382, 0.0
    %v1442 = vmax.f32 %v1167, 0.0
    %v1443 = vmax.f32 %v1169, 0.0
    %v1444 = vmax.f32 %v1240, 0.0
    %v1445 = vmax.f32 %v1242, 0.0
    %v1446 = vmax.f32 %v1313, 0.0
    %v1447 = vmax.f32 %v1315, 0.0
    %v1448 = vmax.f32 %v1386, 0.0
    %v1449 = vmax.f32 %v1388, 0.0
    %v1450 = vmax.f32 %v1171, 0.0
    %v1451 = vmax.f32 %v1173, 0.0
    %v1452 = vmax.f32 %v1244, 0.0
    %v1453 = vmax.f32 %v1246, 0.0
    %v1454 = vmax.f32 %v1317, 0.0
    %v1455 = vmax.f32 %v1319, 0.0
    %v1456 = vmax.f32 %v1390, 0.0
    %v1457 = vmax.f32 %v1392, 0.0
    %v1458 = vpack.c.bf16 %v1402, %v1394
    %v1459 = vpack.c.bf16 %v1403, %v1395
    %v1460 = vpack.c.bf16 %v1404, %v1396
    %v1461 = vpack.c.bf16 %v1405, %v1397
    %v1462 = vpack.c.bf16 %v1406, %v1398
    %v1463 = vpack.c.bf16 %v1407, %v1399
    %v1464 = vpack.c.bf16 %v1408, %v1400
    %v1465 = vpack.c.bf16 %v1409, %v1401
    %v1466 = vpack.c.bf16 %v1418, %v1410
    %v1467 = vpack.c.bf16 %v1419, %v1411
    %v1468 = vpack.c.bf16 %v1420, %v1412
    %v1469 = vpack.c.bf16 %v1421, %v1413
    %v1470 = vpack.c.bf16 %v1422, %v1414
    %v1471 = vpack.c.bf16 %v1423, %v1415
    %v1472 = vpack.c.bf16 %v1424, %v1416
    %v1473 = vpack.c.bf16 %v1425, %v1417
    %v1474 = vpack.c.bf16 %v1434, %v1426
    %v1475 = vpack.c.bf16 %v1435, %v1427
    %v1476 = vpack.c.bf16 %v1436, %v1428
    %v1477 = vpack.c.bf16 %v1437, %v1429
    %v1478 = vpack.c.bf16 %v1438, %v1430
    %v1479 = vpack.c.bf16 %v1439, %v1431
    %v1480 = vpack.c.bf16 %v1440, %v1432
    %v1481 = vpack.c.bf16 %v1441, %v1433
    %v1482 = vpack.c.bf16 %v1450, %v1442
    %v1483 = vpack.c.bf16 %v1451, %v1443
    %v1484 = vpack.c.bf16 %v1452, %v1444
    %v1485 = vpack.c.bf16 %v1453, %v1445
    %v1486 = vpack.c.bf16 %v1454, %v1446
    %v1487 = vpack.c.bf16 %v1455, %v1447
    %v1488 = vpack.c.bf16 %v1456, %v1448
    %v1489 = vpack.c.bf16 %v1457, %v1449
    %v1490 = vld [vmem:[%s5] sm:$0xff]
    %v1491 = vld [vmem:[%s5 + $0x8] sm:$0xff]
    %v1492 = vld [vmem:[%s5 + $0x10] sm:$0xff]
    %v1493 = vld [vmem:[%s5 + $0x18] sm:$0xff]
    %v1494 = vld [vmem:[%s5 + $0x20] sm:$0xff]
    %v1495 = vld [vmem:[%s5 + $0x28] sm:$0xff]
    %v1496 = vld [vmem:[%s5 + $0x30] sm:$0xff]
    %v1497 = vld [vmem:[%s5 + $0x38] sm:$0xff]
    %v1498 = vld [vmem:[%s5 + $0x40] sm:$0xff]
    %v1499 = vld [vmem:[%s5 + $0x48] sm:$0xff]
    %v1500 = vld [vmem:[%s5 + $0x50] sm:$0xff]
    %v1501 = vld [vmem:[%s5 + $0x58] sm:$0xff]
    %v1502 = vld [vmem:[%s5 + $0x60] sm:$0xff]
    %v1503 = vld [vmem:[%s5 + $0x68] sm:$0xff]
    %v1504 = vld [vmem:[%s5 + $0x70] sm:$0xff]
    %v1505 = vld [vmem:[%s5 + $0x78] sm:$0xff]
    %v1506 = vld [vmem:[%s5 + $0x80] sm:$0xff]
    %v1507 = vld [vmem:[%s5 + $0x88] sm:$0xff]
    %v1508 = vld [vmem:[%s5 + $0x90] sm:$0xff]
    %v1509 = vld [vmem:[%s5 + $0x98] sm:$0xff]
    %v1510 = vld [vmem:[%s5 + $0xa0] sm:$0xff]
    %v1511 = vld [vmem:[%s5 + $0xa8] sm:$0xff]
    %v1512 = vld [vmem:[%s5 + $0xb0] sm:$0xff]
    %v1513 = vld [vmem:[%s5 + $0xb8] sm:$0xff]
    %v1514 = vld [vmem:[%s5 + $0xc0] sm:$0xff]
    %v1515 = vld [vmem:[%s5 + $0xc8] sm:$0xff]
    %v1516 = vld [vmem:[%s5 + $0xd0] sm:$0xff]
    %v1517 = vld [vmem:[%s5 + $0xd8] sm:$0xff]
    %v1518 = vld [vmem:[%s5 + $0xe0] sm:$0xff]
    %v1519 = vld [vmem:[%s5 + $0xe8] sm:$0xff]
    %v1520 = vld [vmem:[%s5 + $0xf0] sm:$0xff]
    %v1521 = vld [vmem:[%s5 + $0xf8] sm:$0xff]
    %v1522 = vld [vmem:[%s5 + $0x100] sm:$0xff]
    %v1523 = vld [vmem:[%s5 + $0x108] sm:$0xff]
    %v1524 = vld [vmem:[%s5 + $0x110] sm:$0xff]
    %v1525 = vld [vmem:[%s5 + $0x118] sm:$0xff]
    %v1526 = vld [vmem:[%s5 + $0x120] sm:$0xff]
    %v1527 = vld [vmem:[%s5 + $0x128] sm:$0xff]
    %v1528 = vld [vmem:[%s5 + $0x130] sm:$0xff]
    %v1529 = vld [vmem:[%s5 + $0x138] sm:$0xff]
    %v1530 = vld [vmem:[%s5 + $0x140] sm:$0xff]
    %v1531 = vld [vmem:[%s5 + $0x148] sm:$0xff]
    %v1532 = vld [vmem:[%s5 + $0x150] sm:$0xff]
    %v1533 = vld [vmem:[%s5 + $0x158] sm:$0xff]
    %v1534 = vld [vmem:[%s5 + $0x160] sm:$0xff]
    %v1535 = vld [vmem:[%s5 + $0x168] sm:$0xff]
    %v1536 = vld [vmem:[%s5 + $0x170] sm:$0xff]
    %v1537 = vld [vmem:[%s5 + $0x178] sm:$0xff]
    %v1538 = vld [vmem:[%s5 + $0x180] sm:$0xff]
    %v1539 = vld [vmem:[%s5 + $0x188] sm:$0xff]
    %v1540 = vld [vmem:[%s5 + $0x190] sm:$0xff]
    %v1541 = vld [vmem:[%s5 + $0x198] sm:$0xff]
    %v1542 = vld [vmem:[%s5 + $0x1a0] sm:$0xff]
    %v1543 = vld [vmem:[%s5 + $0x1a8] sm:$0xff]
    %v1544 = vld [vmem:[%s5 + $0x1b0] sm:$0xff]
    %v1545 = vld [vmem:[%s5 + $0x1b8] sm:$0xff]
    %v1546 = vld [vmem:[%s5 + $0x1c0] sm:$0xff]
    %v1547 = vld [vmem:[%s5 + $0x1c8] sm:$0xff]
    %v1548 = vld [vmem:[%s5 + $0x1d0] sm:$0xff]
    %v1549 = vld [vmem:[%s5 + $0x1d8] sm:$0xff]
    %v1550 = vld [vmem:[%s5 + $0x1e0] sm:$0xff]
    %v1551 = vld [vmem:[%s5 + $0x1e8] sm:$0xff]
    %v1552 = vld [vmem:[%s5 + $0x1f0] sm:$0xff]
    %v1553 = vld [vmem:[%s5 + $0x1f8] sm:$0xff]
    %v1554 = vld [vmem:[%s5 + $0x200] sm:$0xff]
    %v1555 = vld [vmem:[%s5 + $0x208] sm:$0xff]
    %v1556 = vld [vmem:[%s5 + $0x210] sm:$0xff]
    %v1557 = vld [vmem:[%s5 + $0x218] sm:$0xff]
    %v1558 = vld [vmem:[%s5 + $0x220] sm:$0xff]
    %v1559 = vld [vmem:[%s5 + $0x228] sm:$0xff]
    %v1560 = vld [vmem:[%s5 + $0x230] sm:$0xff]
    %v1561 = vld [vmem:[%s5 + $0x238] sm:$0xff]
    %v1562 = vld [vmem:[%s5 + $0x240] sm:$0xff]
    %v1563 = vld [vmem:[%s5 + $0x248] sm:$0xff]
    %v1564 = vld [vmem:[%s5 + $0x250] sm:$0xff]
    %v1565 = vld [vmem:[%s5 + $0x258] sm:$0xff]
    %v1566 = vld [vmem:[%s5 + $0x260] sm:$0xff]
    %v1567 = vld [vmem:[%s5 + $0x268] sm:$0xff]
    %v1568 = vld [vmem:[%s5 + $0x270] sm:$0xff]
    %v1569 = vld [vmem:[%s5 + $0x278] sm:$0xff]
    %v1570 = vld [vmem:[%s5 + $0x280] sm:$0xff]
    %v1571 = vld [vmem:[%s5 + $0x288] sm:$0xff]
    %v1572 = vld [vmem:[%s5 + $0x290] sm:$0xff]
    %v1573 = vld [vmem:[%s5 + $0x298] sm:$0xff]
    %v1574 = vld [vmem:[%s5 + $0x2a0] sm:$0xff]
    %v1575 = vld [vmem:[%s5 + $0x2a8] sm:$0xff]
    %v1576 = vld [vmem:[%s5 + $0x2b0] sm:$0xff]
    %v1577 = vld [vmem:[%s5 + $0x2b8] sm:$0xff]
    %v1578 = vld [vmem:[%s5 + $0x2c0] sm:$0xff]
    %v1579 = vld [vmem:[%s5 + $0x2c8] sm:$0xff]
    %v1580 = vld [vmem:[%s5 + $0x2d0] sm:$0xff]
    %v1581 = vld [vmem:[%s5 + $0x2d8] sm:$0xff]
    %v1582 = vld [vmem:[%s5 + $0x2e0] sm:$0xff]
    %v1583 = vld [vmem:[%s5 + $0x2e8] sm:$0xff]
    %v1584 = vld [vmem:[%s5 + $0x2f0] sm:$0xff]
    %v1585 = vld [vmem:[%s5 + $0x2f8] sm:$0xff]
    %v1586 = vld [vmem:[%s5 + $0x300] sm:$0xff]
    %v1587 = vld [vmem:[%s5 + $0x308] sm:$0xff]
    %v1588 = vld [vmem:[%s5 + $0x310] sm:$0xff]
    %v1589 = vld [vmem:[%s5 + $0x318] sm:$0xff]
    %v1590 = vld [vmem:[%s5 + $0x320] sm:$0xff]
    %v1591 = vld [vmem:[%s5 + $0x328] sm:$0xff]
    %v1592 = vld [vmem:[%s5 + $0x330] sm:$0xff]
    %v1593 = vld [vmem:[%s5 + $0x338] sm:$0xff]
    %v1594 = vld [vmem:[%s5 + $0x340] sm:$0xff]
    %v1595 = vld [vmem:[%s5 + $0x348] sm:$0xff]
    %v1596 = vld [vmem:[%s5 + $0x350] sm:$0xff]
    %v1597 = vld [vmem:[%s5 + $0x358] sm:$0xff]
    %v1598 = vld [vmem:[%s5 + $0x360] sm:$0xff]
    %v1599 = vld [vmem:[%s5 + $0x368] sm:$0xff]
    %v1600 = vld [vmem:[%s5 + $0x370] sm:$0xff]
    %v1601 = vld [vmem:[%s5 + $0x378] sm:$0xff]
    %v1602 = vld [vmem:[%s5 + $0x380] sm:$0xff]
    %v1603 = vld [vmem:[%s5 + $0x388] sm:$0xff]
    %v1604 = vld [vmem:[%s5 + $0x390] sm:$0xff]
    %v1605 = vld [vmem:[%s5 + $0x398] sm:$0xff]
    %v1606 = vld [vmem:[%s5 + $0x3a0] sm:$0xff]
    %v1607 = vld [vmem:[%s5 + $0x3a8] sm:$0xff]
    %v1608 = vld [vmem:[%s5 + $0x3b0] sm:$0xff]
    %v1609 = vld [vmem:[%s5 + $0x3b8] sm:$0xff]
    %v1610 = vld [vmem:[%s5 + $0x3c0] sm:$0xff]
    %v1611 = vld [vmem:[%s5 + $0x3c8] sm:$0xff]
    %v1612 = vld [vmem:[%s5 + $0x3d0] sm:$0xff]
    %v1613 = vld [vmem:[%s5 + $0x3d8] sm:$0xff]
    %v1614 = vld [vmem:[%s5 + $0x3e0] sm:$0xff]
    %v1615 = vld [vmem:[%s5 + $0x3e8] sm:$0xff]
    %v1616 = vld [vmem:[%s5 + $0x3f0] sm:$0xff]
    %v1617 = vld [vmem:[%s5 + $0x3f8] sm:$0xff]
    %v1618 = vld [vmem:[%s6] sm:$0x3]
    %v1620 = vlaneseq
    %v1621 = vshrl.u32 %v1620, 7
    %v1622 = vsub.s32 0, %v1621
    %v1623 = vrot.slane %v1618, %v1622
    %v1624 = vlaneseq
    %v1625 = vshrl.u32 %v1624, 7
    %v1626 = vsub.s32 1, %v1625
    %v1627 = vrot.slane %v1618, %v1626
    %v1758 = vunpack.c.l.b16 %v1490
    %v1759 = vunpack.c.h.b16 %v1490
    %v1760 = vunpack.c.l.b16 %v1491
    %v1761 = vunpack.c.h.b16 %v1491
    %v1762 = vunpack.c.l.b16 %v1492
    %v1763 = vunpack.c.h.b16 %v1492
    %v1764 = vunpack.c.l.b16 %v1493
    %v1765 = vunpack.c.h.b16 %v1493
    %v1766 = vunpack.c.l.b16 %v1494
    %v1767 = vunpack.c.h.b16 %v1494
    %v1768 = vunpack.c.l.b16 %v1495
    %v1769 = vunpack.c.h.b16 %v1495
    %v1770 = vunpack.c.l.b16 %v1496
    %v1771 = vunpack.c.h.b16 %v1496
    %v1772 = vunpack.c.l.b16 %v1497
    %v1773 = vunpack.c.h.b16 %v1497
    %v1774 = vunpack.c.l.b16 %v1498
    %v1775 = vunpack.c.h.b16 %v1498
    %v1776 = vunpack.c.l.b16 %v1499
    %v1777 = vunpack.c.h.b16 %v1499
    %v1778 = vunpack.c.l.b16 %v1500
    %v1779 = vunpack.c.h.b16 %v1500
    %v1780 = vunpack.c.l.b16 %v1501
    %v1781 = vunpack.c.h.b16 %v1501
    %v1782 = vunpack.c.l.b16 %v1502
    %v1783 = vunpack.c.h.b16 %v1502
    %v1784 = vunpack.c.l.b16 %v1503
    %v1785 = vunpack.c.h.b16 %v1503
    %v1786 = vunpack.c.l.b16 %v1504
    %v1787 = vunpack.c.h.b16 %v1504
    %v1788 = vunpack.c.l.b16 %v1505
    %v1789 = vunpack.c.h.b16 %v1505
    %v1790 = vunpack.c.l.b16 %v1506
    %v1791 = vunpack.c.h.b16 %v1506
    %v1792 = vunpack.c.l.b16 %v1507
    %v1793 = vunpack.c.h.b16 %v1507
    %v1794 = vunpack.c.l.b16 %v1508
    %v1795 = vunpack.c.h.b16 %v1508
    %v1796 = vunpack.c.l.b16 %v1509
    %v1797 = vunpack.c.h.b16 %v1509
    %v1798 = vunpack.c.l.b16 %v1510
    %v1799 = vunpack.c.h.b16 %v1510
    %v1800 = vunpack.c.l.b16 %v1511
    %v1801 = vunpack.c.h.b16 %v1511
    %v1802 = vunpack.c.l.b16 %v1512
    %v1803 = vunpack.c.h.b16 %v1512
    %v1804 = vunpack.c.l.b16 %v1513
    %v1805 = vunpack.c.h.b16 %v1513
    %v1806 = vunpack.c.l.b16 %v1514
    %v1807 = vunpack.c.h.b16 %v1514
    %v1808 = vunpack.c.l.b16 %v1515
    %v1809 = vunpack.c.h.b16 %v1515
    %v1810 = vunpack.c.l.b16 %v1516
    %v1811 = vunpack.c.h.b16 %v1516
    %v1812 = vunpack.c.l.b16 %v1517
    %v1813 = vunpack.c.h.b16 %v1517
    %v1814 = vunpack.c.l.b16 %v1518
    %v1815 = vunpack.c.h.b16 %v1518
    %v1816 = vunpack.c.l.b16 %v1519
    %v1817 = vunpack.c.h.b16 %v1519
    %v1818 = vunpack.c.l.b16 %v1520
    %v1819 = vunpack.c.h.b16 %v1520
    %v1820 = vunpack.c.l.b16 %v1521
    %v1821 = vunpack.c.h.b16 %v1521
    %v1822 = vunpack.c.l.b16 %v1522
    %v1823 = vunpack.c.h.b16 %v1522
    %v1824 = vunpack.c.l.b16 %v1523
    %v1825 = vunpack.c.h.b16 %v1523
    %v1826 = vunpack.c.l.b16 %v1524
    %v1827 = vunpack.c.h.b16 %v1524
    %v1828 = vunpack.c.l.b16 %v1525
    %v1829 = vunpack.c.h.b16 %v1525
    %v1830 = vunpack.c.l.b16 %v1526
    %v1831 = vunpack.c.h.b16 %v1526
    %v1832 = vunpack.c.l.b16 %v1527
    %v1833 = vunpack.c.h.b16 %v1527
    %v1834 = vunpack.c.l.b16 %v1528
    %v1835 = vunpack.c.h.b16 %v1528
    %v1836 = vunpack.c.l.b16 %v1529
    %v1837 = vunpack.c.h.b16 %v1529
    %v1838 = vunpack.c.l.b16 %v1530
    %v1839 = vunpack.c.h.b16 %v1530
    %v1840 = vunpack.c.l.b16 %v1531
    %v1841 = vunpack.c.h.b16 %v1531
    %v1842 = vunpack.c.l.b16 %v1532
    %v1843 = vunpack.c.h.b16 %v1532
    %v1844 = vunpack.c.l.b16 %v1533
    %v1845 = vunpack.c.h.b16 %v1533
    %v1846 = vunpack.c.l.b16 %v1534
    %v1847 = vunpack.c.h.b16 %v1534
    %v1848 = vunpack.c.l.b16 %v1535
    %v1849 = vunpack.c.h.b16 %v1535
    %v1850 = vunpack.c.l.b16 %v1536
    %v1851 = vunpack.c.h.b16 %v1536
    %v1852 = vunpack.c.l.b16 %v1537
    %v1853 = vunpack.c.h.b16 %v1537
    %v1854 = vunpack.c.l.b16 %v1538
    %v1855 = vunpack.c.h.b16 %v1538
    %v1856 = vunpack.c.l.b16 %v1539
    %v1857 = vunpack.c.h.b16 %v1539
    %v1858 = vunpack.c.l.b16 %v1540
    %v1859 = vunpack.c.h.b16 %v1540
    %v1860 = vunpack.c.l.b16 %v1541
    %v1861 = vunpack.c.h.b16 %v1541
    %v1862 = vunpack.c.l.b16 %v1542
    %v1863 = vunpack.c.h.b16 %v1542
    %v1864 = vunpack.c.l.b16 %v1543
    %v1865 = vunpack.c.h.b16 %v1543
    %v1866 = vunpack.c.l.b16 %v1544
    %v1867 = vunpack.c.h.b16 %v1544
    %v1868 = vunpack.c.l.b16 %v1545
    %v1869 = vunpack.c.h.b16 %v1545
    %v1870 = vunpack.c.l.b16 %v1546
    %v1871 = vunpack.c.h.b16 %v1546
    %v1872 = vunpack.c.l.b16 %v1547
    %v1873 = vunpack.c.h.b16 %v1547
    %v1874 = vunpack.c.l.b16 %v1548
    %v1875 = vunpack.c.h.b16 %v1548
    %v1876 = vunpack.c.l.b16 %v1549
    %v1877 = vunpack.c.h.b16 %v1549
    %v1878 = vunpack.c.l.b16 %v1550
    %v1879 = vunpack.c.h.b16 %v1550
    %v1880 = vunpack.c.l.b16 %v1551
    %v1881 = vunpack.c.h.b16 %v1551
    %v1882 = vunpack.c.l.b16 %v1552
    %v1883 = vunpack.c.h.b16 %v1552
    %v1884 = vunpack.c.l.b16 %v1553
    %v1885 = vunpack.c.h.b16 %v1553
    %v1886 = vunpack.c.l.b16 %v1554
    %v1887 = vunpack.c.h.b16 %v1554
    %v1888 = vunpack.c.l.b16 %v1555
    %v1889 = vunpack.c.h.b16 %v1555
    %v1890 = vunpack.c.l.b16 %v1556
    %v1891 = vunpack.c.h.b16 %v1556
    %v1892 = vunpack.c.l.b16 %v1557
    %v1893 = vunpack.c.h.b16 %v1557
    %v1894 = vunpack.c.l.b16 %v1558
    %v1895 = vunpack.c.h.b16 %v1558
    %v1896 = vunpack.c.l.b16 %v1559
    %v1897 = vunpack.c.h.b16 %v1559
    %v1898 = vunpack.c.l.b16 %v1560
    %v1899 = vunpack.c.h.b16 %v1560
    %v1900 = vunpack.c.l.b16 %v1561
    %v1901 = vunpack.c.h.b16 %v1561
    %v1902 = vunpack.c.l.b16 %v1562
    %v1903 = vunpack.c.h.b16 %v1562
    %v1904 = vunpack.c.l.b16 %v1563
    %v1905 = vunpack.c.h.b16 %v1563
    %v1906 = vunpack.c.l.b16 %v1564
    %v1907 = vunpack.c.h.b16 %v1564
    %v1908 = vunpack.c.l.b16 %v1565
    %v1909 = vunpack.c.h.b16 %v1565
    %v1910 = vunpack.c.l.b16 %v1566
    %v1911 = vunpack.c.h.b16 %v1566
    %v1912 = vunpack.c.l.b16 %v1567
    %v1913 = vunpack.c.h.b16 %v1567
    %v1914 = vunpack.c.l.b16 %v1568
    %v1915 = vunpack.c.h.b16 %v1568
    %v1916 = vunpack.c.l.b16 %v1569
    %v1917 = vunpack.c.h.b16 %v1569
    %v1918 = vunpack.c.l.b16 %v1570
    %v1919 = vunpack.c.h.b16 %v1570
    %v1920 = vunpack.c.l.b16 %v1571
    %v1921 = vunpack.c.h.b16 %v1571
    %v1922 = vunpack.c.l.b16 %v1572
    %v1923 = vunpack.c.h.b16 %v1572
    %v1924 = vunpack.c.l.b16 %v1573
    %v1925 = vunpack.c.h.b16 %v1573
    %v1926 = vunpack.c.l.b16 %v1574
    %v1927 = vunpack.c.h.b16 %v1574
    %v1928 = vunpack.c.l.b16 %v1575
    %v1929 = vunpack.c.h.b16 %v1575
    %v1930 = vunpack.c.l.b16 %v1576
    %v1931 = vunpack.c.h.b16 %v1576
    %v1932 = vunpack.c.l.b16 %v1577
    %v1933 = vunpack.c.h.b16 %v1577
    %v1934 = vunpack.c.l.b16 %v1578
    %v1935 = vunpack.c.h.b16 %v1578
    %v1936 = vunpack.c.l.b16 %v1579
    %v1937 = vunpack.c.h.b16 %v1579
    %v1938 = vunpack.c.l.b16 %v1580
    %v1939 = vunpack.c.h.b16 %v1580
    %v1940 = vunpack.c.l.b16 %v1581
    %v1941 = vunpack.c.h.b16 %v1581
    %v1942 = vunpack.c.l.b16 %v1582
    %v1943 = vunpack.c.h.b16 %v1582
    %v1944 = vunpack.c.l.b16 %v1583
    %v1945 = vunpack.c.h.b16 %v1583
    %v1946 = vunpack.c.l.b16 %v1584
    %v1947 = vunpack.c.h.b16 %v1584
    %v1948 = vunpack.c.l.b16 %v1585
    %v1949 = vunpack.c.h.b16 %v1585
    %v1950 = vunpack.c.l.b16 %v1586
    %v1951 = vunpack.c.h.b16 %v1586
    %v1952 = vunpack.c.l.b16 %v1587
    %v1953 = vunpack.c.h.b16 %v1587
    %v1954 = vunpack.c.l.b16 %v1588
    %v1955 = vunpack.c.h.b16 %v1588
    %v1956 = vunpack.c.l.b16 %v1589
    %v1957 = vunpack.c.h.b16 %v1589
    %v1958 = vunpack.c.l.b16 %v1590
    %v1959 = vunpack.c.h.b16 %v1590
    %v1960 = vunpack.c.l.b16 %v1591
    %v1961 = vunpack.c.h.b16 %v1591
    %v1962 = vunpack.c.l.b16 %v1592
    %v1963 = vunpack.c.h.b16 %v1592
    %v1964 = vunpack.c.l.b16 %v1593
    %v1965 = vunpack.c.h.b16 %v1593
    %v1966 = vunpack.c.l.b16 %v1594
    %v1967 = vunpack.c.h.b16 %v1594
    %v1968 = vunpack.c.l.b16 %v1595
    %v1969 = vunpack.c.h.b16 %v1595
    %v1970 = vunpack.c.l.b16 %v1596
    %v1971 = vunpack.c.h.b16 %v1596
    %v1972 = vunpack.c.l.b16 %v1597
    %v1973 = vunpack.c.h.b16 %v1597
    %v1974 = vunpack.c.l.b16 %v1598
    %v1975 = vunpack.c.h.b16 %v1598
    %v1976 = vunpack.c.l.b16 %v1599
    %v1977 = vunpack.c.h.b16 %v1599
    %v1978 = vunpack.c.l.b16 %v1600
    %v1979 = vunpack.c.h.b16 %v1600
    %v1980 = vunpack.c.l.b16 %v1601
    %v1981 = vunpack.c.h.b16 %v1601
    %v1982 = vunpack.c.l.b16 %v1602
    %v1983 = vunpack.c.h.b16 %v1602
    %v1984 = vunpack.c.l.b16 %v1603
    %v1985 = vunpack.c.h.b16 %v1603
    %v1986 = vunpack.c.l.b16 %v1604
    %v1987 = vunpack.c.h.b16 %v1604
    %v1988 = vunpack.c.l.b16 %v1605
    %v1989 = vunpack.c.h.b16 %v1605
    %v1990 = vunpack.c.l.b16 %v1606
    %v1991 = vunpack.c.h.b16 %v1606
    %v1992 = vunpack.c.l.b16 %v1607
    %v1993 = vunpack.c.h.b16 %v1607
    %v1994 = vunpack.c.l.b16 %v1608
    %v1995 = vunpack.c.h.b16 %v1608
    %v1996 = vunpack.c.l.b16 %v1609
    %v1997 = vunpack.c.h.b16 %v1609
    %v1998 = vunpack.c.l.b16 %v1610
    %v1999 = vunpack.c.h.b16 %v1610
    %v2000 = vunpack.c.l.b16 %v1611
    %v2001 = vunpack.c.h.b16 %v1611
    %v2002 = vunpack.c.l.b16 %v1612
    %v2003 = vunpack.c.h.b16 %v1612
    %v2004 = vunpack.c.l.b16 %v1613
    %v2005 = vunpack.c.h.b16 %v1613
    %v2006 = vunpack.c.l.b16 %v1614
    %v2007 = vunpack.c.h.b16 %v1614
    %v2008 = vunpack.c.l.b16 %v1615
    %v2009 = vunpack.c.h.b16 %v1615
    %v2010 = vunpack.c.l.b16 %v1616
    %v2011 = vunpack.c.h.b16 %v1616
    %v2012 = vunpack.c.l.b16 %v1617
    %v2013 = vunpack.c.h.b16 %v1617
    %v2014 = vpack.c.b16 %v1760, %v1758
    %v2015 = vpack.c.b16 %v1761, %v1759
    %v2016 = vpack.c.b16 %v1764, %v1762
    %v2017 = vpack.c.b16 %v1765, %v1763
    %v2018 = vpack.c.b16 %v1768, %v1766
    %v2019 = vpack.c.b16 %v1769, %v1767
    %v2020 = vpack.c.b16 %v1772, %v1770
    %v2021 = vpack.c.b16 %v1773, %v1771
    %v2022 = vpack.c.b16 %v1776, %v1774
    %v2023 = vpack.c.b16 %v1777, %v1775
    %v2024 = vpack.c.b16 %v1780, %v1778
    %v2025 = vpack.c.b16 %v1781, %v1779
    %v2026 = vpack.c.b16 %v1784, %v1782
    %v2027 = vpack.c.b16 %v1785, %v1783
    %v2028 = vpack.c.b16 %v1788, %v1786
    %v2029 = vpack.c.b16 %v1789, %v1787
    %v2030 = vpack.c.b16 %v1792, %v1790
    %v2031 = vpack.c.b16 %v1793, %v1791
    %v2032 = vpack.c.b16 %v1796, %v1794
    %v2033 = vpack.c.b16 %v1797, %v1795
    %v2034 = vpack.c.b16 %v1800, %v1798
    %v2035 = vpack.c.b16 %v1801, %v1799
    %v2036 = vpack.c.b16 %v1804, %v1802
    %v2037 = vpack.c.b16 %v1805, %v1803
    %v2038 = vpack.c.b16 %v1808, %v1806
    %v2039 = vpack.c.b16 %v1809, %v1807
    %v2040 = vpack.c.b16 %v1812, %v1810
    %v2041 = vpack.c.b16 %v1813, %v1811
    %v2042 = vpack.c.b16 %v1816, %v1814
    %v2043 = vpack.c.b16 %v1817, %v1815
    %v2044 = vpack.c.b16 %v1820, %v1818
    %v2045 = vpack.c.b16 %v1821, %v1819
    %v2046 = vpack.c.b16 %v1824, %v1822
    %v2047 = vpack.c.b16 %v1825, %v1823
    %v2048 = vpack.c.b16 %v1828, %v1826
    %v2049 = vpack.c.b16 %v1829, %v1827
    %v2050 = vpack.c.b16 %v1832, %v1830
    %v2051 = vpack.c.b16 %v1833, %v1831
    %v2052 = vpack.c.b16 %v1836, %v1834
    %v2053 = vpack.c.b16 %v1837, %v1835
    %v2054 = vpack.c.b16 %v1840, %v1838
    %v2055 = vpack.c.b16 %v1841, %v1839
    %v2056 = vpack.c.b16 %v1844, %v1842
    %v2057 = vpack.c.b16 %v1845, %v1843
    %v2058 = vpack.c.b16 %v1848, %v1846
    %v2059 = vpack.c.b16 %v1849, %v1847
    %v2060 = vpack.c.b16 %v1852, %v1850
    %v2061 = vpack.c.b16 %v1853, %v1851
    %v2062 = vpack.c.b16 %v1856, %v1854
    %v2063 = vpack.c.b16 %v1857, %v1855
    %v2064 = vpack.c.b16 %v1860, %v1858
    %v2065 = vpack.c.b16 %v1861, %v1859
    %v2066 = vpack.c.b16 %v1864, %v1862
    %v2067 = vpack.c.b16 %v1865, %v1863
    %v2068 = vpack.c.b16 %v1868, %v1866
    %v2069 = vpack.c.b16 %v1869, %v1867
    %v2070 = vpack.c.b16 %v1872, %v1870
    %v2071 = vpack.c.b16 %v1873, %v1871
    %v2072 = vpack.c.b16 %v1876, %v1874
    %v2073 = vpack.c.b16 %v1877, %v1875
    %v2074 = vpack.c.b16 %v1880, %v1878
    %v2075 = vpack.c.b16 %v1881, %v1879
    %v2076 = vpack.c.b16 %v1884, %v1882
    %v2077 = vpack.c.b16 %v1885, %v1883
    %v2078 = vpack.c.b16 %v1888, %v1886
    %v2079 = vpack.c.b16 %v1889, %v1887
    %v2080 = vpack.c.b16 %v1892, %v1890
    %v2081 = vpack.c.b16 %v1893, %v1891
    %v2082 = vpack.c.b16 %v1896, %v1894
    %v2083 = vpack.c.b16 %v1897, %v1895
    %v2084 = vpack.c.b16 %v1900, %v1898
    %v2085 = vpack.c.b16 %v1901, %v1899
    %v2086 = vpack.c.b16 %v1904, %v1902
    %v2087 = vpack.c.b16 %v1905, %v1903
    %v2088 = vpack.c.b16 %v1908, %v1906
    %v2089 = vpack.c.b16 %v1909, %v1907
    %v2090 = vpack.c.b16 %v1912, %v1910
    %v2091 = vpack.c.b16 %v1913, %v1911
    %v2092 = vpack.c.b16 %v1916, %v1914
    %v2093 = vpack.c.b16 %v1917, %v1915
    %v2094 = vpack.c.b16 %v1920, %v1918
    %v2095 = vpack.c.b16 %v1921, %v1919
    %v2096 = vpack.c.b16 %v1924, %v1922
    %v2097 = vpack.c.b16 %v1925, %v1923
    %v2098 = vpack.c.b16 %v1928, %v1926
    %v2099 = vpack.c.b16 %v1929, %v1927
    %v2100 = vpack.c.b16 %v1932, %v1930
    %v2101 = vpack.c.b16 %v1933, %v1931
    %v2102 = vpack.c.b16 %v1936, %v1934
    %v2103 = vpack.c.b16 %v1937, %v1935
    %v2104 = vpack.c.b16 %v1940, %v1938
    %v2105 = vpack.c.b16 %v1941, %v1939
    %v2106 = vpack.c.b16 %v1944, %v1942
    %v2107 = vpack.c.b16 %v1945, %v1943
    %v2108 = vpack.c.b16 %v1948, %v1946
    %v2109 = vpack.c.b16 %v1949, %v1947
    %v2110 = vpack.c.b16 %v1952, %v1950
    %v2111 = vpack.c.b16 %v1953, %v1951
    %v2112 = vpack.c.b16 %v1956, %v1954
    %v2113 = vpack.c.b16 %v1957, %v1955
    %v2114 = vpack.c.b16 %v1960, %v1958
    %v2115 = vpack.c.b16 %v1961, %v1959
    %v2116 = vpack.c.b16 %v1964, %v1962
    %v2117 = vpack.c.b16 %v1965, %v1963
    %v2118 = vpack.c.b16 %v1968, %v1966
    %v2119 = vpack.c.b16 %v1969, %v1967
    %v2120 = vpack.c.b16 %v1972, %v1970
    %v2121 = vpack.c.b16 %v1973, %v1971
    %v2122 = vpack.c.b16 %v1976, %v1974
    %v2123 = vpack.c.b16 %v1977, %v1975
    %v2124 = vpack.c.b16 %v1980, %v1978
    %v2125 = vpack.c.b16 %v1981, %v1979
    %v2126 = vpack.c.b16 %v1984, %v1982
    %v2127 = vpack.c.b16 %v1985, %v1983
    %v2128 = vpack.c.b16 %v1988, %v1986
    %v2129 = vpack.c.b16 %v1989, %v1987
    %v2130 = vpack.c.b16 %v1992, %v1990
    %v2131 = vpack.c.b16 %v1993, %v1991
    %v2132 = vpack.c.b16 %v1996, %v1994
    %v2133 = vpack.c.b16 %v1997, %v1995
    %v2134 = vpack.c.b16 %v2000, %v1998
    %v2135 = vpack.c.b16 %v2001, %v1999
    %v2136 = vpack.c.b16 %v2004, %v2002
    %v2137 = vpack.c.b16 %v2005, %v2003
    %v2138 = vpack.c.b16 %v2008, %v2006
    %v2139 = vpack.c.b16 %v2009, %v2007
    %v2140 = vpack.c.b16 %v2012, %v2010
    %v2141 = vpack.c.b16 %v2013, %v2011
    %2270 = vmatprep.subr.bf16.mxu0 %v2029
    %2271 = vmatpush1.bf16.msra.mxu0 %v2028
    %2272 = vmatprep.subr.bf16.mxu0 %v2027
    %2273 = vmatpush1.bf16.msra.mxu0 %v2026
    %2274 = vmatprep.subr.bf16.mxu0 %v2025
    %2275 = vmatpush1.bf16.msra.mxu0 %v2024
    %2276 = vmatprep.subr.bf16.mxu0 %v2023
    %2277 = vmatpush1.bf16.msra.mxu0 %v2022
    %2278 = vmatprep.subr.bf16.mxu0 %v2021
    %2279 = vmatpush1.bf16.msra.mxu0 %v2020
    %2280 = vmatprep.subr.bf16.mxu0 %v2019
    %2281 = vmatpush1.bf16.msra.mxu0 %v2018
    %2282 = vmatprep.subr.bf16.mxu0 %v2017
    %2283 = vmatpush1.bf16.msra.mxu0 %v2016
    %2284 = vmatprep.subr.bf16.mxu0 %v2015
    %2285 = vmatpush1.bf16.msra.mxu0 %v2014
    %2286 = vmatprep.subr.bf16.mxu0 %v2045
    %2287 = vmatpush2.bf16.msra.mxu0 %v2044
    %2288 = vmatprep.subr.bf16.mxu0 %v2043
    %2289 = vmatpush2.bf16.msra.mxu0 %v2042
    %2290 = vmatprep.subr.bf16.mxu0 %v2041
    %2291 = vmatpush2.bf16.msra.mxu0 %v2040
    %2292 = vmatprep.subr.bf16.mxu0 %v2039
    %2293 = vmatpush2.bf16.msra.mxu0 %v2038
    %2294 = vmatprep.subr.bf16.mxu0 %v2037
    %2295 = vmatpush2.bf16.msra.mxu0 %v2036
    %2296 = vmatprep.subr.bf16.mxu0 %v2035
    %2297 = vmatpush2.bf16.msra.mxu0 %v2034
    %2298 = vmatprep.subr.bf16.mxu0 %v2033
    %2299 = vmatpush2.bf16.msra.mxu0 %v2032
    %2300 = vmatprep.subr.bf16.mxu0 %v2031
    %2301 = vmatpush2.bf16.msra.mxu0 %v2030
    %2302 = vmatprep.mubr.bf16.mxu0 %v1459
    %2303 = vmatmul.mubr.bf16.gmra.mxu0 %v1458
    %v2304 = vpop.f32.mrf.mxu0
    %v2305 = vadd.f32 %v1623, %v2304
    %v2306 = vpop.f32.mrf.mxu0
    %v2307 = vadd.f32 %v1627, %v2306
    %v2308 = vpop.f32.mrf.mxu0
    %v2309 = vadd.f32 %v1623, %v2308
    %v2310 = vpop.f32.mrf.mxu0
    %v2311 = vadd.f32 %v1627, %v2310
    %2312 = vmatprep.mubr.bf16.mxu0 %v1467
    %2313 = vmatmul.mubr.bf16.gmra.mxu0 %v1466
    %v2314 = vpop.f32.mrf.mxu0
    %v2315 = vadd.f32 %v1623, %v2314
    %v2316 = vpop.f32.mrf.mxu0
    %v2317 = vadd.f32 %v1627, %v2316
    %v2318 = vpop.f32.mrf.mxu0
    %v2319 = vadd.f32 %v1623, %v2318
    %v2320 = vpop.f32.mrf.mxu0
    %v2321 = vadd.f32 %v1627, %v2320
    %2322 = vmatprep.mubr.bf16.mxu0 %v1475
    %2323 = vmatmul.mubr.bf16.gmra.mxu0 %v1474
    %v2324 = vpop.f32.mrf.mxu0
    %v2325 = vadd.f32 %v1623, %v2324
    %v2326 = vpop.f32.mrf.mxu0
    %v2327 = vadd.f32 %v1627, %v2326
    %v2328 = vpop.f32.mrf.mxu0
    %v2329 = vadd.f32 %v1623, %v2328
    %v2330 = vpop.f32.mrf.mxu0
    %v2331 = vadd.f32 %v1627, %v2330
    %2332 = vmatprep.mubr.bf16.mxu0 %v1483
    %2333 = vmatmul.mubr.bf16.gmra.mxu0 %v1482
    %v2334 = vpop.f32.mrf.mxu0
    %v2335 = vadd.f32 %v1623, %v2334
    %v2336 = vpop.f32.mrf.mxu0
    %v2337 = vadd.f32 %v1627, %v2336
    %v2338 = vpop.f32.mrf.mxu0
    %v2339 = vadd.f32 %v1623, %v2338
    %v2340 = vpop.f32.mrf.mxu0
    %v2341 = vadd.f32 %v1627, %v2340
    %2342 = vdwg.mxu0
    %2343 = vmatprep.subr.bf16.mxu0 %v2061
    %2344 = vmatpush1.bf16.msra.mxu0 %v2060
    %2345 = vmatprep.subr.bf16.mxu0 %v2059
    %2346 = vmatpush1.bf16.msra.mxu0 %v2058
    %2347 = vmatprep.subr.bf16.mxu0 %v2057
    %2348 = vmatpush1.bf16.msra.mxu0 %v2056
    %2349 = vmatprep.subr.bf16.mxu0 %v2055
    %2350 = vmatpush1.bf16.msra.mxu0 %v2054
    %2351 = vmatprep.subr.bf16.mxu0 %v2053
    %2352 = vmatpush1.bf16.msra.mxu0 %v2052
    %2353 = vmatprep.subr.bf16.mxu0 %v2051
    %2354 = vmatpush1.bf16.msra.mxu0 %v2050
    %2355 = vmatprep.subr.bf16.mxu0 %v2049
    %2356 = vmatpush1.bf16.msra.mxu0 %v2048
    %2357 = vmatprep.subr.bf16.mxu0 %v2047
    %2358 = vmatpush1.bf16.msra.mxu0 %v2046
    %2359 = vmatprep.subr.bf16.mxu0 %v2077
    %2360 = vmatpush2.bf16.msra.mxu0 %v2076
    %2361 = vmatprep.subr.bf16.mxu0 %v2075
    %2362 = vmatpush2.bf16.msra.mxu0 %v2074
    %2363 = vmatprep.subr.bf16.mxu0 %v2073
    %2364 = vmatpush2.bf16.msra.mxu0 %v2072
    %2365 = vmatprep.subr.bf16.mxu0 %v2071
    %2366 = vmatpush2.bf16.msra.mxu0 %v2070
    %2367 = vmatprep.subr.bf16.mxu0 %v2069
    %2368 = vmatpush2.bf16.msra.mxu0 %v2068
    %2369 = vmatprep.subr.bf16.mxu0 %v2067
    %2370 = vmatpush2.bf16.msra.mxu0 %v2066
    %2371 = vmatprep.subr.bf16.mxu0 %v2065
    %2372 = vmatpush2.bf16.msra.mxu0 %v2064
    %2373 = vmatprep.subr.bf16.mxu0 %v2063
    %2374 = vmatpush2.bf16.msra.mxu0 %v2062
    %2375 = vmatprep.mubr.bf16.mxu0 %v1461
    %2376 = vmatmul.mubr.bf16.gmra.mxu0 %v1460
    %v2377 = vpop.f32.mrf.mxu0
    %v2378 = vadd.f32 %v2305, %v2377
    %v2379 = vpop.f32.mrf.mxu0
    %v2380 = vadd.f32 %v2307, %v2379
    %v2381 = vpop.f32.mrf.mxu0
    %v2382 = vadd.f32 %v2309, %v2381
    %v2383 = vpop.f32.mrf.mxu0
    %v2384 = vadd.f32 %v2311, %v2383
    %2385 = vmatprep.mubr.bf16.mxu0 %v1469
    %2386 = vmatmul.mubr.bf16.gmra.mxu0 %v1468
    %v2387 = vpop.f32.mrf.mxu0
    %v2388 = vadd.f32 %v2315, %v2387
    %v2389 = vpop.f32.mrf.mxu0
    %v2390 = vadd.f32 %v2317, %v2389
    %v2391 = vpop.f32.mrf.mxu0
    %v2392 = vadd.f32 %v2319, %v2391
    %v2393 = vpop.f32.mrf.mxu0
    %v2394 = vadd.f32 %v2321, %v2393
    %2395 = vmatprep.mubr.bf16.mxu0 %v1477
    %2396 = vmatmul.mubr.bf16.gmra.mxu0 %v1476
    %v2397 = vpop.f32.mrf.mxu0
    %v2398 = vadd.f32 %v2325, %v2397
    %v2399 = vpop.f32.mrf.mxu0
    %v2400 = vadd.f32 %v2327, %v2399
    %v2401 = vpop.f32.mrf.mxu0
    %v2402 = vadd.f32 %v2329, %v2401
    %v2403 = vpop.f32.mrf.mxu0
    %v2404 = vadd.f32 %v2331, %v2403
    %2405 = vmatprep.mubr.bf16.mxu0 %v1485
    %2406 = vmatmul.mubr.bf16.gmra.mxu0 %v1484
    %v2407 = vpop.f32.mrf.mxu0
    %v2408 = vadd.f32 %v2335, %v2407
    %v2409 = vpop.f32.mrf.mxu0
    %v2410 = vadd.f32 %v2337, %v2409
    %v2411 = vpop.f32.mrf.mxu0
    %v2412 = vadd.f32 %v2339, %v2411
    %v2413 = vpop.f32.mrf.mxu0
    %v2414 = vadd.f32 %v2341, %v2413
    %2415 = vdwg.mxu0
    %2416 = vmatprep.subr.bf16.mxu0 %v2093
    %2417 = vmatpush1.bf16.msra.mxu0 %v2092
    %2418 = vmatprep.subr.bf16.mxu0 %v2091
    %2419 = vmatpush1.bf16.msra.mxu0 %v2090
    %2420 = vmatprep.subr.bf16.mxu0 %v2089
    %2421 = vmatpush1.bf16.msra.mxu0 %v2088
    %2422 = vmatprep.subr.bf16.mxu0 %v2087
    %2423 = vmatpush1.bf16.msra.mxu0 %v2086
    %2424 = vmatprep.subr.bf16.mxu0 %v2085
    %2425 = vmatpush1.bf16.msra.mxu0 %v2084
    %2426 = vmatprep.subr.bf16.mxu0 %v2083
    %2427 = vmatpush1.bf16.msra.mxu0 %v2082
    %2428 = vmatprep.subr.bf16.mxu0 %v2081
    %2429 = vmatpush1.bf16.msra.mxu0 %v2080
    %2430 = vmatprep.subr.bf16.mxu0 %v2079
    %2431 = vmatpush1.bf16.msra.mxu0 %v2078
    %2432 = vmatprep.subr.bf16.mxu0 %v2109
    %2433 = vmatpush2.bf16.msra.mxu0 %v2108
    %2434 = vmatprep.subr.bf16.mxu0 %v2107
    %2435 = vmatpush2.bf16.msra.mxu0 %v2106
    %2436 = vmatprep.subr.bf16.mxu0 %v2105
    %2437 = vmatpush2.bf16.msra.mxu0 %v2104
    %2438 = vmatprep.subr.bf16.mxu0 %v2103
    %2439 = vmatpush2.bf16.msra.mxu0 %v2102
    %2440 = vmatprep.subr.bf16.mxu0 %v2101
    %2441 = vmatpush2.bf16.msra.mxu0 %v2100
    %2442 = vmatprep.subr.bf16.mxu0 %v2099
    %2443 = vmatpush2.bf16.msra.mxu0 %v2098
    %2444 = vmatprep.subr.bf16.mxu0 %v2097
    %2445 = vmatpush2.bf16.msra.mxu0 %v2096
    %2446 = vmatprep.subr.bf16.mxu0 %v2095
    %2447 = vmatpush2.bf16.msra.mxu0 %v2094
    %2448 = vmatprep.mubr.bf16.mxu0 %v1463
    %2449 = vmatmul.mubr.bf16.gmra.mxu0 %v1462
    %v2450 = vpop.f32.mrf.mxu0
    %v2451 = vadd.f32 %v2378, %v2450
    %v2452 = vpop.f32.mrf.mxu0
    %v2453 = vadd.f32 %v2380, %v2452
    %v2454 = vpop.f32.mrf.mxu0
    %v2455 = vadd.f32 %v2382, %v2454
    %v2456 = vpop.f32.mrf.mxu0
    %v2457 = vadd.f32 %v2384, %v2456
    %2458 = vmatprep.mubr.bf16.mxu0 %v1471
    %2459 = vmatmul.mubr.bf16.gmra.mxu0 %v1470
    %v2460 = vpop.f32.mrf.mxu0
    %v2461 = vadd.f32 %v2388, %v2460
    %v2462 = vpop.f32.mrf.mxu0
    %v2463 = vadd.f32 %v2390, %v2462
    %v2464 = vpop.f32.mrf.mxu0
    %v2465 = vadd.f32 %v2392, %v2464
    %v2466 = vpop.f32.mrf.mxu0
    %v2467 = vadd.f32 %v2394, %v2466
    %2468 = vmatprep.mubr.bf16.mxu0 %v1479
    %2469 = vmatmul.mubr.bf16.gmra.mxu0 %v1478
    %v2470 = vpop.f32.mrf.mxu0
    %v2471 = vadd.f32 %v2398, %v2470
    %v2472 = vpop.f32.mrf.mxu0
    %v2473 = vadd.f32 %v2400, %v2472
    %v2474 = vpop.f32.mrf.mxu0
    %v2475 = vadd.f32 %v2402, %v2474
    %v2476 = vpop.f32.mrf.mxu0
    %v2477 = vadd.f32 %v2404, %v2476
    %2478 = vmatprep.mubr.bf16.mxu0 %v1487
    %2479 = vmatmul.mubr.bf16.gmra.mxu0 %v1486
    %v2480 = vpop.f32.mrf.mxu0
    %v2481 = vadd.f32 %v2408, %v2480
    %v2482 = vpop.f32.mrf.mxu0
    %v2483 = vadd.f32 %v2410, %v2482
    %v2484 = vpop.f32.mrf.mxu0
    %v2485 = vadd.f32 %v2412, %v2484
    %v2486 = vpop.f32.mrf.mxu0
    %v2487 = vadd.f32 %v2414, %v2486
    %2488 = vdwg.mxu0
    %2489 = vmatprep.subr.bf16.mxu0 %v2125
    %2490 = vmatpush1.bf16.msra.mxu0 %v2124
    %2491 = vmatprep.subr.bf16.mxu0 %v2123
    %2492 = vmatpush1.bf16.msra.mxu0 %v2122
    %2493 = vmatprep.subr.bf16.mxu0 %v2121
    %2494 = vmatpush1.bf16.msra.mxu0 %v2120
    %2495 = vmatprep.subr.bf16.mxu0 %v2119
    %2496 = vmatpush1.bf16.msra.mxu0 %v2118
    %2497 = vmatprep.subr.bf16.mxu0 %v2117
    %2498 = vmatpush1.bf16.msra.mxu0 %v2116
    %2499 = vmatprep.subr.bf16.mxu0 %v2115
    %2500 = vmatpush1.bf16.msra.mxu0 %v2114
    %2501 = vmatprep.subr.bf16.mxu0 %v2113
    %2502 = vmatpush1.bf16.msra.mxu0 %v2112
    %2503 = vmatprep.subr.bf16.mxu0 %v2111
    %2504 = vmatpush1.bf16.msra.mxu0 %v2110
    %2505 = vmatprep.subr.bf16.mxu0 %v2141
    %2506 = vmatpush2.bf16.msra.mxu0 %v2140
    %2507 = vmatprep.subr.bf16.mxu0 %v2139
    %2508 = vmatpush2.bf16.msra.mxu0 %v2138
    %2509 = vmatprep.subr.bf16.mxu0 %v2137
    %2510 = vmatpush2.bf16.msra.mxu0 %v2136
    %2511 = vmatprep.subr.bf16.mxu0 %v2135
    %2512 = vmatpush2.bf16.msra.mxu0 %v2134
    %2513 = vmatprep.subr.bf16.mxu0 %v2133
    %2514 = vmatpush2.bf16.msra.mxu0 %v2132
    %2515 = vmatprep.subr.bf16.mxu0 %v2131
    %2516 = vmatpush2.bf16.msra.mxu0 %v2130
    %2517 = vmatprep.subr.bf16.mxu0 %v2129
    %2518 = vmatpush2.bf16.msra.mxu0 %v2128
    %2519 = vmatprep.subr.bf16.mxu0 %v2127
    %2520 = vmatpush2.bf16.msra.mxu0 %v2126
    %2521 = vmatprep.mubr.bf16.mxu0 %v1465
    %2522 = vmatmul.mubr.bf16.gmra.mxu0 %v1464
    %v2523 = vpop.f32.mrf.mxu0
    %v2524 = vadd.f32 %v2451, %v2523
    %v2525 = vpop.f32.mrf.mxu0
    %v2526 = vadd.f32 %v2453, %v2525
    %v2527 = vpop.f32.mrf.mxu0
    %v2528 = vadd.f32 %v2455, %v2527
    %v2529 = vpop.f32.mrf.mxu0
    %v2530 = vadd.f32 %v2457, %v2529
    %2531 = vmatprep.mubr.bf16.mxu0 %v1473
    %2532 = vmatmul.mubr.bf16.gmra.mxu0 %v1472
    %v2533 = vpop.f32.mrf.mxu0
    %v2534 = vadd.f32 %v2461, %v2533
    %v2535 = vpop.f32.mrf.mxu0
    %v2536 = vadd.f32 %v2463, %v2535
    %v2537 = vpop.f32.mrf.mxu0
    %v2538 = vadd.f32 %v2465, %v2537
    %v2539 = vpop.f32.mrf.mxu0
    %v2540 = vadd.f32 %v2467, %v2539
    %2541 = vmatprep.mubr.bf16.mxu0 %v1481
    %2542 = vmatmul.mubr.bf16.gmra.mxu0 %v1480
    %v2543 = vpop.f32.mrf.mxu0
    %v2544 = vadd.f32 %v2471, %v2543
    %v2545 = vpop.f32.mrf.mxu0
    %v2546 = vadd.f32 %v2473, %v2545
    %v2547 = vpop.f32.mrf.mxu0
    %v2548 = vadd.f32 %v2475, %v2547
    %v2549 = vpop.f32.mrf.mxu0
    %v2550 = vadd.f32 %v2477, %v2549
    %2551 = vmatprep.mubr.bf16.mxu0 %v1489
    %2552 = vmatmul.mubr.bf16.gmra.mxu0 %v1488
    %v2553 = vpop.f32.mrf.mxu0
    %v2554 = vadd.f32 %v2481, %v2553
    %v2555 = vpop.f32.mrf.mxu0
    %v2556 = vadd.f32 %v2483, %v2555
    %v2557 = vpop.f32.mrf.mxu0
    %v2558 = vadd.f32 %v2485, %v2557
    %v2559 = vpop.f32.mrf.mxu0
    %v2560 = vadd.f32 %v2487, %v2559
    %2561 = vdwg.mxu0
    %v2562 = vadd.f32 %v27, %v2524
    %v2563 = vadd.f32 %v28, %v2526
    %v2564 = vadd.f32 %v29, %v2528
    %v2565 = vadd.f32 %v30, %v2530
    %v2566 = vadd.f32 %v31, %v2534
    %v2567 = vadd.f32 %v32, %v2536
    %v2568 = vadd.f32 %v33, %v2538
    %v2569 = vadd.f32 %v34, %v2540
    %v2570 = vadd.f32 %v35, %v2544
    %v2571 = vadd.f32 %v36, %v2546
    %v2572 = vadd.f32 %v37, %v2548
    %v2573 = vadd.f32 %v38, %v2550
    %v2574 = vadd.f32 %v39, %v2554
    %v2575 = vadd.f32 %v40, %v2556
    %v2576 = vadd.f32 %v41, %v2558
    %v2577 = vadd.f32 %v42, %v2560
    %2578 = vst [vmem:[#allocation2] sm:$0xff] %v2562
    %2579 = vst [vmem:[#allocation2 + $0x8] sm:$0xff] %v2563
    %2580 = vst [vmem:[#allocation2 + $0x10] sm:$0xff] %v2564
    %2581 = vst [vmem:[#allocation2 + $0x18] sm:$0xff] %v2565
    %2582 = vst [vmem:[#allocation2 + $0x20] sm:$0xff] %v2566
    %2583 = vst [vmem:[#allocation2 + $0x28] sm:$0xff] %v2567
    %2584 = vst [vmem:[#allocation2 + $0x30] sm:$0xff] %v2568
    %2585 = vst [vmem:[#allocation2 + $0x38] sm:$0xff] %v2569
    %2586 = vst [vmem:[#allocation2 + $0x40] sm:$0xff] %v2570
    %2587 = vst [vmem:[#allocation2 + $0x48] sm:$0xff] %v2571
    %2588 = vst [vmem:[#allocation2 + $0x50] sm:$0xff] %v2572
    %2589 = vst [vmem:[#allocation2 + $0x58] sm:$0xff] %v2573
    %2590 = vst [vmem:[#allocation2 + $0x60] sm:$0xff] %v2574
    %2591 = vst [vmem:[#allocation2 + $0x68] sm:$0xff] %v2575
    %2592 = vst [vmem:[#allocation2 + $0x70] sm:$0xff] %v2576
    %2593 = vst [vmem:[#allocation2 + $0x78] sm:$0xff] %v2577
    // Predicated region
    $region30: #{decoder_layer.15} parent=1 // pred_check
      _
    $region31: #{decoder_layer.15} parent=1 // pred_check_branch
      %2595 = sbr.rel (0) target = $region33
    $region32: #{decoder_layer.15} parent=1 // pred_region
      %s2597 = ssub.s32 2048, 2048
      %2598 = vsyncadd [#allocation3], %s2597
      %s2599 = sshll.u32 [#allocation2], 4
      %s2600 = int_to_ptr.vmem [resolvable:$true] %s2599
      %2605 = dma.vmem_to_hbm [thread:$0]  %s2600, 2048, %s7, [#allocation3], 256, 256, 16
    $region33: #{decoder_layer.15} parent=1 // pred_fallthru
      _
    // Predicated region
    $region34: #{decoder_layer.15} parent=1 // pred_check
      _
    $region35: #{decoder_layer.15} parent=1 // pred_check_branch
      %2607 = sbr.rel (0) target = $region37
    $region36: #{decoder_layer.15} parent=1 // pred_region
      %2608 = dma.done [#allocation3], 2048
    $region37: #{decoder_layer.15} parent=1 // pred_fallthru
      _
    %2609 = vsyncpa [#allocation3], 1

</llo_original>
